<compile_context>
chip_gen: v5e
topology: v5e:2x2
jax: 0.10.0
libtpu: 0.0.40
codegen_flags: <defaults>
</compile_context>

<pallas_src>
import functools

import jax
import jax.numpy as jnp
from jax.experimental import pallas as pl
from jax.experimental.pallas import tpu as pltpu


# --------------------------------------------------------------------------
# Helpers
# --------------------------------------------------------------------------
def _round_up(x, m):
    return (x + m - 1) // m * m


def _vmem_limit_bytes():
    """Generation-keyed scoped-VMEM limit: ~85% of physical VMEM, capped."""
    try:
        cap = int(pltpu.get_tpu_info().vmem_capacity_bytes)
    except Exception:
        cap = 64 * 1024 * 1024          # conservative fallback (v7x physical)
    return max(32 * 1024 * 1024, min(int(cap * 0.85), 110 * 1024 * 1024))


def fold_bn(gamma, beta, mean, var, eps=1e-5):
    scale = gamma / jnp.sqrt(var + eps)
    bias = beta - mean * scale
    return scale, bias


# --------------------------------------------------------------------------
# Pallas kernel: whole BasicBlock for one batch image per grid step
# --------------------------------------------------------------------------
def _basic_block_kernel(*refs, Ho, Wo, stride, proj):
    if proj:
        (x_ref, w1_ref, b1_ref, w2_ref, b2_ref, ws_ref, bs_ref,
         o_ref, y1p_ref) = refs
    else:
        (x_ref, w1_ref, b1_ref, w2_ref, b2_ref, o_ref, y1p_ref) = refs

    m = Ho * Wo
    cp = x_ref.shape[-1]           # padded input channels (multiple of 128)
    ncp = o_ref.shape[-1]          # padded output channels (multiple of 128)

    def x_window(di, dj):
        # shifted (and possibly strided) window of the spatially padded input
        if stride == 1:
            return x_ref[0, di:di + Ho, dj:dj + Wo, :]
        return x_ref[0, pl.ds(di, Ho, stride=stride),
                     pl.ds(dj, Wo, stride=stride), :]

    # ---- conv1 (3x3, stride) + BN1(folded) + LeakyReLU(0.1) ---------------
    acc = jnp.zeros((m, ncp), jnp.float32)
    for t in range(9):
        di, dj = t // 3, t % 3
        patch = x_window(di, dj).reshape(m, cp)          # bf16, lane-dense
        acc = acc + jnp.dot(patch, w1_ref[t],
                            preferred_element_type=jnp.float32)
    acc = acc + b1_ref[...]
    y1 = jnp.where(acc > 0, acc, 0.1 * acc)              # LeakyReLU(0.1)

    # Stage spatially padded y1 in VMEM scratch (never round-trips HBM).
    y1p_ref[...] = jnp.zeros(y1p_ref.shape, y1p_ref.dtype)
    y1p_ref[1:1 + Ho, 1:1 + Wo, :] = (
        y1.reshape(Ho, Wo, ncp).astype(y1p_ref.dtype))

    # ---- conv2 (3x3, stride 1) + BN2(folded) -------------------------------
    acc = jnp.zeros((m, ncp), jnp.float32)
    for t in range(9):
        di, dj = t // 3, t % 3
        patch = y1p_ref[di:di + Ho, dj:dj + Wo, :].reshape(m, ncp)
        acc = acc + jnp.dot(patch, w2_ref[t],
                            preferred_element_type=jnp.float32)
    acc = acc + b2_ref[...]

    # ---- shortcut -----------------------------------------------------------
    if proj:
        # 1x1 conv (BN folded) on the original-x samples (center-tap window).
        xs = x_window(1, 1).reshape(m, cp)
        acc = acc + jnp.dot(xs, ws_ref[...],
                            preferred_element_type=jnp.float32)
        acc = acc + bs_ref[...]
    else:
        # identity shortcut (stride == 1, cp == ncp by construction)
        res = x_ref[0, 1:1 + Ho, 1:1 + Wo, :].reshape(m, ncp)
        acc = acc + res.astype(jnp.float32)

    out = jnp.where(acc > 0, acc, 0.1 * acc)              # LeakyReLU(0.1)
    o_ref[...] = out.reshape(1, Ho, Wo, ncp).astype(o_ref.dtype)


# --------------------------------------------------------------------------
# Wrapper: layout, BN folding, pallas_call
# --------------------------------------------------------------------------
def basic_block_forward(x_nchw, batch_repr, params, stride=1):
    # SelectGate (phase 'main_network') is the identity; batch_repr is unused.
    del batch_repr
    N, Cin, H, W = x_nchw.shape
    Cout = params["w1"].shape[0]
    proj = "ws" in params
    assert proj == (stride != 1 or Cin != Cout)

    Ho = (H + 2 - 3) // stride + 1
    Wo = (W + 2 - 3) // stride + 1
    Hp, Wp = H + 2, W + 2
    Hop, Wop = Ho + 2, Wo + 2

    Ncp = _round_up(Cout, 128)      # lane-dense output channels
    Cp = _round_up(Cin, 128)        # lane-dense input channels

    # NCHW -> NHWC; spatial halo pad + channel pad in one copy; bf16 operands.
    x = jnp.transpose(x_nchw, (0, 2, 3, 1))
    xp = jnp.pad(x, ((0, 0), (1, 1), (1, 1), (0, Cp - Cin))).astype(jnp.bfloat16)

    # Fold BN scales into conv weights on the host (tiny tensors).
    s1, b1 = fold_bn(*params["bn1"])
    s2, b2 = fold_bn(*params["bn2"])
    w1 = jnp.transpose(params["w1"], (2, 3, 1, 0)).reshape(9, Cin, Cout) * s1
    w2 = jnp.transpose(params["w2"], (2, 3, 1, 0)).reshape(9, Cout, Cout) * s2
    w1 = jnp.pad(w1, ((0, 0), (0, Cp - Cin), (0, Ncp - Cout))).astype(jnp.bfloat16)
    w2 = jnp.pad(w2, ((0, 0), (0, Ncp - Cout), (0, Ncp - Cout))).astype(jnp.bfloat16)
    b1p = jnp.pad(b1, (0, Ncp - Cout)).reshape(1, Ncp).astype(jnp.float32)
    b2p = jnp.pad(b2, (0, Ncp - Cout)).reshape(1, Ncp).astype(jnp.float32)

    args = [xp, w1, b1p, w2, b2p]
    in_specs = [
        pl.BlockSpec((1, Hp, Wp, Cp), lambda n: (n, 0, 0, 0)),   # one image
        pl.BlockSpec((9, Cp, Ncp), lambda n: (0, 0, 0)),          # resident w1
        pl.BlockSpec((1, Ncp), lambda n: (0, 0)),
        pl.BlockSpec((9, Ncp, Ncp), lambda n: (0, 0, 0)),         # resident w2
        pl.BlockSpec((1, Ncp), lambda n: (0, 0)),
    ]
    if proj:
        ss, bs = fold_bn(*params["bns"])
        ws = params["ws"][:, :, 0, 0].T * ss                      # (Cin, Cout)
        ws = jnp.pad(ws, ((0, Cp - Cin), (0, Ncp - Cout))).astype(jnp.bfloat16)
        bsp = jnp.pad(bs, (0, Ncp - Cout)).reshape(1, Ncp).astype(jnp.float32)
        args += [ws, bsp]
        in_specs += [pl.BlockSpec((Cp, Ncp), lambda n: (0, 0)),
                     pl.BlockSpec((1, Ncp), lambda n: (0, 0))]

    kernel = functools.partial(_basic_block_kernel, Ho=Ho, Wo=Wo,
                               stride=stride, proj=proj)

    flops = 2 * N * Ho * Wo * (9 * Cp * Ncp + 9 * Ncp * Ncp
                               + (Cp * Ncp if proj else 0))
    bytes_accessed = (N * Hp * Wp * Cp * 2 + 9 * Cp * Ncp * 2
                      + 9 * Ncp * Ncp * 2 + (Cp * Ncp * 2 if proj else 0)
                      + 2 * Ncp * 4 + N * Ho * Wo * Ncp * 4)

    out = pl.pallas_call(
        kernel,
        out_shape=jax.ShapeDtypeStruct((N, Ho, Wo, Ncp), jnp.float32),
        grid_spec=pltpu.PrefetchScalarGridSpec(
            num_scalar_prefetch=0,
            grid=(N,),
            in_specs=in_specs,
            out_specs=pl.BlockSpec((1, Ho, Wo, Ncp), lambda n: (n, 0, 0, 0)),
            scratch_shapes=[pltpu.VMEM((Hop, Wop, Ncp), jnp.bfloat16)],
        ),
        compiler_params=pltpu.CompilerParams(
            dimension_semantics=("parallel",),
            vmem_limit_bytes=_vmem_limit_bytes()),
        cost_estimate=pl.CostEstimate(flops=flops, transcendentals=0,
                                      bytes_accessed=bytes_accessed),
    )(*args)

    out = out[..., :Cout]                       # drop channel padding
    return jnp.transpose(out, (0, 3, 1, 2))     # NHWC -> NCHW (f32)


# --------------------------------------------------------------------------
# Pure-JAX reference (lax conv, f32) for correctness check
# --------------------------------------------------------------------------
def ref_forward(x, params, stride=1):
    def conv(x, w, s, pad):
        return jax.lax.conv_general_dilated(
            x, w, (s, s), ((pad, pad), (pad, pad)),
            dimension_numbers=("NCHW", "OIHW", "NCHW"))

    def bn(x, g, b, m, v, eps=1e-5):
        sh = (1, -1, 1, 1)
        return (x - m.reshape(sh)) / jnp.sqrt(v.reshape(sh) + eps) \
            * g.reshape(sh) + b.reshape(sh)

    def lrelu(x):
        return jnp.where(x > 0, x, 0.1 * x)

    if "ws" in params:
        idt = bn(conv(x, params["ws"], stride, 0), *params["bns"])
    else:
        idt = x
    out = lrelu(bn(conv(x, params["w1"], stride, 1), *params["bn1"]))
    out = bn(conv(out, params["w2"], 1, 1), *params["bn2"])
    return lrelu(out + idt)


# --------------------------------------------------------------------------
def make_params(key, cin, cout, projection):
    ks = jax.random.split(key, 6)

    def bn_params(k):
        k1, k2, k3, k4 = jax.random.split(k, 4)
        gamma = 1.0 + 0.1 * jax.random.normal(k1, (cout,), jnp.float32)
        beta = 0.1 * jax.random.normal(k2, (cout,), jnp.float32)
        mean = 0.1 * jax.random.normal(k3, (cout,), jnp.float32)
        var = jnp.abs(jax.random.normal(k4, (cout,), jnp.float32)) + 0.5
        return (gamma, beta, mean, var)

    params = {
        "w1": 0.1 * jax.random.normal(ks[0], (cout, cin, 3, 3), jnp.float32),
        "bn1": bn_params(ks[1]),
        "w2": 0.1 * jax.random.normal(ks[2], (cout, cout, 3, 3), jnp.float32),
        "bn2": bn_params(ks[3]),
    }
    if projection:
        params["ws"] = 0.1 * jax.random.normal(ks[4], (cout, cin, 1, 1),
                                               jnp.float32)
        params["bns"] = bn_params(ks[5])
    return params


if __name__ == "__main__":
    key = jax.random.PRNGKey(0)
    kx, kb, kp1, kp2 = jax.random.split(key, 4)

    batch_repr = jax.random.normal(kb, (1, 64, 1, 1), jnp.float32)  # unused

    # ---- projection-shortcut path (Cin != Cout, stride 1) -------------------
    N, Cin, Cout, H, W, stride = 2, 4, 8, 16, 16, 1
    x = jax.random.normal(kx, (N, Cin, H, W), jnp.float32)          # NCHW
    params = make_params(kp1, Cin, Cout, projection=True)

    out = jax.block_until_ready(basic_block_forward(x, batch_repr, params,
                                                    stride=stride))
    ref = jax.block_until_ready(ref_forward(x, params, stride=stride))
    assert out.shape == ref.shape == (N, Cout, H // stride, W // stride)
    # tolerance reflects bf16 matmul operands (f32 accumulation / epilogue)
    assert jnp.allclose(out, ref, rtol=2e-2, atol=2e-2), \
        float(jnp.max(jnp.abs(out - ref)))

    # ---- identity-shortcut path (Cin == Cout, stride 1) ---------------------
    params_id = make_params(kp2, Cout, Cout, projection=False)
    x2 = jax.random.normal(kx, (N, Cout, H, W), jnp.float32)
    out2 = jax.block_until_ready(basic_block_forward(x2, batch_repr, params_id,
                                                     stride=1))
    ref2 = jax.block_until_ready(ref_forward(x2, params_id, stride=1))
    assert out2.shape == ref2.shape == (N, Cout, H, W)
    assert jnp.allclose(out2, ref2, rtol=2e-2, atol=2e-2), \
        float(jnp.max(jnp.abs(out2 - ref2)))

    print("KERNEL_OK")
</pallas_src>

<mosaic_0001>
module attributes {stable_mosaic.version = 11 : i64} {
  func.func @_basic_block_kernel(%arg0: i32, %arg1: memref<1x18x18x128xbf16, #tpu.memory_space<vmem>>, %arg2: memref<9x128x128xbf16, #tpu.memory_space<vmem>>, %arg3: memref<1x128xf32, #tpu.memory_space<vmem>>, %arg4: memref<9x128x128xbf16, #tpu.memory_space<vmem>>, %arg5: memref<1x128xf32, #tpu.memory_space<vmem>>, %arg6: memref<128x128xbf16, #tpu.memory_space<vmem>>, %arg7: memref<1x128xf32, #tpu.memory_space<vmem>>, %arg8: memref<1x16x16x128xf32, #tpu.memory_space<vmem>>, %arg9: memref<18x18x128xbf16, #tpu.memory_space<vmem>>) attributes {dimension_semantics = [#tpu.dimension_semantics<parallel>], iteration_bounds = array<i64: 2>, scalar_prefetch = 0 : i64, scratch_operands = 1 : i64, tpu.core_type = #tpu.core_type<tc>, window_params = [{transform_indices = @transform_0, window_bounds = array<i64: 1, 18, 18, 128>}, {pipeline_mode = #tpu.pipeline_mode<synchronous>, transform_indices = @transform_1, window_bounds = array<i64: 9, 128, 128>}, {pipeline_mode = #tpu.pipeline_mode<synchronous>, transform_indices = @transform_2, window_bounds = array<i64: 1, 128>}, {pipeline_mode = #tpu.pipeline_mode<synchronous>, transform_indices = @transform_3, window_bounds = array<i64: 9, 128, 128>}, {pipeline_mode = #tpu.pipeline_mode<synchronous>, transform_indices = @transform_4, window_bounds = array<i64: 1, 128>}, {pipeline_mode = #tpu.pipeline_mode<synchronous>, transform_indices = @transform_5, window_bounds = array<i64: 128, 128>}, {pipeline_mode = #tpu.pipeline_mode<synchronous>, transform_indices = @transform_6, window_bounds = array<i64: 1, 128>}, {transform_indices = @transform_7, window_bounds = array<i64: 1, 16, 16, 128>}]} {
    %cst = arith.constant 0.000000e+00 : f32
    %0 = vector.broadcast %cst : f32 to vector<256x128xf32>
    %c0 = arith.constant 0 : index
    %c0_0 = arith.constant 0 : index
    %c0_1 = arith.constant 0 : index
    %c0_2 = arith.constant 0 : index
    %1 = vector.load %arg1[%c0, %c0_0, %c0_1, %c0_2] : memref<1x18x18x128xbf16, #tpu.memory_space<vmem>>, vector<1x16x16x128xbf16>
    %2 = vector.shape_cast %1 : vector<1x16x16x128xbf16> to vector<16x16x128xbf16>
    %3 = vector.shape_cast %2 : vector<16x16x128xbf16> to vector<256x128xbf16>
    %c0_3 = arith.constant 0 : index
    %c0_4 = arith.constant 0 : index
    %c0_5 = arith.constant 0 : index
    %4 = vector.load %arg2[%c0_3, %c0_4, %c0_5] : memref<9x128x128xbf16, #tpu.memory_space<vmem>>, vector<1x128x128xbf16>
    %5 = vector.shape_cast %4 : vector<1x128x128xbf16> to vector<128x128xbf16>
    %cst_6 = arith.constant dense<0.000000e+00> : vector<256x128xf32>
    %6 = tpu.matmul %3, %5, %cst_6 {dimension_numbers = #tpu.dot_dimension_numbers<[1], [0], [0], [1], [0, 0, 1, 1], [], []>} : vector<256x128xbf16>, vector<128x128xbf16>, vector<256x128xf32> -> vector<256x128xf32>
    %7 = arith.addf %0, %6 : vector<256x128xf32>
    %c0_7 = arith.constant 0 : index
    %c0_8 = arith.constant 0 : index
    %c1 = arith.constant 1 : index
    %c0_9 = arith.constant 0 : index
    %8 = vector.load %arg1[%c0_7, %c0_8, %c1, %c0_9] : memref<1x18x18x128xbf16, #tpu.memory_space<vmem>>, vector<1x16x16x128xbf16>
    %9 = vector.shape_cast %8 : vector<1x16x16x128xbf16> to vector<16x16x128xbf16>
    %10 = vector.shape_cast %9 : vector<16x16x128xbf16> to vector<256x128xbf16>
    %c1_10 = arith.constant 1 : index
    %c0_11 = arith.constant 0 : index
    %c0_12 = arith.constant 0 : index
    %11 = vector.load %arg2[%c1_10, %c0_11, %c0_12] : memref<9x128x128xbf16, #tpu.memory_space<vmem>>, vector<1x128x128xbf16>
    %12 = vector.shape_cast %11 : vector<1x128x128xbf16> to vector<128x128xbf16>
    %cst_13 = arith.constant dense<0.000000e+00> : vector<256x128xf32>
    %13 = tpu.matmul %10, %12, %cst_13 {dimension_numbers = #tpu.dot_dimension_numbers<[1], [0], [0], [1], [0, 0, 1, 1], [], []>} : vector<256x128xbf16>, vector<128x128xbf16>, vector<256x128xf32> -> vector<256x128xf32>
    %14 = arith.addf %7, %13 : vector<256x128xf32>
    %c0_14 = arith.constant 0 : index
    %c0_15 = arith.constant 0 : index
    %c2 = arith.constant 2 : index
    %c0_16 = arith.constant 0 : index
    %15 = vector.load %arg1[%c0_14, %c0_15, %c2, %c0_16] : memref<1x18x18x128xbf16, #tpu.memory_space<vmem>>, vector<1x16x16x128xbf16>
    %16 = vector.shape_cast %15 : vector<1x16x16x128xbf16> to vector<16x16x128xbf16>
    %17 = vector.shape_cast %16 : vector<16x16x128xbf16> to vector<256x128xbf16>
    %c2_17 = arith.constant 2 : index
    %c0_18 = arith.constant 0 : index
    %c0_19 = arith.constant 0 : index
    %18 = vector.load %arg2[%c2_17, %c0_18, %c0_19] : memref<9x128x128xbf16, #tpu.memory_space<vmem>>, vector<1x128x128xbf16>
    %19 = vector.shape_cast %18 : vector<1x128x128xbf16> to vector<128x128xbf16>
    %cst_20 = arith.constant dense<0.000000e+00> : vector<256x128xf32>
    %20 = tpu.matmul %17, %19, %cst_20 {dimension_numbers = #tpu.dot_dimension_numbers<[1], [0], [0], [1], [0, 0, 1, 1], [], []>} : vector<256x128xbf16>, vector<128x128xbf16>, vector<256x128xf32> -> vector<256x128xf32>
    %21 = arith.addf %14, %20 : vector<256x128xf32>
    %c0_21 = arith.constant 0 : index
    %c1_22 = arith.constant 1 : index
    %c0_23 = arith.constant 0 : index
    %c0_24 = arith.constant 0 : index
    %22 = vector.load %arg1[%c0_21, %c1_22, %c0_23, %c0_24] : memref<1x18x18x128xbf16, #tpu.memory_space<vmem>>, vector<1x16x16x128xbf16>
    %23 = vector.shape_cast %22 : vector<1x16x16x128xbf16> to vector<16x16x128xbf16>
    %24 = vector.shape_cast %23 : vector<16x16x128xbf16> to vector<256x128xbf16>
    %c3 = arith.constant 3 : index
    %c0_25 = arith.constant 0 : index
    %c0_26 = arith.constant 0 : index
    %25 = vector.load %arg2[%c3, %c0_25, %c0_26] : memref<9x128x128xbf16, #tpu.memory_space<vmem>>, vector<1x128x128xbf16>
    %26 = vector.shape_cast %25 : vector<1x128x128xbf16> to vector<128x128xbf16>
    %cst_27 = arith.constant dense<0.000000e+00> : vector<256x128xf32>
    %27 = tpu.matmul %24, %26, %cst_27 {dimension_numbers = #tpu.dot_dimension_numbers<[1], [0], [0], [1], [0, 0, 1, 1], [], []>} : vector<256x128xbf16>, vector<128x128xbf16>, vector<256x128xf32> -> vector<256x128xf32>
    %28 = arith.addf %21, %27 : vector<256x128xf32>
    %c0_28 = arith.constant 0 : index
    %c1_29 = arith.constant 1 : index
    %c1_30 = arith.constant 1 : index
    %c0_31 = arith.constant 0 : index
    %29 = vector.load %arg1[%c0_28, %c1_29, %c1_30, %c0_31] : memref<1x18x18x128xbf16, #tpu.memory_space<vmem>>, vector<1x16x16x128xbf16>
    %30 = vector.shape_cast %29 : vector<1x16x16x128xbf16> to vector<16x16x128xbf16>
    %31 = vector.shape_cast %30 : vector<16x16x128xbf16> to vector<256x128xbf16>
    %c4 = arith.constant 4 : index
    %c0_32 = arith.constant 0 : index
    %c0_33 = arith.constant 0 : index
    %32 = vector.load %arg2[%c4, %c0_32, %c0_33] : memref<9x128x128xbf16, #tpu.memory_space<vmem>>, vector<1x128x128xbf16>
    %33 = vector.shape_cast %32 : vector<1x128x128xbf16> to vector<128x128xbf16>
    %cst_34 = arith.constant dense<0.000000e+00> : vector<256x128xf32>
    %34 = tpu.matmul %31, %33, %cst_34 {dimension_numbers = #tpu.dot_dimension_numbers<[1], [0], [0], [1], [0, 0, 1, 1], [], []>} : vector<256x128xbf16>, vector<128x128xbf16>, vector<256x128xf32> -> vector<256x128xf32>
    %35 = arith.addf %28, %34 : vector<256x128xf32>
    %c0_35 = arith.constant 0 : index
    %c1_36 = arith.constant 1 : index
    %c2_37 = arith.constant 2 : index
    %c0_38 = arith.constant 0 : index
    %36 = vector.load %arg1[%c0_35, %c1_36, %c2_37, %c0_38] : memref<1x18x18x128xbf16, #tpu.memory_space<vmem>>, vector<1x16x16x128xbf16>
    %37 = vector.shape_cast %36 : vector<1x16x16x128xbf16> to vector<16x16x128xbf16>
    %38 = vector.shape_cast %37 : vector<16x16x128xbf16> to vector<256x128xbf16>
    %c5 = arith.constant 5 : index
    %c0_39 = arith.constant 0 : index
    %c0_40 = arith.constant 0 : index
    %39 = vector.load %arg2[%c5, %c0_39, %c0_40] : memref<9x128x128xbf16, #tpu.memory_space<vmem>>, vector<1x128x128xbf16>
    %40 = vector.shape_cast %39 : vector<1x128x128xbf16> to vector<128x128xbf16>
    %cst_41 = arith.constant dense<0.000000e+00> : vector<256x128xf32>
    %41 = tpu.matmul %38, %40, %cst_41 {dimension_numbers = #tpu.dot_dimension_numbers<[1], [0], [0], [1], [0, 0, 1, 1], [], []>} : vector<256x128xbf16>, vector<128x128xbf16>, vector<256x128xf32> -> vector<256x128xf32>
    %42 = arith.addf %35, %41 : vector<256x128xf32>
    %c0_42 = arith.constant 0 : index
    %c2_43 = arith.constant 2 : index
    %c0_44 = arith.constant 0 : index
    %c0_45 = arith.constant 0 : index
    %43 = vector.load %arg1[%c0_42, %c2_43, %c0_44, %c0_45] : memref<1x18x18x128xbf16, #tpu.memory_space<vmem>>, vector<1x16x16x128xbf16>
    %44 = vector.shape_cast %43 : vector<1x16x16x128xbf16> to vector<16x16x128xbf16>
    %45 = vector.shape_cast %44 : vector<16x16x128xbf16> to vector<256x128xbf16>
    %c6 = arith.constant 6 : index
    %c0_46 = arith.constant 0 : index
    %c0_47 = arith.constant 0 : index
    %46 = vector.load %arg2[%c6, %c0_46, %c0_47] : memref<9x128x128xbf16, #tpu.memory_space<vmem>>, vector<1x128x128xbf16>
    %47 = vector.shape_cast %46 : vector<1x128x128xbf16> to vector<128x128xbf16>
    %cst_48 = arith.constant dense<0.000000e+00> : vector<256x128xf32>
    %48 = tpu.matmul %45, %47, %cst_48 {dimension_numbers = #tpu.dot_dimension_numbers<[1], [0], [0], [1], [0, 0, 1, 1], [], []>} : vector<256x128xbf16>, vector<128x128xbf16>, vector<256x128xf32> -> vector<256x128xf32>
    %49 = arith.addf %42, %48 : vector<256x128xf32>
    %c0_49 = arith.constant 0 : index
    %c2_50 = arith.constant 2 : index
    %c1_51 = arith.constant 1 : index
    %c0_52 = arith.constant 0 : index
    %50 = vector.load %arg1[%c0_49, %c2_50, %c1_51, %c0_52] : memref<1x18x18x128xbf16, #tpu.memory_space<vmem>>, vector<1x16x16x128xbf16>
    %51 = vector.shape_cast %50 : vector<1x16x16x128xbf16> to vector<16x16x128xbf16>
    %52 = vector.shape_cast %51 : vector<16x16x128xbf16> to vector<256x128xbf16>
    %c7 = arith.constant 7 : index
    %c0_53 = arith.constant 0 : index
    %c0_54 = arith.constant 0 : index
    %53 = vector.load %arg2[%c7, %c0_53, %c0_54] : memref<9x128x128xbf16, #tpu.memory_space<vmem>>, vector<1x128x128xbf16>
    %54 = vector.shape_cast %53 : vector<1x128x128xbf16> to vector<128x128xbf16>
    %cst_55 = arith.constant dense<0.000000e+00> : vector<256x128xf32>
    %55 = tpu.matmul %52, %54, %cst_55 {dimension_numbers = #tpu.dot_dimension_numbers<[1], [0], [0], [1], [0, 0, 1, 1], [], []>} : vector<256x128xbf16>, vector<128x128xbf16>, vector<256x128xf32> -> vector<256x128xf32>
    %56 = arith.addf %49, %55 : vector<256x128xf32>
    %c0_56 = arith.constant 0 : index
    %c2_57 = arith.constant 2 : index
    %c2_58 = arith.constant 2 : index
    %c0_59 = arith.constant 0 : index
    %57 = vector.load %arg1[%c0_56, %c2_57, %c2_58, %c0_59] : memref<1x18x18x128xbf16, #tpu.memory_space<vmem>>, vector<1x16x16x128xbf16>
    %58 = vector.shape_cast %57 : vector<1x16x16x128xbf16> to vector<16x16x128xbf16>
    %59 = vector.shape_cast %58 : vector<16x16x128xbf16> to vector<256x128xbf16>
    %c8 = arith.constant 8 : index
    %c0_60 = arith.constant 0 : index
    %c0_61 = arith.constant 0 : index
    %60 = vector.load %arg2[%c8, %c0_60, %c0_61] : memref<9x128x128xbf16, #tpu.memory_space<vmem>>, vector<1x128x128xbf16>
    %61 = vector.shape_cast %60 : vector<1x128x128xbf16> to vector<128x128xbf16>
    %cst_62 = arith.constant dense<0.000000e+00> : vector<256x128xf32>
    %62 = tpu.matmul %59, %61, %cst_62 {dimension_numbers = #tpu.dot_dimension_numbers<[1], [0], [0], [1], [0, 0, 1, 1], [], []>} : vector<256x128xbf16>, vector<128x128xbf16>, vector<256x128xf32> -> vector<256x128xf32>
    %63 = arith.addf %56, %62 : vector<256x128xf32>
    %c0_63 = arith.constant 0 : index
    %c0_64 = arith.constant 0 : index
    %64 = vector.load %arg3[%c0_63, %c0_64] : memref<1x128xf32, #tpu.memory_space<vmem>>, vector<1x128xf32>
    %65 = vector.broadcast %64 : vector<1x128xf32> to vector<256x128xf32>
    %66 = arith.addf %63, %65 : vector<256x128xf32>
    %cst_65 = arith.constant 0.000000e+00 : f32
    %67 = vector.broadcast %cst_65 : f32 to vector<256x128xf32>
    %68 = arith.cmpf ogt, %66, %67 : vector<256x128xf32>
    %cst_66 = arith.constant 1.000000e-01 : f32
    %69 = vector.broadcast %cst_66 : f32 to vector<256x128xf32>
    %70 = arith.mulf %69, %66 : vector<256x128xf32>
    %71 = arith.select %68, %66, %70 : vector<256x128xi1>, vector<256x128xf32>
    %cst_67 = arith.constant 0.000000e+00 : bf16
    %72 = vector.broadcast %cst_67 : bf16 to vector<18x18x128xbf16>
    %c0_68 = arith.constant 0 : index
    %c0_69 = arith.constant 0 : index
    %c0_70 = arith.constant 0 : index
    %73 = vector.load %arg9[%c0_68, %c0_69, %c0_70] : memref<18x18x128xbf16, #tpu.memory_space<vmem>>, vector<18x18x128xbf16>
    tpu.vector_store %arg9[%c0_68, %c0_69, %c0_70], %72 {strides = array<i32>} : memref<18x18x128xbf16, #tpu.memory_space<vmem>>, vector<18x18x128xbf16>,
    %74 = vector.shape_cast %71 : vector<256x128xf32> to vector<16x16x128xf32>
    %75 = arith.truncf %74 : vector<16x16x128xf32> to vector<16x16x128xbf16>
    %c1_71 = arith.constant 1 : index
    %c1_72 = arith.constant 1 : index
    %c0_73 = arith.constant 0 : index
    %76 = vector.load %arg9[%c1_71, %c1_72, %c0_73] : memref<18x18x128xbf16, #tpu.memory_space<vmem>>, vector<16x16x128xbf16>
    tpu.vector_store %arg9[%c1_71, %c1_72, %c0_73], %75 {strides = array<i32>} : memref<18x18x128xbf16, #tpu.memory_space<vmem>>, vector<16x16x128xbf16>,
    %cst_74 = arith.constant 0.000000e+00 : f32
    %77 = vector.broadcast %cst_74 : f32 to vector<256x128xf32>
    %c0_75 = arith.constant 0 : index
    %c0_76 = arith.constant 0 : index
    %c0_77 = arith.constant 0 : index
    %78 = vector.load %arg9[%c0_75, %c0_76, %c0_77] : memref<18x18x128xbf16, #tpu.memory_space<vmem>>, vector<16x16x128xbf16>
    %79 = vector.shape_cast %78 : vector<16x16x128xbf16> to vector<256x128xbf16>
    %c0_78 = arith.constant 0 : index
    %c0_79 = arith.constant 0 : index
    %c0_80 = arith.constant 0 : index
    %80 = vector.load %arg4[%c0_78, %c0_79, %c0_80] : memref<9x128x128xbf16, #tpu.memory_space<vmem>>, vector<1x128x128xbf16>
    %81 = vector.shape_cast %80 : vector<1x128x128xbf16> to vector<128x128xbf16>
    %cst_81 = arith.constant dense<0.000000e+00> : vector<256x128xf32>
    %82 = tpu.matmul %79, %81, %cst_81 {dimension_numbers = #tpu.dot_dimension_numbers<[1], [0], [0], [1], [0, 0, 1, 1], [], []>} : vector<256x128xbf16>, vector<128x128xbf16>, vector<256x128xf32> -> vector<256x128xf32>
    %83 = arith.addf %77, %82 : vector<256x128xf32>
    %c0_82 = arith.constant 0 : index
    %c1_83 = arith.constant 1 : index
    %c0_84 = arith.constant 0 : index
    %84 = vector.load %arg9[%c0_82, %c1_83, %c0_84] : memref<18x18x128xbf16, #tpu.memory_space<vmem>>, vector<16x16x128xbf16>
    %85 = vector.shape_cast %84 : vector<16x16x128xbf16> to vector<256x128xbf16>
    %c1_85 = arith.constant 1 : index
    %c0_86 = arith.constant 0 : index
    %c0_87 = arith.constant 0 : index
    %86 = vector.load %arg4[%c1_85, %c0_86, %c0_87] : memref<9x128x128xbf16, #tpu.memory_space<vmem>>, vector<1x128x128xbf16>
    %87 = vector.shape_cast %86 : vector<1x128x128xbf16> to vector<128x128xbf16>
    %cst_88 = arith.constant dense<0.000000e+00> : vector<256x128xf32>
    %88 = tpu.matmul %85, %87, %cst_88 {dimension_numbers = #tpu.dot_dimension_numbers<[1], [0], [0], [1], [0, 0, 1, 1], [], []>} : vector<256x128xbf16>, vector<128x128xbf16>, vector<256x128xf32> -> vector<256x128xf32>
    %89 = arith.addf %83, %88 : vector<256x128xf32>
    %c0_89 = arith.constant 0 : index
    %c2_90 = arith.constant 2 : index
    %c0_91 = arith.constant 0 : index
    %90 = vector.load %arg9[%c0_89, %c2_90, %c0_91] : memref<18x18x128xbf16, #tpu.memory_space<vmem>>, vector<16x16x128xbf16>
    %91 = vector.shape_cast %90 : vector<16x16x128xbf16> to vector<256x128xbf16>
    %c2_92 = arith.constant 2 : index
    %c0_93 = arith.constant 0 : index
    %c0_94 = arith.constant 0 : index
    %92 = vector.load %arg4[%c2_92, %c0_93, %c0_94] : memref<9x128x128xbf16, #tpu.memory_space<vmem>>, vector<1x128x128xbf16>
    %93 = vector.shape_cast %92 : vector<1x128x128xbf16> to vector<128x128xbf16>
    %cst_95 = arith.constant dense<0.000000e+00> : vector<256x128xf32>
    %94 = tpu.matmul %91, %93, %cst_95 {dimension_numbers = #tpu.dot_dimension_numbers<[1], [0], [0], [1], [0, 0, 1, 1], [], []>} : vector<256x128xbf16>, vector<128x128xbf16>, vector<256x128xf32> -> vector<256x128xf32>
    %95 = arith.addf %89, %94 : vector<256x128xf32>
    %c1_96 = arith.constant 1 : index
    %c0_97 = arith.constant 0 : index
    %c0_98 = arith.constant 0 : index
    %96 = vector.load %arg9[%c1_96, %c0_97, %c0_98] : memref<18x18x128xbf16, #tpu.memory_space<vmem>>, vector<16x16x128xbf16>
    %97 = vector.shape_cast %96 : vector<16x16x128xbf16> to vector<256x128xbf16>
    %c3_99 = arith.constant 3 : index
    %c0_100 = arith.constant 0 : index
    %c0_101 = arith.constant 0 : index
    %98 = vector.load %arg4[%c3_99, %c0_100, %c0_101] : memref<9x128x128xbf16, #tpu.memory_space<vmem>>, vector<1x128x128xbf16>
    %99 = vector.shape_cast %98 : vector<1x128x128xbf16> to vector<128x128xbf16>
    %cst_102 = arith.constant dense<0.000000e+00> : vector<256x128xf32>
    %100 = tpu.matmul %97, %99, %cst_102 {dimension_numbers = #tpu.dot_dimension_numbers<[1], [0], [0], [1], [0, 0, 1, 1], [], []>} : vector<256x128xbf16>, vector<128x128xbf16>, vector<256x128xf32> -> vector<256x128xf32>
    %101 = arith.addf %95, %100 : vector<256x128xf32>
    %c1_103 = arith.constant 1 : index
    %c1_104 = arith.constant 1 : index
    %c0_105 = arith.constant 0 : index
    %102 = vector.load %arg9[%c1_103, %c1_104, %c0_105] : memref<18x18x128xbf16, #tpu.memory_space<vmem>>, vector<16x16x128xbf16>
    %103 = vector.shape_cast %102 : vector<16x16x128xbf16> to vector<256x128xbf16>
    %c4_106 = arith.constant 4 : index
    %c0_107 = arith.constant 0 : index
    %c0_108 = arith.constant 0 : index
    %104 = vector.load %arg4[%c4_106, %c0_107, %c0_108] : memref<9x128x128xbf16, #tpu.memory_space<vmem>>, vector<1x128x128xbf16>
    %105 = vector.shape_cast %104 : vector<1x128x128xbf16> to vector<128x128xbf16>
    %cst_109 = arith.constant dense<0.000000e+00> : vector<256x128xf32>
    %106 = tpu.matmul %103, %105, %cst_109 {dimension_numbers = #tpu.dot_dimension_numbers<[1], [0], [0], [1], [0, 0, 1, 1], [], []>} : vector<256x128xbf16>, vector<128x128xbf16>, vector<256x128xf32> -> vector<256x128xf32>
    %107 = arith.addf %101, %106 : vector<256x128xf32>
    %c1_110 = arith.constant 1 : index
    %c2_111 = arith.constant 2 : index
    %c0_112 = arith.constant 0 : index
    %108 = vector.load %arg9[%c1_110, %c2_111, %c0_112] : memref<18x18x128xbf16, #tpu.memory_space<vmem>>, vector<16x16x128xbf16>
    %109 = vector.shape_cast %108 : vector<16x16x128xbf16> to vector<256x128xbf16>
    %c5_113 = arith.constant 5 : index
    %c0_114 = arith.constant 0 : index
    %c0_115 = arith.constant 0 : index
    %110 = vector.load %arg4[%c5_113, %c0_114, %c0_115] : memref<9x128x128xbf16, #tpu.memory_space<vmem>>, vector<1x128x128xbf16>
    %111 = vector.shape_cast %110 : vector<1x128x128xbf16> to vector<128x128xbf16>
    %cst_116 = arith.constant dense<0.000000e+00> : vector<256x128xf32>
    %112 = tpu.matmul %109, %111, %cst_116 {dimension_numbers = #tpu.dot_dimension_numbers<[1], [0], [0], [1], [0, 0, 1, 1], [], []>} : vector<256x128xbf16>, vector<128x128xbf16>, vector<256x128xf32> -> vector<256x128xf32>
    %113 = arith.addf %107, %112 : vector<256x128xf32>
    %c2_117 = arith.constant 2 : index
    %c0_118 = arith.constant 0 : index
    %c0_119 = arith.constant 0 : index
    %114 = vector.load %arg9[%c2_117, %c0_118, %c0_119] : memref<18x18x128xbf16, #tpu.memory_space<vmem>>, vector<16x16x128xbf16>
    %115 = vector.shape_cast %114 : vector<16x16x128xbf16> to vector<256x128xbf16>
    %c6_120 = arith.constant 6 : index
    %c0_121 = arith.constant 0 : index
    %c0_122 = arith.constant 0 : index
    %116 = vector.load %arg4[%c6_120, %c0_121, %c0_122] : memref<9x128x128xbf16, #tpu.memory_space<vmem>>, vector<1x128x128xbf16>
    %117 = vector.shape_cast %116 : vector<1x128x128xbf16> to vector<128x128xbf16>
    %cst_123 = arith.constant dense<0.000000e+00> : vector<256x128xf32>
    %118 = tpu.matmul %115, %117, %cst_123 {dimension_numbers = #tpu.dot_dimension_numbers<[1], [0], [0], [1], [0, 0, 1, 1], [], []>} : vector<256x128xbf16>, vector<128x128xbf16>, vector<256x128xf32> -> vector<256x128xf32>
    %119 = arith.addf %113, %118 : vector<256x128xf32>
    %c2_124 = arith.constant 2 : index
    %c1_125 = arith.constant 1 : index
    %c0_126 = arith.constant 0 : index
    %120 = vector.load %arg9[%c2_124, %c1_125, %c0_126] : memref<18x18x128xbf16, #tpu.memory_space<vmem>>, vector<16x16x128xbf16>
    %121 = vector.shape_cast %120 : vector<16x16x128xbf16> to vector<256x128xbf16>
    %c7_127 = arith.constant 7 : index
    %c0_128 = arith.constant 0 : index
    %c0_129 = arith.constant 0 : index
    %122 = vector.load %arg4[%c7_127, %c0_128, %c0_129] : memref<9x128x128xbf16, #tpu.memory_space<vmem>>, vector<1x128x128xbf16>
    %123 = vector.shape_cast %122 : vector<1x128x128xbf16> to vector<128x128xbf16>
    %cst_130 = arith.constant dense<0.000000e+00> : vector<256x128xf32>
    %124 = tpu.matmul %121, %123, %cst_130 {dimension_numbers = #tpu.dot_dimension_numbers<[1], [0], [0], [1], [0, 0, 1, 1], [], []>} : vector<256x128xbf16>, vector<128x128xbf16>, vector<256x128xf32> -> vector<256x128xf32>
    %125 = arith.addf %119, %124 : vector<256x128xf32>
    %c2_131 = arith.constant 2 : index
    %c2_132 = arith.constant 2 : index
    %c0_133 = arith.constant 0 : index
    %126 = vector.load %arg9[%c2_131, %c2_132, %c0_133] : memref<18x18x128xbf16, #tpu.memory_space<vmem>>, vector<16x16x128xbf16>
    %127 = vector.shape_cast %126 : vector<16x16x128xbf16> to vector<256x128xbf16>
    %c8_134 = arith.constant 8 : index
    %c0_135 = arith.constant 0 : index
    %c0_136 = arith.constant 0 : index
    %128 = vector.load %arg4[%c8_134, %c0_135, %c0_136] : memref<9x128x128xbf16, #tpu.memory_space<vmem>>, vector<1x128x128xbf16>
    %129 = vector.shape_cast %128 : vector<1x128x128xbf16> to vector<128x128xbf16>
    %cst_137 = arith.constant dense<0.000000e+00> : vector<256x128xf32>
    %130 = tpu.matmul %127, %129, %cst_137 {dimension_numbers = #tpu.dot_dimension_numbers<[1], [0], [0], [1], [0, 0, 1, 1], [], []>} : vector<256x128xbf16>, vector<128x128xbf16>, vector<256x128xf32> -> vector<256x128xf32>
    %131 = arith.addf %125, %130 : vector<256x128xf32>
    %c0_138 = arith.constant 0 : index
    %c0_139 = arith.constant 0 : index
    %132 = vector.load %arg5[%c0_138, %c0_139] : memref<1x128xf32, #tpu.memory_space<vmem>>, vector<1x128xf32>
    %133 = vector.broadcast %132 : vector<1x128xf32> to vector<256x128xf32>
    %134 = arith.addf %131, %133 : vector<256x128xf32>
    %c0_140 = arith.constant 0 : index
    %c1_141 = arith.constant 1 : index
    %c1_142 = arith.constant 1 : index
    %c0_143 = arith.constant 0 : index
    %135 = vector.load %arg1[%c0_140, %c1_141, %c1_142, %c0_143] : memref<1x18x18x128xbf16, #tpu.memory_space<vmem>>, vector<1x16x16x128xbf16>
    %136 = vector.shape_cast %135 : vector<1x16x16x128xbf16> to vector<16x16x128xbf16>
    %137 = vector.shape_cast %136 : vector<16x16x128xbf16> to vector<256x128xbf16>
    %c0_144 = arith.constant 0 : index
    %c0_145 = arith.constant 0 : index
    %138 = vector.load %arg6[%c0_144, %c0_145] : memref<128x128xbf16, #tpu.memory_space<vmem>>, vector<128x128xbf16>
    %cst_146 = arith.constant dense<0.000000e+00> : vector<256x128xf32>
    %139 = tpu.matmul %137, %138, %cst_146 {dimension_numbers = #tpu.dot_dimension_numbers<[1], [0], [0], [1], [0, 0, 1, 1], [], []>} : vector<256x128xbf16>, vector<128x128xbf16>, vector<256x128xf32> -> vector<256x128xf32>
    %140 = arith.addf %134, %139 : vector<256x128xf32>
    %c0_147 = arith.constant 0 : index
    %c0_148 = arith.constant 0 : index
    %141 = vector.load %arg7[%c0_147, %c0_148] : memref<1x128xf32, #tpu.memory_space<vmem>>, vector<1x128xf32>
    %142 = vector.broadcast %141 : vector<1x128xf32> to vector<256x128xf32>
    %143 = arith.addf %140, %142 : vector<256x128xf32>
    %cst_149 = arith.constant 0.000000e+00 : f32
    %144 = vector.broadcast %cst_149 : f32 to vector<256x128xf32>
    %145 = arith.cmpf ogt, %143, %144 : vector<256x128xf32>
    %cst_150 = arith.constant 1.000000e-01 : f32
    %146 = vector.broadcast %cst_150 : f32 to vector<256x128xf32>
    %147 = arith.mulf %146, %143 : vector<256x128xf32>
    %148 = arith.select %145, %143, %147 : vector<256x128xi1>, vector<256x128xf32>
    %149 = vector.shape_cast %148 : vector<256x128xf32> to vector<1x16x16x128xf32>
    %c0_151 = arith.constant 0 : index
    %c0_152 = arith.constant 0 : index
    %c0_153 = arith.constant 0 : index
    %c0_154 = arith.constant 0 : index
    %150 = vector.load %arg8[%c0_151, %c0_152, %c0_153, %c0_154] : memref<1x16x16x128xf32, #tpu.memory_space<vmem>>, vector<1x16x16x128xf32>
    tpu.vector_store %arg8[%c0_151, %c0_152, %c0_153, %c0_154], %149 {strides = array<i32>} : memref<1x16x16x128xf32, #tpu.memory_space<vmem>>, vector<1x16x16x128xf32>,
    return
  }
  func.func @transform_0(%arg0: i32) -> (i32, i32, i32, i32) {
    %c0_i32 = arith.constant 0 : i32
    %c0_i32_0 = arith.constant 0 : i32
    %c0_i32_1 = arith.constant 0 : i32
    %c0_i32_2 = arith.constant 0 : i32
    return %arg0, %c0_i32, %c0_i32_0, %c0_i32_1 : i32, i32, i32, i32
  }
  func.func @transform_1(%arg0: i32) -> (i32, i32, i32) {
    %c0_i32 = arith.constant 0 : i32
    %c0_i32_0 = arith.constant 0 : i32
    %c0_i32_1 = arith.constant 0 : i32
    %c0_i32_2 = arith.constant 0 : i32
    return %c0_i32, %c0_i32_0, %c0_i32_1 : i32, i32, i32
  }
  func.func @transform_2(%arg0: i32) -> (i32, i32) {
    %c0_i32 = arith.constant 0 : i32
    %c0_i32_0 = arith.constant 0 : i32
    %c0_i32_1 = arith.constant 0 : i32
    return %c0_i32, %c0_i32_0 : i32, i32
  }
  func.func @transform_3(%arg0: i32) -> (i32, i32, i32) {
    %c0_i32 = arith.constant 0 : i32
    %c0_i32_0 = arith.constant 0 : i32
    %c0_i32_1 = arith.constant 0 : i32
    %c0_i32_2 = arith.constant 0 : i32
    return %c0_i32, %c0_i32_0, %c0_i32_1 : i32, i32, i32
  }
  func.func @transform_4(%arg0: i32) -> (i32, i32) {
    %c0_i32 = arith.constant 0 : i32
    %c0_i32_0 = arith.constant 0 : i32
    %c0_i32_1 = arith.constant 0 : i32
    return %c0_i32, %c0_i32_0 : i32, i32
  }
  func.func @transform_5(%arg0: i32) -> (i32, i32) {
    %c0_i32 = arith.constant 0 : i32
    %c0_i32_0 = arith.constant 0 : i32
    %c0_i32_1 = arith.constant 0 : i32
    return %c0_i32, %c0_i32_0 : i32, i32
  }
  func.func @transform_6(%arg0: i32) -> (i32, i32) {
    %c0_i32 = arith.constant 0 : i32
    %c0_i32_0 = arith.constant 0 : i32
    %c0_i32_1 = arith.constant 0 : i32
    return %c0_i32, %c0_i32_0 : i32, i32
  }
  func.func @transform_7(%arg0: i32) -> (i32, i32, i32, i32) {
    %c0_i32 = arith.constant 0 : i32
    %c0_i32_0 = arith.constant 0 : i32
    %c0_i32_1 = arith.constant 0 : i32
    %c0_i32_2 = arith.constant 0 : i32
    return %arg0, %c0_i32, %c0_i32_0, %c0_i32_1 : i32, i32, i32, i32
  }
}

</mosaic_0001>

<llo_original>
// kernel: tpu_custom_call.1
$region0: #{tpu_custom_call.1}
  #allocation0 [shape = 'u32[]', space=smem, size = 0x4, offset = 0x4, fixed_abs, tag = 'smem constant byte address 0x4 - core index']
  #allocation1 [shape = 'u32[72,128]{1,0:T(1,128)}', space=vmem, size = 0x9000, scoped, tag = 'internal scratch']
  #allocation2 [shape = 'bf16[18,18,128]{2,1,0:T(8,128)(2,1)}', space=vmem, size = 0x1b000, scoped, tag = 'scratch operand']
  %s0 = inlined_call_operand.vmem [shape: bf16[2,18,18,128], index: 0, kind: input, shape index: {}]
  %s1 = inlined_call_operand.vmem [shape: bf16[9,128,128], index: 1, kind: input, shape index: {}]
  %s2 = inlined_call_operand.vmem [shape: f32[1,128], index: 2, kind: input, shape index: {}]
  %s3 = inlined_call_operand.hbm [shape: bf16[9,128,128], index: 3, kind: input, shape index: {}]
  %s4 = inlined_call_operand.vmem [shape: f32[1,128], index: 4, kind: input, shape index: {}]
  %s5 = inlined_call_operand.vmem [shape: bf16[128,128], index: 5, kind: input, shape index: {}]
  %s6 = inlined_call_operand.vmem [shape: f32[1,128], index: 6, kind: input, shape index: {}]
  %s7 = inlined_call_operand.hbm [shape: f32[2,16,16,128], index: 7, kind: output, shape index: {}]
  %s8 = sld [smem:[#allocation0]]
  $region65: #{tpu_custom_call.1} parent=0
    _
  %s10 = ssub.s32 1, %s8
  %s11 = scalar_select 0, %s10, %s8
  $region1: #{tpu_custom_call.1} parent=0
    #allocation3 [shape = 'u8[294912]{0}', space=vmem, size = 0x48000, scoped, tag = 'input window, operand 3, single buffered']
    #allocation4 [shape = 's32[2]{0}', space=sflag, size = 0x8, scoped, tag = 'scoped memory for tpu_custom_call.1']
    #allocation5 [shape = 's32[2]{0}', space=sflag, size = 0x8, scoped, tag = 'scoped memory for tpu_custom_call.1']
    #allocation6 [shape = 'u8[262144]{0}', space=vmem, size = 0x40000, scoped, tag = 'output window, operand 0']
    %12 = vsyncpa [#allocation4], 0
    %13 = vsyncpa [#allocation5], 0
    %s14 = scalar_lea.sflag [#allocation5], 1
    %15 = vsyncpa %s14, 0
    loop: start=0, step=1, limit=4
    $region2: #{tpu_custom_call.1} parent=1 // loop_pre_header
      _
    $region3: #{tpu_custom_call.1} parent=1 // loop_header
      %s17 = sphi 0, %s21
      %p18 = scmp.ge.s32.totalorder %s17, 4
      %s27 = sphi 0, %s29
      %s30 = sphi 0, %s27
      %s31 = sphi 0, %s30
      %s47 = sphi 0, %s31
      %s51 = sphi 0, %s51
      %s53 = sphi 0, %s51
      %s54 = sphi 0, %s53
      %s68 = sphi 0, %s54
      %s72 = sphi 0, %s72
      %s74 = sphi 0, %s72
      %s75 = sphi 0, %s74
      %s89 = sphi 0, %s75
      %s93 = sphi 0, %s93
      %s95 = sphi 0, %s93
      %s96 = sphi 0, %s95
      %s110 = sphi 0, %s96
      %s114 = sphi 0, %s114
      %s116 = sphi 0, %s114
      %s117 = sphi 0, %s116
      %s131 = sphi 0, %s117
      %s135 = sphi 0, %s135
      %s137 = sphi 0, %s135
      %s138 = sphi 0, %s137
      %s152 = sphi 0, %s138
      %s156 = sphi 0, %s156
      %s158 = sphi 0, %s156
      %s159 = sphi 0, %s158
      %s173 = sphi 0, %s159
      %s179 = sphi 0, %s181
      %s182 = sphi 0, %s179
      %s183 = sphi 0, %s182
      %s199 = sphi 0, %s183
    $region4: #{tpu_custom_call.1} parent=1 // loop_header_branch
      %20 = sbr.rel (%p18) target = $region8
    $region5: #{tpu_custom_call.1} parent=1 // loop_body
      %s22 = ssub.s32 %s17, 1
      %s23 = ssub.s32 %s17, 2
      %s24 = sadd.s32 %s17, 1
      %s25 = ssub.s32 %s17, %s24
      %p26 = scmp.eq.s32.totalorder %s25, 0
      %s28 = sadd.s32 %s27, 1
      %s29 = scalar_select %p26, %s27, %s28
      %p32 = pneg %p26
      %p33 = scmp.eq.s32.totalorder %s17, 1
      %p34 = por %p32, %p33
      %p35 = scmp.ne.s32.totalorder %s27, %s30
      %p36 = scmp.eq.s32.totalorder %s17, 0
      %p37 = por %p35, %p36
      %p38 = scmp.ne.s32.totalorder %s27, %s30
      %p39 = scmp.eq.s32.totalorder %s22, 1
      %p40 = por %p38, %p39
      %p41 = scmp.ne.s32.totalorder %s30, %s31
      %p42 = scmp.eq.s32.totalorder %s22, 0
      %p43 = por %p41, %p42
      %p44 = scmp.ne.s32.totalorder %s30, %s31
      %p45 = scmp.eq.s32.totalorder %s23, 1
      %p46 = por %p44, %p45
      %p48 = scmp.ne.s32.totalorder %s31, %s47
      %p49 = scmp.eq.s32.totalorder %s23, 0
      %p50 = por %p48, %p49
      %s52 = sadd.s32 %s51, 1
      %p55 = scmp.eq.s32.totalorder %s17, 1
      %p56 = scmp.ne.s32.totalorder %s51, %s53
      %p57 = scmp.eq.s32.totalorder %s17, 0
      %p58 = por %p56, %p57
      %p59 = scmp.ne.s32.totalorder %s51, %s53
      %p60 = scmp.eq.s32.totalorder %s22, 1
      %p61 = por %p59, %p60
      %p62 = scmp.ne.s32.totalorder %s53, %s54
      %p63 = scmp.eq.s32.totalorder %s22, 0
      %p64 = por %p62, %p63
      %p65 = scmp.ne.s32.totalorder %s53, %s54
      %p66 = scmp.eq.s32.totalorder %s23, 1
      %p67 = por %p65, %p66
      %p69 = scmp.ne.s32.totalorder %s54, %s68
      %p70 = scmp.eq.s32.totalorder %s23, 0
      %p71 = por %p69, %p70
      %s73 = sadd.s32 %s72, 1
      %p76 = scmp.eq.s32.totalorder %s17, 1
      %p77 = scmp.ne.s32.totalorder %s72, %s74
      %p78 = scmp.eq.s32.totalorder %s17, 0
      %p79 = por %p77, %p78
      %p80 = scmp.ne.s32.totalorder %s72, %s74
      %p81 = scmp.eq.s32.totalorder %s22, 1
      %p82 = por %p80, %p81
      %p83 = scmp.ne.s32.totalorder %s74, %s75
      %p84 = scmp.eq.s32.totalorder %s22, 0
      %p85 = por %p83, %p84
      %p86 = scmp.ne.s32.totalorder %s74, %s75
      %p87 = scmp.eq.s32.totalorder %s23, 1
      %p88 = por %p86, %p87
      %p90 = scmp.ne.s32.totalorder %s75, %s89
      %p91 = scmp.eq.s32.totalorder %s23, 0
      %p92 = por %p90, %p91
      %s94 = sadd.s32 %s93, 1
      %p97 = scmp.eq.s32.totalorder %s17, 1
      %p98 = scmp.ne.s32.totalorder %s93, %s95
      %p99 = scmp.eq.s32.totalorder %s17, 0
      %p100 = por %p98, %p99
      %p101 = scmp.ne.s32.totalorder %s93, %s95
      %p102 = scmp.eq.s32.totalorder %s22, 1
      %p103 = por %p101, %p102
      %p104 = scmp.ne.s32.totalorder %s95, %s96
      %p105 = scmp.eq.s32.totalorder %s22, 0
      %p106 = por %p104, %p105
      %p107 = scmp.ne.s32.totalorder %s95, %s96
      %p108 = scmp.eq.s32.totalorder %s23, 1
      %p109 = por %p107, %p108
      %p111 = scmp.ne.s32.totalorder %s96, %s110
      %p112 = scmp.eq.s32.totalorder %s23, 0
      %p113 = por %p111, %p112
      %s115 = sadd.s32 %s114, 1
      %p118 = scmp.eq.s32.totalorder %s17, 1
      %p119 = scmp.ne.s32.totalorder %s114, %s116
      %p120 = scmp.eq.s32.totalorder %s17, 0
      %p121 = por %p119, %p120
      %p122 = scmp.ne.s32.totalorder %s114, %s116
      %p123 = scmp.eq.s32.totalorder %s22, 1
      %p124 = por %p122, %p123
      %p125 = scmp.ne.s32.totalorder %s116, %s117
      %p126 = scmp.eq.s32.totalorder %s22, 0
      %p127 = por %p125, %p126
      %p128 = scmp.ne.s32.totalorder %s116, %s117
      %p129 = scmp.eq.s32.totalorder %s23, 1
      %p130 = por %p128, %p129
      %p132 = scmp.ne.s32.totalorder %s117, %s131
      %p133 = scmp.eq.s32.totalorder %s23, 0
      %p134 = por %p132, %p133
      %s136 = sadd.s32 %s135, 1
      %p139 = scmp.eq.s32.totalorder %s17, 1
      %p140 = scmp.ne.s32.totalorder %s135, %s137
      %p141 = scmp.eq.s32.totalorder %s17, 0
      %p142 = por %p140, %p141
      %p143 = scmp.ne.s32.totalorder %s135, %s137
      %p144 = scmp.eq.s32.totalorder %s22, 1
      %p145 = por %p143, %p144
      %p146 = scmp.ne.s32.totalorder %s137, %s138
      %p147 = scmp.eq.s32.totalorder %s22, 0
      %p148 = por %p146, %p147
      %p149 = scmp.ne.s32.totalorder %s137, %s138
      %p150 = scmp.eq.s32.totalorder %s23, 1
      %p151 = por %p149, %p150
      %p153 = scmp.ne.s32.totalorder %s138, %s152
      %p154 = scmp.eq.s32.totalorder %s23, 0
      %p155 = por %p153, %p154
      %s157 = sadd.s32 %s156, 1
      %p160 = scmp.eq.s32.totalorder %s17, 1
      %p161 = scmp.ne.s32.totalorder %s156, %s158
      %p162 = scmp.eq.s32.totalorder %s17, 0
      %p163 = por %p161, %p162
      %p164 = scmp.ne.s32.totalorder %s156, %s158
      %p165 = scmp.eq.s32.totalorder %s22, 1
      %p166 = por %p164, %p165
      %p167 = scmp.ne.s32.totalorder %s158, %s159
      %p168 = scmp.eq.s32.totalorder %s22, 0
      %p169 = por %p167, %p168
      %p170 = scmp.ne.s32.totalorder %s158, %s159
      %p171 = scmp.eq.s32.totalorder %s23, 1
      %p172 = por %p170, %p171
      %p174 = scmp.ne.s32.totalorder %s159, %s173
      %p175 = scmp.eq.s32.totalorder %s23, 0
      %p176 = por %p174, %p175
      %s177 = ssub.s32 %s17, %s24
      %p178 = scmp.eq.s32.totalorder %s177, 0
      %s180 = sadd.s32 %s179, 1
      %s181 = scalar_select %p178, %s179, %s180
      %p184 = pneg %p178
      %p185 = scmp.eq.s32.totalorder %s17, 1
      %p186 = por %p184, %p185
      %p187 = scmp.ne.s32.totalorder %s179, %s182
      %p188 = scmp.eq.s32.totalorder %s17, 0
      %p189 = por %p187, %p188
      %p190 = scmp.ne.s32.totalorder %s179, %s182
      %p191 = scmp.eq.s32.totalorder %s22, 1
      %p192 = por %p190, %p191
      %p193 = scmp.ne.s32.totalorder %s182, %s183
      %p194 = scmp.eq.s32.totalorder %s22, 0
      %p195 = por %p193, %p194
      %p196 = scmp.ne.s32.totalorder %s182, %s183
      %p197 = scmp.eq.s32.totalorder %s23, 1
      %p198 = por %p196, %p197
      %p200 = scmp.ne.s32.totalorder %s183, %s199
      %p201 = scmp.eq.s32.totalorder %s23, 0
      %p202 = por %p200, %p201
      %p203 = scmp.le.s32.totalorder 1, %s17
      %p204 = scmp.lt.s32.totalorder %s17, 3
      %p205 = pnand %p203, %p204
      %p206 = pneg %p205
      // Predicated region
      $region9: #{tpu_custom_call.1} parent=5 // pred_check
        _
      $region10: #{tpu_custom_call.1} parent=5 // pred_check_branch
        %208 = sbr.rel (%p205) target = $region12
      $region11: #{tpu_custom_call.1} parent=5 // pred_region
        %s209 = ssub.s32 %s17, 1
        // Predicated region
        $region13: #{tpu_custom_call.1} parent=11 // pred_check
          %p210 = pneg %p64
        $region14: #{tpu_custom_call.1} parent=11 // pred_check_branch
          %212 = sbr.rel (%p210) target = $region16
        $region15: #{tpu_custom_call.1} parent=11 // pred_region
          _
        $region16: #{tpu_custom_call.1} parent=11 // pred_fallthru
          _
        // Predicated region
        $region17: #{tpu_custom_call.1} parent=11 // pred_check
          %p213 = pneg %p85
        $region18: #{tpu_custom_call.1} parent=11 // pred_check_branch
          %215 = sbr.rel (%p213) target = $region20
        $region19: #{tpu_custom_call.1} parent=11 // pred_region
          _
        $region20: #{tpu_custom_call.1} parent=11 // pred_fallthru
          _
        // Predicated region
        $region21: #{tpu_custom_call.1} parent=11 // pred_check
          %p216 = pneg %p106
        $region22: #{tpu_custom_call.1} parent=11 // pred_check_branch
          %218 = sbr.rel (%p216) target = $region24
        $region23: #{tpu_custom_call.1} parent=11 // pred_region
          %220 = vsyncadd [#allocation4], 0
          %s221 = sshll.u32 %s3, 4
          %s222 = int_to_ptr.hbm [resolvable:$true] %s221
          %s223 = sshll.u32 [#allocation3], 4
          %s224 = int_to_ptr.vmem [resolvable:$true] %s223
          %229 = dma.hbm_to_vmem [thread:$0]  %s222, 9216, %s224, [#allocation4], 64, 64, 4
        $region24: #{tpu_custom_call.1} parent=11 // pred_fallthru
          _
        // Predicated region
        $region25: #{tpu_custom_call.1} parent=11 // pred_check
          %p230 = pneg %p127
        $region26: #{tpu_custom_call.1} parent=11 // pred_check_branch
          %232 = sbr.rel (%p230) target = $region28
        $region27: #{tpu_custom_call.1} parent=11 // pred_region
          _
        $region28: #{tpu_custom_call.1} parent=11 // pred_fallthru
          _
        // Predicated region
        $region29: #{tpu_custom_call.1} parent=11 // pred_check
          %p233 = pneg %p148
        $region30: #{tpu_custom_call.1} parent=11 // pred_check_branch
          %235 = sbr.rel (%p233) target = $region32
        $region31: #{tpu_custom_call.1} parent=11 // pred_region
          _
        $region32: #{tpu_custom_call.1} parent=11 // pred_fallthru
          _
        // Predicated region
        $region33: #{tpu_custom_call.1} parent=11 // pred_check
          %p236 = pneg %p169
        $region34: #{tpu_custom_call.1} parent=11 // pred_check_branch
          %238 = sbr.rel (%p236) target = $region36
        $region35: #{tpu_custom_call.1} parent=11 // pred_region
          _
        $region36: #{tpu_custom_call.1} parent=11 // pred_fallthru
          _
      $region12: #{tpu_custom_call.1} parent=5 // pred_fallthru
        _
      %p239 = scmp.lt.s32.totalorder %s17, 2
      // Predicated region
      $region37: #{tpu_custom_call.1} parent=5 // pred_check
        %p240 = pneg %p239
      $region38: #{tpu_custom_call.1} parent=5 // pred_check_branch
        %242 = sbr.rel (%p240) target = $region40
      $region39: #{tpu_custom_call.1} parent=5 // pred_region
        // Predicated region
        $region41: #{tpu_custom_call.1} parent=39 // pred_check
          %p243 = pneg %p37
        $region42: #{tpu_custom_call.1} parent=39 // pred_check_branch
          %245 = sbr.rel (%p243) target = $region44
        $region43: #{tpu_custom_call.1} parent=39 // pred_region
          %p246 = scmp.lt.s32.totalorder %s17, 1
          %s247 = scalar_select %p246, %s17, 1
          %s248 = smul.addr %s247, 54
          %s249 = smul.addr %s248, 4
          %s250 = scalar_lea.vmem %s0, %s249
        $region44: #{tpu_custom_call.1} parent=39 // pred_fallthru
          _
      $region40: #{tpu_custom_call.1} parent=5 // pred_fallthru
        _
      %p251 = scmp.le.s32.totalorder 1, %s17
      %p252 = scmp.lt.s32.totalorder %s17, 3
      %p253 = pnand %p251, %p252
      %p254 = pneg %p253
      // Predicated region
      $region45: #{tpu_custom_call.1} parent=5 // pred_check
        _
      $region46: #{tpu_custom_call.1} parent=5 // pred_check_branch
        %256 = sbr.rel (%p253) target = $region48
      $region47: #{tpu_custom_call.1} parent=5 // pred_region
        %s257 = ssub.s32 %s17, 1
        // Predicated region
        $region49: #{tpu_custom_call.1} parent=47 // pred_check
          %p258 = pneg %p106
        $region50: #{tpu_custom_call.1} parent=47 // pred_check_branch
          %260 = sbr.rel (%p258) target = $region52
        $region51: #{tpu_custom_call.1} parent=47 // pred_region
          %262 = dma.done [#allocation4], 9216
        $region52: #{tpu_custom_call.1} parent=47 // pred_fallthru
          _
        %p263 = scmp.lt.s32.totalorder %s22, 1
        %s264 = scalar_select %p263, %s22, 1
        %s265 = smul.addr %s264, 54
        %s266 = smul.addr %s265, 4
        %s267 = scalar_lea.vmem %s0, %s266
        %p268 = pneg %p43
        %p269 = pneg %p40
        %p270 = pneg %p64
        %p271 = pneg %p61
        %p272 = pneg %p85
        %p273 = pneg %p82
        %p274 = pneg %p106
        %p275 = pneg %p103
        %p276 = pneg %p127
        %p277 = pneg %p124
        %p278 = pneg %p148
        %p279 = pneg %p145
        %p280 = pneg %p169
        %p281 = pneg %p166
        %p282 = pneg %p195
        %p283 = pneg %p192
        %s284 = sand.u32 %s182, 1
        %s285 = scalar_lea.sflag [#allocation5], %s284
        %s286 = sand.u32 %s182, 1
        %s287 = smul.addr %s286, 256
        %s288 = scalar_lea.vmem [#allocation6], %s287
        %p289 = scmp.lt.s32.totalorder %s22, 1
        %s290 = scalar_select %p289, %s22, 1
        %s291 = smul.addr %s290, 54
        %s292 = smul.addr %s291, 4
        %s293 = scalar_lea.vmem %s0, %s292
        %v295 = vld [vmem:[%s293] sm:$0xf]
        %v296 = vld [vmem:[%s293 + $0x4] sm:$0xf]
        %v297 = vld [vmem:[%s293 + $0xc] sm:$0xf]
        %v298 = vld [vmem:[%s293 + $0x10] sm:$0xf]
        %v299 = vld [vmem:[%s293 + $0x18] sm:$0xf]
        %v300 = vld [vmem:[%s293 + $0x1c] sm:$0xf]
        %v301 = vld [vmem:[%s293 + $0x24] sm:$0xf]
        %v302 = vld [vmem:[%s293 + $0x28] sm:$0xf]
        %v303 = vld [vmem:[%s293 + $0x30] sm:$0xf]
        %v304 = vld [vmem:[%s293 + $0x34] sm:$0xf]
        %v305 = vld [vmem:[%s293 + $0x3c] sm:$0xf]
        %v306 = vld [vmem:[%s293 + $0x40] sm:$0xf]
        %v307 = vld [vmem:[%s293 + $0x48] sm:$0xf]
        %v308 = vld [vmem:[%s293 + $0x4c] sm:$0xf]
        %v309 = vld [vmem:[%s293 + $0x54] sm:$0xf]
        %v310 = vld [vmem:[%s293 + $0x58] sm:$0xf]
        %v311 = vld [vmem:[%s293 + $0x60] sm:$0xf]
        %v312 = vld [vmem:[%s293 + $0x64] sm:$0xf]
        %v313 = vld [vmem:[%s293 + $0x6c] sm:$0xf]
        %v314 = vld [vmem:[%s293 + $0x70] sm:$0xf]
        %v315 = vld [vmem:[%s293 + $0x78] sm:$0xf]
        %v316 = vld [vmem:[%s293 + $0x7c] sm:$0xf]
        %v317 = vld [vmem:[%s293 + $0x84] sm:$0xf]
        %v318 = vld [vmem:[%s293 + $0x88] sm:$0xf]
        %v319 = vld [vmem:[%s293 + $0x90] sm:$0xf]
        %v320 = vld [vmem:[%s293 + $0x94] sm:$0xf]
        %v321 = vld [vmem:[%s293 + $0x9c] sm:$0xf]
        %v322 = vld [vmem:[%s293 + $0xa0] sm:$0xf]
        %v323 = vld [vmem:[%s293 + $0xa8] sm:$0xf]
        %v324 = vld [vmem:[%s293 + $0xac] sm:$0xf]
        %v325 = vld [vmem:[%s293 + $0xb4] sm:$0xf]
        %v326 = vld [vmem:[%s293 + $0xb8] sm:$0xf]
        %v327 = vld [vmem:[%s1] sm:$0xf]
        %v328 = vld [vmem:[%s1 + $0x4] sm:$0xf]
        %v329 = vld [vmem:[%s1 + $0x8] sm:$0xf]
        %v330 = vld [vmem:[%s1 + $0xc] sm:$0xf]
        %v331 = vld [vmem:[%s1 + $0x10] sm:$0xf]
        %v332 = vld [vmem:[%s1 + $0x14] sm:$0xf]
        %v333 = vld [vmem:[%s1 + $0x18] sm:$0xf]
        %v334 = vld [vmem:[%s1 + $0x1c] sm:$0xf]
        %v335 = vld [vmem:[%s1 + $0x20] sm:$0xf]
        %v336 = vld [vmem:[%s1 + $0x24] sm:$0xf]
        %v337 = vld [vmem:[%s1 + $0x28] sm:$0xf]
        %v338 = vld [vmem:[%s1 + $0x2c] sm:$0xf]
        %v339 = vld [vmem:[%s1 + $0x30] sm:$0xf]
        %v340 = vld [vmem:[%s1 + $0x34] sm:$0xf]
        %v341 = vld [vmem:[%s1 + $0x38] sm:$0xf]
        %v342 = vld [vmem:[%s1 + $0x3c] sm:$0xf]
        %v343 = vld [vmem:[%s293 + $0x8] sm:$0x1]
        %v344 = vld [vmem:[%s293 + $0x14] sm:$0x1]
        %v345 = vld [vmem:[%s293 + $0x20] sm:$0x1]
        %v346 = vld [vmem:[%s293 + $0x2c] sm:$0x1]
        %v347 = vld [vmem:[%s293 + $0x38] sm:$0x1]
        %v348 = vld [vmem:[%s293 + $0x44] sm:$0x1]
        %v349 = vld [vmem:[%s293 + $0x50] sm:$0x1]
        %v350 = vld [vmem:[%s293 + $0x5c] sm:$0x1]
        %v351 = vld [vmem:[%s293 + $0x68] sm:$0x1]
        %v352 = vld [vmem:[%s293 + $0x74] sm:$0x1]
        %v353 = vld [vmem:[%s293 + $0x80] sm:$0x1]
        %v354 = vld [vmem:[%s293 + $0x8c] sm:$0x1]
        %v355 = vld [vmem:[%s293 + $0x98] sm:$0x1]
        %v356 = vld [vmem:[%s293 + $0xa4] sm:$0x1]
        %v357 = vld [vmem:[%s293 + $0xb0] sm:$0x1]
        %v358 = vld [vmem:[%s293 + $0xbc] sm:$0x1]
        %vm359 = vsmask.f32 3328
        %vm360 = vsmask.f32 7440
        %vm361 = vmor %vm359, %vm360
        %v363 = vshrl.u32 %v295, 16
        %v365 = vrot.slane %v363, 4
        %v366 = vshll.u32 %v295, 16
        %v368 = vrot.slane %v366, 5
        %v369 = vor.u32 %v365, %v368
        %v370 = vrot.slane %v369, 4
        %v372 = vshll.u32 %v296, 16
        %v374 = vrot.slane %v372, 5
        %v375 = vsel %vm361, %v370, %v374
        %v376 = vshrl.u32 %v296, 16
        %v378 = vrot.slane %v376, 4
        %v379 = vor.u32 %v378, %v374
        %v380 = vrot.slane %v379, 4
        %v382 = vshll.u32 %v343, 16
        %v384 = vrot.slane %v382, 5
        %v385 = vsel %vm361, %v380, %v384
        %v387 = vshrl.u32 %v297, 16
        %v389 = vrot.slane %v387, 4
        %v390 = vshll.u32 %v297, 16
        %v392 = vrot.slane %v390, 5
        %v393 = vor.u32 %v389, %v392
        %v394 = vrot.slane %v393, 4
        %v396 = vshll.u32 %v298, 16
        %v398 = vrot.slane %v396, 5
        %v399 = vsel %vm361, %v394, %v398
        %v400 = vshrl.u32 %v298, 16
        %v402 = vrot.slane %v400, 4
        %v403 = vor.u32 %v402, %v398
        %v404 = vrot.slane %v403, 4
        %v406 = vshll.u32 %v344, 16
        %v408 = vrot.slane %v406, 5
        %v409 = vsel %vm361, %v404, %v408
        %v411 = vshrl.u32 %v299, 16
        %v413 = vrot.slane %v411, 4
        %v414 = vshll.u32 %v299, 16
        %v416 = vrot.slane %v414, 5
        %v417 = vor.u32 %v413, %v416
        %v418 = vrot.slane %v417, 4
        %v420 = vshll.u32 %v300, 16
        %v422 = vrot.slane %v420, 5
        %v423 = vsel %vm361, %v418, %v422
        %v424 = vshrl.u32 %v300, 16
        %v426 = vrot.slane %v424, 4
        %v427 = vor.u32 %v426, %v422
        %v428 = vrot.slane %v427, 4
        %v430 = vshll.u32 %v345, 16
        %v432 = vrot.slane %v430, 5
        %v433 = vsel %vm361, %v428, %v432
        %v435 = vshrl.u32 %v301, 16
        %v437 = vrot.slane %v435, 4
        %v438 = vshll.u32 %v301, 16
        %v440 = vrot.slane %v438, 5
        %v441 = vor.u32 %v437, %v440
        %v442 = vrot.slane %v441, 4
        %v444 = vshll.u32 %v302, 16
        %v446 = vrot.slane %v444, 5
        %v447 = vsel %vm361, %v442, %v446
        %v448 = vshrl.u32 %v302, 16
        %v450 = vrot.slane %v448, 4
        %v451 = vor.u32 %v450, %v446
        %v452 = vrot.slane %v451, 4
        %v454 = vshll.u32 %v346, 16
        %v456 = vrot.slane %v454, 5
        %v457 = vsel %vm361, %v452, %v456
        %v459 = vshrl.u32 %v303, 16
        %v461 = vrot.slane %v459, 4
        %v462 = vshll.u32 %v303, 16
        %v464 = vrot.slane %v462, 5
        %v465 = vor.u32 %v461, %v464
        %v466 = vrot.slane %v465, 4
        %v468 = vshll.u32 %v304, 16
        %v470 = vrot.slane %v468, 5
        %v471 = vsel %vm361, %v466, %v470
        %v472 = vshrl.u32 %v304, 16
        %v474 = vrot.slane %v472, 4
        %v475 = vor.u32 %v474, %v470
        %v476 = vrot.slane %v475, 4
        %v478 = vshll.u32 %v347, 16
        %v480 = vrot.slane %v478, 5
        %v481 = vsel %vm361, %v476, %v480
        %v483 = vshrl.u32 %v305, 16
        %v485 = vrot.slane %v483, 4
        %v486 = vshll.u32 %v305, 16
        %v488 = vrot.slane %v486, 5
        %v489 = vor.u32 %v485, %v488
        %v490 = vrot.slane %v489, 4
        %v492 = vshll.u32 %v306, 16
        %v494 = vrot.slane %v492, 5
        %v495 = vsel %vm361, %v490, %v494
        %v496 = vshrl.u32 %v306, 16
        %v498 = vrot.slane %v496, 4
        %v499 = vor.u32 %v498, %v494
        %v500 = vrot.slane %v499, 4
        %v502 = vshll.u32 %v348, 16
        %v504 = vrot.slane %v502, 5
        %v505 = vsel %vm361, %v500, %v504
        %v507 = vshrl.u32 %v307, 16
        %v509 = vrot.slane %v507, 4
        %v510 = vshll.u32 %v307, 16
        %v512 = vrot.slane %v510, 5
        %v513 = vor.u32 %v509, %v512
        %v514 = vrot.slane %v513, 4
        %v516 = vshll.u32 %v308, 16
        %v518 = vrot.slane %v516, 5
        %v519 = vsel %vm361, %v514, %v518
        %v520 = vshrl.u32 %v308, 16
        %v522 = vrot.slane %v520, 4
        %v523 = vor.u32 %v522, %v518
        %v524 = vrot.slane %v523, 4
        %v526 = vshll.u32 %v349, 16
        %v528 = vrot.slane %v526, 5
        %v529 = vsel %vm361, %v524, %v528
        %v531 = vshrl.u32 %v309, 16
        %v533 = vrot.slane %v531, 4
        %v534 = vshll.u32 %v309, 16
        %v536 = vrot.slane %v534, 5
        %v537 = vor.u32 %v533, %v536
        %v538 = vrot.slane %v537, 4
        %v540 = vshll.u32 %v310, 16
        %v542 = vrot.slane %v540, 5
        %v543 = vsel %vm361, %v538, %v542
        %v544 = vshrl.u32 %v310, 16
        %v546 = vrot.slane %v544, 4
        %v547 = vor.u32 %v546, %v542
        %v548 = vrot.slane %v547, 4
        %v550 = vshll.u32 %v350, 16
        %v552 = vrot.slane %v550, 5
        %v553 = vsel %vm361, %v548, %v552
        %v555 = vshrl.u32 %v311, 16
        %v557 = vrot.slane %v555, 4
        %v558 = vshll.u32 %v311, 16
        %v560 = vrot.slane %v558, 5
        %v561 = vor.u32 %v557, %v560
        %v562 = vrot.slane %v561, 4
        %v564 = vshll.u32 %v312, 16
        %v566 = vrot.slane %v564, 5
        %v567 = vsel %vm361, %v562, %v566
        %v568 = vshrl.u32 %v312, 16
        %v570 = vrot.slane %v568, 4
        %v571 = vor.u32 %v570, %v566
        %v572 = vrot.slane %v571, 4
        %v574 = vshll.u32 %v351, 16
        %v576 = vrot.slane %v574, 5
        %v577 = vsel %vm361, %v572, %v576
        %v579 = vshrl.u32 %v313, 16
        %v581 = vrot.slane %v579, 4
        %v582 = vshll.u32 %v313, 16
        %v584 = vrot.slane %v582, 5
        %v585 = vor.u32 %v581, %v584
        %v586 = vrot.slane %v585, 4
        %v588 = vshll.u32 %v314, 16
        %v590 = vrot.slane %v588, 5
        %v591 = vsel %vm361, %v586, %v590
        %v592 = vshrl.u32 %v314, 16
        %v594 = vrot.slane %v592, 4
        %v595 = vor.u32 %v594, %v590
        %v596 = vrot.slane %v595, 4
        %v598 = vshll.u32 %v352, 16
        %v600 = vrot.slane %v598, 5
        %v601 = vsel %vm361, %v596, %v600
        %v603 = vshrl.u32 %v315, 16
        %v605 = vrot.slane %v603, 4
        %v606 = vshll.u32 %v315, 16
        %v608 = vrot.slane %v606, 5
        %v609 = vor.u32 %v605, %v608
        %v610 = vrot.slane %v609, 4
        %v612 = vshll.u32 %v316, 16
        %v614 = vrot.slane %v612, 5
        %v615 = vsel %vm361, %v610, %v614
        %v616 = vshrl.u32 %v316, 16
        %v618 = vrot.slane %v616, 4
        %v619 = vor.u32 %v618, %v614
        %v620 = vrot.slane %v619, 4
        %v622 = vshll.u32 %v353, 16
        %v624 = vrot.slane %v622, 5
        %v625 = vsel %vm361, %v620, %v624
        %v627 = vshrl.u32 %v317, 16
        %v629 = vrot.slane %v627, 4
        %v630 = vshll.u32 %v317, 16
        %v632 = vrot.slane %v630, 5
        %v633 = vor.u32 %v629, %v632
        %v634 = vrot.slane %v633, 4
        %v636 = vshll.u32 %v318, 16
        %v638 = vrot.slane %v636, 5
        %v639 = vsel %vm361, %v634, %v638
        %v640 = vshrl.u32 %v318, 16
        %v642 = vrot.slane %v640, 4
        %v643 = vor.u32 %v642, %v638
        %v644 = vrot.slane %v643, 4
        %v646 = vshll.u32 %v354, 16
        %v648 = vrot.slane %v646, 5
        %v649 = vsel %vm361, %v644, %v648
        %v651 = vshrl.u32 %v319, 16
        %v653 = vrot.slane %v651, 4
        %v654 = vshll.u32 %v319, 16
        %v656 = vrot.slane %v654, 5
        %v657 = vor.u32 %v653, %v656
        %v658 = vrot.slane %v657, 4
        %v660 = vshll.u32 %v320, 16
        %v662 = vrot.slane %v660, 5
        %v663 = vsel %vm361, %v658, %v662
        %v664 = vshrl.u32 %v320, 16
        %v666 = vrot.slane %v664, 4
        %v667 = vor.u32 %v666, %v662
        %v668 = vrot.slane %v667, 4
        %v670 = vshll.u32 %v355, 16
        %v672 = vrot.slane %v670, 5
        %v673 = vsel %vm361, %v668, %v672
        %v675 = vshrl.u32 %v321, 16
        %v677 = vrot.slane %v675, 4
        %v678 = vshll.u32 %v321, 16
        %v680 = vrot.slane %v678, 5
        %v681 = vor.u32 %v677, %v680
        %v682 = vrot.slane %v681, 4
        %v684 = vshll.u32 %v322, 16
        %v686 = vrot.slane %v684, 5
        %v687 = vsel %vm361, %v682, %v686
        %v688 = vshrl.u32 %v322, 16
        %v690 = vrot.slane %v688, 4
        %v691 = vor.u32 %v690, %v686
        %v692 = vrot.slane %v691, 4
        %v694 = vshll.u32 %v356, 16
        %v696 = vrot.slane %v694, 5
        %v697 = vsel %vm361, %v692, %v696
        %v699 = vshrl.u32 %v323, 16
        %v701 = vrot.slane %v699, 4
        %v702 = vshll.u32 %v323, 16
        %v704 = vrot.slane %v702, 5
        %v705 = vor.u32 %v701, %v704
        %v706 = vrot.slane %v705, 4
        %v708 = vshll.u32 %v324, 16
        %v710 = vrot.slane %v708, 5
        %v711 = vsel %vm361, %v706, %v710
        %v712 = vshrl.u32 %v324, 16
        %v714 = vrot.slane %v712, 4
        %v715 = vor.u32 %v714, %v710
        %v716 = vrot.slane %v715, 4
        %v718 = vshll.u32 %v357, 16
        %v720 = vrot.slane %v718, 5
        %v721 = vsel %vm361, %v716, %v720
        %v723 = vshrl.u32 %v325, 16
        %v725 = vrot.slane %v723, 4
        %v726 = vshll.u32 %v325, 16
        %v728 = vrot.slane %v726, 5
        %v729 = vor.u32 %v725, %v728
        %v730 = vrot.slane %v729, 4
        %v732 = vshll.u32 %v326, 16
        %v734 = vrot.slane %v732, 5
        %v735 = vsel %vm361, %v730, %v734
        %v736 = vshrl.u32 %v326, 16
        %v738 = vrot.slane %v736, 4
        %v739 = vor.u32 %v738, %v734
        %v740 = vrot.slane %v739, 4
        %v742 = vshll.u32 %v358, 16
        %v744 = vrot.slane %v742, 5
        %v745 = vsel %vm361, %v740, %v744
        %s746 = scalar_lea.vmem %s1, 64
        %v747 = vld [vmem:[%s746] sm:$0xf]
        %v748 = vld [vmem:[%s746 + $0x4] sm:$0xf]
        %v749 = vld [vmem:[%s746 + $0x8] sm:$0xf]
        %v750 = vld [vmem:[%s746 + $0xc] sm:$0xf]
        %v751 = vld [vmem:[%s746 + $0x10] sm:$0xf]
        %v752 = vld [vmem:[%s746 + $0x14] sm:$0xf]
        %v753 = vld [vmem:[%s746 + $0x18] sm:$0xf]
        %v754 = vld [vmem:[%s746 + $0x1c] sm:$0xf]
        %v755 = vld [vmem:[%s746 + $0x20] sm:$0xf]
        %v756 = vld [vmem:[%s746 + $0x24] sm:$0xf]
        %v757 = vld [vmem:[%s746 + $0x28] sm:$0xf]
        %v758 = vld [vmem:[%s746 + $0x2c] sm:$0xf]
        %v759 = vld [vmem:[%s746 + $0x30] sm:$0xf]
        %v760 = vld [vmem:[%s746 + $0x34] sm:$0xf]
        %v761 = vld [vmem:[%s746 + $0x38] sm:$0xf]
        %v762 = vld [vmem:[%s746 + $0x3c] sm:$0xf]
        %v763 = vunpack.c.l.b16 %v375
        %v764 = vunpack.c.l.b16 %v385
        %v765 = vunpack.c.l.b16 %v399
        %v766 = vunpack.c.l.b16 %v409
        %v767 = vunpack.c.l.b16 %v423
        %v768 = vunpack.c.l.b16 %v433
        %v769 = vunpack.c.l.b16 %v447
        %v770 = vunpack.c.l.b16 %v457
        %v771 = vunpack.c.l.b16 %v471
        %v772 = vunpack.c.l.b16 %v481
        %v773 = vunpack.c.l.b16 %v495
        %v774 = vunpack.c.l.b16 %v505
        %v775 = vunpack.c.l.b16 %v519
        %v776 = vunpack.c.l.b16 %v529
        %v777 = vunpack.c.l.b16 %v543
        %v778 = vunpack.c.l.b16 %v553
        %v779 = vunpack.c.l.b16 %v567
        %v780 = vunpack.c.l.b16 %v577
        %v781 = vunpack.c.l.b16 %v591
        %v782 = vunpack.c.l.b16 %v601
        %v783 = vunpack.c.l.b16 %v615
        %v784 = vunpack.c.l.b16 %v625
        %v785 = vunpack.c.l.b16 %v639
        %v786 = vunpack.c.l.b16 %v649
        %v787 = vunpack.c.l.b16 %v663
        %v788 = vunpack.c.l.b16 %v673
        %v789 = vunpack.c.l.b16 %v687
        %v790 = vunpack.c.l.b16 %v697
        %v791 = vunpack.c.l.b16 %v711
        %v792 = vunpack.c.l.b16 %v721
        %v793 = vunpack.c.l.b16 %v735
        %v794 = vunpack.c.l.b16 %v745
        %v795 = vpack.c.b16 %v764, %v763
        %v796 = vpack.c.b16 %v766, %v765
        %v797 = vpack.c.b16 %v768, %v767
        %v798 = vpack.c.b16 %v770, %v769
        %v799 = vpack.c.b16 %v772, %v771
        %v800 = vpack.c.b16 %v774, %v773
        %v801 = vpack.c.b16 %v776, %v775
        %v802 = vpack.c.b16 %v778, %v777
        %v803 = vpack.c.b16 %v780, %v779
        %v804 = vpack.c.b16 %v782, %v781
        %v805 = vpack.c.b16 %v784, %v783
        %v806 = vpack.c.b16 %v786, %v785
        %v807 = vpack.c.b16 %v788, %v787
        %v808 = vpack.c.b16 %v790, %v789
        %v809 = vpack.c.b16 %v792, %v791
        %v810 = vpack.c.b16 %v794, %v793
        %v843 = vunpack.c.l.b16 %v747
        %v844 = vunpack.c.l.b16 %v748
        %v845 = vunpack.c.l.b16 %v749
        %v846 = vunpack.c.l.b16 %v750
        %v847 = vunpack.c.l.b16 %v751
        %v848 = vunpack.c.l.b16 %v752
        %v849 = vunpack.c.l.b16 %v753
        %v850 = vunpack.c.l.b16 %v754
        %v851 = vunpack.c.l.b16 %v755
        %v852 = vunpack.c.l.b16 %v756
        %v853 = vunpack.c.l.b16 %v757
        %v854 = vunpack.c.l.b16 %v758
        %v855 = vunpack.c.l.b16 %v759
        %v856 = vunpack.c.l.b16 %v760
        %v857 = vunpack.c.l.b16 %v761
        %v858 = vunpack.c.l.b16 %v762
        %v859 = vpack.c.b16 %v844, %v843
        %v860 = vpack.c.b16 %v846, %v845
        %v861 = vpack.c.b16 %v848, %v847
        %v862 = vpack.c.b16 %v850, %v849
        %v863 = vpack.c.b16 %v852, %v851
        %v864 = vpack.c.b16 %v854, %v853
        %v865 = vpack.c.b16 %v856, %v855
        %v866 = vpack.c.b16 %v858, %v857
        %875 = vmatpush.bf16.msra.mxu0 %v866
        %876 = vmatpush.bf16.msra.mxu0 %v865
        %877 = vmatpush.bf16.msra.mxu0 %v864
        %878 = vmatpush.bf16.msra.mxu0 %v863
        %879 = vmatpush.bf16.msra.mxu0 %v862
        %880 = vmatpush.bf16.msra.mxu0 %v861
        %881 = vmatpush.bf16.msra.mxu0 %v860
        %882 = vmatpush.bf16.msra.mxu0 %v859
        %883 = vmatmul.bf16.gmra.mxu0 %v795
        %v884 = vpop.f32.mrf.mxu0
        %v885 = vadd.f32 0.0, %v884
        %v886 = vpop.f32.mrf.mxu0
        %v887 = vadd.f32 0.0, %v886
        %888 = vmatmul.bf16.gmra.mxu0 %v796
        %v889 = vpop.f32.mrf.mxu0
        %v890 = vadd.f32 0.0, %v889
        %v891 = vpop.f32.mrf.mxu0
        %v892 = vadd.f32 0.0, %v891
        %893 = vmatmul.bf16.gmra.mxu0 %v797
        %v894 = vpop.f32.mrf.mxu0
        %v895 = vadd.f32 0.0, %v894
        %v896 = vpop.f32.mrf.mxu0
        %v897 = vadd.f32 0.0, %v896
        %898 = vmatmul.bf16.gmra.mxu0 %v798
        %v899 = vpop.f32.mrf.mxu0
        %v900 = vadd.f32 0.0, %v899
        %v901 = vpop.f32.mrf.mxu0
        %v902 = vadd.f32 0.0, %v901
        %903 = vmatmul.bf16.gmra.mxu0 %v799
        %v904 = vpop.f32.mrf.mxu0
        %v905 = vadd.f32 0.0, %v904
        %v906 = vpop.f32.mrf.mxu0
        %v907 = vadd.f32 0.0, %v906
        %908 = vmatmul.bf16.gmra.mxu0 %v800
        %v909 = vpop.f32.mrf.mxu0
        %v910 = vadd.f32 0.0, %v909
        %v911 = vpop.f32.mrf.mxu0
        %v912 = vadd.f32 0.0, %v911
        %913 = vmatmul.bf16.gmra.mxu0 %v801
        %v914 = vpop.f32.mrf.mxu0
        %v915 = vadd.f32 0.0, %v914
        %v916 = vpop.f32.mrf.mxu0
        %v917 = vadd.f32 0.0, %v916
        %918 = vmatmul.bf16.gmra.mxu0 %v802
        %v919 = vpop.f32.mrf.mxu0
        %v920 = vadd.f32 0.0, %v919
        %v921 = vpop.f32.mrf.mxu0
        %v922 = vadd.f32 0.0, %v921
        %923 = vmatmul.bf16.gmra.mxu0 %v803
        %v924 = vpop.f32.mrf.mxu0
        %v925 = vadd.f32 0.0, %v924
        %v926 = vpop.f32.mrf.mxu0
        %v927 = vadd.f32 0.0, %v926
        %928 = vmatmul.bf16.gmra.mxu0 %v804
        %v929 = vpop.f32.mrf.mxu0
        %v930 = vadd.f32 0.0, %v929
        %v931 = vpop.f32.mrf.mxu0
        %v932 = vadd.f32 0.0, %v931
        %933 = vmatmul.bf16.gmra.mxu0 %v805
        %v934 = vpop.f32.mrf.mxu0
        %v935 = vadd.f32 0.0, %v934
        %v936 = vpop.f32.mrf.mxu0
        %v937 = vadd.f32 0.0, %v936
        %938 = vmatmul.bf16.gmra.mxu0 %v806
        %v939 = vpop.f32.mrf.mxu0
        %v940 = vadd.f32 0.0, %v939
        %v941 = vpop.f32.mrf.mxu0
        %v942 = vadd.f32 0.0, %v941
        %943 = vmatmul.bf16.gmra.mxu0 %v807
        %v944 = vpop.f32.mrf.mxu0
        %v945 = vadd.f32 0.0, %v944
        %v946 = vpop.f32.mrf.mxu0
        %v947 = vadd.f32 0.0, %v946
        %948 = vmatmul.bf16.gmra.mxu0 %v808
        %v949 = vpop.f32.mrf.mxu0
        %v950 = vadd.f32 0.0, %v949
        %v951 = vpop.f32.mrf.mxu0
        %v952 = vadd.f32 0.0, %v951
        %953 = vmatmul.bf16.gmra.mxu0 %v809
        %v954 = vpop.f32.mrf.mxu0
        %v955 = vadd.f32 0.0, %v954
        %v956 = vpop.f32.mrf.mxu0
        %v957 = vadd.f32 0.0, %v956
        %958 = vmatmul.bf16.gmra.mxu0 %v810
        %v959 = vpop.f32.mrf.mxu0
        %v960 = vadd.f32 0.0, %v959
        %v961 = vpop.f32.mrf.mxu0
        %v962 = vadd.f32 0.0, %v961
        %963 = vdwg.mxu0
        %v996 = vunpack.c.l.b16 %v295
        %v997 = vunpack.c.l.b16 %v296
        %v998 = vunpack.c.l.b16 %v297
        %v999 = vunpack.c.l.b16 %v298
        %v1000 = vunpack.c.l.b16 %v299
        %v1001 = vunpack.c.l.b16 %v300
        %v1002 = vunpack.c.l.b16 %v301
        %v1003 = vunpack.c.l.b16 %v302
        %v1004 = vunpack.c.l.b16 %v303
        %v1005 = vunpack.c.l.b16 %v304
        %v1006 = vunpack.c.l.b16 %v305
        %v1007 = vunpack.c.l.b16 %v306
        %v1008 = vunpack.c.l.b16 %v307
        %v1009 = vunpack.c.l.b16 %v308
        %v1010 = vunpack.c.l.b16 %v309
        %v1011 = vunpack.c.l.b16 %v310
        %v1012 = vunpack.c.l.b16 %v311
        %v1013 = vunpack.c.l.b16 %v312
        %v1014 = vunpack.c.l.b16 %v313
        %v1015 = vunpack.c.l.b16 %v314
        %v1016 = vunpack.c.l.b16 %v315
        %v1017 = vunpack.c.l.b16 %v316
        %v1018 = vunpack.c.l.b16 %v317
        %v1019 = vunpack.c.l.b16 %v318
        %v1020 = vunpack.c.l.b16 %v319
        %v1021 = vunpack.c.l.b16 %v320
        %v1022 = vunpack.c.l.b16 %v321
        %v1023 = vunpack.c.l.b16 %v322
        %v1024 = vunpack.c.l.b16 %v323
        %v1025 = vunpack.c.l.b16 %v324
        %v1026 = vunpack.c.l.b16 %v325
        %v1027 = vunpack.c.l.b16 %v326
        %v1028 = vpack.c.b16 %v997, %v996
        %v1029 = vpack.c.b16 %v999, %v998
        %v1030 = vpack.c.b16 %v1001, %v1000
        %v1031 = vpack.c.b16 %v1003, %v1002
        %v1032 = vpack.c.b16 %v1005, %v1004
        %v1033 = vpack.c.b16 %v1007, %v1006
        %v1034 = vpack.c.b16 %v1009, %v1008
        %v1035 = vpack.c.b16 %v1011, %v1010
        %v1036 = vpack.c.b16 %v1013, %v1012
        %v1037 = vpack.c.b16 %v1015, %v1014
        %v1038 = vpack.c.b16 %v1017, %v1016
        %v1039 = vpack.c.b16 %v1019, %v1018
        %v1040 = vpack.c.b16 %v1021, %v1020
        %v1041 = vpack.c.b16 %v1023, %v1022
        %v1042 = vpack.c.b16 %v1025, %v1024
        %v1043 = vpack.c.b16 %v1027, %v1026
        %v1076 = vunpack.c.l.b16 %v327
        %v1077 = vunpack.c.l.b16 %v328
        %v1078 = vunpack.c.l.b16 %v329
        %v1079 = vunpack.c.l.b16 %v330
        %v1080 = vunpack.c.l.b16 %v331
        %v1081 = vunpack.c.l.b16 %v332
        %v1082 = vunpack.c.l.b16 %v333
        %v1083 = vunpack.c.l.b16 %v334
        %v1084 = vunpack.c.l.b16 %v335
        %v1085 = vunpack.c.l.b16 %v336
        %v1086 = vunpack.c.l.b16 %v337
        %v1087 = vunpack.c.l.b16 %v338
        %v1088 = vunpack.c.l.b16 %v339
        %v1089 = vunpack.c.l.b16 %v340
        %v1090 = vunpack.c.l.b16 %v341
        %v1091 = vunpack.c.l.b16 %v342
        %v1092 = vpack.c.b16 %v1077, %v1076
        %v1093 = vpack.c.b16 %v1079, %v1078
        %v1094 = vpack.c.b16 %v1081, %v1080
        %v1095 = vpack.c.b16 %v1083, %v1082
        %v1096 = vpack.c.b16 %v1085, %v1084
        %v1097 = vpack.c.b16 %v1087, %v1086
        %v1098 = vpack.c.b16 %v1089, %v1088
        %v1099 = vpack.c.b16 %v1091, %v1090
        %1108 = vmatpush.bf16.msra.mxu0 %v1099
        %1109 = vmatpush.bf16.msra.mxu0 %v1098
        %1110 = vmatpush.bf16.msra.mxu0 %v1097
        %1111 = vmatpush.bf16.msra.mxu0 %v1096
        %1112 = vmatpush.bf16.msra.mxu0 %v1095
        %1113 = vmatpush.bf16.msra.mxu0 %v1094
        %1114 = vmatpush.bf16.msra.mxu0 %v1093
        %1115 = vmatpush.bf16.msra.mxu0 %v1092
        %1116 = vmatmul.bf16.gmra.mxu0 %v1028
        %v1117 = vpop.f32.mrf.mxu0
        %v1118 = vadd.f32 %v885, %v1117
        %v1119 = vpop.f32.mrf.mxu0
        %v1120 = vadd.f32 %v887, %v1119
        %1121 = vmatmul.bf16.gmra.mxu0 %v1029
        %v1122 = vpop.f32.mrf.mxu0
        %v1123 = vadd.f32 %v890, %v1122
        %v1124 = vpop.f32.mrf.mxu0
        %v1125 = vadd.f32 %v892, %v1124
        %1126 = vmatmul.bf16.gmra.mxu0 %v1030
        %v1127 = vpop.f32.mrf.mxu0
        %v1128 = vadd.f32 %v895, %v1127
        %v1129 = vpop.f32.mrf.mxu0
        %v1130 = vadd.f32 %v897, %v1129
        %1131 = vmatmul.bf16.gmra.mxu0 %v1031
        %v1132 = vpop.f32.mrf.mxu0
        %v1133 = vadd.f32 %v900, %v1132
        %v1134 = vpop.f32.mrf.mxu0
        %v1135 = vadd.f32 %v902, %v1134
        %1136 = vmatmul.bf16.gmra.mxu0 %v1032
        %v1137 = vpop.f32.mrf.mxu0
        %v1138 = vadd.f32 %v905, %v1137
        %v1139 = vpop.f32.mrf.mxu0
        %v1140 = vadd.f32 %v907, %v1139
        %1141 = vmatmul.bf16.gmra.mxu0 %v1033
        %v1142 = vpop.f32.mrf.mxu0
        %v1143 = vadd.f32 %v910, %v1142
        %v1144 = vpop.f32.mrf.mxu0
        %v1145 = vadd.f32 %v912, %v1144
        %1146 = vmatmul.bf16.gmra.mxu0 %v1034
        %v1147 = vpop.f32.mrf.mxu0
        %v1148 = vadd.f32 %v915, %v1147
        %v1149 = vpop.f32.mrf.mxu0
        %v1150 = vadd.f32 %v917, %v1149
        %1151 = vmatmul.bf16.gmra.mxu0 %v1035
        %v1152 = vpop.f32.mrf.mxu0
        %v1153 = vadd.f32 %v920, %v1152
        %v1154 = vpop.f32.mrf.mxu0
        %v1155 = vadd.f32 %v922, %v1154
        %1156 = vmatmul.bf16.gmra.mxu0 %v1036
        %v1157 = vpop.f32.mrf.mxu0
        %v1158 = vadd.f32 %v925, %v1157
        %v1159 = vpop.f32.mrf.mxu0
        %v1160 = vadd.f32 %v927, %v1159
        %1161 = vmatmul.bf16.gmra.mxu0 %v1037
        %v1162 = vpop.f32.mrf.mxu0
        %v1163 = vadd.f32 %v930, %v1162
        %v1164 = vpop.f32.mrf.mxu0
        %v1165 = vadd.f32 %v932, %v1164
        %1166 = vmatmul.bf16.gmra.mxu0 %v1038
        %v1167 = vpop.f32.mrf.mxu0
        %v1168 = vadd.f32 %v935, %v1167
        %v1169 = vpop.f32.mrf.mxu0
        %v1170 = vadd.f32 %v937, %v1169
        %1171 = vmatmul.bf16.gmra.mxu0 %v1039
        %v1172 = vpop.f32.mrf.mxu0
        %v1173 = vadd.f32 %v940, %v1172
        %v1174 = vpop.f32.mrf.mxu0
        %v1175 = vadd.f32 %v942, %v1174
        %1176 = vmatmul.bf16.gmra.mxu0 %v1040
        %v1177 = vpop.f32.mrf.mxu0
        %v1178 = vadd.f32 %v945, %v1177
        %v1179 = vpop.f32.mrf.mxu0
        %v1180 = vadd.f32 %v947, %v1179
        %1181 = vmatmul.bf16.gmra.mxu0 %v1041
        %v1182 = vpop.f32.mrf.mxu0
        %v1183 = vadd.f32 %v950, %v1182
        %v1184 = vpop.f32.mrf.mxu0
        %v1185 = vadd.f32 %v952, %v1184
        %1186 = vmatmul.bf16.gmra.mxu0 %v1042
        %v1187 = vpop.f32.mrf.mxu0
        %v1188 = vadd.f32 %v955, %v1187
        %v1189 = vpop.f32.mrf.mxu0
        %v1190 = vadd.f32 %v957, %v1189
        %1191 = vmatmul.bf16.gmra.mxu0 %v1043
        %v1192 = vpop.f32.mrf.mxu0
        %v1193 = vadd.f32 %v960, %v1192
        %v1194 = vpop.f32.mrf.mxu0
        %v1195 = vadd.f32 %v962, %v1194
        %1196 = vdwg.mxu0
        %v1197 = vld [vmem:[%s293] sm:$0xe]
        %v1198 = vld [vmem:[%s293 + $0xc] sm:$0xe]
        %v1199 = vld [vmem:[%s293 + $0x18] sm:$0xe]
        %v1200 = vld [vmem:[%s293 + $0x24] sm:$0xe]
        %v1201 = vld [vmem:[%s293 + $0x30] sm:$0xe]
        %v1202 = vld [vmem:[%s293 + $0x3c] sm:$0xe]
        %v1203 = vld [vmem:[%s293 + $0x48] sm:$0xe]
        %v1204 = vld [vmem:[%s293 + $0x54] sm:$0xe]
        %v1205 = vld [vmem:[%s293 + $0x60] sm:$0xe]
        %v1206 = vld [vmem:[%s293 + $0x6c] sm:$0xe]
        %v1207 = vld [vmem:[%s293 + $0x78] sm:$0xe]
        %v1208 = vld [vmem:[%s293 + $0x84] sm:$0xe]
        %v1209 = vld [vmem:[%s293 + $0x90] sm:$0xe]
        %v1210 = vld [vmem:[%s293 + $0x9c] sm:$0xe]
        %v1211 = vld [vmem:[%s293 + $0xa8] sm:$0xe]
        %v1212 = vld [vmem:[%s293 + $0xb4] sm:$0xe]
        %vm1245 = vcmask 1042432
        %vm1246 = vcmask 1046532
        %vm1247 = vmor %vm1245, %vm1246
        %v1248 = vrot.slane %v1197, 5
        %v1249 = vrot.slane %v1248, 4
        %v1250 = vrot.slane %v296, 5
        %v1251 = vsel %vm1247, %v1249, %v1250
        %v1252 = vrot.slane %v1250, 4
        %v1253 = vrot.slane %v343, 5
        %v1254 = vsel %vm1247, %v1252, %v1253
        %v1255 = vrot.slane %v1198, 5
        %v1256 = vrot.slane %v1255, 4
        %v1257 = vrot.slane %v298, 5
        %v1258 = vsel %vm1247, %v1256, %v1257
        %v1259 = vrot.slane %v1257, 4
        %v1260 = vrot.slane %v344, 5
        %v1261 = vsel %vm1247, %v1259, %v1260
        %v1262 = vrot.slane %v1199, 5
        %v1263 = vrot.slane %v1262, 4
        %v1264 = vrot.slane %v300, 5
        %v1265 = vsel %vm1247, %v1263, %v1264
        %v1266 = vrot.slane %v1264, 4
        %v1267 = vrot.slane %v345, 5
        %v1268 = vsel %vm1247, %v1266, %v1267
        %v1269 = vrot.slane %v1200, 5
        %v1270 = vrot.slane %v1269, 4
        %v1271 = vrot.slane %v302, 5
        %v1272 = vsel %vm1247, %v1270, %v1271
        %v1273 = vrot.slane %v1271, 4
        %v1274 = vrot.slane %v346, 5
        %v1275 = vsel %vm1247, %v1273, %v1274
        %v1276 = vrot.slane %v1201, 5
        %v1277 = vrot.slane %v1276, 4
        %v1278 = vrot.slane %v304, 5
        %v1279 = vsel %vm1247, %v1277, %v1278
        %v1280 = vrot.slane %v1278, 4
        %v1281 = vrot.slane %v347, 5
        %v1282 = vsel %vm1247, %v1280, %v1281
        %v1283 = vrot.slane %v1202, 5
        %v1284 = vrot.slane %v1283, 4
        %v1285 = vrot.slane %v306, 5
        %v1286 = vsel %vm1247, %v1284, %v1285
        %v1287 = vrot.slane %v1285, 4
        %v1288 = vrot.slane %v348, 5
        %v1289 = vsel %vm1247, %v1287, %v1288
        %v1290 = vrot.slane %v1203, 5
        %v1291 = vrot.slane %v1290, 4
        %v1292 = vrot.slane %v308, 5
        %v1293 = vsel %vm1247, %v1291, %v1292
        %v1294 = vrot.slane %v1292, 4
        %v1295 = vrot.slane %v349, 5
        %v1296 = vsel %vm1247, %v1294, %v1295
        %v1297 = vrot.slane %v1204, 5
        %v1298 = vrot.slane %v1297, 4
        %v1299 = vrot.slane %v310, 5
        %v1300 = vsel %vm1247, %v1298, %v1299
        %v1301 = vrot.slane %v1299, 4
        %v1302 = vrot.slane %v350, 5
        %v1303 = vsel %vm1247, %v1301, %v1302
        %v1304 = vrot.slane %v1205, 5
        %v1305 = vrot.slane %v1304, 4
        %v1306 = vrot.slane %v312, 5
        %v1307 = vsel %vm1247, %v1305, %v1306
        %v1308 = vrot.slane %v1306, 4
        %v1309 = vrot.slane %v351, 5
        %v1310 = vsel %vm1247, %v1308, %v1309
        %v1311 = vrot.slane %v1206, 5
        %v1312 = vrot.slane %v1311, 4
        %v1313 = vrot.slane %v314, 5
        %v1314 = vsel %vm1247, %v1312, %v1313
        %v1315 = vrot.slane %v1313, 4
        %v1316 = vrot.slane %v352, 5
        %v1317 = vsel %vm1247, %v1315, %v1316
        %v1318 = vrot.slane %v1207, 5
        %v1319 = vrot.slane %v1318, 4
        %v1320 = vrot.slane %v316, 5
        %v1321 = vsel %vm1247, %v1319, %v1320
        %v1322 = vrot.slane %v1320, 4
        %v1323 = vrot.slane %v353, 5
        %v1324 = vsel %vm1247, %v1322, %v1323
        %v1325 = vrot.slane %v1208, 5
        %v1326 = vrot.slane %v1325, 4
        %v1327 = vrot.slane %v318, 5
        %v1328 = vsel %vm1247, %v1326, %v1327
        %v1329 = vrot.slane %v1327, 4
        %v1330 = vrot.slane %v354, 5
        %v1331 = vsel %vm1247, %v1329, %v1330
        %v1332 = vrot.slane %v1209, 5
        %v1333 = vrot.slane %v1332, 4
        %v1334 = vrot.slane %v320, 5
        %v1335 = vsel %vm1247, %v1333, %v1334
        %v1336 = vrot.slane %v1334, 4
        %v1337 = vrot.slane %v355, 5
        %v1338 = vsel %vm1247, %v1336, %v1337
        %v1339 = vrot.slane %v1210, 5
        %v1340 = vrot.slane %v1339, 4
        %v1341 = vrot.slane %v322, 5
        %v1342 = vsel %vm1247, %v1340, %v1341
        %v1343 = vrot.slane %v1341, 4
        %v1344 = vrot.slane %v356, 5
        %v1345 = vsel %vm1247, %v1343, %v1344
        %v1346 = vrot.slane %v1211, 5
        %v1347 = vrot.slane %v1346, 4
        %v1348 = vrot.slane %v324, 5
        %v1349 = vsel %vm1247, %v1347, %v1348
        %v1350 = vrot.slane %v1348, 4
        %v1351 = vrot.slane %v357, 5
        %v1352 = vsel %vm1247, %v1350, %v1351
        %v1353 = vrot.slane %v1212, 5
        %v1354 = vrot.slane %v1353, 4
        %v1355 = vrot.slane %v326, 5
        %v1356 = vsel %vm1247, %v1354, %v1355
        %v1357 = vrot.slane %v1355, 4
        %v1358 = vrot.slane %v358, 5
        %v1359 = vsel %vm1247, %v1357, %v1358
        %s1360 = scalar_lea.vmem %s1, 128
        %v1361 = vld [vmem:[%s1360] sm:$0xf]
        %v1362 = vld [vmem:[%s1360 + $0x4] sm:$0xf]
        %v1363 = vld [vmem:[%s1360 + $0x8] sm:$0xf]
        %v1364 = vld [vmem:[%s1360 + $0xc] sm:$0xf]
        %v1365 = vld [vmem:[%s1360 + $0x10] sm:$0xf]
        %v1366 = vld [vmem:[%s1360 + $0x14] sm:$0xf]
        %v1367 = vld [vmem:[%s1360 + $0x18] sm:$0xf]
        %v1368 = vld [vmem:[%s1360 + $0x1c] sm:$0xf]
        %v1369 = vld [vmem:[%s1360 + $0x20] sm:$0xf]
        %v1370 = vld [vmem:[%s1360 + $0x24] sm:$0xf]
        %v1371 = vld [vmem:[%s1360 + $0x28] sm:$0xf]
        %v1372 = vld [vmem:[%s1360 + $0x2c] sm:$0xf]
        %v1373 = vld [vmem:[%s1360 + $0x30] sm:$0xf]
        %v1374 = vld [vmem:[%s1360 + $0x34] sm:$0xf]
        %v1375 = vld [vmem:[%s1360 + $0x38] sm:$0xf]
        %v1376 = vld [vmem:[%s1360 + $0x3c] sm:$0xf]
        %v1377 = vunpack.c.l.b16 %v1251
        %v1378 = vunpack.c.l.b16 %v1254
        %v1379 = vunpack.c.l.b16 %v1258
        %v1380 = vunpack.c.l.b16 %v1261
        %v1381 = vunpack.c.l.b16 %v1265
        %v1382 = vunpack.c.l.b16 %v1268
        %v1383 = vunpack.c.l.b16 %v1272
        %v1384 = vunpack.c.l.b16 %v1275
        %v1385 = vunpack.c.l.b16 %v1279
        %v1386 = vunpack.c.l.b16 %v1282
        %v1387 = vunpack.c.l.b16 %v1286
        %v1388 = vunpack.c.l.b16 %v1289
        %v1389 = vunpack.c.l.b16 %v1293
        %v1390 = vunpack.c.l.b16 %v1296
        %v1391 = vunpack.c.l.b16 %v1300
        %v1392 = vunpack.c.l.b16 %v1303
        %v1393 = vunpack.c.l.b16 %v1307
        %v1394 = vunpack.c.l.b16 %v1310
        %v1395 = vunpack.c.l.b16 %v1314
        %v1396 = vunpack.c.l.b16 %v1317
        %v1397 = vunpack.c.l.b16 %v1321
        %v1398 = vunpack.c.l.b16 %v1324
        %v1399 = vunpack.c.l.b16 %v1328
        %v1400 = vunpack.c.l.b16 %v1331
        %v1401 = vunpack.c.l.b16 %v1335
        %v1402 = vunpack.c.l.b16 %v1338
        %v1403 = vunpack.c.l.b16 %v1342
        %v1404 = vunpack.c.l.b16 %v1345
        %v1405 = vunpack.c.l.b16 %v1349
        %v1406 = vunpack.c.l.b16 %v1352
        %v1407 = vunpack.c.l.b16 %v1356
        %v1408 = vunpack.c.l.b16 %v1359
        %v1409 = vpack.c.b16 %v1378, %v1377
        %v1410 = vpack.c.b16 %v1380, %v1379
        %v1411 = vpack.c.b16 %v1382, %v1381
        %v1412 = vpack.c.b16 %v1384, %v1383
        %v1413 = vpack.c.b16 %v1386, %v1385
        %v1414 = vpack.c.b16 %v1388, %v1387
        %v1415 = vpack.c.b16 %v1390, %v1389
        %v1416 = vpack.c.b16 %v1392, %v1391
        %v1417 = vpack.c.b16 %v1394, %v1393
        %v1418 = vpack.c.b16 %v1396, %v1395
        %v1419 = vpack.c.b16 %v1398, %v1397
        %v1420 = vpack.c.b16 %v1400, %v1399
        %v1421 = vpack.c.b16 %v1402, %v1401
        %v1422 = vpack.c.b16 %v1404, %v1403
        %v1423 = vpack.c.b16 %v1406, %v1405
        %v1424 = vpack.c.b16 %v1408, %v1407
        %v1457 = vunpack.c.l.b16 %v1361
        %v1458 = vunpack.c.l.b16 %v1362
        %v1459 = vunpack.c.l.b16 %v1363
        %v1460 = vunpack.c.l.b16 %v1364
        %v1461 = vunpack.c.l.b16 %v1365
        %v1462 = vunpack.c.l.b16 %v1366
        %v1463 = vunpack.c.l.b16 %v1367
        %v1464 = vunpack.c.l.b16 %v1368
        %v1465 = vunpack.c.l.b16 %v1369
        %v1466 = vunpack.c.l.b16 %v1370
        %v1467 = vunpack.c.l.b16 %v1371
        %v1468 = vunpack.c.l.b16 %v1372
        %v1469 = vunpack.c.l.b16 %v1373
        %v1470 = vunpack.c.l.b16 %v1374
        %v1471 = vunpack.c.l.b16 %v1375
        %v1472 = vunpack.c.l.b16 %v1376
        %v1473 = vpack.c.b16 %v1458, %v1457
        %v1474 = vpack.c.b16 %v1460, %v1459
        %v1475 = vpack.c.b16 %v1462, %v1461
        %v1476 = vpack.c.b16 %v1464, %v1463
        %v1477 = vpack.c.b16 %v1466, %v1465
        %v1478 = vpack.c.b16 %v1468, %v1467
        %v1479 = vpack.c.b16 %v1470, %v1469
        %v1480 = vpack.c.b16 %v1472, %v1471
        %1489 = vmatpush.bf16.msra.mxu0 %v1480
        %1490 = vmatpush.bf16.msra.mxu0 %v1479
        %1491 = vmatpush.bf16.msra.mxu0 %v1478
        %1492 = vmatpush.bf16.msra.mxu0 %v1477
        %1493 = vmatpush.bf16.msra.mxu0 %v1476
        %1494 = vmatpush.bf16.msra.mxu0 %v1475
        %1495 = vmatpush.bf16.msra.mxu0 %v1474
        %1496 = vmatpush.bf16.msra.mxu0 %v1473
        %1497 = vmatmul.bf16.gmra.mxu0 %v1409
        %v1498 = vpop.f32.mrf.mxu0
        %v1499 = vadd.f32 0.0, %v1498
        %v1500 = vpop.f32.mrf.mxu0
        %v1501 = vadd.f32 0.0, %v1500
        %1502 = vmatmul.bf16.gmra.mxu0 %v1410
        %v1503 = vpop.f32.mrf.mxu0
        %v1504 = vadd.f32 0.0, %v1503
        %v1505 = vpop.f32.mrf.mxu0
        %v1506 = vadd.f32 0.0, %v1505
        %1507 = vmatmul.bf16.gmra.mxu0 %v1411
        %v1508 = vpop.f32.mrf.mxu0
        %v1509 = vadd.f32 0.0, %v1508
        %v1510 = vpop.f32.mrf.mxu0
        %v1511 = vadd.f32 0.0, %v1510
        %1512 = vmatmul.bf16.gmra.mxu0 %v1412
        %v1513 = vpop.f32.mrf.mxu0
        %v1514 = vadd.f32 0.0, %v1513
        %v1515 = vpop.f32.mrf.mxu0
        %v1516 = vadd.f32 0.0, %v1515
        %1517 = vmatmul.bf16.gmra.mxu0 %v1413
        %v1518 = vpop.f32.mrf.mxu0
        %v1519 = vadd.f32 0.0, %v1518
        %v1520 = vpop.f32.mrf.mxu0
        %v1521 = vadd.f32 0.0, %v1520
        %1522 = vmatmul.bf16.gmra.mxu0 %v1414
        %v1523 = vpop.f32.mrf.mxu0
        %v1524 = vadd.f32 0.0, %v1523
        %v1525 = vpop.f32.mrf.mxu0
        %v1526 = vadd.f32 0.0, %v1525
        %1527 = vmatmul.bf16.gmra.mxu0 %v1415
        %v1528 = vpop.f32.mrf.mxu0
        %v1529 = vadd.f32 0.0, %v1528
        %v1530 = vpop.f32.mrf.mxu0
        %v1531 = vadd.f32 0.0, %v1530
        %1532 = vmatmul.bf16.gmra.mxu0 %v1416
        %v1533 = vpop.f32.mrf.mxu0
        %v1534 = vadd.f32 0.0, %v1533
        %v1535 = vpop.f32.mrf.mxu0
        %v1536 = vadd.f32 0.0, %v1535
        %1537 = vmatmul.bf16.gmra.mxu0 %v1417
        %v1538 = vpop.f32.mrf.mxu0
        %v1539 = vadd.f32 0.0, %v1538
        %v1540 = vpop.f32.mrf.mxu0
        %v1541 = vadd.f32 0.0, %v1540
        %1542 = vmatmul.bf16.gmra.mxu0 %v1418
        %v1543 = vpop.f32.mrf.mxu0
        %v1544 = vadd.f32 0.0, %v1543
        %v1545 = vpop.f32.mrf.mxu0
        %v1546 = vadd.f32 0.0, %v1545
        %1547 = vmatmul.bf16.gmra.mxu0 %v1419
        %v1548 = vpop.f32.mrf.mxu0
        %v1549 = vadd.f32 0.0, %v1548
        %v1550 = vpop.f32.mrf.mxu0
        %v1551 = vadd.f32 0.0, %v1550
        %1552 = vmatmul.bf16.gmra.mxu0 %v1420
        %v1553 = vpop.f32.mrf.mxu0
        %v1554 = vadd.f32 0.0, %v1553
        %v1555 = vpop.f32.mrf.mxu0
        %v1556 = vadd.f32 0.0, %v1555
        %1557 = vmatmul.bf16.gmra.mxu0 %v1421
        %v1558 = vpop.f32.mrf.mxu0
        %v1559 = vadd.f32 0.0, %v1558
        %v1560 = vpop.f32.mrf.mxu0
        %v1561 = vadd.f32 0.0, %v1560
        %1562 = vmatmul.bf16.gmra.mxu0 %v1422
        %v1563 = vpop.f32.mrf.mxu0
        %v1564 = vadd.f32 0.0, %v1563
        %v1565 = vpop.f32.mrf.mxu0
        %v1566 = vadd.f32 0.0, %v1565
        %1567 = vmatmul.bf16.gmra.mxu0 %v1423
        %v1568 = vpop.f32.mrf.mxu0
        %v1569 = vadd.f32 0.0, %v1568
        %v1570 = vpop.f32.mrf.mxu0
        %v1571 = vadd.f32 0.0, %v1570
        %1572 = vmatmul.bf16.gmra.mxu0 %v1424
        %v1573 = vpop.f32.mrf.mxu0
        %v1574 = vadd.f32 0.0, %v1573
        %v1575 = vpop.f32.mrf.mxu0
        %v1576 = vadd.f32 0.0, %v1575
        %1577 = vdwg.mxu0
        %v1578 = vadd.f32 %v1118, %v1499
        %v1579 = vadd.f32 %v1120, %v1501
        %v1580 = vadd.f32 %v1123, %v1504
        %v1581 = vadd.f32 %v1125, %v1506
        %v1582 = vadd.f32 %v1128, %v1509
        %v1583 = vadd.f32 %v1130, %v1511
        %v1584 = vadd.f32 %v1133, %v1514
        %v1585 = vadd.f32 %v1135, %v1516
        %v1586 = vadd.f32 %v1138, %v1519
        %v1587 = vadd.f32 %v1140, %v1521
        %v1588 = vadd.f32 %v1143, %v1524
        %v1589 = vadd.f32 %v1145, %v1526
        %v1590 = vadd.f32 %v1148, %v1529
        %v1591 = vadd.f32 %v1150, %v1531
        %v1592 = vadd.f32 %v1153, %v1534
        %v1593 = vadd.f32 %v1155, %v1536
        %v1594 = vadd.f32 %v1158, %v1539
        %v1595 = vadd.f32 %v1160, %v1541
        %v1596 = vadd.f32 %v1163, %v1544
        %v1597 = vadd.f32 %v1165, %v1546
        %v1598 = vadd.f32 %v1168, %v1549
        %v1599 = vadd.f32 %v1170, %v1551
        %v1600 = vadd.f32 %v1173, %v1554
        %v1601 = vadd.f32 %v1175, %v1556
        %v1602 = vadd.f32 %v1178, %v1559
        %v1603 = vadd.f32 %v1180, %v1561
        %v1604 = vadd.f32 %v1183, %v1564
        %v1605 = vadd.f32 %v1185, %v1566
        %v1606 = vadd.f32 %v1188, %v1569
        %v1607 = vadd.f32 %v1190, %v1571
        %v1608 = vadd.f32 %v1193, %v1574
        %v1609 = vadd.f32 %v1195, %v1576
        %s1610 = scalar_lea.vmem %s293, 12
        %v1611 = vld [vmem:[%s1610] sm:$0xf]
        %v1612 = vld [vmem:[%s1610 + $0x4] sm:$0xf]
        %v1613 = vld [vmem:[%s1610 + $0xc] sm:$0xf]
        %v1614 = vld [vmem:[%s1610 + $0x10] sm:$0xf]
        %v1615 = vld [vmem:[%s1610 + $0x18] sm:$0xf]
        %v1616 = vld [vmem:[%s1610 + $0x1c] sm:$0xf]
        %v1617 = vld [vmem:[%s1610 + $0x24] sm:$0xf]
        %v1618 = vld [vmem:[%s1610 + $0x28] sm:$0xf]
        %v1619 = vld [vmem:[%s1610 + $0x30] sm:$0xf]
        %v1620 = vld [vmem:[%s1610 + $0x34] sm:$0xf]
        %v1621 = vld [vmem:[%s1610 + $0x3c] sm:$0xf]
        %v1622 = vld [vmem:[%s1610 + $0x40] sm:$0xf]
        %v1623 = vld [vmem:[%s1610 + $0x48] sm:$0xf]
        %v1624 = vld [vmem:[%s1610 + $0x4c] sm:$0xf]
        %v1625 = vld [vmem:[%s1610 + $0x54] sm:$0xf]
        %v1626 = vld [vmem:[%s1610 + $0x58] sm:$0xf]
        %v1627 = vld [vmem:[%s1610 + $0x60] sm:$0xf]
        %v1628 = vld [vmem:[%s1610 + $0x64] sm:$0xf]
        %v1629 = vld [vmem:[%s1610 + $0x6c] sm:$0xf]
        %v1630 = vld [vmem:[%s1610 + $0x70] sm:$0xf]
        %v1631 = vld [vmem:[%s1610 + $0x78] sm:$0xf]
        %v1632 = vld [vmem:[%s1610 + $0x7c] sm:$0xf]
        %v1633 = vld [vmem:[%s1610 + $0x84] sm:$0xf]
        %v1634 = vld [vmem:[%s1610 + $0x88] sm:$0xf]
        %v1635 = vld [vmem:[%s1610 + $0x90] sm:$0xf]
        %v1636 = vld [vmem:[%s1610 + $0x94] sm:$0xf]
        %v1637 = vld [vmem:[%s1610 + $0x9c] sm:$0xf]
        %v1638 = vld [vmem:[%s1610 + $0xa0] sm:$0xf]
        %v1639 = vld [vmem:[%s1610 + $0xa8] sm:$0xf]
        %v1640 = vld [vmem:[%s1610 + $0xac] sm:$0xf]
        %v1641 = vld [vmem:[%s1610 + $0xb4] sm:$0xf]
        %v1642 = vld [vmem:[%s1610 + $0xb8] sm:$0xf]
        %s1643 = scalar_lea.vmem %s1, 192
        %v1644 = vld [vmem:[%s1643] sm:$0xf]
        %v1645 = vld [vmem:[%s1643 + $0x4] sm:$0xf]
        %v1646 = vld [vmem:[%s1643 + $0x8] sm:$0xf]
        %v1647 = vld [vmem:[%s1643 + $0xc] sm:$0xf]
        %v1648 = vld [vmem:[%s1643 + $0x10] sm:$0xf]
        %v1649 = vld [vmem:[%s1643 + $0x14] sm:$0xf]
        %v1650 = vld [vmem:[%s1643 + $0x18] sm:$0xf]
        %v1651 = vld [vmem:[%s1643 + $0x1c] sm:$0xf]
        %v1652 = vld [vmem:[%s1643 + $0x20] sm:$0xf]
        %v1653 = vld [vmem:[%s1643 + $0x24] sm:$0xf]
        %v1654 = vld [vmem:[%s1643 + $0x28] sm:$0xf]
        %v1655 = vld [vmem:[%s1643 + $0x2c] sm:$0xf]
        %v1656 = vld [vmem:[%s1643 + $0x30] sm:$0xf]
        %v1657 = vld [vmem:[%s1643 + $0x34] sm:$0xf]
        %v1658 = vld [vmem:[%s1643 + $0x38] sm:$0xf]
        %v1659 = vld [vmem:[%s1643 + $0x3c] sm:$0xf]
        %v1692 = vunpack.c.l.b16 %v1611
        %v1693 = vunpack.c.l.b16 %v1612
        %v1694 = vunpack.c.l.b16 %v1613
        %v1695 = vunpack.c.l.b16 %v1614
        %v1696 = vunpack.c.l.b16 %v1615
        %v1697 = vunpack.c.l.b16 %v1616
        %v1698 = vunpack.c.l.b16 %v1617
        %v1699 = vunpack.c.l.b16 %v1618
        %v1700 = vunpack.c.l.b16 %v1619
        %v1701 = vunpack.c.l.b16 %v1620
        %v1702 = vunpack.c.l.b16 %v1621
        %v1703 = vunpack.c.l.b16 %v1622
        %v1704 = vunpack.c.l.b16 %v1623
        %v1705 = vunpack.c.l.b16 %v1624
        %v1706 = vunpack.c.l.b16 %v1625
        %v1707 = vunpack.c.l.b16 %v1626
        %v1708 = vunpack.c.l.b16 %v1627
        %v1709 = vunpack.c.l.b16 %v1628
        %v1710 = vunpack.c.l.b16 %v1629
        %v1711 = vunpack.c.l.b16 %v1630
        %v1712 = vunpack.c.l.b16 %v1631
        %v1713 = vunpack.c.l.b16 %v1632
        %v1714 = vunpack.c.l.b16 %v1633
        %v1715 = vunpack.c.l.b16 %v1634
        %v1716 = vunpack.c.l.b16 %v1635
        %v1717 = vunpack.c.l.b16 %v1636
        %v1718 = vunpack.c.l.b16 %v1637
        %v1719 = vunpack.c.l.b16 %v1638
        %v1720 = vunpack.c.l.b16 %v1639
        %v1721 = vunpack.c.l.b16 %v1640
        %v1722 = vunpack.c.l.b16 %v1641
        %v1723 = vunpack.c.l.b16 %v1642
        %v1724 = vpack.c.b16 %v1693, %v1692
        %v1725 = vpack.c.b16 %v1695, %v1694
        %v1726 = vpack.c.b16 %v1697, %v1696
        %v1727 = vpack.c.b16 %v1699, %v1698
        %v1728 = vpack.c.b16 %v1701, %v1700
        %v1729 = vpack.c.b16 %v1703, %v1702
        %v1730 = vpack.c.b16 %v1705, %v1704
        %v1731 = vpack.c.b16 %v1707, %v1706
        %v1732 = vpack.c.b16 %v1709, %v1708
        %v1733 = vpack.c.b16 %v1711, %v1710
        %v1734 = vpack.c.b16 %v1713, %v1712
        %v1735 = vpack.c.b16 %v1715, %v1714
        %v1736 = vpack.c.b16 %v1717, %v1716
        %v1737 = vpack.c.b16 %v1719, %v1718
        %v1738 = vpack.c.b16 %v1721, %v1720
        %v1739 = vpack.c.b16 %v1723, %v1722
        %v1772 = vunpack.c.l.b16 %v1644
        %v1773 = vunpack.c.l.b16 %v1645
        %v1774 = vunpack.c.l.b16 %v1646
        %v1775 = vunpack.c.l.b16 %v1647
        %v1776 = vunpack.c.l.b16 %v1648
        %v1777 = vunpack.c.l.b16 %v1649
        %v1778 = vunpack.c.l.b16 %v1650
        %v1779 = vunpack.c.l.b16 %v1651
        %v1780 = vunpack.c.l.b16 %v1652
        %v1781 = vunpack.c.l.b16 %v1653
        %v1782 = vunpack.c.l.b16 %v1654
        %v1783 = vunpack.c.l.b16 %v1655
        %v1784 = vunpack.c.l.b16 %v1656
        %v1785 = vunpack.c.l.b16 %v1657
        %v1786 = vunpack.c.l.b16 %v1658
        %v1787 = vunpack.c.l.b16 %v1659
        %v1788 = vpack.c.b16 %v1773, %v1772
        %v1789 = vpack.c.b16 %v1775, %v1774
        %v1790 = vpack.c.b16 %v1777, %v1776
        %v1791 = vpack.c.b16 %v1779, %v1778
        %v1792 = vpack.c.b16 %v1781, %v1780
        %v1793 = vpack.c.b16 %v1783, %v1782
        %v1794 = vpack.c.b16 %v1785, %v1784
        %v1795 = vpack.c.b16 %v1787, %v1786
        %1804 = vmatpush.bf16.msra.mxu0 %v1795
        %1805 = vmatpush.bf16.msra.mxu0 %v1794
        %1806 = vmatpush.bf16.msra.mxu0 %v1793
        %1807 = vmatpush.bf16.msra.mxu0 %v1792
        %1808 = vmatpush.bf16.msra.mxu0 %v1791
        %1809 = vmatpush.bf16.msra.mxu0 %v1790
        %1810 = vmatpush.bf16.msra.mxu0 %v1789
        %1811 = vmatpush.bf16.msra.mxu0 %v1788
        %1812 = vmatmul.bf16.gmra.mxu0 %v1724
        %v1813 = vpop.f32.mrf.mxu0
        %v1814 = vadd.f32 0.0, %v1813
        %v1815 = vpop.f32.mrf.mxu0
        %v1816 = vadd.f32 0.0, %v1815
        %1817 = vmatmul.bf16.gmra.mxu0 %v1725
        %v1818 = vpop.f32.mrf.mxu0
        %v1819 = vadd.f32 0.0, %v1818
        %v1820 = vpop.f32.mrf.mxu0
        %v1821 = vadd.f32 0.0, %v1820
        %1822 = vmatmul.bf16.gmra.mxu0 %v1726
        %v1823 = vpop.f32.mrf.mxu0
        %v1824 = vadd.f32 0.0, %v1823
        %v1825 = vpop.f32.mrf.mxu0
        %v1826 = vadd.f32 0.0, %v1825
        %1827 = vmatmul.bf16.gmra.mxu0 %v1727
        %v1828 = vpop.f32.mrf.mxu0
        %v1829 = vadd.f32 0.0, %v1828
        %v1830 = vpop.f32.mrf.mxu0
        %v1831 = vadd.f32 0.0, %v1830
        %1832 = vmatmul.bf16.gmra.mxu0 %v1728
        %v1833 = vpop.f32.mrf.mxu0
        %v1834 = vadd.f32 0.0, %v1833
        %v1835 = vpop.f32.mrf.mxu0
        %v1836 = vadd.f32 0.0, %v1835
        %1837 = vmatmul.bf16.gmra.mxu0 %v1729
        %v1838 = vpop.f32.mrf.mxu0
        %v1839 = vadd.f32 0.0, %v1838
        %v1840 = vpop.f32.mrf.mxu0
        %v1841 = vadd.f32 0.0, %v1840
        %1842 = vmatmul.bf16.gmra.mxu0 %v1730
        %v1843 = vpop.f32.mrf.mxu0
        %v1844 = vadd.f32 0.0, %v1843
        %v1845 = vpop.f32.mrf.mxu0
        %v1846 = vadd.f32 0.0, %v1845
        %1847 = vmatmul.bf16.gmra.mxu0 %v1731
        %v1848 = vpop.f32.mrf.mxu0
        %v1849 = vadd.f32 0.0, %v1848
        %v1850 = vpop.f32.mrf.mxu0
        %v1851 = vadd.f32 0.0, %v1850
        %1852 = vmatmul.bf16.gmra.mxu0 %v1732
        %v1853 = vpop.f32.mrf.mxu0
        %v1854 = vadd.f32 0.0, %v1853
        %v1855 = vpop.f32.mrf.mxu0
        %v1856 = vadd.f32 0.0, %v1855
        %1857 = vmatmul.bf16.gmra.mxu0 %v1733
        %v1858 = vpop.f32.mrf.mxu0
        %v1859 = vadd.f32 0.0, %v1858
        %v1860 = vpop.f32.mrf.mxu0
        %v1861 = vadd.f32 0.0, %v1860
        %1862 = vmatmul.bf16.gmra.mxu0 %v1734
        %v1863 = vpop.f32.mrf.mxu0
        %v1864 = vadd.f32 0.0, %v1863
        %v1865 = vpop.f32.mrf.mxu0
        %v1866 = vadd.f32 0.0, %v1865
        %1867 = vmatmul.bf16.gmra.mxu0 %v1735
        %v1868 = vpop.f32.mrf.mxu0
        %v1869 = vadd.f32 0.0, %v1868
        %v1870 = vpop.f32.mrf.mxu0
        %v1871 = vadd.f32 0.0, %v1870
        %1872 = vmatmul.bf16.gmra.mxu0 %v1736
        %v1873 = vpop.f32.mrf.mxu0
        %v1874 = vadd.f32 0.0, %v1873
        %v1875 = vpop.f32.mrf.mxu0
        %v1876 = vadd.f32 0.0, %v1875
        %1877 = vmatmul.bf16.gmra.mxu0 %v1737
        %v1878 = vpop.f32.mrf.mxu0
        %v1879 = vadd.f32 0.0, %v1878
        %v1880 = vpop.f32.mrf.mxu0
        %v1881 = vadd.f32 0.0, %v1880
        %1882 = vmatmul.bf16.gmra.mxu0 %v1738
        %v1883 = vpop.f32.mrf.mxu0
        %v1884 = vadd.f32 0.0, %v1883
        %v1885 = vpop.f32.mrf.mxu0
        %v1886 = vadd.f32 0.0, %v1885
        %1887 = vmatmul.bf16.gmra.mxu0 %v1739
        %v1888 = vpop.f32.mrf.mxu0
        %v1889 = vadd.f32 0.0, %v1888
        %v1890 = vpop.f32.mrf.mxu0
        %v1891 = vadd.f32 0.0, %v1890
        %1892 = vdwg.mxu0
        %v1893 = vadd.f32 %v1578, %v1814
        %v1894 = vadd.f32 %v1579, %v1816
        %v1895 = vadd.f32 %v1580, %v1819
        %v1896 = vadd.f32 %v1581, %v1821
        %v1897 = vadd.f32 %v1582, %v1824
        %v1898 = vadd.f32 %v1583, %v1826
        %v1899 = vadd.f32 %v1584, %v1829
        %v1900 = vadd.f32 %v1585, %v1831
        %v1901 = vadd.f32 %v1586, %v1834
        %v1902 = vadd.f32 %v1587, %v1836
        %v1903 = vadd.f32 %v1588, %v1839
        %v1904 = vadd.f32 %v1589, %v1841
        %v1905 = vadd.f32 %v1590, %v1844
        %v1906 = vadd.f32 %v1591, %v1846
        %v1907 = vadd.f32 %v1592, %v1849
        %v1908 = vadd.f32 %v1593, %v1851
        %v1909 = vadd.f32 %v1594, %v1854
        %v1910 = vadd.f32 %v1595, %v1856
        %v1911 = vadd.f32 %v1596, %v1859
        %v1912 = vadd.f32 %v1597, %v1861
        %v1913 = vadd.f32 %v1598, %v1864
        %v1914 = vadd.f32 %v1599, %v1866
        %v1915 = vadd.f32 %v1600, %v1869
        %v1916 = vadd.f32 %v1601, %v1871
        %v1917 = vadd.f32 %v1602, %v1874
        %v1918 = vadd.f32 %v1603, %v1876
        %v1919 = vadd.f32 %v1604, %v1879
        %v1920 = vadd.f32 %v1605, %v1881
        %v1921 = vadd.f32 %v1606, %v1884
        %v1922 = vadd.f32 %v1607, %v1886
        %v1923 = vadd.f32 %v1608, %v1889
        %v1924 = vadd.f32 %v1609, %v1891
        %v1925 = vld [vmem:[%s1610] sm:$0xf]
        %v1926 = vld [vmem:[%s1610 + $0x4] sm:$0xf]
        %v1927 = vld [vmem:[%s1610 + $0x8] sm:$0x1]
        %v1928 = vld [vmem:[%s1610 + $0xc] sm:$0xf]
        %v1929 = vld [vmem:[%s1610 + $0x10] sm:$0xf]
        %v1930 = vld [vmem:[%s1610 + $0x14] sm:$0x1]
        %v1931 = vld [vmem:[%s1610 + $0x18] sm:$0xf]
        %v1932 = vld [vmem:[%s1610 + $0x1c] sm:$0xf]
        %v1933 = vld [vmem:[%s1610 + $0x20] sm:$0x1]
        %v1934 = vld [vmem:[%s1610 + $0x24] sm:$0xf]
        %v1935 = vld [vmem:[%s1610 + $0x28] sm:$0xf]
        %v1936 = vld [vmem:[%s1610 + $0x2c] sm:$0x1]
        %v1937 = vld [vmem:[%s1610 + $0x30] sm:$0xf]
        %v1938 = vld [vmem:[%s1610 + $0x34] sm:$0xf]
        %v1939 = vld [vmem:[%s1610 + $0x38] sm:$0x1]
        %v1940 = vld [vmem:[%s1610 + $0x3c] sm:$0xf]
        %v1941 = vld [vmem:[%s1610 + $0x40] sm:$0xf]
        %v1942 = vld [vmem:[%s1610 + $0x44] sm:$0x1]
        %v1943 = vld [vmem:[%s1610 + $0x48] sm:$0xf]
        %v1944 = vld [vmem:[%s1610 + $0x4c] sm:$0xf]
        %v1945 = vld [vmem:[%s1610 + $0x50] sm:$0x1]
        %v1946 = vld [vmem:[%s1610 + $0x54] sm:$0xf]
        %v1947 = vld [vmem:[%s1610 + $0x58] sm:$0xf]
        %v1948 = vld [vmem:[%s1610 + $0x5c] sm:$0x1]
        %v1949 = vld [vmem:[%s1610 + $0x60] sm:$0xf]
        %v1950 = vld [vmem:[%s1610 + $0x64] sm:$0xf]
        %v1951 = vld [vmem:[%s1610 + $0x68] sm:$0x1]
        %v1952 = vld [vmem:[%s1610 + $0x6c] sm:$0xf]
        %v1953 = vld [vmem:[%s1610 + $0x70] sm:$0xf]
        %v1954 = vld [vmem:[%s1610 + $0x74] sm:$0x1]
        %v1955 = vld [vmem:[%s1610 + $0x78] sm:$0xf]
        %v1956 = vld [vmem:[%s1610 + $0x7c] sm:$0xf]
        %v1957 = vld [vmem:[%s1610 + $0x80] sm:$0x1]
        %v1958 = vld [vmem:[%s1610 + $0x84] sm:$0xf]
        %v1959 = vld [vmem:[%s1610 + $0x88] sm:$0xf]
        %v1960 = vld [vmem:[%s1610 + $0x8c] sm:$0x1]
        %v1961 = vld [vmem:[%s1610 + $0x90] sm:$0xf]
        %v1962 = vld [vmem:[%s1610 + $0x94] sm:$0xf]
        %v1963 = vld [vmem:[%s1610 + $0x98] sm:$0x1]
        %v1964 = vld [vmem:[%s1610 + $0x9c] sm:$0xf]
        %v1965 = vld [vmem:[%s1610 + $0xa0] sm:$0xf]
        %v1966 = vld [vmem:[%s1610 + $0xa4] sm:$0x1]
        %v1967 = vld [vmem:[%s1610 + $0xa8] sm:$0xf]
        %v1968 = vld [vmem:[%s1610 + $0xac] sm:$0xf]
        %v1969 = vld [vmem:[%s1610 + $0xb0] sm:$0x1]
        %v1970 = vld [vmem:[%s1610 + $0xb4] sm:$0xf]
        %v1971 = vld [vmem:[%s1610 + $0xb8] sm:$0xf]
        %v1972 = vld [vmem:[%s1610 + $0xbc] sm:$0x1]
        %v1974 = vshrl.u32 %v1925, 16
        %v1976 = vrot.slane %v1974, 4
        %v1977 = vshll.u32 %v1925, 16
        %v1979 = vrot.slane %v1977, 5
        %v1980 = vor.u32 %v1976, %v1979
        %v1981 = vrot.slane %v1980, 4
        %v1983 = vshll.u32 %v1926, 16
        %v1985 = vrot.slane %v1983, 5
        %v1986 = vsel %vm361, %v1981, %v1985
        %v1987 = vshrl.u32 %v1926, 16
        %v1989 = vrot.slane %v1987, 4
        %v1990 = vor.u32 %v1989, %v1985
        %v1991 = vrot.slane %v1990, 4
        %v1993 = vshll.u32 %v1927, 16
        %v1995 = vrot.slane %v1993, 5
        %v1996 = vsel %vm361, %v1991, %v1995
        %v1998 = vshrl.u32 %v1928, 16
        %v2000 = vrot.slane %v1998, 4
        %v2001 = vshll.u32 %v1928, 16
        %v2003 = vrot.slane %v2001, 5
        %v2004 = vor.u32 %v2000, %v2003
        %v2005 = vrot.slane %v2004, 4
        %v2007 = vshll.u32 %v1929, 16
        %v2009 = vrot.slane %v2007, 5
        %v2010 = vsel %vm361, %v2005, %v2009
        %v2011 = vshrl.u32 %v1929, 16
        %v2013 = vrot.slane %v2011, 4
        %v2014 = vor.u32 %v2013, %v2009
        %v2015 = vrot.slane %v2014, 4
        %v2017 = vshll.u32 %v1930, 16
        %v2019 = vrot.slane %v2017, 5
        %v2020 = vsel %vm361, %v2015, %v2019
        %v2022 = vshrl.u32 %v1931, 16
        %v2024 = vrot.slane %v2022, 4
        %v2025 = vshll.u32 %v1931, 16
        %v2027 = vrot.slane %v2025, 5
        %v2028 = vor.u32 %v2024, %v2027
        %v2029 = vrot.slane %v2028, 4
        %v2031 = vshll.u32 %v1932, 16
        %v2033 = vrot.slane %v2031, 5
        %v2034 = vsel %vm361, %v2029, %v2033
        %v2035 = vshrl.u32 %v1932, 16
        %v2037 = vrot.slane %v2035, 4
        %v2038 = vor.u32 %v2037, %v2033
        %v2039 = vrot.slane %v2038, 4
        %v2041 = vshll.u32 %v1933, 16
        %v2043 = vrot.slane %v2041, 5
        %v2044 = vsel %vm361, %v2039, %v2043
        %v2046 = vshrl.u32 %v1934, 16
        %v2048 = vrot.slane %v2046, 4
        %v2049 = vshll.u32 %v1934, 16
        %v2051 = vrot.slane %v2049, 5
        %v2052 = vor.u32 %v2048, %v2051
        %v2053 = vrot.slane %v2052, 4
        %v2055 = vshll.u32 %v1935, 16
        %v2057 = vrot.slane %v2055, 5
        %v2058 = vsel %vm361, %v2053, %v2057
        %v2059 = vshrl.u32 %v1935, 16
        %v2061 = vrot.slane %v2059, 4
        %v2062 = vor.u32 %v2061, %v2057
        %v2063 = vrot.slane %v2062, 4
        %v2065 = vshll.u32 %v1936, 16
        %v2067 = vrot.slane %v2065, 5
        %v2068 = vsel %vm361, %v2063, %v2067
        %v2070 = vshrl.u32 %v1937, 16
        %v2072 = vrot.slane %v2070, 4
        %v2073 = vshll.u32 %v1937, 16
        %v2075 = vrot.slane %v2073, 5
        %v2076 = vor.u32 %v2072, %v2075
        %v2077 = vrot.slane %v2076, 4
        %v2079 = vshll.u32 %v1938, 16
        %v2081 = vrot.slane %v2079, 5
        %v2082 = vsel %vm361, %v2077, %v2081
        %v2083 = vshrl.u32 %v1938, 16
        %v2085 = vrot.slane %v2083, 4
        %v2086 = vor.u32 %v2085, %v2081
        %v2087 = vrot.slane %v2086, 4
        %v2089 = vshll.u32 %v1939, 16
        %v2091 = vrot.slane %v2089, 5
        %v2092 = vsel %vm361, %v2087, %v2091
        %v2094 = vshrl.u32 %v1940, 16
        %v2096 = vrot.slane %v2094, 4
        %v2097 = vshll.u32 %v1940, 16
        %v2099 = vrot.slane %v2097, 5
        %v2100 = vor.u32 %v2096, %v2099
        %v2101 = vrot.slane %v2100, 4
        %v2103 = vshll.u32 %v1941, 16
        %v2105 = vrot.slane %v2103, 5
        %v2106 = vsel %vm361, %v2101, %v2105
        %v2107 = vshrl.u32 %v1941, 16
        %v2109 = vrot.slane %v2107, 4
        %v2110 = vor.u32 %v2109, %v2105
        %v2111 = vrot.slane %v2110, 4
        %v2113 = vshll.u32 %v1942, 16
        %v2115 = vrot.slane %v2113, 5
        %v2116 = vsel %vm361, %v2111, %v2115
        %v2118 = vshrl.u32 %v1943, 16
        %v2120 = vrot.slane %v2118, 4
        %v2121 = vshll.u32 %v1943, 16
        %v2123 = vrot.slane %v2121, 5
        %v2124 = vor.u32 %v2120, %v2123
        %v2125 = vrot.slane %v2124, 4
        %v2127 = vshll.u32 %v1944, 16
        %v2129 = vrot.slane %v2127, 5
        %v2130 = vsel %vm361, %v2125, %v2129
        %v2131 = vshrl.u32 %v1944, 16
        %v2133 = vrot.slane %v2131, 4
        %v2134 = vor.u32 %v2133, %v2129
        %v2135 = vrot.slane %v2134, 4
        %v2137 = vshll.u32 %v1945, 16
        %v2139 = vrot.slane %v2137, 5
        %v2140 = vsel %vm361, %v2135, %v2139
        %v2142 = vshrl.u32 %v1946, 16
        %v2144 = vrot.slane %v2142, 4
        %v2145 = vshll.u32 %v1946, 16
        %v2147 = vrot.slane %v2145, 5
        %v2148 = vor.u32 %v2144, %v2147
        %v2149 = vrot.slane %v2148, 4
        %v2151 = vshll.u32 %v1947, 16
        %v2153 = vrot.slane %v2151, 5
        %v2154 = vsel %vm361, %v2149, %v2153
        %v2155 = vshrl.u32 %v1947, 16
        %v2157 = vrot.slane %v2155, 4
        %v2158 = vor.u32 %v2157, %v2153
        %v2159 = vrot.slane %v2158, 4
        %v2161 = vshll.u32 %v1948, 16
        %v2163 = vrot.slane %v2161, 5
        %v2164 = vsel %vm361, %v2159, %v2163
        %v2166 = vshrl.u32 %v1949, 16
        %v2168 = vrot.slane %v2166, 4
        %v2169 = vshll.u32 %v1949, 16
        %v2171 = vrot.slane %v2169, 5
        %v2172 = vor.u32 %v2168, %v2171
        %v2173 = vrot.slane %v2172, 4
        %v2175 = vshll.u32 %v1950, 16
        %v2177 = vrot.slane %v2175, 5
        %v2178 = vsel %vm361, %v2173, %v2177
        %v2179 = vshrl.u32 %v1950, 16
        %v2181 = vrot.slane %v2179, 4
        %v2182 = vor.u32 %v2181, %v2177
        %v2183 = vrot.slane %v2182, 4
        %v2185 = vshll.u32 %v1951, 16
        %v2187 = vrot.slane %v2185, 5
        %v2188 = vsel %vm361, %v2183, %v2187
        %v2190 = vshrl.u32 %v1952, 16
        %v2192 = vrot.slane %v2190, 4
        %v2193 = vshll.u32 %v1952, 16
        %v2195 = vrot.slane %v2193, 5
        %v2196 = vor.u32 %v2192, %v2195
        %v2197 = vrot.slane %v2196, 4
        %v2199 = vshll.u32 %v1953, 16
        %v2201 = vrot.slane %v2199, 5
        %v2202 = vsel %vm361, %v2197, %v2201
        %v2203 = vshrl.u32 %v1953, 16
        %v2205 = vrot.slane %v2203, 4
        %v2206 = vor.u32 %v2205, %v2201
        %v2207 = vrot.slane %v2206, 4
        %v2209 = vshll.u32 %v1954, 16
        %v2211 = vrot.slane %v2209, 5
        %v2212 = vsel %vm361, %v2207, %v2211
        %v2214 = vshrl.u32 %v1955, 16
        %v2216 = vrot.slane %v2214, 4
        %v2217 = vshll.u32 %v1955, 16
        %v2219 = vrot.slane %v2217, 5
        %v2220 = vor.u32 %v2216, %v2219
        %v2221 = vrot.slane %v2220, 4
        %v2223 = vshll.u32 %v1956, 16
        %v2225 = vrot.slane %v2223, 5
        %v2226 = vsel %vm361, %v2221, %v2225
        %v2227 = vshrl.u32 %v1956, 16
        %v2229 = vrot.slane %v2227, 4
        %v2230 = vor.u32 %v2229, %v2225
        %v2231 = vrot.slane %v2230, 4
        %v2233 = vshll.u32 %v1957, 16
        %v2235 = vrot.slane %v2233, 5
        %v2236 = vsel %vm361, %v2231, %v2235
        %v2238 = vshrl.u32 %v1958, 16
        %v2240 = vrot.slane %v2238, 4
        %v2241 = vshll.u32 %v1958, 16
        %v2243 = vrot.slane %v2241, 5
        %v2244 = vor.u32 %v2240, %v2243
        %v2245 = vrot.slane %v2244, 4
        %v2247 = vshll.u32 %v1959, 16
        %v2249 = vrot.slane %v2247, 5
        %v2250 = vsel %vm361, %v2245, %v2249
        %v2251 = vshrl.u32 %v1959, 16
        %v2253 = vrot.slane %v2251, 4
        %v2254 = vor.u32 %v2253, %v2249
        %v2255 = vrot.slane %v2254, 4
        %v2257 = vshll.u32 %v1960, 16
        %v2259 = vrot.slane %v2257, 5
        %v2260 = vsel %vm361, %v2255, %v2259
        %v2262 = vshrl.u32 %v1961, 16
        %v2264 = vrot.slane %v2262, 4
        %v2265 = vshll.u32 %v1961, 16
        %v2267 = vrot.slane %v2265, 5
        %v2268 = vor.u32 %v2264, %v2267
        %v2269 = vrot.slane %v2268, 4
        %v2271 = vshll.u32 %v1962, 16
        %v2273 = vrot.slane %v2271, 5
        %v2274 = vsel %vm361, %v2269, %v2273
        %v2275 = vshrl.u32 %v1962, 16
        %v2277 = vrot.slane %v2275, 4
        %v2278 = vor.u32 %v2277, %v2273
        %v2279 = vrot.slane %v2278, 4
        %v2281 = vshll.u32 %v1963, 16
        %v2283 = vrot.slane %v2281, 5
        %v2284 = vsel %vm361, %v2279, %v2283
        %v2286 = vshrl.u32 %v1964, 16
        %v2288 = vrot.slane %v2286, 4
        %v2289 = vshll.u32 %v1964, 16
        %v2291 = vrot.slane %v2289, 5
        %v2292 = vor.u32 %v2288, %v2291
        %v2293 = vrot.slane %v2292, 4
        %v2295 = vshll.u32 %v1965, 16
        %v2297 = vrot.slane %v2295, 5
        %v2298 = vsel %vm361, %v2293, %v2297
        %v2299 = vshrl.u32 %v1965, 16
        %v2301 = vrot.slane %v2299, 4
        %v2302 = vor.u32 %v2301, %v2297
        %v2303 = vrot.slane %v2302, 4
        %v2305 = vshll.u32 %v1966, 16
        %v2307 = vrot.slane %v2305, 5
        %v2308 = vsel %vm361, %v2303, %v2307
        %v2310 = vshrl.u32 %v1967, 16
        %v2312 = vrot.slane %v2310, 4
        %v2313 = vshll.u32 %v1967, 16
        %v2315 = vrot.slane %v2313, 5
        %v2316 = vor.u32 %v2312, %v2315
        %v2317 = vrot.slane %v2316, 4
        %v2319 = vshll.u32 %v1968, 16
        %v2321 = vrot.slane %v2319, 5
        %v2322 = vsel %vm361, %v2317, %v2321
        %v2323 = vshrl.u32 %v1968, 16
        %v2325 = vrot.slane %v2323, 4
        %v2326 = vor.u32 %v2325, %v2321
        %v2327 = vrot.slane %v2326, 4
        %v2329 = vshll.u32 %v1969, 16
        %v2331 = vrot.slane %v2329, 5
        %v2332 = vsel %vm361, %v2327, %v2331
        %v2334 = vshrl.u32 %v1970, 16
        %v2336 = vrot.slane %v2334, 4
        %v2337 = vshll.u32 %v1970, 16
        %v2339 = vrot.slane %v2337, 5
        %v2340 = vor.u32 %v2336, %v2339
        %v2341 = vrot.slane %v2340, 4
        %v2343 = vshll.u32 %v1971, 16
        %v2345 = vrot.slane %v2343, 5
        %v2346 = vsel %vm361, %v2341, %v2345
        %v2347 = vshrl.u32 %v1971, 16
        %v2349 = vrot.slane %v2347, 4
        %v2350 = vor.u32 %v2349, %v2345
        %v2351 = vrot.slane %v2350, 4
        %v2353 = vshll.u32 %v1972, 16
        %v2355 = vrot.slane %v2353, 5
        %v2356 = vsel %vm361, %v2351, %v2355
        %s2357 = scalar_lea.vmem %s1, 256
        %v2358 = vld [vmem:[%s2357] sm:$0xf]
        %v2359 = vld [vmem:[%s2357 + $0x4] sm:$0xf]
        %v2360 = vld [vmem:[%s2357 + $0x8] sm:$0xf]
        %v2361 = vld [vmem:[%s2357 + $0xc] sm:$0xf]
        %v2362 = vld [vmem:[%s2357 + $0x10] sm:$0xf]
        %v2363 = vld [vmem:[%s2357 + $0x14] sm:$0xf]
        %v2364 = vld [vmem:[%s2357 + $0x18] sm:$0xf]
        %v2365 = vld [vmem:[%s2357 + $0x1c] sm:$0xf]
        %v2366 = vld [vmem:[%s2357 + $0x20] sm:$0xf]
        %v2367 = vld [vmem:[%s2357 + $0x24] sm:$0xf]
        %v2368 = vld [vmem:[%s2357 + $0x28] sm:$0xf]
        %v2369 = vld [vmem:[%s2357 + $0x2c] sm:$0xf]
        %v2370 = vld [vmem:[%s2357 + $0x30] sm:$0xf]
        %v2371 = vld [vmem:[%s2357 + $0x34] sm:$0xf]
        %v2372 = vld [vmem:[%s2357 + $0x38] sm:$0xf]
        %v2373 = vld [vmem:[%s2357 + $0x3c] sm:$0xf]
        %v2374 = vunpack.c.l.b16 %v1986
        %v2375 = vunpack.c.l.b16 %v1996
        %v2376 = vunpack.c.l.b16 %v2010
        %v2377 = vunpack.c.l.b16 %v2020
        %v2378 = vunpack.c.l.b16 %v2034
        %v2379 = vunpack.c.l.b16 %v2044
        %v2380 = vunpack.c.l.b16 %v2058
        %v2381 = vunpack.c.l.b16 %v2068
        %v2382 = vunpack.c.l.b16 %v2082
        %v2383 = vunpack.c.l.b16 %v2092
        %v2384 = vunpack.c.l.b16 %v2106
        %v2385 = vunpack.c.l.b16 %v2116
        %v2386 = vunpack.c.l.b16 %v2130
        %v2387 = vunpack.c.l.b16 %v2140
        %v2388 = vunpack.c.l.b16 %v2154
        %v2389 = vunpack.c.l.b16 %v2164
        %v2390 = vunpack.c.l.b16 %v2178
        %v2391 = vunpack.c.l.b16 %v2188
        %v2392 = vunpack.c.l.b16 %v2202
        %v2393 = vunpack.c.l.b16 %v2212
        %v2394 = vunpack.c.l.b16 %v2226
        %v2395 = vunpack.c.l.b16 %v2236
        %v2396 = vunpack.c.l.b16 %v2250
        %v2397 = vunpack.c.l.b16 %v2260
        %v2398 = vunpack.c.l.b16 %v2274
        %v2399 = vunpack.c.l.b16 %v2284
        %v2400 = vunpack.c.l.b16 %v2298
        %v2401 = vunpack.c.l.b16 %v2308
        %v2402 = vunpack.c.l.b16 %v2322
        %v2403 = vunpack.c.l.b16 %v2332
        %v2404 = vunpack.c.l.b16 %v2346
        %v2405 = vunpack.c.l.b16 %v2356
        %v2406 = vpack.c.b16 %v2375, %v2374
        %v2407 = vpack.c.b16 %v2377, %v2376
        %v2408 = vpack.c.b16 %v2379, %v2378
        %v2409 = vpack.c.b16 %v2381, %v2380
        %v2410 = vpack.c.b16 %v2383, %v2382
        %v2411 = vpack.c.b16 %v2385, %v2384
        %v2412 = vpack.c.b16 %v2387, %v2386
        %v2413 = vpack.c.b16 %v2389, %v2388
        %v2414 = vpack.c.b16 %v2391, %v2390
        %v2415 = vpack.c.b16 %v2393, %v2392
        %v2416 = vpack.c.b16 %v2395, %v2394
        %v2417 = vpack.c.b16 %v2397, %v2396
        %v2418 = vpack.c.b16 %v2399, %v2398
        %v2419 = vpack.c.b16 %v2401, %v2400
        %v2420 = vpack.c.b16 %v2403, %v2402
        %v2421 = vpack.c.b16 %v2405, %v2404
        %v2454 = vunpack.c.l.b16 %v2358
        %v2455 = vunpack.c.l.b16 %v2359
        %v2456 = vunpack.c.l.b16 %v2360
        %v2457 = vunpack.c.l.b16 %v2361
        %v2458 = vunpack.c.l.b16 %v2362
        %v2459 = vunpack.c.l.b16 %v2363
        %v2460 = vunpack.c.l.b16 %v2364
        %v2461 = vunpack.c.l.b16 %v2365
        %v2462 = vunpack.c.l.b16 %v2366
        %v2463 = vunpack.c.l.b16 %v2367
        %v2464 = vunpack.c.l.b16 %v2368
        %v2465 = vunpack.c.l.b16 %v2369
        %v2466 = vunpack.c.l.b16 %v2370
        %v2467 = vunpack.c.l.b16 %v2371
        %v2468 = vunpack.c.l.b16 %v2372
        %v2469 = vunpack.c.l.b16 %v2373
        %v2470 = vpack.c.b16 %v2455, %v2454
        %v2471 = vpack.c.b16 %v2457, %v2456
        %v2472 = vpack.c.b16 %v2459, %v2458
        %v2473 = vpack.c.b16 %v2461, %v2460
        %v2474 = vpack.c.b16 %v2463, %v2462
        %v2475 = vpack.c.b16 %v2465, %v2464
        %v2476 = vpack.c.b16 %v2467, %v2466
        %v2477 = vpack.c.b16 %v2469, %v2468
        %2486 = vmatpush.bf16.msra.mxu0 %v2477
        %2487 = vmatpush.bf16.msra.mxu0 %v2476
        %2488 = vmatpush.bf16.msra.mxu0 %v2475
        %2489 = vmatpush.bf16.msra.mxu0 %v2474
        %2490 = vmatpush.bf16.msra.mxu0 %v2473
        %2491 = vmatpush.bf16.msra.mxu0 %v2472
        %2492 = vmatpush.bf16.msra.mxu0 %v2471
        %2493 = vmatpush.bf16.msra.mxu0 %v2470
        %2494 = vmatmul.bf16.gmra.mxu0 %v2406
        %v2495 = vpop.f32.mrf.mxu0
        %v2496 = vadd.f32 0.0, %v2495
        %v2497 = vpop.f32.mrf.mxu0
        %v2498 = vadd.f32 0.0, %v2497
        %2499 = vmatmul.bf16.gmra.mxu0 %v2407
        %v2500 = vpop.f32.mrf.mxu0
        %v2501 = vadd.f32 0.0, %v2500
        %v2502 = vpop.f32.mrf.mxu0
        %v2503 = vadd.f32 0.0, %v2502
        %2504 = vmatmul.bf16.gmra.mxu0 %v2408
        %v2505 = vpop.f32.mrf.mxu0
        %v2506 = vadd.f32 0.0, %v2505
        %v2507 = vpop.f32.mrf.mxu0
        %v2508 = vadd.f32 0.0, %v2507
        %2509 = vmatmul.bf16.gmra.mxu0 %v2409
        %v2510 = vpop.f32.mrf.mxu0
        %v2511 = vadd.f32 0.0, %v2510
        %v2512 = vpop.f32.mrf.mxu0
        %v2513 = vadd.f32 0.0, %v2512
        %2514 = vmatmul.bf16.gmra.mxu0 %v2410
        %v2515 = vpop.f32.mrf.mxu0
        %v2516 = vadd.f32 0.0, %v2515
        %v2517 = vpop.f32.mrf.mxu0
        %v2518 = vadd.f32 0.0, %v2517
        %2519 = vmatmul.bf16.gmra.mxu0 %v2411
        %v2520 = vpop.f32.mrf.mxu0
        %v2521 = vadd.f32 0.0, %v2520
        %v2522 = vpop.f32.mrf.mxu0
        %v2523 = vadd.f32 0.0, %v2522
        %2524 = vmatmul.bf16.gmra.mxu0 %v2412
        %v2525 = vpop.f32.mrf.mxu0
        %v2526 = vadd.f32 0.0, %v2525
        %v2527 = vpop.f32.mrf.mxu0
        %v2528 = vadd.f32 0.0, %v2527
        %2529 = vmatmul.bf16.gmra.mxu0 %v2413
        %v2530 = vpop.f32.mrf.mxu0
        %v2531 = vadd.f32 0.0, %v2530
        %v2532 = vpop.f32.mrf.mxu0
        %v2533 = vadd.f32 0.0, %v2532
        %2534 = vmatmul.bf16.gmra.mxu0 %v2414
        %v2535 = vpop.f32.mrf.mxu0
        %v2536 = vadd.f32 0.0, %v2535
        %v2537 = vpop.f32.mrf.mxu0
        %v2538 = vadd.f32 0.0, %v2537
        %2539 = vmatmul.bf16.gmra.mxu0 %v2415
        %v2540 = vpop.f32.mrf.mxu0
        %v2541 = vadd.f32 0.0, %v2540
        %v2542 = vpop.f32.mrf.mxu0
        %v2543 = vadd.f32 0.0, %v2542
        %2544 = vmatmul.bf16.gmra.mxu0 %v2416
        %v2545 = vpop.f32.mrf.mxu0
        %v2546 = vadd.f32 0.0, %v2545
        %v2547 = vpop.f32.mrf.mxu0
        %v2548 = vadd.f32 0.0, %v2547
        %2549 = vmatmul.bf16.gmra.mxu0 %v2417
        %v2550 = vpop.f32.mrf.mxu0
        %v2551 = vadd.f32 0.0, %v2550
        %v2552 = vpop.f32.mrf.mxu0
        %v2553 = vadd.f32 0.0, %v2552
        %2554 = vmatmul.bf16.gmra.mxu0 %v2418
        %v2555 = vpop.f32.mrf.mxu0
        %v2556 = vadd.f32 0.0, %v2555
        %v2557 = vpop.f32.mrf.mxu0
        %v2558 = vadd.f32 0.0, %v2557
        %2559 = vmatmul.bf16.gmra.mxu0 %v2419
        %v2560 = vpop.f32.mrf.mxu0
        %v2561 = vadd.f32 0.0, %v2560
        %v2562 = vpop.f32.mrf.mxu0
        %v2563 = vadd.f32 0.0, %v2562
        %2564 = vmatmul.bf16.gmra.mxu0 %v2420
        %v2565 = vpop.f32.mrf.mxu0
        %v2566 = vadd.f32 0.0, %v2565
        %v2567 = vpop.f32.mrf.mxu0
        %v2568 = vadd.f32 0.0, %v2567
        %2569 = vmatmul.bf16.gmra.mxu0 %v2421
        %v2570 = vpop.f32.mrf.mxu0
        %v2571 = vadd.f32 0.0, %v2570
        %v2572 = vpop.f32.mrf.mxu0
        %v2573 = vadd.f32 0.0, %v2572
        %2574 = vdwg.mxu0
        %v2575 = vadd.f32 %v1893, %v2496
        %v2576 = vadd.f32 %v1894, %v2498
        %v2577 = vadd.f32 %v1895, %v2501
        %v2578 = vadd.f32 %v1896, %v2503
        %v2579 = vadd.f32 %v1897, %v2506
        %v2580 = vadd.f32 %v1898, %v2508
        %v2581 = vadd.f32 %v1899, %v2511
        %v2582 = vadd.f32 %v1900, %v2513
        %v2583 = vadd.f32 %v1901, %v2516
        %v2584 = vadd.f32 %v1902, %v2518
        %v2585 = vadd.f32 %v1903, %v2521
        %v2586 = vadd.f32 %v1904, %v2523
        %v2587 = vadd.f32 %v1905, %v2526
        %v2588 = vadd.f32 %v1906, %v2528
        %v2589 = vadd.f32 %v1907, %v2531
        %v2590 = vadd.f32 %v1908, %v2533
        %v2591 = vadd.f32 %v1909, %v2536
        %v2592 = vadd.f32 %v1910, %v2538
        %v2593 = vadd.f32 %v1911, %v2541
        %v2594 = vadd.f32 %v1912, %v2543
        %v2595 = vadd.f32 %v1913, %v2546
        %v2596 = vadd.f32 %v1914, %v2548
        %v2597 = vadd.f32 %v1915, %v2551
        %v2598 = vadd.f32 %v1916, %v2553
        %v2599 = vadd.f32 %v1917, %v2556
        %v2600 = vadd.f32 %v1918, %v2558
        %v2601 = vadd.f32 %v1919, %v2561
        %v2602 = vadd.f32 %v1920, %v2563
        %v2603 = vadd.f32 %v1921, %v2566
        %v2604 = vadd.f32 %v1922, %v2568
        %v2605 = vadd.f32 %v1923, %v2571
        %v2606 = vadd.f32 %v1924, %v2573
        %v2607 = vld [vmem:[%s1610] sm:$0xe]
        %v2608 = vld [vmem:[%s1610 + $0xc] sm:$0xe]
        %v2609 = vld [vmem:[%s1610 + $0x18] sm:$0xe]
        %v2610 = vld [vmem:[%s1610 + $0x24] sm:$0xe]
        %v2611 = vld [vmem:[%s1610 + $0x30] sm:$0xe]
        %v2612 = vld [vmem:[%s1610 + $0x3c] sm:$0xe]
        %v2613 = vld [vmem:[%s1610 + $0x48] sm:$0xe]
        %v2614 = vld [vmem:[%s1610 + $0x54] sm:$0xe]
        %v2615 = vld [vmem:[%s1610 + $0x60] sm:$0xe]
        %v2616 = vld [vmem:[%s1610 + $0x6c] sm:$0xe]
        %v2617 = vld [vmem:[%s1610 + $0x78] sm:$0xe]
        %v2618 = vld [vmem:[%s1610 + $0x84] sm:$0xe]
        %v2619 = vld [vmem:[%s1610 + $0x90] sm:$0xe]
        %v2620 = vld [vmem:[%s1610 + $0x9c] sm:$0xe]
        %v2621 = vld [vmem:[%s1610 + $0xa8] sm:$0xe]
        %v2622 = vld [vmem:[%s1610 + $0xb4] sm:$0xe]
        %v2671 = vrot.slane %v2607, 5
        %v2672 = vrot.slane %v2671, 4
        %v2673 = vrot.slane %v1926, 5
        %v2674 = vsel %vm1247, %v2672, %v2673
        %v2675 = vrot.slane %v2673, 4
        %v2676 = vrot.slane %v1927, 5
        %v2677 = vsel %vm1247, %v2675, %v2676
        %v2678 = vrot.slane %v2608, 5
        %v2679 = vrot.slane %v2678, 4
        %v2680 = vrot.slane %v1929, 5
        %v2681 = vsel %vm1247, %v2679, %v2680
        %v2682 = vrot.slane %v2680, 4
        %v2683 = vrot.slane %v1930, 5
        %v2684 = vsel %vm1247, %v2682, %v2683
        %v2685 = vrot.slane %v2609, 5
        %v2686 = vrot.slane %v2685, 4
        %v2687 = vrot.slane %v1932, 5
        %v2688 = vsel %vm1247, %v2686, %v2687
        %v2689 = vrot.slane %v2687, 4
        %v2690 = vrot.slane %v1933, 5
        %v2691 = vsel %vm1247, %v2689, %v2690
        %v2692 = vrot.slane %v2610, 5
        %v2693 = vrot.slane %v2692, 4
        %v2694 = vrot.slane %v1935, 5
        %v2695 = vsel %vm1247, %v2693, %v2694
        %v2696 = vrot.slane %v2694, 4
        %v2697 = vrot.slane %v1936, 5
        %v2698 = vsel %vm1247, %v2696, %v2697
        %v2699 = vrot.slane %v2611, 5
        %v2700 = vrot.slane %v2699, 4
        %v2701 = vrot.slane %v1938, 5
        %v2702 = vsel %vm1247, %v2700, %v2701
        %v2703 = vrot.slane %v2701, 4
        %v2704 = vrot.slane %v1939, 5
        %v2705 = vsel %vm1247, %v2703, %v2704
        %v2706 = vrot.slane %v2612, 5
        %v2707 = vrot.slane %v2706, 4
        %v2708 = vrot.slane %v1941, 5
        %v2709 = vsel %vm1247, %v2707, %v2708
        %v2710 = vrot.slane %v2708, 4
        %v2711 = vrot.slane %v1942, 5
        %v2712 = vsel %vm1247, %v2710, %v2711
        %v2713 = vrot.slane %v2613, 5
        %v2714 = vrot.slane %v2713, 4
        %v2715 = vrot.slane %v1944, 5
        %v2716 = vsel %vm1247, %v2714, %v2715
        %v2717 = vrot.slane %v2715, 4
        %v2718 = vrot.slane %v1945, 5
        %v2719 = vsel %vm1247, %v2717, %v2718
        %v2720 = vrot.slane %v2614, 5
        %v2721 = vrot.slane %v2720, 4
        %v2722 = vrot.slane %v1947, 5
        %v2723 = vsel %vm1247, %v2721, %v2722
        %v2724 = vrot.slane %v2722, 4
        %v2725 = vrot.slane %v1948, 5
        %v2726 = vsel %vm1247, %v2724, %v2725
        %v2727 = vrot.slane %v2615, 5
        %v2728 = vrot.slane %v2727, 4
        %v2729 = vrot.slane %v1950, 5
        %v2730 = vsel %vm1247, %v2728, %v2729
        %v2731 = vrot.slane %v2729, 4
        %v2732 = vrot.slane %v1951, 5
        %v2733 = vsel %vm1247, %v2731, %v2732
        %v2734 = vrot.slane %v2616, 5
        %v2735 = vrot.slane %v2734, 4
        %v2736 = vrot.slane %v1953, 5
        %v2737 = vsel %vm1247, %v2735, %v2736
        %v2738 = vrot.slane %v2736, 4
        %v2739 = vrot.slane %v1954, 5
        %v2740 = vsel %vm1247, %v2738, %v2739
        %v2741 = vrot.slane %v2617, 5
        %v2742 = vrot.slane %v2741, 4
        %v2743 = vrot.slane %v1956, 5
        %v2744 = vsel %vm1247, %v2742, %v2743
        %v2745 = vrot.slane %v2743, 4
        %v2746 = vrot.slane %v1957, 5
        %v2747 = vsel %vm1247, %v2745, %v2746
        %v2748 = vrot.slane %v2618, 5
        %v2749 = vrot.slane %v2748, 4
        %v2750 = vrot.slane %v1959, 5
        %v2751 = vsel %vm1247, %v2749, %v2750
        %v2752 = vrot.slane %v2750, 4
        %v2753 = vrot.slane %v1960, 5
        %v2754 = vsel %vm1247, %v2752, %v2753
        %v2755 = vrot.slane %v2619, 5
        %v2756 = vrot.slane %v2755, 4
        %v2757 = vrot.slane %v1962, 5
        %v2758 = vsel %vm1247, %v2756, %v2757
        %v2759 = vrot.slane %v2757, 4
        %v2760 = vrot.slane %v1963, 5
        %v2761 = vsel %vm1247, %v2759, %v2760
        %v2762 = vrot.slane %v2620, 5
        %v2763 = vrot.slane %v2762, 4
        %v2764 = vrot.slane %v1965, 5
        %v2765 = vsel %vm1247, %v2763, %v2764
        %v2766 = vrot.slane %v2764, 4
        %v2767 = vrot.slane %v1966, 5
        %v2768 = vsel %vm1247, %v2766, %v2767
        %v2769 = vrot.slane %v2621, 5
        %v2770 = vrot.slane %v2769, 4
        %v2771 = vrot.slane %v1968, 5
        %v2772 = vsel %vm1247, %v2770, %v2771
        %v2773 = vrot.slane %v2771, 4
        %v2774 = vrot.slane %v1969, 5
        %v2775 = vsel %vm1247, %v2773, %v2774
        %v2776 = vrot.slane %v2622, 5
        %v2777 = vrot.slane %v2776, 4
        %v2778 = vrot.slane %v1971, 5
        %v2779 = vsel %vm1247, %v2777, %v2778
        %v2780 = vrot.slane %v2778, 4
        %v2781 = vrot.slane %v1972, 5
        %v2782 = vsel %vm1247, %v2780, %v2781
        %s2783 = scalar_lea.vmem %s1, 320
        %v2784 = vld [vmem:[%s2783] sm:$0xf]
        %v2785 = vld [vmem:[%s2783 + $0x4] sm:$0xf]
        %v2786 = vld [vmem:[%s2783 + $0x8] sm:$0xf]
        %v2787 = vld [vmem:[%s2783 + $0xc] sm:$0xf]
        %v2788 = vld [vmem:[%s2783 + $0x10] sm:$0xf]
        %v2789 = vld [vmem:[%s2783 + $0x14] sm:$0xf]
        %v2790 = vld [vmem:[%s2783 + $0x18] sm:$0xf]
        %v2791 = vld [vmem:[%s2783 + $0x1c] sm:$0xf]
        %v2792 = vld [vmem:[%s2783 + $0x20] sm:$0xf]
        %v2793 = vld [vmem:[%s2783 + $0x24] sm:$0xf]
        %v2794 = vld [vmem:[%s2783 + $0x28] sm:$0xf]
        %v2795 = vld [vmem:[%s2783 + $0x2c] sm:$0xf]
        %v2796 = vld [vmem:[%s2783 + $0x30] sm:$0xf]
        %v2797 = vld [vmem:[%s2783 + $0x34] sm:$0xf]
        %v2798 = vld [vmem:[%s2783 + $0x38] sm:$0xf]
        %v2799 = vld [vmem:[%s2783 + $0x3c] sm:$0xf]
        %v2800 = vunpack.c.l.b16 %v2674
        %v2801 = vunpack.c.l.b16 %v2677
        %v2802 = vunpack.c.l.b16 %v2681
        %v2803 = vunpack.c.l.b16 %v2684
        %v2804 = vunpack.c.l.b16 %v2688
        %v2805 = vunpack.c.l.b16 %v2691
        %v2806 = vunpack.c.l.b16 %v2695
        %v2807 = vunpack.c.l.b16 %v2698
        %v2808 = vunpack.c.l.b16 %v2702
        %v2809 = vunpack.c.l.b16 %v2705
        %v2810 = vunpack.c.l.b16 %v2709
        %v2811 = vunpack.c.l.b16 %v2712
        %v2812 = vunpack.c.l.b16 %v2716
        %v2813 = vunpack.c.l.b16 %v2719
        %v2814 = vunpack.c.l.b16 %v2723
        %v2815 = vunpack.c.l.b16 %v2726
        %v2816 = vunpack.c.l.b16 %v2730
        %v2817 = vunpack.c.l.b16 %v2733
        %v2818 = vunpack.c.l.b16 %v2737
        %v2819 = vunpack.c.l.b16 %v2740
        %v2820 = vunpack.c.l.b16 %v2744
        %v2821 = vunpack.c.l.b16 %v2747
        %v2822 = vunpack.c.l.b16 %v2751
        %v2823 = vunpack.c.l.b16 %v2754
        %v2824 = vunpack.c.l.b16 %v2758
        %v2825 = vunpack.c.l.b16 %v2761
        %v2826 = vunpack.c.l.b16 %v2765
        %v2827 = vunpack.c.l.b16 %v2768
        %v2828 = vunpack.c.l.b16 %v2772
        %v2829 = vunpack.c.l.b16 %v2775
        %v2830 = vunpack.c.l.b16 %v2779
        %v2831 = vunpack.c.l.b16 %v2782
        %v2832 = vpack.c.b16 %v2801, %v2800
        %v2833 = vpack.c.b16 %v2803, %v2802
        %v2834 = vpack.c.b16 %v2805, %v2804
        %v2835 = vpack.c.b16 %v2807, %v2806
        %v2836 = vpack.c.b16 %v2809, %v2808
        %v2837 = vpack.c.b16 %v2811, %v2810
        %v2838 = vpack.c.b16 %v2813, %v2812
        %v2839 = vpack.c.b16 %v2815, %v2814
        %v2840 = vpack.c.b16 %v2817, %v2816
        %v2841 = vpack.c.b16 %v2819, %v2818
        %v2842 = vpack.c.b16 %v2821, %v2820
        %v2843 = vpack.c.b16 %v2823, %v2822
        %v2844 = vpack.c.b16 %v2825, %v2824
        %v2845 = vpack.c.b16 %v2827, %v2826
        %v2846 = vpack.c.b16 %v2829, %v2828
        %v2847 = vpack.c.b16 %v2831, %v2830
        %v2880 = vunpack.c.l.b16 %v2784
        %v2881 = vunpack.c.l.b16 %v2785
        %v2882 = vunpack.c.l.b16 %v2786
        %v2883 = vunpack.c.l.b16 %v2787
        %v2884 = vunpack.c.l.b16 %v2788
        %v2885 = vunpack.c.l.b16 %v2789
        %v2886 = vunpack.c.l.b16 %v2790
        %v2887 = vunpack.c.l.b16 %v2791
        %v2888 = vunpack.c.l.b16 %v2792
        %v2889 = vunpack.c.l.b16 %v2793
        %v2890 = vunpack.c.l.b16 %v2794
        %v2891 = vunpack.c.l.b16 %v2795
        %v2892 = vunpack.c.l.b16 %v2796
        %v2893 = vunpack.c.l.b16 %v2797
        %v2894 = vunpack.c.l.b16 %v2798
        %v2895 = vunpack.c.l.b16 %v2799
        %v2896 = vpack.c.b16 %v2881, %v2880
        %v2897 = vpack.c.b16 %v2883, %v2882
        %v2898 = vpack.c.b16 %v2885, %v2884
        %v2899 = vpack.c.b16 %v2887, %v2886
        %v2900 = vpack.c.b16 %v2889, %v2888
        %v2901 = vpack.c.b16 %v2891, %v2890
        %v2902 = vpack.c.b16 %v2893, %v2892
        %v2903 = vpack.c.b16 %v2895, %v2894
        %2912 = vmatpush.bf16.msra.mxu0 %v2903
        %2913 = vmatpush.bf16.msra.mxu0 %v2902
        %2914 = vmatpush.bf16.msra.mxu0 %v2901
        %2915 = vmatpush.bf16.msra.mxu0 %v2900
        %2916 = vmatpush.bf16.msra.mxu0 %v2899
        %2917 = vmatpush.bf16.msra.mxu0 %v2898
        %2918 = vmatpush.bf16.msra.mxu0 %v2897
        %2919 = vmatpush.bf16.msra.mxu0 %v2896
        %2920 = vmatmul.bf16.gmra.mxu0 %v2832
        %v2921 = vpop.f32.mrf.mxu0
        %v2922 = vadd.f32 0.0, %v2921
        %v2923 = vpop.f32.mrf.mxu0
        %v2924 = vadd.f32 0.0, %v2923
        %2925 = vmatmul.bf16.gmra.mxu0 %v2833
        %v2926 = vpop.f32.mrf.mxu0
        %v2927 = vadd.f32 0.0, %v2926
        %v2928 = vpop.f32.mrf.mxu0
        %v2929 = vadd.f32 0.0, %v2928
        %2930 = vmatmul.bf16.gmra.mxu0 %v2834
        %v2931 = vpop.f32.mrf.mxu0
        %v2932 = vadd.f32 0.0, %v2931
        %v2933 = vpop.f32.mrf.mxu0
        %v2934 = vadd.f32 0.0, %v2933
        %2935 = vmatmul.bf16.gmra.mxu0 %v2835
        %v2936 = vpop.f32.mrf.mxu0
        %v2937 = vadd.f32 0.0, %v2936
        %v2938 = vpop.f32.mrf.mxu0
        %v2939 = vadd.f32 0.0, %v2938
        %2940 = vmatmul.bf16.gmra.mxu0 %v2836
        %v2941 = vpop.f32.mrf.mxu0
        %v2942 = vadd.f32 0.0, %v2941
        %v2943 = vpop.f32.mrf.mxu0
        %v2944 = vadd.f32 0.0, %v2943
        %2945 = vmatmul.bf16.gmra.mxu0 %v2837
        %v2946 = vpop.f32.mrf.mxu0
        %v2947 = vadd.f32 0.0, %v2946
        %v2948 = vpop.f32.mrf.mxu0
        %v2949 = vadd.f32 0.0, %v2948
        %2950 = vmatmul.bf16.gmra.mxu0 %v2838
        %v2951 = vpop.f32.mrf.mxu0
        %v2952 = vadd.f32 0.0, %v2951
        %v2953 = vpop.f32.mrf.mxu0
        %v2954 = vadd.f32 0.0, %v2953
        %2955 = vmatmul.bf16.gmra.mxu0 %v2839
        %v2956 = vpop.f32.mrf.mxu0
        %v2957 = vadd.f32 0.0, %v2956
        %v2958 = vpop.f32.mrf.mxu0
        %v2959 = vadd.f32 0.0, %v2958
        %2960 = vmatmul.bf16.gmra.mxu0 %v2840
        %v2961 = vpop.f32.mrf.mxu0
        %v2962 = vadd.f32 0.0, %v2961
        %v2963 = vpop.f32.mrf.mxu0
        %v2964 = vadd.f32 0.0, %v2963
        %2965 = vmatmul.bf16.gmra.mxu0 %v2841
        %v2966 = vpop.f32.mrf.mxu0
        %v2967 = vadd.f32 0.0, %v2966
        %v2968 = vpop.f32.mrf.mxu0
        %v2969 = vadd.f32 0.0, %v2968
        %2970 = vmatmul.bf16.gmra.mxu0 %v2842
        %v2971 = vpop.f32.mrf.mxu0
        %v2972 = vadd.f32 0.0, %v2971
        %v2973 = vpop.f32.mrf.mxu0
        %v2974 = vadd.f32 0.0, %v2973
        %2975 = vmatmul.bf16.gmra.mxu0 %v2843
        %v2976 = vpop.f32.mrf.mxu0
        %v2977 = vadd.f32 0.0, %v2976
        %v2978 = vpop.f32.mrf.mxu0
        %v2979 = vadd.f32 0.0, %v2978
        %2980 = vmatmul.bf16.gmra.mxu0 %v2844
        %v2981 = vpop.f32.mrf.mxu0
        %v2982 = vadd.f32 0.0, %v2981
        %v2983 = vpop.f32.mrf.mxu0
        %v2984 = vadd.f32 0.0, %v2983
        %2985 = vmatmul.bf16.gmra.mxu0 %v2845
        %v2986 = vpop.f32.mrf.mxu0
        %v2987 = vadd.f32 0.0, %v2986
        %v2988 = vpop.f32.mrf.mxu0
        %v2989 = vadd.f32 0.0, %v2988
        %2990 = vmatmul.bf16.gmra.mxu0 %v2846
        %v2991 = vpop.f32.mrf.mxu0
        %v2992 = vadd.f32 0.0, %v2991
        %v2993 = vpop.f32.mrf.mxu0
        %v2994 = vadd.f32 0.0, %v2993
        %2995 = vmatmul.bf16.gmra.mxu0 %v2847
        %v2996 = vpop.f32.mrf.mxu0
        %v2997 = vadd.f32 0.0, %v2996
        %v2998 = vpop.f32.mrf.mxu0
        %v2999 = vadd.f32 0.0, %v2998
        %3000 = vdwg.mxu0
        %v3001 = vadd.f32 %v2575, %v2922
        %v3002 = vadd.f32 %v2576, %v2924
        %v3003 = vadd.f32 %v2577, %v2927
        %v3004 = vadd.f32 %v2578, %v2929
        %v3005 = vadd.f32 %v2579, %v2932
        %v3006 = vadd.f32 %v2580, %v2934
        %v3007 = vadd.f32 %v2581, %v2937
        %v3008 = vadd.f32 %v2582, %v2939
        %v3009 = vadd.f32 %v2583, %v2942
        %v3010 = vadd.f32 %v2584, %v2944
        %v3011 = vadd.f32 %v2585, %v2947
        %v3012 = vadd.f32 %v2586, %v2949
        %v3013 = vadd.f32 %v2587, %v2952
        %v3014 = vadd.f32 %v2588, %v2954
        %v3015 = vadd.f32 %v2589, %v2957
        %v3016 = vadd.f32 %v2590, %v2959
        %v3017 = vadd.f32 %v2591, %v2962
        %v3018 = vadd.f32 %v2592, %v2964
        %v3019 = vadd.f32 %v2593, %v2967
        %v3020 = vadd.f32 %v2594, %v2969
        %v3021 = vadd.f32 %v2595, %v2972
        %v3022 = vadd.f32 %v2596, %v2974
        %v3023 = vadd.f32 %v2597, %v2977
        %v3024 = vadd.f32 %v2598, %v2979
        %v3025 = vadd.f32 %v2599, %v2982
        %v3026 = vadd.f32 %v2600, %v2984
        %v3027 = vadd.f32 %v2601, %v2987
        %v3028 = vadd.f32 %v2602, %v2989
        %v3029 = vadd.f32 %v2603, %v2992
        %v3030 = vadd.f32 %v2604, %v2994
        %v3031 = vadd.f32 %v2605, %v2997
        %v3032 = vadd.f32 %v2606, %v2999
        %s3033 = scalar_lea.vmem %s293, 24
        %v3034 = vld [vmem:[%s3033] sm:$0xf]
        %v3035 = vld [vmem:[%s3033 + $0x4] sm:$0xf]
        %v3036 = vld [vmem:[%s3033 + $0xc] sm:$0xf]
        %v3037 = vld [vmem:[%s3033 + $0x10] sm:$0xf]
        %v3038 = vld [vmem:[%s3033 + $0x18] sm:$0xf]
        %v3039 = vld [vmem:[%s3033 + $0x1c] sm:$0xf]
        %v3040 = vld [vmem:[%s3033 + $0x24] sm:$0xf]
        %v3041 = vld [vmem:[%s3033 + $0x28] sm:$0xf]
        %v3042 = vld [vmem:[%s3033 + $0x30] sm:$0xf]
        %v3043 = vld [vmem:[%s3033 + $0x34] sm:$0xf]
        %v3044 = vld [vmem:[%s3033 + $0x3c] sm:$0xf]
        %v3045 = vld [vmem:[%s3033 + $0x40] sm:$0xf]
        %v3046 = vld [vmem:[%s3033 + $0x48] sm:$0xf]
        %v3047 = vld [vmem:[%s3033 + $0x4c] sm:$0xf]
        %v3048 = vld [vmem:[%s3033 + $0x54] sm:$0xf]
        %v3049 = vld [vmem:[%s3033 + $0x58] sm:$0xf]
        %v3050 = vld [vmem:[%s3033 + $0x60] sm:$0xf]
        %v3051 = vld [vmem:[%s3033 + $0x64] sm:$0xf]
        %v3052 = vld [vmem:[%s3033 + $0x6c] sm:$0xf]
        %v3053 = vld [vmem:[%s3033 + $0x70] sm:$0xf]
        %v3054 = vld [vmem:[%s3033 + $0x78] sm:$0xf]
        %v3055 = vld [vmem:[%s3033 + $0x7c] sm:$0xf]
        %v3056 = vld [vmem:[%s3033 + $0x84] sm:$0xf]
        %v3057 = vld [vmem:[%s3033 + $0x88] sm:$0xf]
        %v3058 = vld [vmem:[%s3033 + $0x90] sm:$0xf]
        %v3059 = vld [vmem:[%s3033 + $0x94] sm:$0xf]
        %v3060 = vld [vmem:[%s3033 + $0x9c] sm:$0xf]
        %v3061 = vld [vmem:[%s3033 + $0xa0] sm:$0xf]
        %v3062 = vld [vmem:[%s3033 + $0xa8] sm:$0xf]
        %v3063 = vld [vmem:[%s3033 + $0xac] sm:$0xf]
        %v3064 = vld [vmem:[%s3033 + $0xb4] sm:$0xf]
        %v3065 = vld [vmem:[%s3033 + $0xb8] sm:$0xf]
        %s3066 = scalar_lea.vmem %s1, 384
        %v3067 = vld [vmem:[%s3066] sm:$0xf]
        %v3068 = vld [vmem:[%s3066 + $0x4] sm:$0xf]
        %v3069 = vld [vmem:[%s3066 + $0x8] sm:$0xf]
        %v3070 = vld [vmem:[%s3066 + $0xc] sm:$0xf]
        %v3071 = vld [vmem:[%s3066 + $0x10] sm:$0xf]
        %v3072 = vld [vmem:[%s3066 + $0x14] sm:$0xf]
        %v3073 = vld [vmem:[%s3066 + $0x18] sm:$0xf]
        %v3074 = vld [vmem:[%s3066 + $0x1c] sm:$0xf]
        %v3075 = vld [vmem:[%s3066 + $0x20] sm:$0xf]
        %v3076 = vld [vmem:[%s3066 + $0x24] sm:$0xf]
        %v3077 = vld [vmem:[%s3066 + $0x28] sm:$0xf]
        %v3078 = vld [vmem:[%s3066 + $0x2c] sm:$0xf]
        %v3079 = vld [vmem:[%s3066 + $0x30] sm:$0xf]
        %v3080 = vld [vmem:[%s3066 + $0x34] sm:$0xf]
        %v3081 = vld [vmem:[%s3066 + $0x38] sm:$0xf]
        %v3082 = vld [vmem:[%s3066 + $0x3c] sm:$0xf]
        %v3115 = vunpack.c.l.b16 %v3034
        %v3116 = vunpack.c.l.b16 %v3035
        %v3117 = vunpack.c.l.b16 %v3036
        %v3118 = vunpack.c.l.b16 %v3037
        %v3119 = vunpack.c.l.b16 %v3038
        %v3120 = vunpack.c.l.b16 %v3039
        %v3121 = vunpack.c.l.b16 %v3040
        %v3122 = vunpack.c.l.b16 %v3041
        %v3123 = vunpack.c.l.b16 %v3042
        %v3124 = vunpack.c.l.b16 %v3043
        %v3125 = vunpack.c.l.b16 %v3044
        %v3126 = vunpack.c.l.b16 %v3045
        %v3127 = vunpack.c.l.b16 %v3046
        %v3128 = vunpack.c.l.b16 %v3047
        %v3129 = vunpack.c.l.b16 %v3048
        %v3130 = vunpack.c.l.b16 %v3049
        %v3131 = vunpack.c.l.b16 %v3050
        %v3132 = vunpack.c.l.b16 %v3051
        %v3133 = vunpack.c.l.b16 %v3052
        %v3134 = vunpack.c.l.b16 %v3053
        %v3135 = vunpack.c.l.b16 %v3054
        %v3136 = vunpack.c.l.b16 %v3055
        %v3137 = vunpack.c.l.b16 %v3056
        %v3138 = vunpack.c.l.b16 %v3057
        %v3139 = vunpack.c.l.b16 %v3058
        %v3140 = vunpack.c.l.b16 %v3059
        %v3141 = vunpack.c.l.b16 %v3060
        %v3142 = vunpack.c.l.b16 %v3061
        %v3143 = vunpack.c.l.b16 %v3062
        %v3144 = vunpack.c.l.b16 %v3063
        %v3145 = vunpack.c.l.b16 %v3064
        %v3146 = vunpack.c.l.b16 %v3065
        %v3147 = vpack.c.b16 %v3116, %v3115
        %v3148 = vpack.c.b16 %v3118, %v3117
        %v3149 = vpack.c.b16 %v3120, %v3119
        %v3150 = vpack.c.b16 %v3122, %v3121
        %v3151 = vpack.c.b16 %v3124, %v3123
        %v3152 = vpack.c.b16 %v3126, %v3125
        %v3153 = vpack.c.b16 %v3128, %v3127
        %v3154 = vpack.c.b16 %v3130, %v3129
        %v3155 = vpack.c.b16 %v3132, %v3131
        %v3156 = vpack.c.b16 %v3134, %v3133
        %v3157 = vpack.c.b16 %v3136, %v3135
        %v3158 = vpack.c.b16 %v3138, %v3137
        %v3159 = vpack.c.b16 %v3140, %v3139
        %v3160 = vpack.c.b16 %v3142, %v3141
        %v3161 = vpack.c.b16 %v3144, %v3143
        %v3162 = vpack.c.b16 %v3146, %v3145
        %v3195 = vunpack.c.l.b16 %v3067
        %v3196 = vunpack.c.l.b16 %v3068
        %v3197 = vunpack.c.l.b16 %v3069
        %v3198 = vunpack.c.l.b16 %v3070
        %v3199 = vunpack.c.l.b16 %v3071
        %v3200 = vunpack.c.l.b16 %v3072
        %v3201 = vunpack.c.l.b16 %v3073
        %v3202 = vunpack.c.l.b16 %v3074
        %v3203 = vunpack.c.l.b16 %v3075
        %v3204 = vunpack.c.l.b16 %v3076
        %v3205 = vunpack.c.l.b16 %v3077
        %v3206 = vunpack.c.l.b16 %v3078
        %v3207 = vunpack.c.l.b16 %v3079
        %v3208 = vunpack.c.l.b16 %v3080
        %v3209 = vunpack.c.l.b16 %v3081
        %v3210 = vunpack.c.l.b16 %v3082
        %v3211 = vpack.c.b16 %v3196, %v3195
        %v3212 = vpack.c.b16 %v3198, %v3197
        %v3213 = vpack.c.b16 %v3200, %v3199
        %v3214 = vpack.c.b16 %v3202, %v3201
        %v3215 = vpack.c.b16 %v3204, %v3203
        %v3216 = vpack.c.b16 %v3206, %v3205
        %v3217 = vpack.c.b16 %v3208, %v3207
        %v3218 = vpack.c.b16 %v3210, %v3209
        %3227 = vmatpush.bf16.msra.mxu0 %v3218
        %3228 = vmatpush.bf16.msra.mxu0 %v3217
        %3229 = vmatpush.bf16.msra.mxu0 %v3216
        %3230 = vmatpush.bf16.msra.mxu0 %v3215
        %3231 = vmatpush.bf16.msra.mxu0 %v3214
        %3232 = vmatpush.bf16.msra.mxu0 %v3213
        %3233 = vmatpush.bf16.msra.mxu0 %v3212
        %3234 = vmatpush.bf16.msra.mxu0 %v3211
        %3235 = vmatmul.bf16.gmra.mxu0 %v3147
        %v3236 = vpop.f32.mrf.mxu0
        %v3237 = vadd.f32 0.0, %v3236
        %v3238 = vpop.f32.mrf.mxu0
        %v3239 = vadd.f32 0.0, %v3238
        %3240 = vmatmul.bf16.gmra.mxu0 %v3148
        %v3241 = vpop.f32.mrf.mxu0
        %v3242 = vadd.f32 0.0, %v3241
        %v3243 = vpop.f32.mrf.mxu0
        %v3244 = vadd.f32 0.0, %v3243
        %3245 = vmatmul.bf16.gmra.mxu0 %v3149
        %v3246 = vpop.f32.mrf.mxu0
        %v3247 = vadd.f32 0.0, %v3246
        %v3248 = vpop.f32.mrf.mxu0
        %v3249 = vadd.f32 0.0, %v3248
        %3250 = vmatmul.bf16.gmra.mxu0 %v3150
        %v3251 = vpop.f32.mrf.mxu0
        %v3252 = vadd.f32 0.0, %v3251
        %v3253 = vpop.f32.mrf.mxu0
        %v3254 = vadd.f32 0.0, %v3253
        %3255 = vmatmul.bf16.gmra.mxu0 %v3151
        %v3256 = vpop.f32.mrf.mxu0
        %v3257 = vadd.f32 0.0, %v3256
        %v3258 = vpop.f32.mrf.mxu0
        %v3259 = vadd.f32 0.0, %v3258
        %3260 = vmatmul.bf16.gmra.mxu0 %v3152
        %v3261 = vpop.f32.mrf.mxu0
        %v3262 = vadd.f32 0.0, %v3261
        %v3263 = vpop.f32.mrf.mxu0
        %v3264 = vadd.f32 0.0, %v3263
        %3265 = vmatmul.bf16.gmra.mxu0 %v3153
        %v3266 = vpop.f32.mrf.mxu0
        %v3267 = vadd.f32 0.0, %v3266
        %v3268 = vpop.f32.mrf.mxu0
        %v3269 = vadd.f32 0.0, %v3268
        %3270 = vmatmul.bf16.gmra.mxu0 %v3154
        %v3271 = vpop.f32.mrf.mxu0
        %v3272 = vadd.f32 0.0, %v3271
        %v3273 = vpop.f32.mrf.mxu0
        %v3274 = vadd.f32 0.0, %v3273
        %3275 = vmatmul.bf16.gmra.mxu0 %v3155
        %v3276 = vpop.f32.mrf.mxu0
        %v3277 = vadd.f32 0.0, %v3276
        %v3278 = vpop.f32.mrf.mxu0
        %v3279 = vadd.f32 0.0, %v3278
        %3280 = vmatmul.bf16.gmra.mxu0 %v3156
        %v3281 = vpop.f32.mrf.mxu0
        %v3282 = vadd.f32 0.0, %v3281
        %v3283 = vpop.f32.mrf.mxu0
        %v3284 = vadd.f32 0.0, %v3283
        %3285 = vmatmul.bf16.gmra.mxu0 %v3157
        %v3286 = vpop.f32.mrf.mxu0
        %v3287 = vadd.f32 0.0, %v3286
        %v3288 = vpop.f32.mrf.mxu0
        %v3289 = vadd.f32 0.0, %v3288
        %3290 = vmatmul.bf16.gmra.mxu0 %v3158
        %v3291 = vpop.f32.mrf.mxu0
        %v3292 = vadd.f32 0.0, %v3291
        %v3293 = vpop.f32.mrf.mxu0
        %v3294 = vadd.f32 0.0, %v3293
        %3295 = vmatmul.bf16.gmra.mxu0 %v3159
        %v3296 = vpop.f32.mrf.mxu0
        %v3297 = vadd.f32 0.0, %v3296
        %v3298 = vpop.f32.mrf.mxu0
        %v3299 = vadd.f32 0.0, %v3298
        %3300 = vmatmul.bf16.gmra.mxu0 %v3160
        %v3301 = vpop.f32.mrf.mxu0
        %v3302 = vadd.f32 0.0, %v3301
        %v3303 = vpop.f32.mrf.mxu0
        %v3304 = vadd.f32 0.0, %v3303
        %3305 = vmatmul.bf16.gmra.mxu0 %v3161
        %v3306 = vpop.f32.mrf.mxu0
        %v3307 = vadd.f32 0.0, %v3306
        %v3308 = vpop.f32.mrf.mxu0
        %v3309 = vadd.f32 0.0, %v3308
        %3310 = vmatmul.bf16.gmra.mxu0 %v3162
        %v3311 = vpop.f32.mrf.mxu0
        %v3312 = vadd.f32 0.0, %v3311
        %v3313 = vpop.f32.mrf.mxu0
        %v3314 = vadd.f32 0.0, %v3313
        %3315 = vdwg.mxu0
        %v3316 = vadd.f32 %v3001, %v3237
        %v3317 = vadd.f32 %v3002, %v3239
        %v3318 = vadd.f32 %v3003, %v3242
        %v3319 = vadd.f32 %v3004, %v3244
        %v3320 = vadd.f32 %v3005, %v3247
        %v3321 = vadd.f32 %v3006, %v3249
        %v3322 = vadd.f32 %v3007, %v3252
        %v3323 = vadd.f32 %v3008, %v3254
        %v3324 = vadd.f32 %v3009, %v3257
        %v3325 = vadd.f32 %v3010, %v3259
        %v3326 = vadd.f32 %v3011, %v3262
        %v3327 = vadd.f32 %v3012, %v3264
        %v3328 = vadd.f32 %v3013, %v3267
        %v3329 = vadd.f32 %v3014, %v3269
        %v3330 = vadd.f32 %v3015, %v3272
        %v3331 = vadd.f32 %v3016, %v3274
        %v3332 = vadd.f32 %v3017, %v3277
        %v3333 = vadd.f32 %v3018, %v3279
        %v3334 = vadd.f32 %v3019, %v3282
        %v3335 = vadd.f32 %v3020, %v3284
        %v3336 = vadd.f32 %v3021, %v3287
        %v3337 = vadd.f32 %v3022, %v3289
        %v3338 = vadd.f32 %v3023, %v3292
        %v3339 = vadd.f32 %v3024, %v3294
        %v3340 = vadd.f32 %v3025, %v3297
        %v3341 = vadd.f32 %v3026, %v3299
        %v3342 = vadd.f32 %v3027, %v3302
        %v3343 = vadd.f32 %v3028, %v3304
        %v3344 = vadd.f32 %v3029, %v3307
        %v3345 = vadd.f32 %v3030, %v3309
        %v3346 = vadd.f32 %v3031, %v3312
        %v3347 = vadd.f32 %v3032, %v3314
        %v3348 = vld [vmem:[%s3033] sm:$0xf]
        %v3349 = vld [vmem:[%s3033 + $0x4] sm:$0xf]
        %v3350 = vld [vmem:[%s3033 + $0x8] sm:$0x1]
        %v3351 = vld [vmem:[%s3033 + $0xc] sm:$0xf]
        %v3352 = vld [vmem:[%s3033 + $0x10] sm:$0xf]
        %v3353 = vld [vmem:[%s3033 + $0x14] sm:$0x1]
        %v3354 = vld [vmem:[%s3033 + $0x18] sm:$0xf]
        %v3355 = vld [vmem:[%s3033 + $0x1c] sm:$0xf]
        %v3356 = vld [vmem:[%s3033 + $0x20] sm:$0x1]
        %v3357 = vld [vmem:[%s3033 + $0x24] sm:$0xf]
        %v3358 = vld [vmem:[%s3033 + $0x28] sm:$0xf]
        %v3359 = vld [vmem:[%s3033 + $0x2c] sm:$0x1]
        %v3360 = vld [vmem:[%s3033 + $0x30] sm:$0xf]
        %v3361 = vld [vmem:[%s3033 + $0x34] sm:$0xf]
        %v3362 = vld [vmem:[%s3033 + $0x38] sm:$0x1]
        %v3363 = vld [vmem:[%s3033 + $0x3c] sm:$0xf]
        %v3364 = vld [vmem:[%s3033 + $0x40] sm:$0xf]
        %v3365 = vld [vmem:[%s3033 + $0x44] sm:$0x1]
        %v3366 = vld [vmem:[%s3033 + $0x48] sm:$0xf]
        %v3367 = vld [vmem:[%s3033 + $0x4c] sm:$0xf]
        %v3368 = vld [vmem:[%s3033 + $0x50] sm:$0x1]
        %v3369 = vld [vmem:[%s3033 + $0x54] sm:$0xf]
        %v3370 = vld [vmem:[%s3033 + $0x58] sm:$0xf]
        %v3371 = vld [vmem:[%s3033 + $0x5c] sm:$0x1]
        %v3372 = vld [vmem:[%s3033 + $0x60] sm:$0xf]
        %v3373 = vld [vmem:[%s3033 + $0x64] sm:$0xf]
        %v3374 = vld [vmem:[%s3033 + $0x68] sm:$0x1]
        %v3375 = vld [vmem:[%s3033 + $0x6c] sm:$0xf]
        %v3376 = vld [vmem:[%s3033 + $0x70] sm:$0xf]
        %v3377 = vld [vmem:[%s3033 + $0x74] sm:$0x1]
        %v3378 = vld [vmem:[%s3033 + $0x78] sm:$0xf]
        %v3379 = vld [vmem:[%s3033 + $0x7c] sm:$0xf]
        %v3380 = vld [vmem:[%s3033 + $0x80] sm:$0x1]
        %v3381 = vld [vmem:[%s3033 + $0x84] sm:$0xf]
        %v3382 = vld [vmem:[%s3033 + $0x88] sm:$0xf]
        %v3383 = vld [vmem:[%s3033 + $0x8c] sm:$0x1]
        %v3384 = vld [vmem:[%s3033 + $0x90] sm:$0xf]
        %v3385 = vld [vmem:[%s3033 + $0x94] sm:$0xf]
        %v3386 = vld [vmem:[%s3033 + $0x98] sm:$0x1]
        %v3387 = vld [vmem:[%s3033 + $0x9c] sm:$0xf]
        %v3388 = vld [vmem:[%s3033 + $0xa0] sm:$0xf]
        %v3389 = vld [vmem:[%s3033 + $0xa4] sm:$0x1]
        %v3390 = vld [vmem:[%s3033 + $0xa8] sm:$0xf]
        %v3391 = vld [vmem:[%s3033 + $0xac] sm:$0xf]
        %v3392 = vld [vmem:[%s3033 + $0xb0] sm:$0x1]
        %v3393 = vld [vmem:[%s3033 + $0xb4] sm:$0xf]
        %v3394 = vld [vmem:[%s3033 + $0xb8] sm:$0xf]
        %v3395 = vld [vmem:[%s3033 + $0xbc] sm:$0x1]
        %v3397 = vshrl.u32 %v3348, 16
        %v3399 = vrot.slane %v3397, 4
        %v3400 = vshll.u32 %v3348, 16
        %v3402 = vrot.slane %v3400, 5
        %v3403 = vor.u32 %v3399, %v3402
        %v3404 = vrot.slane %v3403, 4
        %v3406 = vshll.u32 %v3349, 16
        %v3408 = vrot.slane %v3406, 5
        %v3409 = vsel %vm361, %v3404, %v3408
        %v3410 = vshrl.u32 %v3349, 16
        %v3412 = vrot.slane %v3410, 4
        %v3413 = vor.u32 %v3412, %v3408
        %v3414 = vrot.slane %v3413, 4
        %v3416 = vshll.u32 %v3350, 16
        %v3418 = vrot.slane %v3416, 5
        %v3419 = vsel %vm361, %v3414, %v3418
        %v3421 = vshrl.u32 %v3351, 16
        %v3423 = vrot.slane %v3421, 4
        %v3424 = vshll.u32 %v3351, 16
        %v3426 = vrot.slane %v3424, 5
        %v3427 = vor.u32 %v3423, %v3426
        %v3428 = vrot.slane %v3427, 4
        %v3430 = vshll.u32 %v3352, 16
        %v3432 = vrot.slane %v3430, 5
        %v3433 = vsel %vm361, %v3428, %v3432
        %v3434 = vshrl.u32 %v3352, 16
        %v3436 = vrot.slane %v3434, 4
        %v3437 = vor.u32 %v3436, %v3432
        %v3438 = vrot.slane %v3437, 4
        %v3440 = vshll.u32 %v3353, 16
        %v3442 = vrot.slane %v3440, 5
        %v3443 = vsel %vm361, %v3438, %v3442
        %v3445 = vshrl.u32 %v3354, 16
        %v3447 = vrot.slane %v3445, 4
        %v3448 = vshll.u32 %v3354, 16
        %v3450 = vrot.slane %v3448, 5
        %v3451 = vor.u32 %v3447, %v3450
        %v3452 = vrot.slane %v3451, 4
        %v3454 = vshll.u32 %v3355, 16
        %v3456 = vrot.slane %v3454, 5
        %v3457 = vsel %vm361, %v3452, %v3456
        %v3458 = vshrl.u32 %v3355, 16
        %v3460 = vrot.slane %v3458, 4
        %v3461 = vor.u32 %v3460, %v3456
        %v3462 = vrot.slane %v3461, 4
        %v3464 = vshll.u32 %v3356, 16
        %v3466 = vrot.slane %v3464, 5
        %v3467 = vsel %vm361, %v3462, %v3466
        %v3469 = vshrl.u32 %v3357, 16
        %v3471 = vrot.slane %v3469, 4
        %v3472 = vshll.u32 %v3357, 16
        %v3474 = vrot.slane %v3472, 5
        %v3475 = vor.u32 %v3471, %v3474
        %v3476 = vrot.slane %v3475, 4
        %v3478 = vshll.u32 %v3358, 16
        %v3480 = vrot.slane %v3478, 5
        %v3481 = vsel %vm361, %v3476, %v3480
        %v3482 = vshrl.u32 %v3358, 16
        %v3484 = vrot.slane %v3482, 4
        %v3485 = vor.u32 %v3484, %v3480
        %v3486 = vrot.slane %v3485, 4
        %v3488 = vshll.u32 %v3359, 16
        %v3490 = vrot.slane %v3488, 5
        %v3491 = vsel %vm361, %v3486, %v3490
        %v3493 = vshrl.u32 %v3360, 16
        %v3495 = vrot.slane %v3493, 4
        %v3496 = vshll.u32 %v3360, 16
        %v3498 = vrot.slane %v3496, 5
        %v3499 = vor.u32 %v3495, %v3498
        %v3500 = vrot.slane %v3499, 4
        %v3502 = vshll.u32 %v3361, 16
        %v3504 = vrot.slane %v3502, 5
        %v3505 = vsel %vm361, %v3500, %v3504
        %v3506 = vshrl.u32 %v3361, 16
        %v3508 = vrot.slane %v3506, 4
        %v3509 = vor.u32 %v3508, %v3504
        %v3510 = vrot.slane %v3509, 4
        %v3512 = vshll.u32 %v3362, 16
        %v3514 = vrot.slane %v3512, 5
        %v3515 = vsel %vm361, %v3510, %v3514
        %v3517 = vshrl.u32 %v3363, 16
        %v3519 = vrot.slane %v3517, 4
        %v3520 = vshll.u32 %v3363, 16
        %v3522 = vrot.slane %v3520, 5
        %v3523 = vor.u32 %v3519, %v3522
        %v3524 = vrot.slane %v3523, 4
        %v3526 = vshll.u32 %v3364, 16
        %v3528 = vrot.slane %v3526, 5
        %v3529 = vsel %vm361, %v3524, %v3528
        %v3530 = vshrl.u32 %v3364, 16
        %v3532 = vrot.slane %v3530, 4
        %v3533 = vor.u32 %v3532, %v3528
        %v3534 = vrot.slane %v3533, 4
        %v3536 = vshll.u32 %v3365, 16
        %v3538 = vrot.slane %v3536, 5
        %v3539 = vsel %vm361, %v3534, %v3538
        %v3541 = vshrl.u32 %v3366, 16
        %v3543 = vrot.slane %v3541, 4
        %v3544 = vshll.u32 %v3366, 16
        %v3546 = vrot.slane %v3544, 5
        %v3547 = vor.u32 %v3543, %v3546
        %v3548 = vrot.slane %v3547, 4
        %v3550 = vshll.u32 %v3367, 16
        %v3552 = vrot.slane %v3550, 5
        %v3553 = vsel %vm361, %v3548, %v3552
        %v3554 = vshrl.u32 %v3367, 16
        %v3556 = vrot.slane %v3554, 4
        %v3557 = vor.u32 %v3556, %v3552
        %v3558 = vrot.slane %v3557, 4
        %v3560 = vshll.u32 %v3368, 16
        %v3562 = vrot.slane %v3560, 5
        %v3563 = vsel %vm361, %v3558, %v3562
        %v3565 = vshrl.u32 %v3369, 16
        %v3567 = vrot.slane %v3565, 4
        %v3568 = vshll.u32 %v3369, 16
        %v3570 = vrot.slane %v3568, 5
        %v3571 = vor.u32 %v3567, %v3570
        %v3572 = vrot.slane %v3571, 4
        %v3574 = vshll.u32 %v3370, 16
        %v3576 = vrot.slane %v3574, 5
        %v3577 = vsel %vm361, %v3572, %v3576
        %v3578 = vshrl.u32 %v3370, 16
        %v3580 = vrot.slane %v3578, 4
        %v3581 = vor.u32 %v3580, %v3576
        %v3582 = vrot.slane %v3581, 4
        %v3584 = vshll.u32 %v3371, 16
        %v3586 = vrot.slane %v3584, 5
        %v3587 = vsel %vm361, %v3582, %v3586
        %v3589 = vshrl.u32 %v3372, 16
        %v3591 = vrot.slane %v3589, 4
        %v3592 = vshll.u32 %v3372, 16
        %v3594 = vrot.slane %v3592, 5
        %v3595 = vor.u32 %v3591, %v3594
        %v3596 = vrot.slane %v3595, 4
        %v3598 = vshll.u32 %v3373, 16
        %v3600 = vrot.slane %v3598, 5
        %v3601 = vsel %vm361, %v3596, %v3600
        %v3602 = vshrl.u32 %v3373, 16
        %v3604 = vrot.slane %v3602, 4
        %v3605 = vor.u32 %v3604, %v3600
        %v3606 = vrot.slane %v3605, 4
        %v3608 = vshll.u32 %v3374, 16
        %v3610 = vrot.slane %v3608, 5
        %v3611 = vsel %vm361, %v3606, %v3610
        %v3613 = vshrl.u32 %v3375, 16
        %v3615 = vrot.slane %v3613, 4
        %v3616 = vshll.u32 %v3375, 16
        %v3618 = vrot.slane %v3616, 5
        %v3619 = vor.u32 %v3615, %v3618
        %v3620 = vrot.slane %v3619, 4
        %v3622 = vshll.u32 %v3376, 16
        %v3624 = vrot.slane %v3622, 5
        %v3625 = vsel %vm361, %v3620, %v3624
        %v3626 = vshrl.u32 %v3376, 16
        %v3628 = vrot.slane %v3626, 4
        %v3629 = vor.u32 %v3628, %v3624
        %v3630 = vrot.slane %v3629, 4
        %v3632 = vshll.u32 %v3377, 16
        %v3634 = vrot.slane %v3632, 5
        %v3635 = vsel %vm361, %v3630, %v3634
        %v3637 = vshrl.u32 %v3378, 16
        %v3639 = vrot.slane %v3637, 4
        %v3640 = vshll.u32 %v3378, 16
        %v3642 = vrot.slane %v3640, 5
        %v3643 = vor.u32 %v3639, %v3642
        %v3644 = vrot.slane %v3643, 4
        %v3646 = vshll.u32 %v3379, 16
        %v3648 = vrot.slane %v3646, 5
        %v3649 = vsel %vm361, %v3644, %v3648
        %v3650 = vshrl.u32 %v3379, 16
        %v3652 = vrot.slane %v3650, 4
        %v3653 = vor.u32 %v3652, %v3648
        %v3654 = vrot.slane %v3653, 4
        %v3656 = vshll.u32 %v3380, 16
        %v3658 = vrot.slane %v3656, 5
        %v3659 = vsel %vm361, %v3654, %v3658
        %v3661 = vshrl.u32 %v3381, 16
        %v3663 = vrot.slane %v3661, 4
        %v3664 = vshll.u32 %v3381, 16
        %v3666 = vrot.slane %v3664, 5
        %v3667 = vor.u32 %v3663, %v3666
        %v3668 = vrot.slane %v3667, 4
        %v3670 = vshll.u32 %v3382, 16
        %v3672 = vrot.slane %v3670, 5
        %v3673 = vsel %vm361, %v3668, %v3672
        %v3674 = vshrl.u32 %v3382, 16
        %v3676 = vrot.slane %v3674, 4
        %v3677 = vor.u32 %v3676, %v3672
        %v3678 = vrot.slane %v3677, 4
        %v3680 = vshll.u32 %v3383, 16
        %v3682 = vrot.slane %v3680, 5
        %v3683 = vsel %vm361, %v3678, %v3682
        %v3685 = vshrl.u32 %v3384, 16
        %v3687 = vrot.slane %v3685, 4
        %v3688 = vshll.u32 %v3384, 16
        %v3690 = vrot.slane %v3688, 5
        %v3691 = vor.u32 %v3687, %v3690
        %v3692 = vrot.slane %v3691, 4
        %v3694 = vshll.u32 %v3385, 16
        %v3696 = vrot.slane %v3694, 5
        %v3697 = vsel %vm361, %v3692, %v3696
        %v3698 = vshrl.u32 %v3385, 16
        %v3700 = vrot.slane %v3698, 4
        %v3701 = vor.u32 %v3700, %v3696
        %v3702 = vrot.slane %v3701, 4
        %v3704 = vshll.u32 %v3386, 16
        %v3706 = vrot.slane %v3704, 5
        %v3707 = vsel %vm361, %v3702, %v3706
        %v3709 = vshrl.u32 %v3387, 16
        %v3711 = vrot.slane %v3709, 4
        %v3712 = vshll.u32 %v3387, 16
        %v3714 = vrot.slane %v3712, 5
        %v3715 = vor.u32 %v3711, %v3714
        %v3716 = vrot.slane %v3715, 4
        %v3718 = vshll.u32 %v3388, 16
        %v3720 = vrot.slane %v3718, 5
        %v3721 = vsel %vm361, %v3716, %v3720
        %v3722 = vshrl.u32 %v3388, 16
        %v3724 = vrot.slane %v3722, 4
        %v3725 = vor.u32 %v3724, %v3720
        %v3726 = vrot.slane %v3725, 4
        %v3728 = vshll.u32 %v3389, 16
        %v3730 = vrot.slane %v3728, 5
        %v3731 = vsel %vm361, %v3726, %v3730
        %v3733 = vshrl.u32 %v3390, 16
        %v3735 = vrot.slane %v3733, 4
        %v3736 = vshll.u32 %v3390, 16
        %v3738 = vrot.slane %v3736, 5
        %v3739 = vor.u32 %v3735, %v3738
        %v3740 = vrot.slane %v3739, 4
        %v3742 = vshll.u32 %v3391, 16
        %v3744 = vrot.slane %v3742, 5
        %v3745 = vsel %vm361, %v3740, %v3744
        %v3746 = vshrl.u32 %v3391, 16
        %v3748 = vrot.slane %v3746, 4
        %v3749 = vor.u32 %v3748, %v3744
        %v3750 = vrot.slane %v3749, 4
        %v3752 = vshll.u32 %v3392, 16
        %v3754 = vrot.slane %v3752, 5
        %v3755 = vsel %vm361, %v3750, %v3754
        %v3757 = vshrl.u32 %v3393, 16
        %v3759 = vrot.slane %v3757, 4
        %v3760 = vshll.u32 %v3393, 16
        %v3762 = vrot.slane %v3760, 5
        %v3763 = vor.u32 %v3759, %v3762
        %v3764 = vrot.slane %v3763, 4
        %v3766 = vshll.u32 %v3394, 16
        %v3768 = vrot.slane %v3766, 5
        %v3769 = vsel %vm361, %v3764, %v3768
        %v3770 = vshrl.u32 %v3394, 16
        %v3772 = vrot.slane %v3770, 4
        %v3773 = vor.u32 %v3772, %v3768
        %v3774 = vrot.slane %v3773, 4
        %v3776 = vshll.u32 %v3395, 16
        %v3778 = vrot.slane %v3776, 5
        %v3779 = vsel %vm361, %v3774, %v3778
        %s3780 = scalar_lea.vmem %s1, 448
        %v3781 = vld [vmem:[%s3780] sm:$0xf]
        %v3782 = vld [vmem:[%s3780 + $0x4] sm:$0xf]
        %v3783 = vld [vmem:[%s3780 + $0x8] sm:$0xf]
        %v3784 = vld [vmem:[%s3780 + $0xc] sm:$0xf]
        %v3785 = vld [vmem:[%s3780 + $0x10] sm:$0xf]
        %v3786 = vld [vmem:[%s3780 + $0x14] sm:$0xf]
        %v3787 = vld [vmem:[%s3780 + $0x18] sm:$0xf]
        %v3788 = vld [vmem:[%s3780 + $0x1c] sm:$0xf]
        %v3789 = vld [vmem:[%s3780 + $0x20] sm:$0xf]
        %v3790 = vld [vmem:[%s3780 + $0x24] sm:$0xf]
        %v3791 = vld [vmem:[%s3780 + $0x28] sm:$0xf]
        %v3792 = vld [vmem:[%s3780 + $0x2c] sm:$0xf]
        %v3793 = vld [vmem:[%s3780 + $0x30] sm:$0xf]
        %v3794 = vld [vmem:[%s3780 + $0x34] sm:$0xf]
        %v3795 = vld [vmem:[%s3780 + $0x38] sm:$0xf]
        %v3796 = vld [vmem:[%s3780 + $0x3c] sm:$0xf]
        %v3797 = vunpack.c.l.b16 %v3409
        %v3798 = vunpack.c.l.b16 %v3419
        %v3799 = vunpack.c.l.b16 %v3433
        %v3800 = vunpack.c.l.b16 %v3443
        %v3801 = vunpack.c.l.b16 %v3457
        %v3802 = vunpack.c.l.b16 %v3467
        %v3803 = vunpack.c.l.b16 %v3481
        %v3804 = vunpack.c.l.b16 %v3491
        %v3805 = vunpack.c.l.b16 %v3505
        %v3806 = vunpack.c.l.b16 %v3515
        %v3807 = vunpack.c.l.b16 %v3529
        %v3808 = vunpack.c.l.b16 %v3539
        %v3809 = vunpack.c.l.b16 %v3553
        %v3810 = vunpack.c.l.b16 %v3563
        %v3811 = vunpack.c.l.b16 %v3577
        %v3812 = vunpack.c.l.b16 %v3587
        %v3813 = vunpack.c.l.b16 %v3601
        %v3814 = vunpack.c.l.b16 %v3611
        %v3815 = vunpack.c.l.b16 %v3625
        %v3816 = vunpack.c.l.b16 %v3635
        %v3817 = vunpack.c.l.b16 %v3649
        %v3818 = vunpack.c.l.b16 %v3659
        %v3819 = vunpack.c.l.b16 %v3673
        %v3820 = vunpack.c.l.b16 %v3683
        %v3821 = vunpack.c.l.b16 %v3697
        %v3822 = vunpack.c.l.b16 %v3707
        %v3823 = vunpack.c.l.b16 %v3721
        %v3824 = vunpack.c.l.b16 %v3731
        %v3825 = vunpack.c.l.b16 %v3745
        %v3826 = vunpack.c.l.b16 %v3755
        %v3827 = vunpack.c.l.b16 %v3769
        %v3828 = vunpack.c.l.b16 %v3779
        %v3829 = vpack.c.b16 %v3798, %v3797
        %v3830 = vpack.c.b16 %v3800, %v3799
        %v3831 = vpack.c.b16 %v3802, %v3801
        %v3832 = vpack.c.b16 %v3804, %v3803
        %v3833 = vpack.c.b16 %v3806, %v3805
        %v3834 = vpack.c.b16 %v3808, %v3807
        %v3835 = vpack.c.b16 %v3810, %v3809
        %v3836 = vpack.c.b16 %v3812, %v3811
        %v3837 = vpack.c.b16 %v3814, %v3813
        %v3838 = vpack.c.b16 %v3816, %v3815
        %v3839 = vpack.c.b16 %v3818, %v3817
        %v3840 = vpack.c.b16 %v3820, %v3819
        %v3841 = vpack.c.b16 %v3822, %v3821
        %v3842 = vpack.c.b16 %v3824, %v3823
        %v3843 = vpack.c.b16 %v3826, %v3825
        %v3844 = vpack.c.b16 %v3828, %v3827
        %v3877 = vunpack.c.l.b16 %v3781
        %v3878 = vunpack.c.l.b16 %v3782
        %v3879 = vunpack.c.l.b16 %v3783
        %v3880 = vunpack.c.l.b16 %v3784
        %v3881 = vunpack.c.l.b16 %v3785
        %v3882 = vunpack.c.l.b16 %v3786
        %v3883 = vunpack.c.l.b16 %v3787
        %v3884 = vunpack.c.l.b16 %v3788
        %v3885 = vunpack.c.l.b16 %v3789
        %v3886 = vunpack.c.l.b16 %v3790
        %v3887 = vunpack.c.l.b16 %v3791
        %v3888 = vunpack.c.l.b16 %v3792
        %v3889 = vunpack.c.l.b16 %v3793
        %v3890 = vunpack.c.l.b16 %v3794
        %v3891 = vunpack.c.l.b16 %v3795
        %v3892 = vunpack.c.l.b16 %v3796
        %v3893 = vpack.c.b16 %v3878, %v3877
        %v3894 = vpack.c.b16 %v3880, %v3879
        %v3895 = vpack.c.b16 %v3882, %v3881
        %v3896 = vpack.c.b16 %v3884, %v3883
        %v3897 = vpack.c.b16 %v3886, %v3885
        %v3898 = vpack.c.b16 %v3888, %v3887
        %v3899 = vpack.c.b16 %v3890, %v3889
        %v3900 = vpack.c.b16 %v3892, %v3891
        %3909 = vmatpush.bf16.msra.mxu0 %v3900
        %3910 = vmatpush.bf16.msra.mxu0 %v3899
        %3911 = vmatpush.bf16.msra.mxu0 %v3898
        %3912 = vmatpush.bf16.msra.mxu0 %v3897
        %3913 = vmatpush.bf16.msra.mxu0 %v3896
        %3914 = vmatpush.bf16.msra.mxu0 %v3895
        %3915 = vmatpush.bf16.msra.mxu0 %v3894
        %3916 = vmatpush.bf16.msra.mxu0 %v3893
        %3917 = vmatmul.bf16.gmra.mxu0 %v3829
        %v3918 = vpop.f32.mrf.mxu0
        %v3919 = vadd.f32 0.0, %v3918
        %v3920 = vpop.f32.mrf.mxu0
        %v3921 = vadd.f32 0.0, %v3920
        %3922 = vmatmul.bf16.gmra.mxu0 %v3830
        %v3923 = vpop.f32.mrf.mxu0
        %v3924 = vadd.f32 0.0, %v3923
        %v3925 = vpop.f32.mrf.mxu0
        %v3926 = vadd.f32 0.0, %v3925
        %3927 = vmatmul.bf16.gmra.mxu0 %v3831
        %v3928 = vpop.f32.mrf.mxu0
        %v3929 = vadd.f32 0.0, %v3928
        %v3930 = vpop.f32.mrf.mxu0
        %v3931 = vadd.f32 0.0, %v3930
        %3932 = vmatmul.bf16.gmra.mxu0 %v3832
        %v3933 = vpop.f32.mrf.mxu0
        %v3934 = vadd.f32 0.0, %v3933
        %v3935 = vpop.f32.mrf.mxu0
        %v3936 = vadd.f32 0.0, %v3935
        %3937 = vmatmul.bf16.gmra.mxu0 %v3833
        %v3938 = vpop.f32.mrf.mxu0
        %v3939 = vadd.f32 0.0, %v3938
        %v3940 = vpop.f32.mrf.mxu0
        %v3941 = vadd.f32 0.0, %v3940
        %3942 = vmatmul.bf16.gmra.mxu0 %v3834
        %v3943 = vpop.f32.mrf.mxu0
        %v3944 = vadd.f32 0.0, %v3943
        %v3945 = vpop.f32.mrf.mxu0
        %v3946 = vadd.f32 0.0, %v3945
        %3947 = vmatmul.bf16.gmra.mxu0 %v3835
        %v3948 = vpop.f32.mrf.mxu0
        %v3949 = vadd.f32 0.0, %v3948
        %v3950 = vpop.f32.mrf.mxu0
        %v3951 = vadd.f32 0.0, %v3950
        %3952 = vmatmul.bf16.gmra.mxu0 %v3836
        %v3953 = vpop.f32.mrf.mxu0
        %v3954 = vadd.f32 0.0, %v3953
        %v3955 = vpop.f32.mrf.mxu0
        %v3956 = vadd.f32 0.0, %v3955
        %3957 = vmatmul.bf16.gmra.mxu0 %v3837
        %v3958 = vpop.f32.mrf.mxu0
        %v3959 = vadd.f32 0.0, %v3958
        %v3960 = vpop.f32.mrf.mxu0
        %v3961 = vadd.f32 0.0, %v3960
        %3962 = vmatmul.bf16.gmra.mxu0 %v3838
        %v3963 = vpop.f32.mrf.mxu0
        %v3964 = vadd.f32 0.0, %v3963
        %v3965 = vpop.f32.mrf.mxu0
        %v3966 = vadd.f32 0.0, %v3965
        %3967 = vmatmul.bf16.gmra.mxu0 %v3839
        %v3968 = vpop.f32.mrf.mxu0
        %v3969 = vadd.f32 0.0, %v3968
        %v3970 = vpop.f32.mrf.mxu0
        %v3971 = vadd.f32 0.0, %v3970
        %3972 = vmatmul.bf16.gmra.mxu0 %v3840
        %v3973 = vpop.f32.mrf.mxu0
        %v3974 = vadd.f32 0.0, %v3973
        %v3975 = vpop.f32.mrf.mxu0
        %v3976 = vadd.f32 0.0, %v3975
        %3977 = vmatmul.bf16.gmra.mxu0 %v3841
        %v3978 = vpop.f32.mrf.mxu0
        %v3979 = vadd.f32 0.0, %v3978
        %v3980 = vpop.f32.mrf.mxu0
        %v3981 = vadd.f32 0.0, %v3980
        %3982 = vmatmul.bf16.gmra.mxu0 %v3842
        %v3983 = vpop.f32.mrf.mxu0
        %v3984 = vadd.f32 0.0, %v3983
        %v3985 = vpop.f32.mrf.mxu0
        %v3986 = vadd.f32 0.0, %v3985
        %3987 = vmatmul.bf16.gmra.mxu0 %v3843
        %v3988 = vpop.f32.mrf.mxu0
        %v3989 = vadd.f32 0.0, %v3988
        %v3990 = vpop.f32.mrf.mxu0
        %v3991 = vadd.f32 0.0, %v3990
        %3992 = vmatmul.bf16.gmra.mxu0 %v3844
        %v3993 = vpop.f32.mrf.mxu0
        %v3994 = vadd.f32 0.0, %v3993
        %v3995 = vpop.f32.mrf.mxu0
        %v3996 = vadd.f32 0.0, %v3995
        %3997 = vdwg.mxu0
        %v3998 = vadd.f32 %v3316, %v3919
        %v3999 = vadd.f32 %v3317, %v3921
        %v4000 = vadd.f32 %v3318, %v3924
        %v4001 = vadd.f32 %v3319, %v3926
        %v4002 = vadd.f32 %v3320, %v3929
        %v4003 = vadd.f32 %v3321, %v3931
        %v4004 = vadd.f32 %v3322, %v3934
        %v4005 = vadd.f32 %v3323, %v3936
        %v4006 = vadd.f32 %v3324, %v3939
        %v4007 = vadd.f32 %v3325, %v3941
        %v4008 = vadd.f32 %v3326, %v3944
        %v4009 = vadd.f32 %v3327, %v3946
        %v4010 = vadd.f32 %v3328, %v3949
        %v4011 = vadd.f32 %v3329, %v3951
        %v4012 = vadd.f32 %v3330, %v3954
        %v4013 = vadd.f32 %v3331, %v3956
        %v4014 = vadd.f32 %v3332, %v3959
        %v4015 = vadd.f32 %v3333, %v3961
        %v4016 = vadd.f32 %v3334, %v3964
        %v4017 = vadd.f32 %v3335, %v3966
        %v4018 = vadd.f32 %v3336, %v3969
        %v4019 = vadd.f32 %v3337, %v3971
        %v4020 = vadd.f32 %v3338, %v3974
        %v4021 = vadd.f32 %v3339, %v3976
        %v4022 = vadd.f32 %v3340, %v3979
        %v4023 = vadd.f32 %v3341, %v3981
        %v4024 = vadd.f32 %v3342, %v3984
        %v4025 = vadd.f32 %v3343, %v3986
        %v4026 = vadd.f32 %v3344, %v3989
        %v4027 = vadd.f32 %v3345, %v3991
        %v4028 = vadd.f32 %v3346, %v3994
        %v4029 = vadd.f32 %v3347, %v3996
        %v4030 = vld [vmem:[%s3033] sm:$0xe]
        %v4031 = vld [vmem:[%s3033 + $0xc] sm:$0xe]
        %v4032 = vld [vmem:[%s3033 + $0x18] sm:$0xe]
        %v4033 = vld [vmem:[%s3033 + $0x24] sm:$0xe]
        %v4034 = vld [vmem:[%s3033 + $0x30] sm:$0xe]
        %v4035 = vld [vmem:[%s3033 + $0x3c] sm:$0xe]
        %v4036 = vld [vmem:[%s3033 + $0x48] sm:$0xe]
        %v4037 = vld [vmem:[%s3033 + $0x54] sm:$0xe]
        %v4038 = vld [vmem:[%s3033 + $0x60] sm:$0xe]
        %v4039 = vld [vmem:[%s3033 + $0x6c] sm:$0xe]
        %v4040 = vld [vmem:[%s3033 + $0x78] sm:$0xe]
        %v4041 = vld [vmem:[%s3033 + $0x84] sm:$0xe]
        %v4042 = vld [vmem:[%s3033 + $0x90] sm:$0xe]
        %v4043 = vld [vmem:[%s3033 + $0x9c] sm:$0xe]
        %v4044 = vld [vmem:[%s3033 + $0xa8] sm:$0xe]
        %v4045 = vld [vmem:[%s3033 + $0xb4] sm:$0xe]
        %v4094 = vrot.slane %v4030, 5
        %v4095 = vrot.slane %v4094, 4
        %v4096 = vrot.slane %v3349, 5
        %v4097 = vsel %vm1247, %v4095, %v4096
        %v4098 = vrot.slane %v4096, 4
        %v4099 = vrot.slane %v3350, 5
        %v4100 = vsel %vm1247, %v4098, %v4099
        %v4101 = vrot.slane %v4031, 5
        %v4102 = vrot.slane %v4101, 4
        %v4103 = vrot.slane %v3352, 5
        %v4104 = vsel %vm1247, %v4102, %v4103
        %v4105 = vrot.slane %v4103, 4
        %v4106 = vrot.slane %v3353, 5
        %v4107 = vsel %vm1247, %v4105, %v4106
        %v4108 = vrot.slane %v4032, 5
        %v4109 = vrot.slane %v4108, 4
        %v4110 = vrot.slane %v3355, 5
        %v4111 = vsel %vm1247, %v4109, %v4110
        %v4112 = vrot.slane %v4110, 4
        %v4113 = vrot.slane %v3356, 5
        %v4114 = vsel %vm1247, %v4112, %v4113
        %v4115 = vrot.slane %v4033, 5
        %v4116 = vrot.slane %v4115, 4
        %v4117 = vrot.slane %v3358, 5
        %v4118 = vsel %vm1247, %v4116, %v4117
        %v4119 = vrot.slane %v4117, 4
        %v4120 = vrot.slane %v3359, 5
        %v4121 = vsel %vm1247, %v4119, %v4120
        %v4122 = vrot.slane %v4034, 5
        %v4123 = vrot.slane %v4122, 4
        %v4124 = vrot.slane %v3361, 5
        %v4125 = vsel %vm1247, %v4123, %v4124
        %v4126 = vrot.slane %v4124, 4
        %v4127 = vrot.slane %v3362, 5
        %v4128 = vsel %vm1247, %v4126, %v4127
        %v4129 = vrot.slane %v4035, 5
        %v4130 = vrot.slane %v4129, 4
        %v4131 = vrot.slane %v3364, 5
        %v4132 = vsel %vm1247, %v4130, %v4131
        %v4133 = vrot.slane %v4131, 4
        %v4134 = vrot.slane %v3365, 5
        %v4135 = vsel %vm1247, %v4133, %v4134
        %v4136 = vrot.slane %v4036, 5
        %v4137 = vrot.slane %v4136, 4
        %v4138 = vrot.slane %v3367, 5
        %v4139 = vsel %vm1247, %v4137, %v4138
        %v4140 = vrot.slane %v4138, 4
        %v4141 = vrot.slane %v3368, 5
        %v4142 = vsel %vm1247, %v4140, %v4141
        %v4143 = vrot.slane %v4037, 5
        %v4144 = vrot.slane %v4143, 4
        %v4145 = vrot.slane %v3370, 5
        %v4146 = vsel %vm1247, %v4144, %v4145
        %v4147 = vrot.slane %v4145, 4
        %v4148 = vrot.slane %v3371, 5
        %v4149 = vsel %vm1247, %v4147, %v4148
        %v4150 = vrot.slane %v4038, 5
        %v4151 = vrot.slane %v4150, 4
        %v4152 = vrot.slane %v3373, 5
        %v4153 = vsel %vm1247, %v4151, %v4152
        %v4154 = vrot.slane %v4152, 4
        %v4155 = vrot.slane %v3374, 5
        %v4156 = vsel %vm1247, %v4154, %v4155
        %v4157 = vrot.slane %v4039, 5
        %v4158 = vrot.slane %v4157, 4
        %v4159 = vrot.slane %v3376, 5
        %v4160 = vsel %vm1247, %v4158, %v4159
        %v4161 = vrot.slane %v4159, 4
        %v4162 = vrot.slane %v3377, 5
        %v4163 = vsel %vm1247, %v4161, %v4162
        %v4164 = vrot.slane %v4040, 5
        %v4165 = vrot.slane %v4164, 4
        %v4166 = vrot.slane %v3379, 5
        %v4167 = vsel %vm1247, %v4165, %v4166
        %v4168 = vrot.slane %v4166, 4
        %v4169 = vrot.slane %v3380, 5
        %v4170 = vsel %vm1247, %v4168, %v4169
        %v4171 = vrot.slane %v4041, 5
        %v4172 = vrot.slane %v4171, 4
        %v4173 = vrot.slane %v3382, 5
        %v4174 = vsel %vm1247, %v4172, %v4173
        %v4175 = vrot.slane %v4173, 4
        %v4176 = vrot.slane %v3383, 5
        %v4177 = vsel %vm1247, %v4175, %v4176
        %v4178 = vrot.slane %v4042, 5
        %v4179 = vrot.slane %v4178, 4
        %v4180 = vrot.slane %v3385, 5
        %v4181 = vsel %vm1247, %v4179, %v4180
        %v4182 = vrot.slane %v4180, 4
        %v4183 = vrot.slane %v3386, 5
        %v4184 = vsel %vm1247, %v4182, %v4183
        %v4185 = vrot.slane %v4043, 5
        %v4186 = vrot.slane %v4185, 4
        %v4187 = vrot.slane %v3388, 5
        %v4188 = vsel %vm1247, %v4186, %v4187
        %v4189 = vrot.slane %v4187, 4
        %v4190 = vrot.slane %v3389, 5
        %v4191 = vsel %vm1247, %v4189, %v4190
        %v4192 = vrot.slane %v4044, 5
        %v4193 = vrot.slane %v4192, 4
        %v4194 = vrot.slane %v3391, 5
        %v4195 = vsel %vm1247, %v4193, %v4194
        %v4196 = vrot.slane %v4194, 4
        %v4197 = vrot.slane %v3392, 5
        %v4198 = vsel %vm1247, %v4196, %v4197
        %v4199 = vrot.slane %v4045, 5
        %v4200 = vrot.slane %v4199, 4
        %v4201 = vrot.slane %v3394, 5
        %v4202 = vsel %vm1247, %v4200, %v4201
        %v4203 = vrot.slane %v4201, 4
        %v4204 = vrot.slane %v3395, 5
        %v4205 = vsel %vm1247, %v4203, %v4204
        %s4206 = scalar_lea.vmem %s1, 512
        %v4207 = vld [vmem:[%s4206] sm:$0xf]
        %v4208 = vld [vmem:[%s4206 + $0x4] sm:$0xf]
        %v4209 = vld [vmem:[%s4206 + $0x8] sm:$0xf]
        %v4210 = vld [vmem:[%s4206 + $0xc] sm:$0xf]
        %v4211 = vld [vmem:[%s4206 + $0x10] sm:$0xf]
        %v4212 = vld [vmem:[%s4206 + $0x14] sm:$0xf]
        %v4213 = vld [vmem:[%s4206 + $0x18] sm:$0xf]
        %v4214 = vld [vmem:[%s4206 + $0x1c] sm:$0xf]
        %v4215 = vld [vmem:[%s4206 + $0x20] sm:$0xf]
        %v4216 = vld [vmem:[%s4206 + $0x24] sm:$0xf]
        %v4217 = vld [vmem:[%s4206 + $0x28] sm:$0xf]
        %v4218 = vld [vmem:[%s4206 + $0x2c] sm:$0xf]
        %v4219 = vld [vmem:[%s4206 + $0x30] sm:$0xf]
        %v4220 = vld [vmem:[%s4206 + $0x34] sm:$0xf]
        %v4221 = vld [vmem:[%s4206 + $0x38] sm:$0xf]
        %v4222 = vld [vmem:[%s4206 + $0x3c] sm:$0xf]
        %v4223 = vunpack.c.l.b16 %v4097
        %v4224 = vunpack.c.l.b16 %v4100
        %v4225 = vunpack.c.l.b16 %v4104
        %v4226 = vunpack.c.l.b16 %v4107
        %v4227 = vunpack.c.l.b16 %v4111
        %v4228 = vunpack.c.l.b16 %v4114
        %v4229 = vunpack.c.l.b16 %v4118
        %v4230 = vunpack.c.l.b16 %v4121
        %v4231 = vunpack.c.l.b16 %v4125
        %v4232 = vunpack.c.l.b16 %v4128
        %v4233 = vunpack.c.l.b16 %v4132
        %v4234 = vunpack.c.l.b16 %v4135
        %v4235 = vunpack.c.l.b16 %v4139
        %v4236 = vunpack.c.l.b16 %v4142
        %v4237 = vunpack.c.l.b16 %v4146
        %v4238 = vunpack.c.l.b16 %v4149
        %v4239 = vunpack.c.l.b16 %v4153
        %v4240 = vunpack.c.l.b16 %v4156
        %v4241 = vunpack.c.l.b16 %v4160
        %v4242 = vunpack.c.l.b16 %v4163
        %v4243 = vunpack.c.l.b16 %v4167
        %v4244 = vunpack.c.l.b16 %v4170
        %v4245 = vunpack.c.l.b16 %v4174
        %v4246 = vunpack.c.l.b16 %v4177
        %v4247 = vunpack.c.l.b16 %v4181
        %v4248 = vunpack.c.l.b16 %v4184
        %v4249 = vunpack.c.l.b16 %v4188
        %v4250 = vunpack.c.l.b16 %v4191
        %v4251 = vunpack.c.l.b16 %v4195
        %v4252 = vunpack.c.l.b16 %v4198
        %v4253 = vunpack.c.l.b16 %v4202
        %v4254 = vunpack.c.l.b16 %v4205
        %v4255 = vpack.c.b16 %v4224, %v4223
        %v4256 = vpack.c.b16 %v4226, %v4225
        %v4257 = vpack.c.b16 %v4228, %v4227
        %v4258 = vpack.c.b16 %v4230, %v4229
        %v4259 = vpack.c.b16 %v4232, %v4231
        %v4260 = vpack.c.b16 %v4234, %v4233
        %v4261 = vpack.c.b16 %v4236, %v4235
        %v4262 = vpack.c.b16 %v4238, %v4237
        %v4263 = vpack.c.b16 %v4240, %v4239
        %v4264 = vpack.c.b16 %v4242, %v4241
        %v4265 = vpack.c.b16 %v4244, %v4243
        %v4266 = vpack.c.b16 %v4246, %v4245
        %v4267 = vpack.c.b16 %v4248, %v4247
        %v4268 = vpack.c.b16 %v4250, %v4249
        %v4269 = vpack.c.b16 %v4252, %v4251
        %v4270 = vpack.c.b16 %v4254, %v4253
        %v4303 = vunpack.c.l.b16 %v4207
        %v4304 = vunpack.c.l.b16 %v4208
        %v4305 = vunpack.c.l.b16 %v4209
        %v4306 = vunpack.c.l.b16 %v4210
        %v4307 = vunpack.c.l.b16 %v4211
        %v4308 = vunpack.c.l.b16 %v4212
        %v4309 = vunpack.c.l.b16 %v4213
        %v4310 = vunpack.c.l.b16 %v4214
        %v4311 = vunpack.c.l.b16 %v4215
        %v4312 = vunpack.c.l.b16 %v4216
        %v4313 = vunpack.c.l.b16 %v4217
        %v4314 = vunpack.c.l.b16 %v4218
        %v4315 = vunpack.c.l.b16 %v4219
        %v4316 = vunpack.c.l.b16 %v4220
        %v4317 = vunpack.c.l.b16 %v4221
        %v4318 = vunpack.c.l.b16 %v4222
        %v4319 = vpack.c.b16 %v4304, %v4303
        %v4320 = vpack.c.b16 %v4306, %v4305
        %v4321 = vpack.c.b16 %v4308, %v4307
        %v4322 = vpack.c.b16 %v4310, %v4309
        %v4323 = vpack.c.b16 %v4312, %v4311
        %v4324 = vpack.c.b16 %v4314, %v4313
        %v4325 = vpack.c.b16 %v4316, %v4315
        %v4326 = vpack.c.b16 %v4318, %v4317
        %4335 = vmatpush.bf16.msra.mxu0 %v4326
        %4336 = vmatpush.bf16.msra.mxu0 %v4325
        %4337 = vmatpush.bf16.msra.mxu0 %v4324
        %4338 = vmatpush.bf16.msra.mxu0 %v4323
        %4339 = vmatpush.bf16.msra.mxu0 %v4322
        %4340 = vmatpush.bf16.msra.mxu0 %v4321
        %4341 = vmatpush.bf16.msra.mxu0 %v4320
        %4342 = vmatpush.bf16.msra.mxu0 %v4319
        %4343 = vmatmul.bf16.gmra.mxu0 %v4255
        %v4344 = vpop.f32.mrf.mxu0
        %v4345 = vadd.f32 0.0, %v4344
        %v4346 = vpop.f32.mrf.mxu0
        %v4347 = vadd.f32 0.0, %v4346
        %4348 = vmatmul.bf16.gmra.mxu0 %v4256
        %v4349 = vpop.f32.mrf.mxu0
        %v4350 = vadd.f32 0.0, %v4349
        %v4351 = vpop.f32.mrf.mxu0
        %v4352 = vadd.f32 0.0, %v4351
        %4353 = vmatmul.bf16.gmra.mxu0 %v4257
        %v4354 = vpop.f32.mrf.mxu0
        %v4355 = vadd.f32 0.0, %v4354
        %v4356 = vpop.f32.mrf.mxu0
        %v4357 = vadd.f32 0.0, %v4356
        %4358 = vmatmul.bf16.gmra.mxu0 %v4258
        %v4359 = vpop.f32.mrf.mxu0
        %v4360 = vadd.f32 0.0, %v4359
        %v4361 = vpop.f32.mrf.mxu0
        %v4362 = vadd.f32 0.0, %v4361
        %4363 = vmatmul.bf16.gmra.mxu0 %v4259
        %v4364 = vpop.f32.mrf.mxu0
        %v4365 = vadd.f32 0.0, %v4364
        %v4366 = vpop.f32.mrf.mxu0
        %v4367 = vadd.f32 0.0, %v4366
        %4368 = vmatmul.bf16.gmra.mxu0 %v4260
        %v4369 = vpop.f32.mrf.mxu0
        %v4370 = vadd.f32 0.0, %v4369
        %v4371 = vpop.f32.mrf.mxu0
        %v4372 = vadd.f32 0.0, %v4371
        %4373 = vmatmul.bf16.gmra.mxu0 %v4261
        %v4374 = vpop.f32.mrf.mxu0
        %v4375 = vadd.f32 0.0, %v4374
        %v4376 = vpop.f32.mrf.mxu0
        %v4377 = vadd.f32 0.0, %v4376
        %4378 = vmatmul.bf16.gmra.mxu0 %v4262
        %v4379 = vpop.f32.mrf.mxu0
        %v4380 = vadd.f32 0.0, %v4379
        %v4381 = vpop.f32.mrf.mxu0
        %v4382 = vadd.f32 0.0, %v4381
        %4383 = vmatmul.bf16.gmra.mxu0 %v4263
        %v4384 = vpop.f32.mrf.mxu0
        %v4385 = vadd.f32 0.0, %v4384
        %v4386 = vpop.f32.mrf.mxu0
        %v4387 = vadd.f32 0.0, %v4386
        %4388 = vmatmul.bf16.gmra.mxu0 %v4264
        %v4389 = vpop.f32.mrf.mxu0
        %v4390 = vadd.f32 0.0, %v4389
        %v4391 = vpop.f32.mrf.mxu0
        %v4392 = vadd.f32 0.0, %v4391
        %4393 = vmatmul.bf16.gmra.mxu0 %v4265
        %v4394 = vpop.f32.mrf.mxu0
        %v4395 = vadd.f32 0.0, %v4394
        %v4396 = vpop.f32.mrf.mxu0
        %v4397 = vadd.f32 0.0, %v4396
        %4398 = vmatmul.bf16.gmra.mxu0 %v4266
        %v4399 = vpop.f32.mrf.mxu0
        %v4400 = vadd.f32 0.0, %v4399
        %v4401 = vpop.f32.mrf.mxu0
        %v4402 = vadd.f32 0.0, %v4401
        %4403 = vmatmul.bf16.gmra.mxu0 %v4267
        %v4404 = vpop.f32.mrf.mxu0
        %v4405 = vadd.f32 0.0, %v4404
        %v4406 = vpop.f32.mrf.mxu0
        %v4407 = vadd.f32 0.0, %v4406
        %4408 = vmatmul.bf16.gmra.mxu0 %v4268
        %v4409 = vpop.f32.mrf.mxu0
        %v4410 = vadd.f32 0.0, %v4409
        %v4411 = vpop.f32.mrf.mxu0
        %v4412 = vadd.f32 0.0, %v4411
        %4413 = vmatmul.bf16.gmra.mxu0 %v4269
        %v4414 = vpop.f32.mrf.mxu0
        %v4415 = vadd.f32 0.0, %v4414
        %v4416 = vpop.f32.mrf.mxu0
        %v4417 = vadd.f32 0.0, %v4416
        %4418 = vmatmul.bf16.gmra.mxu0 %v4270
        %v4419 = vpop.f32.mrf.mxu0
        %v4420 = vadd.f32 0.0, %v4419
        %v4421 = vpop.f32.mrf.mxu0
        %v4422 = vadd.f32 0.0, %v4421
        %4423 = vdwg.mxu0
        %v4424 = vadd.f32 %v3998, %v4345
        %v4425 = vadd.f32 %v3999, %v4347
        %v4426 = vadd.f32 %v4000, %v4350
        %v4427 = vadd.f32 %v4001, %v4352
        %v4428 = vadd.f32 %v4002, %v4355
        %v4429 = vadd.f32 %v4003, %v4357
        %v4430 = vadd.f32 %v4004, %v4360
        %v4431 = vadd.f32 %v4005, %v4362
        %v4432 = vadd.f32 %v4006, %v4365
        %v4433 = vadd.f32 %v4007, %v4367
        %v4434 = vadd.f32 %v4008, %v4370
        %v4435 = vadd.f32 %v4009, %v4372
        %v4436 = vadd.f32 %v4010, %v4375
        %v4437 = vadd.f32 %v4011, %v4377
        %v4438 = vadd.f32 %v4012, %v4380
        %v4439 = vadd.f32 %v4013, %v4382
        %v4440 = vadd.f32 %v4014, %v4385
        %v4441 = vadd.f32 %v4015, %v4387
        %v4442 = vadd.f32 %v4016, %v4390
        %v4443 = vadd.f32 %v4017, %v4392
        %v4444 = vadd.f32 %v4018, %v4395
        %v4445 = vadd.f32 %v4019, %v4397
        %v4446 = vadd.f32 %v4020, %v4400
        %v4447 = vadd.f32 %v4021, %v4402
        %v4448 = vadd.f32 %v4022, %v4405
        %v4449 = vadd.f32 %v4023, %v4407
        %v4450 = vadd.f32 %v4024, %v4410
        %v4451 = vadd.f32 %v4025, %v4412
        %v4452 = vadd.f32 %v4026, %v4415
        %v4453 = vadd.f32 %v4027, %v4417
        %v4454 = vadd.f32 %v4028, %v4420
        %v4455 = vadd.f32 %v4029, %v4422
        %v4456 = vld [vmem:[%s2] sm:$0x1]
        %v4458 = vperm.slane %v4456, 0
        %v4460 = vadd.f32 %v4424, %v4458
        %v4461 = vadd.f32 %v4425, %v4458
        %v4462 = vadd.f32 %v4426, %v4458
        %v4463 = vadd.f32 %v4427, %v4458
        %v4464 = vadd.f32 %v4428, %v4458
        %v4465 = vadd.f32 %v4429, %v4458
        %v4466 = vadd.f32 %v4430, %v4458
        %v4467 = vadd.f32 %v4431, %v4458
        %v4468 = vadd.f32 %v4432, %v4458
        %v4469 = vadd.f32 %v4433, %v4458
        %v4470 = vadd.f32 %v4434, %v4458
        %v4471 = vadd.f32 %v4435, %v4458
        %v4472 = vadd.f32 %v4436, %v4458
        %v4473 = vadd.f32 %v4437, %v4458
        %v4474 = vadd.f32 %v4438, %v4458
        %v4475 = vadd.f32 %v4439, %v4458
        %v4476 = vadd.f32 %v4440, %v4458
        %v4477 = vadd.f32 %v4441, %v4458
        %v4478 = vadd.f32 %v4442, %v4458
        %v4479 = vadd.f32 %v4443, %v4458
        %v4480 = vadd.f32 %v4444, %v4458
        %v4481 = vadd.f32 %v4445, %v4458
        %v4482 = vadd.f32 %v4446, %v4458
        %v4483 = vadd.f32 %v4447, %v4458
        %v4484 = vadd.f32 %v4448, %v4458
        %v4485 = vadd.f32 %v4449, %v4458
        %v4486 = vadd.f32 %v4450, %v4458
        %v4487 = vadd.f32 %v4451, %v4458
        %v4488 = vadd.f32 %v4452, %v4458
        %v4489 = vadd.f32 %v4453, %v4458
        %v4490 = vadd.f32 %v4454, %v4458
        %v4491 = vadd.f32 %v4455, %v4458
        %vm4492 = vcmp.gt.f32.partialorder %v4460, 0.0
        %vm4493 = vcmp.gt.f32.partialorder %v4461, 0.0
        %vm4494 = vcmp.gt.f32.partialorder %v4462, 0.0
        %vm4495 = vcmp.gt.f32.partialorder %v4463, 0.0
        %vm4496 = vcmp.gt.f32.partialorder %v4464, 0.0
        %vm4497 = vcmp.gt.f32.partialorder %v4465, 0.0
        %vm4498 = vcmp.gt.f32.partialorder %v4466, 0.0
        %vm4499 = vcmp.gt.f32.partialorder %v4467, 0.0
        %vm4500 = vcmp.gt.f32.partialorder %v4468, 0.0
        %vm4501 = vcmp.gt.f32.partialorder %v4469, 0.0
        %vm4502 = vcmp.gt.f32.partialorder %v4470, 0.0
        %vm4503 = vcmp.gt.f32.partialorder %v4471, 0.0
        %vm4504 = vcmp.gt.f32.partialorder %v4472, 0.0
        %vm4505 = vcmp.gt.f32.partialorder %v4473, 0.0
        %vm4506 = vcmp.gt.f32.partialorder %v4474, 0.0
        %vm4507 = vcmp.gt.f32.partialorder %v4475, 0.0
        %vm4508 = vcmp.gt.f32.partialorder %v4476, 0.0
        %vm4509 = vcmp.gt.f32.partialorder %v4477, 0.0
        %vm4510 = vcmp.gt.f32.partialorder %v4478, 0.0
        %vm4511 = vcmp.gt.f32.partialorder %v4479, 0.0
        %vm4512 = vcmp.gt.f32.partialorder %v4480, 0.0
        %vm4513 = vcmp.gt.f32.partialorder %v4481, 0.0
        %vm4514 = vcmp.gt.f32.partialorder %v4482, 0.0
        %vm4515 = vcmp.gt.f32.partialorder %v4483, 0.0
        %vm4516 = vcmp.gt.f32.partialorder %v4484, 0.0
        %vm4517 = vcmp.gt.f32.partialorder %v4485, 0.0
        %vm4518 = vcmp.gt.f32.partialorder %v4486, 0.0
        %vm4519 = vcmp.gt.f32.partialorder %v4487, 0.0
        %vm4520 = vcmp.gt.f32.partialorder %v4488, 0.0
        %vm4521 = vcmp.gt.f32.partialorder %v4489, 0.0
        %vm4522 = vcmp.gt.f32.partialorder %v4490, 0.0
        %vm4523 = vcmp.gt.f32.partialorder %v4491, 0.0
        %v4524 = vmul.f32 %v4460, 0.1
        %v4525 = vmul.f32 %v4461, 0.1
        %v4526 = vmul.f32 %v4462, 0.1
        %v4527 = vmul.f32 %v4463, 0.1
        %v4528 = vmul.f32 %v4464, 0.1
        %v4529 = vmul.f32 %v4465, 0.1
        %v4530 = vmul.f32 %v4466, 0.1
        %v4531 = vmul.f32 %v4467, 0.1
        %v4532 = vmul.f32 %v4468, 0.1
        %v4533 = vmul.f32 %v4469, 0.1
        %v4534 = vmul.f32 %v4470, 0.1
        %v4535 = vmul.f32 %v4471, 0.1
        %v4536 = vmul.f32 %v4472, 0.1
        %v4537 = vmul.f32 %v4473, 0.1
        %v4538 = vmul.f32 %v4474, 0.1
        %v4539 = vmul.f32 %v4475, 0.1
        %v4540 = vmul.f32 %v4476, 0.1
        %v4541 = vmul.f32 %v4477, 0.1
        %v4542 = vmul.f32 %v4478, 0.1
        %v4543 = vmul.f32 %v4479, 0.1
        %v4544 = vmul.f32 %v4480, 0.1
        %v4545 = vmul.f32 %v4481, 0.1
        %v4546 = vmul.f32 %v4482, 0.1
        %v4547 = vmul.f32 %v4483, 0.1
        %v4548 = vmul.f32 %v4484, 0.1
        %v4549 = vmul.f32 %v4485, 0.1
        %v4550 = vmul.f32 %v4486, 0.1
        %v4551 = vmul.f32 %v4487, 0.1
        %v4552 = vmul.f32 %v4488, 0.1
        %v4553 = vmul.f32 %v4489, 0.1
        %v4554 = vmul.f32 %v4490, 0.1
        %v4555 = vmul.f32 %v4491, 0.1
        %v4556 = vsel %vm4492, %v4460, %v4524
        %v4557 = vsel %vm4493, %v4461, %v4525
        %v4558 = vsel %vm4494, %v4462, %v4526
        %v4559 = vsel %vm4495, %v4463, %v4527
        %v4560 = vsel %vm4496, %v4464, %v4528
        %v4561 = vsel %vm4497, %v4465, %v4529
        %v4562 = vsel %vm4498, %v4466, %v4530
        %v4563 = vsel %vm4499, %v4467, %v4531
        %v4564 = vsel %vm4500, %v4468, %v4532
        %v4565 = vsel %vm4501, %v4469, %v4533
        %v4566 = vsel %vm4502, %v4470, %v4534
        %v4567 = vsel %vm4503, %v4471, %v4535
        %v4568 = vsel %vm4504, %v4472, %v4536
        %v4569 = vsel %vm4505, %v4473, %v4537
        %v4570 = vsel %vm4506, %v4474, %v4538
        %v4571 = vsel %vm4507, %v4475, %v4539
        %v4572 = vsel %vm4508, %v4476, %v4540
        %v4573 = vsel %vm4509, %v4477, %v4541
        %v4574 = vsel %vm4510, %v4478, %v4542
        %v4575 = vsel %vm4511, %v4479, %v4543
        %v4576 = vsel %vm4512, %v4480, %v4544
        %v4577 = vsel %vm4513, %v4481, %v4545
        %v4578 = vsel %vm4514, %v4482, %v4546
        %v4579 = vsel %vm4515, %v4483, %v4547
        %v4580 = vsel %vm4516, %v4484, %v4548
        %v4581 = vsel %vm4517, %v4485, %v4549
        %v4582 = vsel %vm4518, %v4486, %v4550
        %v4583 = vsel %vm4519, %v4487, %v4551
        %v4584 = vsel %vm4520, %v4488, %v4552
        %v4585 = vsel %vm4521, %v4489, %v4553
        %v4586 = vsel %vm4522, %v4490, %v4554
        %v4587 = vsel %vm4523, %v4491, %v4555
        %4588 = vst [vmem:[#allocation2] sm:$0xf] 0
        %4589 = vst [vmem:[#allocation2 + $0x4] sm:$0xf] 0
        %4590 = vst [vmem:[#allocation2 + $0x8] sm:$0x1] 0
        %4591 = vst [vmem:[#allocation2 + $0xc] sm:$0xf] 0
        %4592 = vst [vmem:[#allocation2 + $0x10] sm:$0xf] 0
        %4593 = vst [vmem:[#allocation2 + $0x14] sm:$0x1] 0
        %4594 = vst [vmem:[#allocation2 + $0x18] sm:$0xf] 0
        %4595 = vst [vmem:[#allocation2 + $0x1c] sm:$0xf] 0
        %4596 = vst [vmem:[#allocation2 + $0x20] sm:$0x1] 0
        %4597 = vst [vmem:[#allocation2 + $0x24] sm:$0xf] 0
        %4598 = vst [vmem:[#allocation2 + $0x28] sm:$0xf] 0
        %4599 = vst [vmem:[#allocation2 + $0x2c] sm:$0x1] 0
        %4600 = vst [vmem:[#allocation2 + $0x30] sm:$0xf] 0
        %4601 = vst [vmem:[#allocation2 + $0x34] sm:$0xf] 0
        %4602 = vst [vmem:[#allocation2 + $0x38] sm:$0x1] 0
        %4603 = vst [vmem:[#allocation2 + $0x3c] sm:$0xf] 0
        %4604 = vst [vmem:[#allocation2 + $0x40] sm:$0xf] 0
        %4605 = vst [vmem:[#allocation2 + $0x44] sm:$0x1] 0
        %4606 = vst [vmem:[#allocation2 + $0x48] sm:$0xf] 0
        %4607 = vst [vmem:[#allocation2 + $0x4c] sm:$0xf] 0
        %4608 = vst [vmem:[#allocation2 + $0x50] sm:$0x1] 0
        %4609 = vst [vmem:[#allocation2 + $0x54] sm:$0xf] 0
        %4610 = vst [vmem:[#allocation2 + $0x58] sm:$0xf] 0
        %4611 = vst [vmem:[#allocation2 + $0x5c] sm:$0x1] 0
        %4612 = vst [vmem:[#allocation2 + $0x60] sm:$0xf] 0
        %4613 = vst [vmem:[#allocation2 + $0x64] sm:$0xf] 0
        %4614 = vst [vmem:[#allocation2 + $0x68] sm:$0x1] 0
        %4615 = vst [vmem:[#allocation2 + $0x6c] sm:$0xf] 0
        %4616 = vst [vmem:[#allocation2 + $0x70] sm:$0xf] 0
        %4617 = vst [vmem:[#allocation2 + $0x74] sm:$0x1] 0
        %4618 = vst [vmem:[#allocation2 + $0x78] sm:$0xf] 0
        %4619 = vst [vmem:[#allocation2 + $0x7c] sm:$0xf] 0
        %4620 = vst [vmem:[#allocation2 + $0x80] sm:$0x1] 0
        %4621 = vst [vmem:[#allocation2 + $0x84] sm:$0xf] 0
        %4622 = vst [vmem:[#allocation2 + $0x88] sm:$0xf] 0
        %4623 = vst [vmem:[#allocation2 + $0x8c] sm:$0x1] 0
        %4624 = vst [vmem:[#allocation2 + $0x90] sm:$0xf] 0
        %4625 = vst [vmem:[#allocation2 + $0x94] sm:$0xf] 0
        %4626 = vst [vmem:[#allocation2 + $0x98] sm:$0x1] 0
        %4627 = vst [vmem:[#allocation2 + $0x9c] sm:$0xf] 0
        %4628 = vst [vmem:[#allocation2 + $0xa0] sm:$0xf] 0
        %4629 = vst [vmem:[#allocation2 + $0xa4] sm:$0x1] 0
        %4630 = vst [vmem:[#allocation2 + $0xa8] sm:$0xf] 0
        %4631 = vst [vmem:[#allocation2 + $0xac] sm:$0xf] 0
        %4632 = vst [vmem:[#allocation2 + $0xb0] sm:$0x1] 0
        %4633 = vst [vmem:[#allocation2 + $0xb4] sm:$0xf] 0
        %4634 = vst [vmem:[#allocation2 + $0xb8] sm:$0xf] 0
        %4635 = vst [vmem:[#allocation2 + $0xbc] sm:$0x1] 0
        %4636 = vst [vmem:[#allocation2 + $0xc0] sm:$0xf] 0
        %4637 = vst [vmem:[#allocation2 + $0xc4] sm:$0xf] 0
        %4638 = vst [vmem:[#allocation2 + $0xc8] sm:$0x1] 0
        %4639 = vst [vmem:[#allocation2 + $0xcc] sm:$0xf] 0
        %4640 = vst [vmem:[#allocation2 + $0xd0] sm:$0xf] 0
        %4641 = vst [vmem:[#allocation2 + $0xd4] sm:$0x1] 0
        %v4642 = vpack.c.bf16 %v4556, %v4556
        %v4643 = vpack.c.bf16 %v4557, %v4557
        %v4644 = vpack.c.bf16 %v4558, %v4558
        %v4645 = vpack.c.bf16 %v4559, %v4559
        %v4646 = vpack.c.bf16 %v4560, %v4560
        %v4647 = vpack.c.bf16 %v4561, %v4561
        %v4648 = vpack.c.bf16 %v4562, %v4562
        %v4649 = vpack.c.bf16 %v4563, %v4563
        %v4650 = vpack.c.bf16 %v4564, %v4564
        %v4651 = vpack.c.bf16 %v4565, %v4565
        %v4652 = vpack.c.bf16 %v4566, %v4566
        %v4653 = vpack.c.bf16 %v4567, %v4567
        %v4654 = vpack.c.bf16 %v4568, %v4568
        %v4655 = vpack.c.bf16 %v4569, %v4569
        %v4656 = vpack.c.bf16 %v4570, %v4570
        %v4657 = vpack.c.bf16 %v4571, %v4571
        %v4658 = vpack.c.bf16 %v4572, %v4572
        %v4659 = vpack.c.bf16 %v4573, %v4573
        %v4660 = vpack.c.bf16 %v4574, %v4574
        %v4661 = vpack.c.bf16 %v4575, %v4575
        %v4662 = vpack.c.bf16 %v4576, %v4576
        %v4663 = vpack.c.bf16 %v4577, %v4577
        %v4664 = vpack.c.bf16 %v4578, %v4578
        %v4665 = vpack.c.bf16 %v4579, %v4579
        %v4666 = vpack.c.bf16 %v4580, %v4580
        %v4667 = vpack.c.bf16 %v4581, %v4581
        %v4668 = vpack.c.bf16 %v4582, %v4582
        %v4669 = vpack.c.bf16 %v4583, %v4583
        %v4670 = vpack.c.bf16 %v4584, %v4584
        %v4671 = vpack.c.bf16 %v4585, %v4585
        %v4672 = vpack.c.bf16 %v4586, %v4586
        %v4673 = vpack.c.bf16 %v4587, %v4587
        %vm4674 = vsmask.f32 256
        %vm4675 = vsmask.f32 4368
        %vm4676 = vmor %vm4674, %vm4675
        %v4678 = vshrl.u32 %v4642, 16
        %v4680 = vrot.slane %v4678, 7
        %v4681 = vshll.u32 %v4642, 16
        %v4683 = vor.u32 %v4680, %v4681
        %v4684 = vrot.slane %v4680, 4
        %v4686 = vshrl.u32 %v4643, 16
        %v4688 = vrot.slane %v4686, 7
        %v4689 = vshll.u32 %v4643, 16
        %v4691 = vor.u32 %v4688, %v4689
        %v4692 = vsel %vm4676, %v4684, %v4691
        %v4693 = vrot.slane %v4688, 4
        %v4695 = vshrl.u32 %v4644, 16
        %v4697 = vrot.slane %v4695, 7
        %v4698 = vshll.u32 %v4644, 16
        %v4700 = vor.u32 %v4697, %v4698
        %v4701 = vrot.slane %v4697, 4
        %v4703 = vshrl.u32 %v4645, 16
        %v4705 = vrot.slane %v4703, 7
        %v4706 = vshll.u32 %v4645, 16
        %v4708 = vor.u32 %v4705, %v4706
        %v4709 = vsel %vm4676, %v4701, %v4708
        %v4710 = vrot.slane %v4705, 4
        %v4712 = vshrl.u32 %v4646, 16
        %v4714 = vrot.slane %v4712, 7
        %v4715 = vshll.u32 %v4646, 16
        %v4717 = vor.u32 %v4714, %v4715
        %v4718 = vrot.slane %v4714, 4
        %v4720 = vshrl.u32 %v4647, 16
        %v4722 = vrot.slane %v4720, 7
        %v4723 = vshll.u32 %v4647, 16
        %v4725 = vor.u32 %v4722, %v4723
        %v4726 = vsel %vm4676, %v4718, %v4725
        %v4727 = vrot.slane %v4722, 4
        %v4729 = vshrl.u32 %v4648, 16
        %v4731 = vrot.slane %v4729, 7
        %v4732 = vshll.u32 %v4648, 16
        %v4734 = vor.u32 %v4731, %v4732
        %v4735 = vrot.slane %v4731, 4
        %v4737 = vshrl.u32 %v4649, 16
        %v4739 = vrot.slane %v4737, 7
        %v4740 = vshll.u32 %v4649, 16
        %v4742 = vor.u32 %v4739, %v4740
        %v4743 = vsel %vm4676, %v4735, %v4742
        %v4744 = vrot.slane %v4739, 4
        %v4746 = vshrl.u32 %v4650, 16
        %v4748 = vrot.slane %v4746, 7
        %v4749 = vshll.u32 %v4650, 16
        %v4751 = vor.u32 %v4748, %v4749
        %v4752 = vrot.slane %v4748, 4
        %v4754 = vshrl.u32 %v4651, 16
        %v4756 = vrot.slane %v4754, 7
        %v4757 = vshll.u32 %v4651, 16
        %v4759 = vor.u32 %v4756, %v4757
        %v4760 = vsel %vm4676, %v4752, %v4759
        %v4761 = vrot.slane %v4756, 4
        %v4763 = vshrl.u32 %v4652, 16
        %v4765 = vrot.slane %v4763, 7
        %v4766 = vshll.u32 %v4652, 16
        %v4768 = vor.u32 %v4765, %v4766
        %v4769 = vrot.slane %v4765, 4
        %v4771 = vshrl.u32 %v4653, 16
        %v4773 = vrot.slane %v4771, 7
        %v4774 = vshll.u32 %v4653, 16
        %v4776 = vor.u32 %v4773, %v4774
        %v4777 = vsel %vm4676, %v4769, %v4776
        %v4778 = vrot.slane %v4773, 4
        %v4780 = vshrl.u32 %v4654, 16
        %v4782 = vrot.slane %v4780, 7
        %v4783 = vshll.u32 %v4654, 16
        %v4785 = vor.u32 %v4782, %v4783
        %v4786 = vrot.slane %v4782, 4
        %v4788 = vshrl.u32 %v4655, 16
        %v4790 = vrot.slane %v4788, 7
        %v4791 = vshll.u32 %v4655, 16
        %v4793 = vor.u32 %v4790, %v4791
        %v4794 = vsel %vm4676, %v4786, %v4793
        %v4795 = vrot.slane %v4790, 4
        %v4797 = vshrl.u32 %v4656, 16
        %v4799 = vrot.slane %v4797, 7
        %v4800 = vshll.u32 %v4656, 16
        %v4802 = vor.u32 %v4799, %v4800
        %v4803 = vrot.slane %v4799, 4
        %v4805 = vshrl.u32 %v4657, 16
        %v4807 = vrot.slane %v4805, 7
        %v4808 = vshll.u32 %v4657, 16
        %v4810 = vor.u32 %v4807, %v4808
        %v4811 = vsel %vm4676, %v4803, %v4810
        %v4812 = vrot.slane %v4807, 4
        %v4814 = vshrl.u32 %v4658, 16
        %v4816 = vrot.slane %v4814, 7
        %v4817 = vshll.u32 %v4658, 16
        %v4819 = vor.u32 %v4816, %v4817
        %v4820 = vrot.slane %v4816, 4
        %v4822 = vshrl.u32 %v4659, 16
        %v4824 = vrot.slane %v4822, 7
        %v4825 = vshll.u32 %v4659, 16
        %v4827 = vor.u32 %v4824, %v4825
        %v4828 = vsel %vm4676, %v4820, %v4827
        %v4829 = vrot.slane %v4824, 4
        %v4831 = vshrl.u32 %v4660, 16
        %v4833 = vrot.slane %v4831, 7
        %v4834 = vshll.u32 %v4660, 16
        %v4836 = vor.u32 %v4833, %v4834
        %v4837 = vrot.slane %v4833, 4
        %v4839 = vshrl.u32 %v4661, 16
        %v4841 = vrot.slane %v4839, 7
        %v4842 = vshll.u32 %v4661, 16
        %v4844 = vor.u32 %v4841, %v4842
        %v4845 = vsel %vm4676, %v4837, %v4844
        %v4846 = vrot.slane %v4841, 4
        %v4848 = vshrl.u32 %v4662, 16
        %v4850 = vrot.slane %v4848, 7
        %v4851 = vshll.u32 %v4662, 16
        %v4853 = vor.u32 %v4850, %v4851
        %v4854 = vrot.slane %v4850, 4
        %v4856 = vshrl.u32 %v4663, 16
        %v4858 = vrot.slane %v4856, 7
        %v4859 = vshll.u32 %v4663, 16
        %v4861 = vor.u32 %v4858, %v4859
        %v4862 = vsel %vm4676, %v4854, %v4861
        %v4863 = vrot.slane %v4858, 4
        %v4865 = vshrl.u32 %v4664, 16
        %v4867 = vrot.slane %v4865, 7
        %v4868 = vshll.u32 %v4664, 16
        %v4870 = vor.u32 %v4867, %v4868
        %v4871 = vrot.slane %v4867, 4
        %v4873 = vshrl.u32 %v4665, 16
        %v4875 = vrot.slane %v4873, 7
        %v4876 = vshll.u32 %v4665, 16
        %v4878 = vor.u32 %v4875, %v4876
        %v4879 = vsel %vm4676, %v4871, %v4878
        %v4880 = vrot.slane %v4875, 4
        %v4882 = vshrl.u32 %v4666, 16
        %v4884 = vrot.slane %v4882, 7
        %v4885 = vshll.u32 %v4666, 16
        %v4887 = vor.u32 %v4884, %v4885
        %v4888 = vrot.slane %v4884, 4
        %v4890 = vshrl.u32 %v4667, 16
        %v4892 = vrot.slane %v4890, 7
        %v4893 = vshll.u32 %v4667, 16
        %v4895 = vor.u32 %v4892, %v4893
        %v4896 = vsel %vm4676, %v4888, %v4895
        %v4897 = vrot.slane %v4892, 4
        %v4899 = vshrl.u32 %v4668, 16
        %v4901 = vrot.slane %v4899, 7
        %v4902 = vshll.u32 %v4668, 16
        %v4904 = vor.u32 %v4901, %v4902
        %v4905 = vrot.slane %v4901, 4
        %v4907 = vshrl.u32 %v4669, 16
        %v4909 = vrot.slane %v4907, 7
        %v4910 = vshll.u32 %v4669, 16
        %v4912 = vor.u32 %v4909, %v4910
        %v4913 = vsel %vm4676, %v4905, %v4912
        %v4914 = vrot.slane %v4909, 4
        %v4916 = vshrl.u32 %v4670, 16
        %v4918 = vrot.slane %v4916, 7
        %v4919 = vshll.u32 %v4670, 16
        %v4921 = vor.u32 %v4918, %v4919
        %v4922 = vrot.slane %v4918, 4
        %v4924 = vshrl.u32 %v4671, 16
        %v4926 = vrot.slane %v4924, 7
        %v4927 = vshll.u32 %v4671, 16
        %v4929 = vor.u32 %v4926, %v4927
        %v4930 = vsel %vm4676, %v4922, %v4929
        %v4931 = vrot.slane %v4926, 4
        %v4933 = vshrl.u32 %v4672, 16
        %v4935 = vrot.slane %v4933, 7
        %v4936 = vshll.u32 %v4672, 16
        %v4938 = vor.u32 %v4935, %v4936
        %v4939 = vrot.slane %v4935, 4
        %v4941 = vshrl.u32 %v4673, 16
        %v4943 = vrot.slane %v4941, 7
        %v4944 = vshll.u32 %v4673, 16
        %v4946 = vor.u32 %v4943, %v4944
        %v4947 = vsel %vm4676, %v4939, %v4946
        %v4948 = vrot.slane %v4943, 4
        %s4997 = scalar_lea.vmem [#allocation2], 12
        %vm4998 = vcmask 1043456
        %vm4999 = vsmask.f32 7938
        %vm5000 = vmand %vm4998, %vm4999
        %v5001 = vld [vmem:[%s4997] sm:$0xf]
        %v5002 = vsel %vm5000, %v4683, %v5001
        %5003 = vst [vmem:[%s4997] sm:$0xf] %v5002
        %5004 = vst [vmem:[%s4997 + $0x4] sm:$0xf] %v4692
        %vm5005 = vcmask 1040384
        %vm5006 = vmand %vm5005, %vm4674
        %v5007 = vld [vmem:[%s4997 + $0x8] sm:$0x1]
        %v5008 = vsel %vm5006, %v4693, %v5007
        %5009 = vst [vmem:[%s4997 + $0x8] sm:$0x1] %v5008
        %v5010 = vld [vmem:[%s4997 + $0xc] sm:$0xf]
        %v5011 = vsel %vm5000, %v4700, %v5010
        %5012 = vst [vmem:[%s4997 + $0xc] sm:$0xf] %v5011
        %5013 = vst [vmem:[%s4997 + $0x10] sm:$0xf] %v4709
        %v5014 = vld [vmem:[%s4997 + $0x14] sm:$0x1]
        %v5015 = vsel %vm5006, %v4710, %v5014
        %5016 = vst [vmem:[%s4997 + $0x14] sm:$0x1] %v5015
        %v5017 = vld [vmem:[%s4997 + $0x18] sm:$0xf]
        %v5018 = vsel %vm5000, %v4717, %v5017
        %5019 = vst [vmem:[%s4997 + $0x18] sm:$0xf] %v5018
        %5020 = vst [vmem:[%s4997 + $0x1c] sm:$0xf] %v4726
        %v5021 = vld [vmem:[%s4997 + $0x20] sm:$0x1]
        %v5022 = vsel %vm5006, %v4727, %v5021
        %5023 = vst [vmem:[%s4997 + $0x20] sm:$0x1] %v5022
        %v5024 = vld [vmem:[%s4997 + $0x24] sm:$0xf]
        %v5025 = vsel %vm5000, %v4734, %v5024
        %5026 = vst [vmem:[%s4997 + $0x24] sm:$0xf] %v5025
        %5027 = vst [vmem:[%s4997 + $0x28] sm:$0xf] %v4743
        %v5028 = vld [vmem:[%s4997 + $0x2c] sm:$0x1]
        %v5029 = vsel %vm5006, %v4744, %v5028
        %5030 = vst [vmem:[%s4997 + $0x2c] sm:$0x1] %v5029
        %v5031 = vld [vmem:[%s4997 + $0x30] sm:$0xf]
        %v5032 = vsel %vm5000, %v4751, %v5031
        %5033 = vst [vmem:[%s4997 + $0x30] sm:$0xf] %v5032
        %5034 = vst [vmem:[%s4997 + $0x34] sm:$0xf] %v4760
        %v5035 = vld [vmem:[%s4997 + $0x38] sm:$0x1]
        %v5036 = vsel %vm5006, %v4761, %v5035
        %5037 = vst [vmem:[%s4997 + $0x38] sm:$0x1] %v5036
        %v5038 = vld [vmem:[%s4997 + $0x3c] sm:$0xf]
        %v5039 = vsel %vm5000, %v4768, %v5038
        %5040 = vst [vmem:[%s4997 + $0x3c] sm:$0xf] %v5039
        %5041 = vst [vmem:[%s4997 + $0x40] sm:$0xf] %v4777
        %v5042 = vld [vmem:[%s4997 + $0x44] sm:$0x1]
        %v5043 = vsel %vm5006, %v4778, %v5042
        %5044 = vst [vmem:[%s4997 + $0x44] sm:$0x1] %v5043
        %v5045 = vld [vmem:[%s4997 + $0x48] sm:$0xf]
        %v5046 = vsel %vm5000, %v4785, %v5045
        %5047 = vst [vmem:[%s4997 + $0x48] sm:$0xf] %v5046
        %5048 = vst [vmem:[%s4997 + $0x4c] sm:$0xf] %v4794
        %v5049 = vld [vmem:[%s4997 + $0x50] sm:$0x1]
        %v5050 = vsel %vm5006, %v4795, %v5049
        %5051 = vst [vmem:[%s4997 + $0x50] sm:$0x1] %v5050
        %v5052 = vld [vmem:[%s4997 + $0x54] sm:$0xf]
        %v5053 = vsel %vm5000, %v4802, %v5052
        %5054 = vst [vmem:[%s4997 + $0x54] sm:$0xf] %v5053
        %5055 = vst [vmem:[%s4997 + $0x58] sm:$0xf] %v4811
        %v5056 = vld [vmem:[%s4997 + $0x5c] sm:$0x1]
        %v5057 = vsel %vm5006, %v4812, %v5056
        %5058 = vst [vmem:[%s4997 + $0x5c] sm:$0x1] %v5057
        %v5059 = vld [vmem:[%s4997 + $0x60] sm:$0xf]
        %v5060 = vsel %vm5000, %v4819, %v5059
        %5061 = vst [vmem:[%s4997 + $0x60] sm:$0xf] %v5060
        %5062 = vst [vmem:[%s4997 + $0x64] sm:$0xf] %v4828
        %v5063 = vld [vmem:[%s4997 + $0x68] sm:$0x1]
        %v5064 = vsel %vm5006, %v4829, %v5063
        %5065 = vst [vmem:[%s4997 + $0x68] sm:$0x1] %v5064
        %v5066 = vld [vmem:[%s4997 + $0x6c] sm:$0xf]
        %v5067 = vsel %vm5000, %v4836, %v5066
        %5068 = vst [vmem:[%s4997 + $0x6c] sm:$0xf] %v5067
        %5069 = vst [vmem:[%s4997 + $0x70] sm:$0xf] %v4845
        %v5070 = vld [vmem:[%s4997 + $0x74] sm:$0x1]
        %v5071 = vsel %vm5006, %v4846, %v5070
        %5072 = vst [vmem:[%s4997 + $0x74] sm:$0x1] %v5071
        %v5073 = vld [vmem:[%s4997 + $0x78] sm:$0xf]
        %v5074 = vsel %vm5000, %v4853, %v5073
        %5075 = vst [vmem:[%s4997 + $0x78] sm:$0xf] %v5074
        %5076 = vst [vmem:[%s4997 + $0x7c] sm:$0xf] %v4862
        %v5077 = vld [vmem:[%s4997 + $0x80] sm:$0x1]
        %v5078 = vsel %vm5006, %v4863, %v5077
        %5079 = vst [vmem:[%s4997 + $0x80] sm:$0x1] %v5078
        %v5080 = vld [vmem:[%s4997 + $0x84] sm:$0xf]
        %v5081 = vsel %vm5000, %v4870, %v5080
        %5082 = vst [vmem:[%s4997 + $0x84] sm:$0xf] %v5081
        %5083 = vst [vmem:[%s4997 + $0x88] sm:$0xf] %v4879
        %v5084 = vld [vmem:[%s4997 + $0x8c] sm:$0x1]
        %v5085 = vsel %vm5006, %v4880, %v5084
        %5086 = vst [vmem:[%s4997 + $0x8c] sm:$0x1] %v5085
        %v5087 = vld [vmem:[%s4997 + $0x90] sm:$0xf]
        %v5088 = vsel %vm5000, %v4887, %v5087
        %5089 = vst [vmem:[%s4997 + $0x90] sm:$0xf] %v5088
        %5090 = vst [vmem:[%s4997 + $0x94] sm:$0xf] %v4896
        %v5091 = vld [vmem:[%s4997 + $0x98] sm:$0x1]
        %v5092 = vsel %vm5006, %v4897, %v5091
        %5093 = vst [vmem:[%s4997 + $0x98] sm:$0x1] %v5092
        %v5094 = vld [vmem:[%s4997 + $0x9c] sm:$0xf]
        %v5095 = vsel %vm5000, %v4904, %v5094
        %5096 = vst [vmem:[%s4997 + $0x9c] sm:$0xf] %v5095
        %5097 = vst [vmem:[%s4997 + $0xa0] sm:$0xf] %v4913
        %v5098 = vld [vmem:[%s4997 + $0xa4] sm:$0x1]
        %v5099 = vsel %vm5006, %v4914, %v5098
        %5100 = vst [vmem:[%s4997 + $0xa4] sm:$0x1] %v5099
        %v5101 = vld [vmem:[%s4997 + $0xa8] sm:$0xf]
        %v5102 = vsel %vm5000, %v4921, %v5101
        %5103 = vst [vmem:[%s4997 + $0xa8] sm:$0xf] %v5102
        %5104 = vst [vmem:[%s4997 + $0xac] sm:$0xf] %v4930
        %v5105 = vld [vmem:[%s4997 + $0xb0] sm:$0x1]
        %v5106 = vsel %vm5006, %v4931, %v5105
        %5107 = vst [vmem:[%s4997 + $0xb0] sm:$0x1] %v5106
        %v5108 = vld [vmem:[%s4997 + $0xb4] sm:$0xf]
        %v5109 = vsel %vm5000, %v4938, %v5108
        %5110 = vst [vmem:[%s4997 + $0xb4] sm:$0xf] %v5109
        %5111 = vst [vmem:[%s4997 + $0xb8] sm:$0xf] %v4947
        %v5112 = vld [vmem:[%s4997 + $0xbc] sm:$0x1]
        %v5113 = vsel %vm5006, %v4948, %v5112
        %5114 = vst [vmem:[%s4997 + $0xbc] sm:$0x1] %v5113
        %v5115 = vld [vmem:[#allocation2] sm:$0xf]
        %v5116 = vld [vmem:[#allocation2 + $0x4] sm:$0xf]
        %v5117 = vld [vmem:[#allocation2 + $0xc] sm:$0xf]
        %v5118 = vld [vmem:[#allocation2 + $0x10] sm:$0xf]
        %v5119 = vld [vmem:[#allocation2 + $0x18] sm:$0xf]
        %v5120 = vld [vmem:[#allocation2 + $0x1c] sm:$0xf]
        %v5121 = vld [vmem:[#allocation2 + $0x24] sm:$0xf]
        %v5122 = vld [vmem:[#allocation2 + $0x28] sm:$0xf]
        %v5123 = vld [vmem:[#allocation2 + $0x30] sm:$0xf]
        %v5124 = vld [vmem:[#allocation2 + $0x34] sm:$0xf]
        %v5125 = vld [vmem:[#allocation2 + $0x3c] sm:$0xf]
        %v5126 = vld [vmem:[#allocation2 + $0x40] sm:$0xf]
        %v5127 = vld [vmem:[#allocation2 + $0x48] sm:$0xf]
        %v5128 = vld [vmem:[#allocation2 + $0x4c] sm:$0xf]
        %v5129 = vld [vmem:[#allocation2 + $0x54] sm:$0xf]
        %v5130 = vld [vmem:[#allocation2 + $0x58] sm:$0xf]
        %v5131 = vld [vmem:[#allocation2 + $0x60] sm:$0xf]
        %v5132 = vld [vmem:[#allocation2 + $0x64] sm:$0xf]
        %v5133 = vld [vmem:[#allocation2 + $0x6c] sm:$0xf]
        %v5134 = vld [vmem:[#allocation2 + $0x70] sm:$0xf]
        %v5135 = vld [vmem:[#allocation2 + $0x78] sm:$0xf]
        %v5136 = vld [vmem:[#allocation2 + $0x7c] sm:$0xf]
        %v5137 = vld [vmem:[#allocation2 + $0x84] sm:$0xf]
        %v5138 = vld [vmem:[#allocation2 + $0x88] sm:$0xf]
        %v5139 = vld [vmem:[#allocation2 + $0x90] sm:$0xf]
        %v5140 = vld [vmem:[#allocation2 + $0x94] sm:$0xf]
        %v5141 = vld [vmem:[#allocation2 + $0x9c] sm:$0xf]
        %v5142 = vld [vmem:[#allocation2 + $0xa0] sm:$0xf]
        %v5143 = vld [vmem:[#allocation2 + $0xa8] sm:$0xf]
        %v5144 = vld [vmem:[#allocation2 + $0xac] sm:$0xf]
        %v5145 = vld [vmem:[#allocation2 + $0xb4] sm:$0xf]
        %v5146 = vld [vmem:[#allocation2 + $0xb8] sm:$0xf]
        %v5147 = vld [vmem:[#allocation3] sm:$0xf]
        %v5148 = vld [vmem:[#allocation3 + $0x4] sm:$0xf]
        %v5149 = vld [vmem:[#allocation3 + $0x8] sm:$0xf]
        %v5150 = vld [vmem:[#allocation3 + $0xc] sm:$0xf]
        %v5151 = vld [vmem:[#allocation3 + $0x10] sm:$0xf]
        %v5152 = vld [vmem:[#allocation3 + $0x14] sm:$0xf]
        %v5153 = vld [vmem:[#allocation3 + $0x18] sm:$0xf]
        %v5154 = vld [vmem:[#allocation3 + $0x1c] sm:$0xf]
        %v5155 = vld [vmem:[#allocation3 + $0x20] sm:$0xf]
        %v5156 = vld [vmem:[#allocation3 + $0x24] sm:$0xf]
        %v5157 = vld [vmem:[#allocation3 + $0x28] sm:$0xf]
        %v5158 = vld [vmem:[#allocation3 + $0x2c] sm:$0xf]
        %v5159 = vld [vmem:[#allocation3 + $0x30] sm:$0xf]
        %v5160 = vld [vmem:[#allocation3 + $0x34] sm:$0xf]
        %v5161 = vld [vmem:[#allocation3 + $0x38] sm:$0xf]
        %v5162 = vld [vmem:[#allocation3 + $0x3c] sm:$0xf]
        %v5163 = vld [vmem:[#allocation2 + $0x8] sm:$0x1]
        %v5164 = vld [vmem:[#allocation2 + $0x14] sm:$0x1]
        %v5165 = vld [vmem:[#allocation2 + $0x20] sm:$0x1]
        %v5166 = vld [vmem:[#allocation2 + $0x2c] sm:$0x1]
        %v5167 = vld [vmem:[#allocation2 + $0x38] sm:$0x1]
        %v5168 = vld [vmem:[#allocation2 + $0x44] sm:$0x1]
        %v5169 = vld [vmem:[#allocation2 + $0x50] sm:$0x1]
        %v5170 = vld [vmem:[#allocation2 + $0x5c] sm:$0x1]
        %v5171 = vld [vmem:[#allocation2 + $0x68] sm:$0x1]
        %v5172 = vld [vmem:[#allocation2 + $0x74] sm:$0x1]
        %v5173 = vld [vmem:[#allocation2 + $0x80] sm:$0x1]
        %v5174 = vld [vmem:[#allocation2 + $0x8c] sm:$0x1]
        %v5175 = vld [vmem:[#allocation2 + $0x98] sm:$0x1]
        %v5176 = vld [vmem:[#allocation2 + $0xa4] sm:$0x1]
        %v5177 = vld [vmem:[#allocation2 + $0xb0] sm:$0x1]
        %v5178 = vld [vmem:[#allocation2 + $0xbc] sm:$0x1]
        %v5180 = vshrl.u32 %v5115, 16
        %v5182 = vrot.slane %v5180, 4
        %v5183 = vshll.u32 %v5115, 16
        %v5185 = vrot.slane %v5183, 5
        %v5186 = vor.u32 %v5182, %v5185
        %v5187 = vrot.slane %v5186, 4
        %v5189 = vshll.u32 %v5116, 16
        %v5191 = vrot.slane %v5189, 5
        %v5192 = vsel %vm361, %v5187, %v5191
        %v5193 = vshrl.u32 %v5116, 16
        %v5195 = vrot.slane %v5193, 4
        %v5196 = vor.u32 %v5195, %v5191
        %v5197 = vrot.slane %v5196, 4
        %v5199 = vshll.u32 %v5163, 16
        %v5201 = vrot.slane %v5199, 5
        %v5202 = vsel %vm361, %v5197, %v5201
        %v5204 = vshrl.u32 %v5117, 16
        %v5206 = vrot.slane %v5204, 4
        %v5207 = vshll.u32 %v5117, 16
        %v5209 = vrot.slane %v5207, 5
        %v5210 = vor.u32 %v5206, %v5209
        %v5211 = vrot.slane %v5210, 4
        %v5213 = vshll.u32 %v5118, 16
        %v5215 = vrot.slane %v5213, 5
        %v5216 = vsel %vm361, %v5211, %v5215
        %v5217 = vshrl.u32 %v5118, 16
        %v5219 = vrot.slane %v5217, 4
        %v5220 = vor.u32 %v5219, %v5215
        %v5221 = vrot.slane %v5220, 4
        %v5223 = vshll.u32 %v5164, 16
        %v5225 = vrot.slane %v5223, 5
        %v5226 = vsel %vm361, %v5221, %v5225
        %v5228 = vshrl.u32 %v5119, 16
        %v5230 = vrot.slane %v5228, 4
        %v5231 = vshll.u32 %v5119, 16
        %v5233 = vrot.slane %v5231, 5
        %v5234 = vor.u32 %v5230, %v5233
        %v5235 = vrot.slane %v5234, 4
        %v5237 = vshll.u32 %v5120, 16
        %v5239 = vrot.slane %v5237, 5
        %v5240 = vsel %vm361, %v5235, %v5239
        %v5241 = vshrl.u32 %v5120, 16
        %v5243 = vrot.slane %v5241, 4
        %v5244 = vor.u32 %v5243, %v5239
        %v5245 = vrot.slane %v5244, 4
        %v5247 = vshll.u32 %v5165, 16
        %v5249 = vrot.slane %v5247, 5
        %v5250 = vsel %vm361, %v5245, %v5249
        %v5252 = vshrl.u32 %v5121, 16
        %v5254 = vrot.slane %v5252, 4
        %v5255 = vshll.u32 %v5121, 16
        %v5257 = vrot.slane %v5255, 5
        %v5258 = vor.u32 %v5254, %v5257
        %v5259 = vrot.slane %v5258, 4
        %v5261 = vshll.u32 %v5122, 16
        %v5263 = vrot.slane %v5261, 5
        %v5264 = vsel %vm361, %v5259, %v5263
        %v5265 = vshrl.u32 %v5122, 16
        %v5267 = vrot.slane %v5265, 4
        %v5268 = vor.u32 %v5267, %v5263
        %v5269 = vrot.slane %v5268, 4
        %v5271 = vshll.u32 %v5166, 16
        %v5273 = vrot.slane %v5271, 5
        %v5274 = vsel %vm361, %v5269, %v5273
        %v5276 = vshrl.u32 %v5123, 16
        %v5278 = vrot.slane %v5276, 4
        %v5279 = vshll.u32 %v5123, 16
        %v5281 = vrot.slane %v5279, 5
        %v5282 = vor.u32 %v5278, %v5281
        %v5283 = vrot.slane %v5282, 4
        %v5285 = vshll.u32 %v5124, 16
        %v5287 = vrot.slane %v5285, 5
        %v5288 = vsel %vm361, %v5283, %v5287
        %v5289 = vshrl.u32 %v5124, 16
        %v5291 = vrot.slane %v5289, 4
        %v5292 = vor.u32 %v5291, %v5287
        %v5293 = vrot.slane %v5292, 4
        %v5295 = vshll.u32 %v5167, 16
        %v5297 = vrot.slane %v5295, 5
        %v5298 = vsel %vm361, %v5293, %v5297
        %v5300 = vshrl.u32 %v5125, 16
        %v5302 = vrot.slane %v5300, 4
        %v5303 = vshll.u32 %v5125, 16
        %v5305 = vrot.slane %v5303, 5
        %v5306 = vor.u32 %v5302, %v5305
        %v5307 = vrot.slane %v5306, 4
        %v5309 = vshll.u32 %v5126, 16
        %v5311 = vrot.slane %v5309, 5
        %v5312 = vsel %vm361, %v5307, %v5311
        %v5313 = vshrl.u32 %v5126, 16
        %v5315 = vrot.slane %v5313, 4
        %v5316 = vor.u32 %v5315, %v5311
        %v5317 = vrot.slane %v5316, 4
        %v5319 = vshll.u32 %v5168, 16
        %v5321 = vrot.slane %v5319, 5
        %v5322 = vsel %vm361, %v5317, %v5321
        %v5324 = vshrl.u32 %v5127, 16
        %v5326 = vrot.slane %v5324, 4
        %v5327 = vshll.u32 %v5127, 16
        %v5329 = vrot.slane %v5327, 5
        %v5330 = vor.u32 %v5326, %v5329
        %v5331 = vrot.slane %v5330, 4
        %v5333 = vshll.u32 %v5128, 16
        %v5335 = vrot.slane %v5333, 5
        %v5336 = vsel %vm361, %v5331, %v5335
        %v5337 = vshrl.u32 %v5128, 16
        %v5339 = vrot.slane %v5337, 4
        %v5340 = vor.u32 %v5339, %v5335
        %v5341 = vrot.slane %v5340, 4
        %v5343 = vshll.u32 %v5169, 16
        %v5345 = vrot.slane %v5343, 5
        %v5346 = vsel %vm361, %v5341, %v5345
        %v5348 = vshrl.u32 %v5129, 16
        %v5350 = vrot.slane %v5348, 4
        %v5351 = vshll.u32 %v5129, 16
        %v5353 = vrot.slane %v5351, 5
        %v5354 = vor.u32 %v5350, %v5353
        %v5355 = vrot.slane %v5354, 4
        %v5357 = vshll.u32 %v5130, 16
        %v5359 = vrot.slane %v5357, 5
        %v5360 = vsel %vm361, %v5355, %v5359
        %v5361 = vshrl.u32 %v5130, 16
        %v5363 = vrot.slane %v5361, 4
        %v5364 = vor.u32 %v5363, %v5359
        %v5365 = vrot.slane %v5364, 4
        %v5367 = vshll.u32 %v5170, 16
        %v5369 = vrot.slane %v5367, 5
        %v5370 = vsel %vm361, %v5365, %v5369
        %v5372 = vshrl.u32 %v5131, 16
        %v5374 = vrot.slane %v5372, 4
        %v5375 = vshll.u32 %v5131, 16
        %v5377 = vrot.slane %v5375, 5
        %v5378 = vor.u32 %v5374, %v5377
        %v5379 = vrot.slane %v5378, 4
        %v5381 = vshll.u32 %v5132, 16
        %v5383 = vrot.slane %v5381, 5
        %v5384 = vsel %vm361, %v5379, %v5383
        %v5385 = vshrl.u32 %v5132, 16
        %v5387 = vrot.slane %v5385, 4
        %v5388 = vor.u32 %v5387, %v5383
        %v5389 = vrot.slane %v5388, 4
        %v5391 = vshll.u32 %v5171, 16
        %v5393 = vrot.slane %v5391, 5
        %v5394 = vsel %vm361, %v5389, %v5393
        %v5396 = vshrl.u32 %v5133, 16
        %v5398 = vrot.slane %v5396, 4
        %v5399 = vshll.u32 %v5133, 16
        %v5401 = vrot.slane %v5399, 5
        %v5402 = vor.u32 %v5398, %v5401
        %v5403 = vrot.slane %v5402, 4
        %v5405 = vshll.u32 %v5134, 16
        %v5407 = vrot.slane %v5405, 5
        %v5408 = vsel %vm361, %v5403, %v5407
        %v5409 = vshrl.u32 %v5134, 16
        %v5411 = vrot.slane %v5409, 4
        %v5412 = vor.u32 %v5411, %v5407
        %v5413 = vrot.slane %v5412, 4
        %v5415 = vshll.u32 %v5172, 16
        %v5417 = vrot.slane %v5415, 5
        %v5418 = vsel %vm361, %v5413, %v5417
        %v5420 = vshrl.u32 %v5135, 16
        %v5422 = vrot.slane %v5420, 4
        %v5423 = vshll.u32 %v5135, 16
        %v5425 = vrot.slane %v5423, 5
        %v5426 = vor.u32 %v5422, %v5425
        %v5427 = vrot.slane %v5426, 4
        %v5429 = vshll.u32 %v5136, 16
        %v5431 = vrot.slane %v5429, 5
        %v5432 = vsel %vm361, %v5427, %v5431
        %v5433 = vshrl.u32 %v5136, 16
        %v5435 = vrot.slane %v5433, 4
        %v5436 = vor.u32 %v5435, %v5431
        %v5437 = vrot.slane %v5436, 4
        %v5439 = vshll.u32 %v5173, 16
        %v5441 = vrot.slane %v5439, 5
        %v5442 = vsel %vm361, %v5437, %v5441
        %v5444 = vshrl.u32 %v5137, 16
        %v5446 = vrot.slane %v5444, 4
        %v5447 = vshll.u32 %v5137, 16
        %v5449 = vrot.slane %v5447, 5
        %v5450 = vor.u32 %v5446, %v5449
        %v5451 = vrot.slane %v5450, 4
        %v5453 = vshll.u32 %v5138, 16
        %v5455 = vrot.slane %v5453, 5
        %v5456 = vsel %vm361, %v5451, %v5455
        %v5457 = vshrl.u32 %v5138, 16
        %v5459 = vrot.slane %v5457, 4
        %v5460 = vor.u32 %v5459, %v5455
        %v5461 = vrot.slane %v5460, 4
        %v5463 = vshll.u32 %v5174, 16
        %v5465 = vrot.slane %v5463, 5
        %v5466 = vsel %vm361, %v5461, %v5465
        %v5468 = vshrl.u32 %v5139, 16
        %v5470 = vrot.slane %v5468, 4
        %v5471 = vshll.u32 %v5139, 16
        %v5473 = vrot.slane %v5471, 5
        %v5474 = vor.u32 %v5470, %v5473
        %v5475 = vrot.slane %v5474, 4
        %v5477 = vshll.u32 %v5140, 16
        %v5479 = vrot.slane %v5477, 5
        %v5480 = vsel %vm361, %v5475, %v5479
        %v5481 = vshrl.u32 %v5140, 16
        %v5483 = vrot.slane %v5481, 4
        %v5484 = vor.u32 %v5483, %v5479
        %v5485 = vrot.slane %v5484, 4
        %v5487 = vshll.u32 %v5175, 16
        %v5489 = vrot.slane %v5487, 5
        %v5490 = vsel %vm361, %v5485, %v5489
        %v5492 = vshrl.u32 %v5141, 16
        %v5494 = vrot.slane %v5492, 4
        %v5495 = vshll.u32 %v5141, 16
        %v5497 = vrot.slane %v5495, 5
        %v5498 = vor.u32 %v5494, %v5497
        %v5499 = vrot.slane %v5498, 4
        %v5501 = vshll.u32 %v5142, 16
        %v5503 = vrot.slane %v5501, 5
        %v5504 = vsel %vm361, %v5499, %v5503
        %v5505 = vshrl.u32 %v5142, 16
        %v5507 = vrot.slane %v5505, 4
        %v5508 = vor.u32 %v5507, %v5503
        %v5509 = vrot.slane %v5508, 4
        %v5511 = vshll.u32 %v5176, 16
        %v5513 = vrot.slane %v5511, 5
        %v5514 = vsel %vm361, %v5509, %v5513
        %v5516 = vshrl.u32 %v5143, 16
        %v5518 = vrot.slane %v5516, 4
        %v5519 = vshll.u32 %v5143, 16
        %v5521 = vrot.slane %v5519, 5
        %v5522 = vor.u32 %v5518, %v5521
        %v5523 = vrot.slane %v5522, 4
        %v5525 = vshll.u32 %v5144, 16
        %v5527 = vrot.slane %v5525, 5
        %v5528 = vsel %vm361, %v5523, %v5527
        %v5529 = vshrl.u32 %v5144, 16
        %v5531 = vrot.slane %v5529, 4
        %v5532 = vor.u32 %v5531, %v5527
        %v5533 = vrot.slane %v5532, 4
        %v5535 = vshll.u32 %v5177, 16
        %v5537 = vrot.slane %v5535, 5
        %v5538 = vsel %vm361, %v5533, %v5537
        %v5540 = vshrl.u32 %v5145, 16
        %v5542 = vrot.slane %v5540, 4
        %v5543 = vshll.u32 %v5145, 16
        %v5545 = vrot.slane %v5543, 5
        %v5546 = vor.u32 %v5542, %v5545
        %v5547 = vrot.slane %v5546, 4
        %v5549 = vshll.u32 %v5146, 16
        %v5551 = vrot.slane %v5549, 5
        %v5552 = vsel %vm361, %v5547, %v5551
        %v5553 = vshrl.u32 %v5146, 16
        %v5555 = vrot.slane %v5553, 4
        %v5556 = vor.u32 %v5555, %v5551
        %v5557 = vrot.slane %v5556, 4
        %v5559 = vshll.u32 %v5178, 16
        %v5561 = vrot.slane %v5559, 5
        %v5562 = vsel %vm361, %v5557, %v5561
        %s5563 = scalar_lea.vmem [#allocation3], 64
        %v5564 = vld [vmem:[%s5563] sm:$0xf]
        %v5565 = vld [vmem:[%s5563 + $0x4] sm:$0xf]
        %v5566 = vld [vmem:[%s5563 + $0x8] sm:$0xf]
        %v5567 = vld [vmem:[%s5563 + $0xc] sm:$0xf]
        %v5568 = vld [vmem:[%s5563 + $0x10] sm:$0xf]
        %v5569 = vld [vmem:[%s5563 + $0x14] sm:$0xf]
        %v5570 = vld [vmem:[%s5563 + $0x18] sm:$0xf]
        %v5571 = vld [vmem:[%s5563 + $0x1c] sm:$0xf]
        %v5572 = vld [vmem:[%s5563 + $0x20] sm:$0xf]
        %v5573 = vld [vmem:[%s5563 + $0x24] sm:$0xf]
        %v5574 = vld [vmem:[%s5563 + $0x28] sm:$0xf]
        %v5575 = vld [vmem:[%s5563 + $0x2c] sm:$0xf]
        %v5576 = vld [vmem:[%s5563 + $0x30] sm:$0xf]
        %v5577 = vld [vmem:[%s5563 + $0x34] sm:$0xf]
        %v5578 = vld [vmem:[%s5563 + $0x38] sm:$0xf]
        %v5579 = vld [vmem:[%s5563 + $0x3c] sm:$0xf]
        %v5580 = vunpack.c.l.b16 %v5192
        %v5581 = vunpack.c.l.b16 %v5202
        %v5582 = vunpack.c.l.b16 %v5216
        %v5583 = vunpack.c.l.b16 %v5226
        %v5584 = vunpack.c.l.b16 %v5240
        %v5585 = vunpack.c.l.b16 %v5250
        %v5586 = vunpack.c.l.b16 %v5264
        %v5587 = vunpack.c.l.b16 %v5274
        %v5588 = vunpack.c.l.b16 %v5288
        %v5589 = vunpack.c.l.b16 %v5298
        %v5590 = vunpack.c.l.b16 %v5312
        %v5591 = vunpack.c.l.b16 %v5322
        %v5592 = vunpack.c.l.b16 %v5336
        %v5593 = vunpack.c.l.b16 %v5346
        %v5594 = vunpack.c.l.b16 %v5360
        %v5595 = vunpack.c.l.b16 %v5370
        %v5596 = vunpack.c.l.b16 %v5384
        %v5597 = vunpack.c.l.b16 %v5394
        %v5598 = vunpack.c.l.b16 %v5408
        %v5599 = vunpack.c.l.b16 %v5418
        %v5600 = vunpack.c.l.b16 %v5432
        %v5601 = vunpack.c.l.b16 %v5442
        %v5602 = vunpack.c.l.b16 %v5456
        %v5603 = vunpack.c.l.b16 %v5466
        %v5604 = vunpack.c.l.b16 %v5480
        %v5605 = vunpack.c.l.b16 %v5490
        %v5606 = vunpack.c.l.b16 %v5504
        %v5607 = vunpack.c.l.b16 %v5514
        %v5608 = vunpack.c.l.b16 %v5528
        %v5609 = vunpack.c.l.b16 %v5538
        %v5610 = vunpack.c.l.b16 %v5552
        %v5611 = vunpack.c.l.b16 %v5562
        %v5612 = vpack.c.b16 %v5581, %v5580
        %v5613 = vpack.c.b16 %v5583, %v5582
        %v5614 = vpack.c.b16 %v5585, %v5584
        %v5615 = vpack.c.b16 %v5587, %v5586
        %v5616 = vpack.c.b16 %v5589, %v5588
        %v5617 = vpack.c.b16 %v5591, %v5590
        %v5618 = vpack.c.b16 %v5593, %v5592
        %v5619 = vpack.c.b16 %v5595, %v5594
        %v5620 = vpack.c.b16 %v5597, %v5596
        %v5621 = vpack.c.b16 %v5599, %v5598
        %v5622 = vpack.c.b16 %v5601, %v5600
        %v5623 = vpack.c.b16 %v5603, %v5602
        %v5624 = vpack.c.b16 %v5605, %v5604
        %v5625 = vpack.c.b16 %v5607, %v5606
        %v5626 = vpack.c.b16 %v5609, %v5608
        %v5627 = vpack.c.b16 %v5611, %v5610
        %v5660 = vunpack.c.l.b16 %v5564
        %v5661 = vunpack.c.l.b16 %v5565
        %v5662 = vunpack.c.l.b16 %v5566
        %v5663 = vunpack.c.l.b16 %v5567
        %v5664 = vunpack.c.l.b16 %v5568
        %v5665 = vunpack.c.l.b16 %v5569
        %v5666 = vunpack.c.l.b16 %v5570
        %v5667 = vunpack.c.l.b16 %v5571
        %v5668 = vunpack.c.l.b16 %v5572
        %v5669 = vunpack.c.l.b16 %v5573
        %v5670 = vunpack.c.l.b16 %v5574
        %v5671 = vunpack.c.l.b16 %v5575
        %v5672 = vunpack.c.l.b16 %v5576
        %v5673 = vunpack.c.l.b16 %v5577
        %v5674 = vunpack.c.l.b16 %v5578
        %v5675 = vunpack.c.l.b16 %v5579
        %v5676 = vpack.c.b16 %v5661, %v5660
        %v5677 = vpack.c.b16 %v5663, %v5662
        %v5678 = vpack.c.b16 %v5665, %v5664
        %v5679 = vpack.c.b16 %v5667, %v5666
        %v5680 = vpack.c.b16 %v5669, %v5668
        %v5681 = vpack.c.b16 %v5671, %v5670
        %v5682 = vpack.c.b16 %v5673, %v5672
        %v5683 = vpack.c.b16 %v5675, %v5674
        %5692 = vmatpush.bf16.msra.mxu0 %v5683
        %5693 = vmatpush.bf16.msra.mxu0 %v5682
        %5694 = vmatpush.bf16.msra.mxu0 %v5681
        %5695 = vmatpush.bf16.msra.mxu0 %v5680
        %5696 = vmatpush.bf16.msra.mxu0 %v5679
        %5697 = vmatpush.bf16.msra.mxu0 %v5678
        %5698 = vmatpush.bf16.msra.mxu0 %v5677
        %5699 = vmatpush.bf16.msra.mxu0 %v5676
        %5700 = vmatmul.bf16.gmra.mxu0 %v5612
        %v5701 = vpop.f32.mrf.mxu0
        %v5702 = vadd.f32 0.0, %v5701
        %v5703 = vpop.f32.mrf.mxu0
        %v5704 = vadd.f32 0.0, %v5703
        %5705 = vmatmul.bf16.gmra.mxu0 %v5613
        %v5706 = vpop.f32.mrf.mxu0
        %v5707 = vadd.f32 0.0, %v5706
        %v5708 = vpop.f32.mrf.mxu0
        %v5709 = vadd.f32 0.0, %v5708
        %5710 = vmatmul.bf16.gmra.mxu0 %v5614
        %v5711 = vpop.f32.mrf.mxu0
        %v5712 = vadd.f32 0.0, %v5711
        %v5713 = vpop.f32.mrf.mxu0
        %v5714 = vadd.f32 0.0, %v5713
        %5715 = vmatmul.bf16.gmra.mxu0 %v5615
        %v5716 = vpop.f32.mrf.mxu0
        %v5717 = vadd.f32 0.0, %v5716
        %v5718 = vpop.f32.mrf.mxu0
        %v5719 = vadd.f32 0.0, %v5718
        %5720 = vmatmul.bf16.gmra.mxu0 %v5616
        %v5721 = vpop.f32.mrf.mxu0
        %v5722 = vadd.f32 0.0, %v5721
        %v5723 = vpop.f32.mrf.mxu0
        %v5724 = vadd.f32 0.0, %v5723
        %5725 = vmatmul.bf16.gmra.mxu0 %v5617
        %v5726 = vpop.f32.mrf.mxu0
        %v5727 = vadd.f32 0.0, %v5726
        %v5728 = vpop.f32.mrf.mxu0
        %v5729 = vadd.f32 0.0, %v5728
        %5730 = vmatmul.bf16.gmra.mxu0 %v5618
        %v5731 = vpop.f32.mrf.mxu0
        %v5732 = vadd.f32 0.0, %v5731
        %v5733 = vpop.f32.mrf.mxu0
        %v5734 = vadd.f32 0.0, %v5733
        %5735 = vmatmul.bf16.gmra.mxu0 %v5619
        %v5736 = vpop.f32.mrf.mxu0
        %v5737 = vadd.f32 0.0, %v5736
        %v5738 = vpop.f32.mrf.mxu0
        %v5739 = vadd.f32 0.0, %v5738
        %5740 = vmatmul.bf16.gmra.mxu0 %v5620
        %v5741 = vpop.f32.mrf.mxu0
        %v5742 = vadd.f32 0.0, %v5741
        %v5743 = vpop.f32.mrf.mxu0
        %v5744 = vadd.f32 0.0, %v5743
        %5745 = vmatmul.bf16.gmra.mxu0 %v5621
        %v5746 = vpop.f32.mrf.mxu0
        %v5747 = vadd.f32 0.0, %v5746
        %v5748 = vpop.f32.mrf.mxu0
        %v5749 = vadd.f32 0.0, %v5748
        %5750 = vmatmul.bf16.gmra.mxu0 %v5622
        %v5751 = vpop.f32.mrf.mxu0
        %v5752 = vadd.f32 0.0, %v5751
        %v5753 = vpop.f32.mrf.mxu0
        %v5754 = vadd.f32 0.0, %v5753
        %5755 = vmatmul.bf16.gmra.mxu0 %v5623
        %v5756 = vpop.f32.mrf.mxu0
        %v5757 = vadd.f32 0.0, %v5756
        %v5758 = vpop.f32.mrf.mxu0
        %v5759 = vadd.f32 0.0, %v5758
        %5760 = vmatmul.bf16.gmra.mxu0 %v5624
        %v5761 = vpop.f32.mrf.mxu0
        %v5762 = vadd.f32 0.0, %v5761
        %v5763 = vpop.f32.mrf.mxu0
        %v5764 = vadd.f32 0.0, %v5763
        %5765 = vmatmul.bf16.gmra.mxu0 %v5625
        %v5766 = vpop.f32.mrf.mxu0
        %v5767 = vadd.f32 0.0, %v5766
        %v5768 = vpop.f32.mrf.mxu0
        %v5769 = vadd.f32 0.0, %v5768
        %5770 = vmatmul.bf16.gmra.mxu0 %v5626
        %v5771 = vpop.f32.mrf.mxu0
        %v5772 = vadd.f32 0.0, %v5771
        %v5773 = vpop.f32.mrf.mxu0
        %v5774 = vadd.f32 0.0, %v5773
        %5775 = vmatmul.bf16.gmra.mxu0 %v5627
        %v5776 = vpop.f32.mrf.mxu0
        %v5777 = vadd.f32 0.0, %v5776
        %v5778 = vpop.f32.mrf.mxu0
        %v5779 = vadd.f32 0.0, %v5778
        %5780 = vdwg.mxu0
        %v5813 = vunpack.c.l.b16 %v5115
        %v5814 = vunpack.c.l.b16 %v5116
        %v5815 = vunpack.c.l.b16 %v5117
        %v5816 = vunpack.c.l.b16 %v5118
        %v5817 = vunpack.c.l.b16 %v5119
        %v5818 = vunpack.c.l.b16 %v5120
        %v5819 = vunpack.c.l.b16 %v5121
        %v5820 = vunpack.c.l.b16 %v5122
        %v5821 = vunpack.c.l.b16 %v5123
        %v5822 = vunpack.c.l.b16 %v5124
        %v5823 = vunpack.c.l.b16 %v5125
        %v5824 = vunpack.c.l.b16 %v5126
        %v5825 = vunpack.c.l.b16 %v5127
        %v5826 = vunpack.c.l.b16 %v5128
        %v5827 = vunpack.c.l.b16 %v5129
        %v5828 = vunpack.c.l.b16 %v5130
        %v5829 = vunpack.c.l.b16 %v5131
        %v5830 = vunpack.c.l.b16 %v5132
        %v5831 = vunpack.c.l.b16 %v5133
        %v5832 = vunpack.c.l.b16 %v5134
        %v5833 = vunpack.c.l.b16 %v5135
        %v5834 = vunpack.c.l.b16 %v5136
        %v5835 = vunpack.c.l.b16 %v5137
        %v5836 = vunpack.c.l.b16 %v5138
        %v5837 = vunpack.c.l.b16 %v5139
        %v5838 = vunpack.c.l.b16 %v5140
        %v5839 = vunpack.c.l.b16 %v5141
        %v5840 = vunpack.c.l.b16 %v5142
        %v5841 = vunpack.c.l.b16 %v5143
        %v5842 = vunpack.c.l.b16 %v5144
        %v5843 = vunpack.c.l.b16 %v5145
        %v5844 = vunpack.c.l.b16 %v5146
        %v5845 = vpack.c.b16 %v5814, %v5813
        %v5846 = vpack.c.b16 %v5816, %v5815
        %v5847 = vpack.c.b16 %v5818, %v5817
        %v5848 = vpack.c.b16 %v5820, %v5819
        %v5849 = vpack.c.b16 %v5822, %v5821
        %v5850 = vpack.c.b16 %v5824, %v5823
        %v5851 = vpack.c.b16 %v5826, %v5825
        %v5852 = vpack.c.b16 %v5828, %v5827
        %v5853 = vpack.c.b16 %v5830, %v5829
        %v5854 = vpack.c.b16 %v5832, %v5831
        %v5855 = vpack.c.b16 %v5834, %v5833
        %v5856 = vpack.c.b16 %v5836, %v5835
        %v5857 = vpack.c.b16 %v5838, %v5837
        %v5858 = vpack.c.b16 %v5840, %v5839
        %v5859 = vpack.c.b16 %v5842, %v5841
        %v5860 = vpack.c.b16 %v5844, %v5843
        %v5893 = vunpack.c.l.b16 %v5147
        %v5894 = vunpack.c.l.b16 %v5148
        %v5895 = vunpack.c.l.b16 %v5149
        %v5896 = vunpack.c.l.b16 %v5150
        %v5897 = vunpack.c.l.b16 %v5151
        %v5898 = vunpack.c.l.b16 %v5152
        %v5899 = vunpack.c.l.b16 %v5153
        %v5900 = vunpack.c.l.b16 %v5154
        %v5901 = vunpack.c.l.b16 %v5155
        %v5902 = vunpack.c.l.b16 %v5156
        %v5903 = vunpack.c.l.b16 %v5157
        %v5904 = vunpack.c.l.b16 %v5158
        %v5905 = vunpack.c.l.b16 %v5159
        %v5906 = vunpack.c.l.b16 %v5160
        %v5907 = vunpack.c.l.b16 %v5161
        %v5908 = vunpack.c.l.b16 %v5162
        %v5909 = vpack.c.b16 %v5894, %v5893
        %v5910 = vpack.c.b16 %v5896, %v5895
        %v5911 = vpack.c.b16 %v5898, %v5897
        %v5912 = vpack.c.b16 %v5900, %v5899
        %v5913 = vpack.c.b16 %v5902, %v5901
        %v5914 = vpack.c.b16 %v5904, %v5903
        %v5915 = vpack.c.b16 %v5906, %v5905
        %v5916 = vpack.c.b16 %v5908, %v5907
        %5925 = vmatpush.bf16.msra.mxu0 %v5916
        %5926 = vmatpush.bf16.msra.mxu0 %v5915
        %5927 = vmatpush.bf16.msra.mxu0 %v5914
        %5928 = vmatpush.bf16.msra.mxu0 %v5913
        %5929 = vmatpush.bf16.msra.mxu0 %v5912
        %5930 = vmatpush.bf16.msra.mxu0 %v5911
        %5931 = vmatpush.bf16.msra.mxu0 %v5910
        %5932 = vmatpush.bf16.msra.mxu0 %v5909
        %5933 = vmatmul.bf16.gmra.mxu0 %v5845
        %v5934 = vpop.f32.mrf.mxu0
        %v5935 = vadd.f32 %v5702, %v5934
        %v5936 = vpop.f32.mrf.mxu0
        %v5937 = vadd.f32 %v5704, %v5936
        %5938 = vmatmul.bf16.gmra.mxu0 %v5846
        %v5939 = vpop.f32.mrf.mxu0
        %v5940 = vadd.f32 %v5707, %v5939
        %v5941 = vpop.f32.mrf.mxu0
        %v5942 = vadd.f32 %v5709, %v5941
        %5943 = vmatmul.bf16.gmra.mxu0 %v5847
        %v5944 = vpop.f32.mrf.mxu0
        %v5945 = vadd.f32 %v5712, %v5944
        %v5946 = vpop.f32.mrf.mxu0
        %v5947 = vadd.f32 %v5714, %v5946
        %5948 = vmatmul.bf16.gmra.mxu0 %v5848
        %v5949 = vpop.f32.mrf.mxu0
        %v5950 = vadd.f32 %v5717, %v5949
        %v5951 = vpop.f32.mrf.mxu0
        %v5952 = vadd.f32 %v5719, %v5951
        %5953 = vmatmul.bf16.gmra.mxu0 %v5849
        %v5954 = vpop.f32.mrf.mxu0
        %v5955 = vadd.f32 %v5722, %v5954
        %v5956 = vpop.f32.mrf.mxu0
        %v5957 = vadd.f32 %v5724, %v5956
        %5958 = vmatmul.bf16.gmra.mxu0 %v5850
        %v5959 = vpop.f32.mrf.mxu0
        %v5960 = vadd.f32 %v5727, %v5959
        %v5961 = vpop.f32.mrf.mxu0
        %v5962 = vadd.f32 %v5729, %v5961
        %5963 = vmatmul.bf16.gmra.mxu0 %v5851
        %v5964 = vpop.f32.mrf.mxu0
        %v5965 = vadd.f32 %v5732, %v5964
        %v5966 = vpop.f32.mrf.mxu0
        %v5967 = vadd.f32 %v5734, %v5966
        %5968 = vmatmul.bf16.gmra.mxu0 %v5852
        %v5969 = vpop.f32.mrf.mxu0
        %v5970 = vadd.f32 %v5737, %v5969
        %v5971 = vpop.f32.mrf.mxu0
        %v5972 = vadd.f32 %v5739, %v5971
        %5973 = vmatmul.bf16.gmra.mxu0 %v5853
        %v5974 = vpop.f32.mrf.mxu0
        %v5975 = vadd.f32 %v5742, %v5974
        %v5976 = vpop.f32.mrf.mxu0
        %v5977 = vadd.f32 %v5744, %v5976
        %5978 = vmatmul.bf16.gmra.mxu0 %v5854
        %v5979 = vpop.f32.mrf.mxu0
        %v5980 = vadd.f32 %v5747, %v5979
        %v5981 = vpop.f32.mrf.mxu0
        %v5982 = vadd.f32 %v5749, %v5981
        %5983 = vmatmul.bf16.gmra.mxu0 %v5855
        %v5984 = vpop.f32.mrf.mxu0
        %v5985 = vadd.f32 %v5752, %v5984
        %v5986 = vpop.f32.mrf.mxu0
        %v5987 = vadd.f32 %v5754, %v5986
        %5988 = vmatmul.bf16.gmra.mxu0 %v5856
        %v5989 = vpop.f32.mrf.mxu0
        %v5990 = vadd.f32 %v5757, %v5989
        %v5991 = vpop.f32.mrf.mxu0
        %v5992 = vadd.f32 %v5759, %v5991
        %5993 = vmatmul.bf16.gmra.mxu0 %v5857
        %v5994 = vpop.f32.mrf.mxu0
        %v5995 = vadd.f32 %v5762, %v5994
        %v5996 = vpop.f32.mrf.mxu0
        %v5997 = vadd.f32 %v5764, %v5996
        %5998 = vmatmul.bf16.gmra.mxu0 %v5858
        %v5999 = vpop.f32.mrf.mxu0
        %v6000 = vadd.f32 %v5767, %v5999
        %v6001 = vpop.f32.mrf.mxu0
        %v6002 = vadd.f32 %v5769, %v6001
        %6003 = vmatmul.bf16.gmra.mxu0 %v5859
        %v6004 = vpop.f32.mrf.mxu0
        %v6005 = vadd.f32 %v5772, %v6004
        %v6006 = vpop.f32.mrf.mxu0
        %v6007 = vadd.f32 %v5774, %v6006
        %6008 = vmatmul.bf16.gmra.mxu0 %v5860
        %v6009 = vpop.f32.mrf.mxu0
        %v6010 = vadd.f32 %v5777, %v6009
        %v6011 = vpop.f32.mrf.mxu0
        %v6012 = vadd.f32 %v5779, %v6011
        %6013 = vdwg.mxu0
        %v6014 = vld [vmem:[#allocation2] sm:$0xe]
        %v6015 = vld [vmem:[#allocation2 + $0xc] sm:$0xe]
        %v6016 = vld [vmem:[#allocation2 + $0x18] sm:$0xe]
        %v6017 = vld [vmem:[#allocation2 + $0x24] sm:$0xe]
        %v6018 = vld [vmem:[#allocation2 + $0x30] sm:$0xe]
        %v6019 = vld [vmem:[#allocation2 + $0x3c] sm:$0xe]
        %v6020 = vld [vmem:[#allocation2 + $0x48] sm:$0xe]
        %v6021 = vld [vmem:[#allocation2 + $0x54] sm:$0xe]
        %v6022 = vld [vmem:[#allocation2 + $0x60] sm:$0xe]
        %v6023 = vld [vmem:[#allocation2 + $0x6c] sm:$0xe]
        %v6024 = vld [vmem:[#allocation2 + $0x78] sm:$0xe]
        %v6025 = vld [vmem:[#allocation2 + $0x84] sm:$0xe]
        %v6026 = vld [vmem:[#allocation2 + $0x90] sm:$0xe]
        %v6027 = vld [vmem:[#allocation2 + $0x9c] sm:$0xe]
        %v6028 = vld [vmem:[#allocation2 + $0xa8] sm:$0xe]
        %v6029 = vld [vmem:[#allocation2 + $0xb4] sm:$0xe]
        %v6062 = vrot.slane %v6014, 5
        %v6063 = vrot.slane %v6062, 4
        %v6064 = vrot.slane %v5116, 5
        %v6065 = vsel %vm1247, %v6063, %v6064
        %v6066 = vrot.slane %v6064, 4
        %v6067 = vrot.slane %v5163, 5
        %v6068 = vsel %vm1247, %v6066, %v6067
        %v6069 = vrot.slane %v6015, 5
        %v6070 = vrot.slane %v6069, 4
        %v6071 = vrot.slane %v5118, 5
        %v6072 = vsel %vm1247, %v6070, %v6071
        %v6073 = vrot.slane %v6071, 4
        %v6074 = vrot.slane %v5164, 5
        %v6075 = vsel %vm1247, %v6073, %v6074
        %v6076 = vrot.slane %v6016, 5
        %v6077 = vrot.slane %v6076, 4
        %v6078 = vrot.slane %v5120, 5
        %v6079 = vsel %vm1247, %v6077, %v6078
        %v6080 = vrot.slane %v6078, 4
        %v6081 = vrot.slane %v5165, 5
        %v6082 = vsel %vm1247, %v6080, %v6081
        %v6083 = vrot.slane %v6017, 5
        %v6084 = vrot.slane %v6083, 4
        %v6085 = vrot.slane %v5122, 5
        %v6086 = vsel %vm1247, %v6084, %v6085
        %v6087 = vrot.slane %v6085, 4
        %v6088 = vrot.slane %v5166, 5
        %v6089 = vsel %vm1247, %v6087, %v6088
        %v6090 = vrot.slane %v6018, 5
        %v6091 = vrot.slane %v6090, 4
        %v6092 = vrot.slane %v5124, 5
        %v6093 = vsel %vm1247, %v6091, %v6092
        %v6094 = vrot.slane %v6092, 4
        %v6095 = vrot.slane %v5167, 5
        %v6096 = vsel %vm1247, %v6094, %v6095
        %v6097 = vrot.slane %v6019, 5
        %v6098 = vrot.slane %v6097, 4
        %v6099 = vrot.slane %v5126, 5
        %v6100 = vsel %vm1247, %v6098, %v6099
        %v6101 = vrot.slane %v6099, 4
        %v6102 = vrot.slane %v5168, 5
        %v6103 = vsel %vm1247, %v6101, %v6102
        %v6104 = vrot.slane %v6020, 5
        %v6105 = vrot.slane %v6104, 4
        %v6106 = vrot.slane %v5128, 5
        %v6107 = vsel %vm1247, %v6105, %v6106
        %v6108 = vrot.slane %v6106, 4
        %v6109 = vrot.slane %v5169, 5
        %v6110 = vsel %vm1247, %v6108, %v6109
        %v6111 = vrot.slane %v6021, 5
        %v6112 = vrot.slane %v6111, 4
        %v6113 = vrot.slane %v5130, 5
        %v6114 = vsel %vm1247, %v6112, %v6113
        %v6115 = vrot.slane %v6113, 4
        %v6116 = vrot.slane %v5170, 5
        %v6117 = vsel %vm1247, %v6115, %v6116
        %v6118 = vrot.slane %v6022, 5
        %v6119 = vrot.slane %v6118, 4
        %v6120 = vrot.slane %v5132, 5
        %v6121 = vsel %vm1247, %v6119, %v6120
        %v6122 = vrot.slane %v6120, 4
        %v6123 = vrot.slane %v5171, 5
        %v6124 = vsel %vm1247, %v6122, %v6123
        %v6125 = vrot.slane %v6023, 5
        %v6126 = vrot.slane %v6125, 4
        %v6127 = vrot.slane %v5134, 5
        %v6128 = vsel %vm1247, %v6126, %v6127
        %v6129 = vrot.slane %v6127, 4
        %v6130 = vrot.slane %v5172, 5
        %v6131 = vsel %vm1247, %v6129, %v6130
        %v6132 = vrot.slane %v6024, 5
        %v6133 = vrot.slane %v6132, 4
        %v6134 = vrot.slane %v5136, 5
        %v6135 = vsel %vm1247, %v6133, %v6134
        %v6136 = vrot.slane %v6134, 4
        %v6137 = vrot.slane %v5173, 5
        %v6138 = vsel %vm1247, %v6136, %v6137
        %v6139 = vrot.slane %v6025, 5
        %v6140 = vrot.slane %v6139, 4
        %v6141 = vrot.slane %v5138, 5
        %v6142 = vsel %vm1247, %v6140, %v6141
        %v6143 = vrot.slane %v6141, 4
        %v6144 = vrot.slane %v5174, 5
        %v6145 = vsel %vm1247, %v6143, %v6144
        %v6146 = vrot.slane %v6026, 5
        %v6147 = vrot.slane %v6146, 4
        %v6148 = vrot.slane %v5140, 5
        %v6149 = vsel %vm1247, %v6147, %v6148
        %v6150 = vrot.slane %v6148, 4
        %v6151 = vrot.slane %v5175, 5
        %v6152 = vsel %vm1247, %v6150, %v6151
        %v6153 = vrot.slane %v6027, 5
        %v6154 = vrot.slane %v6153, 4
        %v6155 = vrot.slane %v5142, 5
        %v6156 = vsel %vm1247, %v6154, %v6155
        %v6157 = vrot.slane %v6155, 4
        %v6158 = vrot.slane %v5176, 5
        %v6159 = vsel %vm1247, %v6157, %v6158
        %v6160 = vrot.slane %v6028, 5
        %v6161 = vrot.slane %v6160, 4
        %v6162 = vrot.slane %v5144, 5
        %v6163 = vsel %vm1247, %v6161, %v6162
        %v6164 = vrot.slane %v6162, 4
        %v6165 = vrot.slane %v5177, 5
        %v6166 = vsel %vm1247, %v6164, %v6165
        %v6167 = vrot.slane %v6029, 5
        %v6168 = vrot.slane %v6167, 4
        %v6169 = vrot.slane %v5146, 5
        %v6170 = vsel %vm1247, %v6168, %v6169
        %v6171 = vrot.slane %v6169, 4
        %v6172 = vrot.slane %v5178, 5
        %v6173 = vsel %vm1247, %v6171, %v6172
        %s6174 = scalar_lea.vmem [#allocation3], 128
        %v6175 = vld [vmem:[%s6174] sm:$0xf]
        %v6176 = vld [vmem:[%s6174 + $0x4] sm:$0xf]
        %v6177 = vld [vmem:[%s6174 + $0x8] sm:$0xf]
        %v6178 = vld [vmem:[%s6174 + $0xc] sm:$0xf]
        %v6179 = vld [vmem:[%s6174 + $0x10] sm:$0xf]
        %v6180 = vld [vmem:[%s6174 + $0x14] sm:$0xf]
        %v6181 = vld [vmem:[%s6174 + $0x18] sm:$0xf]
        %v6182 = vld [vmem:[%s6174 + $0x1c] sm:$0xf]
        %v6183 = vld [vmem:[%s6174 + $0x20] sm:$0xf]
        %v6184 = vld [vmem:[%s6174 + $0x24] sm:$0xf]
        %v6185 = vld [vmem:[%s6174 + $0x28] sm:$0xf]
        %v6186 = vld [vmem:[%s6174 + $0x2c] sm:$0xf]
        %v6187 = vld [vmem:[%s6174 + $0x30] sm:$0xf]
        %v6188 = vld [vmem:[%s6174 + $0x34] sm:$0xf]
        %v6189 = vld [vmem:[%s6174 + $0x38] sm:$0xf]
        %v6190 = vld [vmem:[%s6174 + $0x3c] sm:$0xf]
        %v6191 = vunpack.c.l.b16 %v6065
        %v6192 = vunpack.c.l.b16 %v6068
        %v6193 = vunpack.c.l.b16 %v6072
        %v6194 = vunpack.c.l.b16 %v6075
        %v6195 = vunpack.c.l.b16 %v6079
        %v6196 = vunpack.c.l.b16 %v6082
        %v6197 = vunpack.c.l.b16 %v6086
        %v6198 = vunpack.c.l.b16 %v6089
        %v6199 = vunpack.c.l.b16 %v6093
        %v6200 = vunpack.c.l.b16 %v6096
        %v6201 = vunpack.c.l.b16 %v6100
        %v6202 = vunpack.c.l.b16 %v6103
        %v6203 = vunpack.c.l.b16 %v6107
        %v6204 = vunpack.c.l.b16 %v6110
        %v6205 = vunpack.c.l.b16 %v6114
        %v6206 = vunpack.c.l.b16 %v6117
        %v6207 = vunpack.c.l.b16 %v6121
        %v6208 = vunpack.c.l.b16 %v6124
        %v6209 = vunpack.c.l.b16 %v6128
        %v6210 = vunpack.c.l.b16 %v6131
        %v6211 = vunpack.c.l.b16 %v6135
        %v6212 = vunpack.c.l.b16 %v6138
        %v6213 = vunpack.c.l.b16 %v6142
        %v6214 = vunpack.c.l.b16 %v6145
        %v6215 = vunpack.c.l.b16 %v6149
        %v6216 = vunpack.c.l.b16 %v6152
        %v6217 = vunpack.c.l.b16 %v6156
        %v6218 = vunpack.c.l.b16 %v6159
        %v6219 = vunpack.c.l.b16 %v6163
        %v6220 = vunpack.c.l.b16 %v6166
        %v6221 = vunpack.c.l.b16 %v6170
        %v6222 = vunpack.c.l.b16 %v6173
        %v6223 = vpack.c.b16 %v6192, %v6191
        %v6224 = vpack.c.b16 %v6194, %v6193
        %v6225 = vpack.c.b16 %v6196, %v6195
        %v6226 = vpack.c.b16 %v6198, %v6197
        %v6227 = vpack.c.b16 %v6200, %v6199
        %v6228 = vpack.c.b16 %v6202, %v6201
        %v6229 = vpack.c.b16 %v6204, %v6203
        %v6230 = vpack.c.b16 %v6206, %v6205
        %v6231 = vpack.c.b16 %v6208, %v6207
        %v6232 = vpack.c.b16 %v6210, %v6209
        %v6233 = vpack.c.b16 %v6212, %v6211
        %v6234 = vpack.c.b16 %v6214, %v6213
        %v6235 = vpack.c.b16 %v6216, %v6215
        %v6236 = vpack.c.b16 %v6218, %v6217
        %v6237 = vpack.c.b16 %v6220, %v6219
        %v6238 = vpack.c.b16 %v6222, %v6221
        %v6271 = vunpack.c.l.b16 %v6175
        %v6272 = vunpack.c.l.b16 %v6176
        %v6273 = vunpack.c.l.b16 %v6177
        %v6274 = vunpack.c.l.b16 %v6178
        %v6275 = vunpack.c.l.b16 %v6179
        %v6276 = vunpack.c.l.b16 %v6180
        %v6277 = vunpack.c.l.b16 %v6181
        %v6278 = vunpack.c.l.b16 %v6182
        %v6279 = vunpack.c.l.b16 %v6183
        %v6280 = vunpack.c.l.b16 %v6184
        %v6281 = vunpack.c.l.b16 %v6185
        %v6282 = vunpack.c.l.b16 %v6186
        %v6283 = vunpack.c.l.b16 %v6187
        %v6284 = vunpack.c.l.b16 %v6188
        %v6285 = vunpack.c.l.b16 %v6189
        %v6286 = vunpack.c.l.b16 %v6190
        %v6287 = vpack.c.b16 %v6272, %v6271
        %v6288 = vpack.c.b16 %v6274, %v6273
        %v6289 = vpack.c.b16 %v6276, %v6275
        %v6290 = vpack.c.b16 %v6278, %v6277
        %v6291 = vpack.c.b16 %v6280, %v6279
        %v6292 = vpack.c.b16 %v6282, %v6281
        %v6293 = vpack.c.b16 %v6284, %v6283
        %v6294 = vpack.c.b16 %v6286, %v6285
        %6303 = vmatpush.bf16.msra.mxu0 %v6294
        %6304 = vmatpush.bf16.msra.mxu0 %v6293
        %6305 = vmatpush.bf16.msra.mxu0 %v6292
        %6306 = vmatpush.bf16.msra.mxu0 %v6291
        %6307 = vmatpush.bf16.msra.mxu0 %v6290
        %6308 = vmatpush.bf16.msra.mxu0 %v6289
        %6309 = vmatpush.bf16.msra.mxu0 %v6288
        %6310 = vmatpush.bf16.msra.mxu0 %v6287
        %6311 = vmatmul.bf16.gmra.mxu0 %v6223
        %v6312 = vpop.f32.mrf.mxu0
        %v6313 = vadd.f32 0.0, %v6312
        %v6314 = vpop.f32.mrf.mxu0
        %v6315 = vadd.f32 0.0, %v6314
        %6316 = vmatmul.bf16.gmra.mxu0 %v6224
        %v6317 = vpop.f32.mrf.mxu0
        %v6318 = vadd.f32 0.0, %v6317
        %v6319 = vpop.f32.mrf.mxu0
        %v6320 = vadd.f32 0.0, %v6319
        %6321 = vmatmul.bf16.gmra.mxu0 %v6225
        %v6322 = vpop.f32.mrf.mxu0
        %v6323 = vadd.f32 0.0, %v6322
        %v6324 = vpop.f32.mrf.mxu0
        %v6325 = vadd.f32 0.0, %v6324
        %6326 = vmatmul.bf16.gmra.mxu0 %v6226
        %v6327 = vpop.f32.mrf.mxu0
        %v6328 = vadd.f32 0.0, %v6327
        %v6329 = vpop.f32.mrf.mxu0
        %v6330 = vadd.f32 0.0, %v6329
        %6331 = vmatmul.bf16.gmra.mxu0 %v6227
        %v6332 = vpop.f32.mrf.mxu0
        %v6333 = vadd.f32 0.0, %v6332
        %v6334 = vpop.f32.mrf.mxu0
        %v6335 = vadd.f32 0.0, %v6334
        %6336 = vmatmul.bf16.gmra.mxu0 %v6228
        %v6337 = vpop.f32.mrf.mxu0
        %v6338 = vadd.f32 0.0, %v6337
        %v6339 = vpop.f32.mrf.mxu0
        %v6340 = vadd.f32 0.0, %v6339
        %6341 = vmatmul.bf16.gmra.mxu0 %v6229
        %v6342 = vpop.f32.mrf.mxu0
        %v6343 = vadd.f32 0.0, %v6342
        %v6344 = vpop.f32.mrf.mxu0
        %v6345 = vadd.f32 0.0, %v6344
        %6346 = vmatmul.bf16.gmra.mxu0 %v6230
        %v6347 = vpop.f32.mrf.mxu0
        %v6348 = vadd.f32 0.0, %v6347
        %v6349 = vpop.f32.mrf.mxu0
        %v6350 = vadd.f32 0.0, %v6349
        %6351 = vmatmul.bf16.gmra.mxu0 %v6231
        %v6352 = vpop.f32.mrf.mxu0
        %v6353 = vadd.f32 0.0, %v6352
        %v6354 = vpop.f32.mrf.mxu0
        %v6355 = vadd.f32 0.0, %v6354
        %6356 = vmatmul.bf16.gmra.mxu0 %v6232
        %v6357 = vpop.f32.mrf.mxu0
        %v6358 = vadd.f32 0.0, %v6357
        %v6359 = vpop.f32.mrf.mxu0
        %v6360 = vadd.f32 0.0, %v6359
        %6361 = vmatmul.bf16.gmra.mxu0 %v6233
        %v6362 = vpop.f32.mrf.mxu0
        %v6363 = vadd.f32 0.0, %v6362
        %v6364 = vpop.f32.mrf.mxu0
        %v6365 = vadd.f32 0.0, %v6364
        %6366 = vmatmul.bf16.gmra.mxu0 %v6234
        %v6367 = vpop.f32.mrf.mxu0
        %v6368 = vadd.f32 0.0, %v6367
        %v6369 = vpop.f32.mrf.mxu0
        %v6370 = vadd.f32 0.0, %v6369
        %6371 = vmatmul.bf16.gmra.mxu0 %v6235
        %v6372 = vpop.f32.mrf.mxu0
        %v6373 = vadd.f32 0.0, %v6372
        %v6374 = vpop.f32.mrf.mxu0
        %v6375 = vadd.f32 0.0, %v6374
        %6376 = vmatmul.bf16.gmra.mxu0 %v6236
        %v6377 = vpop.f32.mrf.mxu0
        %v6378 = vadd.f32 0.0, %v6377
        %v6379 = vpop.f32.mrf.mxu0
        %v6380 = vadd.f32 0.0, %v6379
        %6381 = vmatmul.bf16.gmra.mxu0 %v6237
        %v6382 = vpop.f32.mrf.mxu0
        %v6383 = vadd.f32 0.0, %v6382
        %v6384 = vpop.f32.mrf.mxu0
        %v6385 = vadd.f32 0.0, %v6384
        %6386 = vmatmul.bf16.gmra.mxu0 %v6238
        %v6387 = vpop.f32.mrf.mxu0
        %v6388 = vadd.f32 0.0, %v6387
        %v6389 = vpop.f32.mrf.mxu0
        %v6390 = vadd.f32 0.0, %v6389
        %6391 = vdwg.mxu0
        %v6392 = vadd.f32 %v5935, %v6313
        %v6393 = vadd.f32 %v5937, %v6315
        %v6394 = vadd.f32 %v5940, %v6318
        %v6395 = vadd.f32 %v5942, %v6320
        %v6396 = vadd.f32 %v5945, %v6323
        %v6397 = vadd.f32 %v5947, %v6325
        %v6398 = vadd.f32 %v5950, %v6328
        %v6399 = vadd.f32 %v5952, %v6330
        %v6400 = vadd.f32 %v5955, %v6333
        %v6401 = vadd.f32 %v5957, %v6335
        %v6402 = vadd.f32 %v5960, %v6338
        %v6403 = vadd.f32 %v5962, %v6340
        %v6404 = vadd.f32 %v5965, %v6343
        %v6405 = vadd.f32 %v5967, %v6345
        %v6406 = vadd.f32 %v5970, %v6348
        %v6407 = vadd.f32 %v5972, %v6350
        %v6408 = vadd.f32 %v5975, %v6353
        %v6409 = vadd.f32 %v5977, %v6355
        %v6410 = vadd.f32 %v5980, %v6358
        %v6411 = vadd.f32 %v5982, %v6360
        %v6412 = vadd.f32 %v5985, %v6363
        %v6413 = vadd.f32 %v5987, %v6365
        %v6414 = vadd.f32 %v5990, %v6368
        %v6415 = vadd.f32 %v5992, %v6370
        %v6416 = vadd.f32 %v5995, %v6373
        %v6417 = vadd.f32 %v5997, %v6375
        %v6418 = vadd.f32 %v6000, %v6378
        %v6419 = vadd.f32 %v6002, %v6380
        %v6420 = vadd.f32 %v6005, %v6383
        %v6421 = vadd.f32 %v6007, %v6385
        %v6422 = vadd.f32 %v6010, %v6388
        %v6423 = vadd.f32 %v6012, %v6390
        %v6424 = vld [vmem:[%s4997] sm:$0xf]
        %v6425 = vld [vmem:[%s4997 + $0x4] sm:$0xf]
        %v6426 = vld [vmem:[%s4997 + $0xc] sm:$0xf]
        %v6427 = vld [vmem:[%s4997 + $0x10] sm:$0xf]
        %v6428 = vld [vmem:[%s4997 + $0x18] sm:$0xf]
        %v6429 = vld [vmem:[%s4997 + $0x1c] sm:$0xf]
        %v6430 = vld [vmem:[%s4997 + $0x24] sm:$0xf]
        %v6431 = vld [vmem:[%s4997 + $0x28] sm:$0xf]
        %v6432 = vld [vmem:[%s4997 + $0x30] sm:$0xf]
        %v6433 = vld [vmem:[%s4997 + $0x34] sm:$0xf]
        %v6434 = vld [vmem:[%s4997 + $0x3c] sm:$0xf]
        %v6435 = vld [vmem:[%s4997 + $0x40] sm:$0xf]
        %v6436 = vld [vmem:[%s4997 + $0x48] sm:$0xf]
        %v6437 = vld [vmem:[%s4997 + $0x4c] sm:$0xf]
        %v6438 = vld [vmem:[%s4997 + $0x54] sm:$0xf]
        %v6439 = vld [vmem:[%s4997 + $0x58] sm:$0xf]
        %v6440 = vld [vmem:[%s4997 + $0x60] sm:$0xf]
        %v6441 = vld [vmem:[%s4997 + $0x64] sm:$0xf]
        %v6442 = vld [vmem:[%s4997 + $0x6c] sm:$0xf]
        %v6443 = vld [vmem:[%s4997 + $0x70] sm:$0xf]
        %v6444 = vld [vmem:[%s4997 + $0x78] sm:$0xf]
        %v6445 = vld [vmem:[%s4997 + $0x7c] sm:$0xf]
        %v6446 = vld [vmem:[%s4997 + $0x84] sm:$0xf]
        %v6447 = vld [vmem:[%s4997 + $0x88] sm:$0xf]
        %v6448 = vld [vmem:[%s4997 + $0x90] sm:$0xf]
        %v6449 = vld [vmem:[%s4997 + $0x94] sm:$0xf]
        %v6450 = vld [vmem:[%s4997 + $0x9c] sm:$0xf]
        %v6451 = vld [vmem:[%s4997 + $0xa0] sm:$0xf]
        %v6452 = vld [vmem:[%s4997 + $0xa8] sm:$0xf]
        %v6453 = vld [vmem:[%s4997 + $0xac] sm:$0xf]
        %v6454 = vld [vmem:[%s4997 + $0xb4] sm:$0xf]
        %v6455 = vld [vmem:[%s4997 + $0xb8] sm:$0xf]
        %s6456 = scalar_lea.vmem [#allocation3], 192
        %v6457 = vld [vmem:[%s6456] sm:$0xf]
        %v6458 = vld [vmem:[%s6456 + $0x4] sm:$0xf]
        %v6459 = vld [vmem:[%s6456 + $0x8] sm:$0xf]
        %v6460 = vld [vmem:[%s6456 + $0xc] sm:$0xf]
        %v6461 = vld [vmem:[%s6456 + $0x10] sm:$0xf]
        %v6462 = vld [vmem:[%s6456 + $0x14] sm:$0xf]
        %v6463 = vld [vmem:[%s6456 + $0x18] sm:$0xf]
        %v6464 = vld [vmem:[%s6456 + $0x1c] sm:$0xf]
        %v6465 = vld [vmem:[%s6456 + $0x20] sm:$0xf]
        %v6466 = vld [vmem:[%s6456 + $0x24] sm:$0xf]
        %v6467 = vld [vmem:[%s6456 + $0x28] sm:$0xf]
        %v6468 = vld [vmem:[%s6456 + $0x2c] sm:$0xf]
        %v6469 = vld [vmem:[%s6456 + $0x30] sm:$0xf]
        %v6470 = vld [vmem:[%s6456 + $0x34] sm:$0xf]
        %v6471 = vld [vmem:[%s6456 + $0x38] sm:$0xf]
        %v6472 = vld [vmem:[%s6456 + $0x3c] sm:$0xf]
        %v6505 = vunpack.c.l.b16 %v6424
        %v6506 = vunpack.c.l.b16 %v6425
        %v6507 = vunpack.c.l.b16 %v6426
        %v6508 = vunpack.c.l.b16 %v6427
        %v6509 = vunpack.c.l.b16 %v6428
        %v6510 = vunpack.c.l.b16 %v6429
        %v6511 = vunpack.c.l.b16 %v6430
        %v6512 = vunpack.c.l.b16 %v6431
        %v6513 = vunpack.c.l.b16 %v6432
        %v6514 = vunpack.c.l.b16 %v6433
        %v6515 = vunpack.c.l.b16 %v6434
        %v6516 = vunpack.c.l.b16 %v6435
        %v6517 = vunpack.c.l.b16 %v6436
        %v6518 = vunpack.c.l.b16 %v6437
        %v6519 = vunpack.c.l.b16 %v6438
        %v6520 = vunpack.c.l.b16 %v6439
        %v6521 = vunpack.c.l.b16 %v6440
        %v6522 = vunpack.c.l.b16 %v6441
        %v6523 = vunpack.c.l.b16 %v6442
        %v6524 = vunpack.c.l.b16 %v6443
        %v6525 = vunpack.c.l.b16 %v6444
        %v6526 = vunpack.c.l.b16 %v6445
        %v6527 = vunpack.c.l.b16 %v6446
        %v6528 = vunpack.c.l.b16 %v6447
        %v6529 = vunpack.c.l.b16 %v6448
        %v6530 = vunpack.c.l.b16 %v6449
        %v6531 = vunpack.c.l.b16 %v6450
        %v6532 = vunpack.c.l.b16 %v6451
        %v6533 = vunpack.c.l.b16 %v6452
        %v6534 = vunpack.c.l.b16 %v6453
        %v6535 = vunpack.c.l.b16 %v6454
        %v6536 = vunpack.c.l.b16 %v6455
        %v6537 = vpack.c.b16 %v6506, %v6505
        %v6538 = vpack.c.b16 %v6508, %v6507
        %v6539 = vpack.c.b16 %v6510, %v6509
        %v6540 = vpack.c.b16 %v6512, %v6511
        %v6541 = vpack.c.b16 %v6514, %v6513
        %v6542 = vpack.c.b16 %v6516, %v6515
        %v6543 = vpack.c.b16 %v6518, %v6517
        %v6544 = vpack.c.b16 %v6520, %v6519
        %v6545 = vpack.c.b16 %v6522, %v6521
        %v6546 = vpack.c.b16 %v6524, %v6523
        %v6547 = vpack.c.b16 %v6526, %v6525
        %v6548 = vpack.c.b16 %v6528, %v6527
        %v6549 = vpack.c.b16 %v6530, %v6529
        %v6550 = vpack.c.b16 %v6532, %v6531
        %v6551 = vpack.c.b16 %v6534, %v6533
        %v6552 = vpack.c.b16 %v6536, %v6535
        %v6585 = vunpack.c.l.b16 %v6457
        %v6586 = vunpack.c.l.b16 %v6458
        %v6587 = vunpack.c.l.b16 %v6459
        %v6588 = vunpack.c.l.b16 %v6460
        %v6589 = vunpack.c.l.b16 %v6461
        %v6590 = vunpack.c.l.b16 %v6462
        %v6591 = vunpack.c.l.b16 %v6463
        %v6592 = vunpack.c.l.b16 %v6464
        %v6593 = vunpack.c.l.b16 %v6465
        %v6594 = vunpack.c.l.b16 %v6466
        %v6595 = vunpack.c.l.b16 %v6467
        %v6596 = vunpack.c.l.b16 %v6468
        %v6597 = vunpack.c.l.b16 %v6469
        %v6598 = vunpack.c.l.b16 %v6470
        %v6599 = vunpack.c.l.b16 %v6471
        %v6600 = vunpack.c.l.b16 %v6472
        %v6601 = vpack.c.b16 %v6586, %v6585
        %v6602 = vpack.c.b16 %v6588, %v6587
        %v6603 = vpack.c.b16 %v6590, %v6589
        %v6604 = vpack.c.b16 %v6592, %v6591
        %v6605 = vpack.c.b16 %v6594, %v6593
        %v6606 = vpack.c.b16 %v6596, %v6595
        %v6607 = vpack.c.b16 %v6598, %v6597
        %v6608 = vpack.c.b16 %v6600, %v6599
        %6617 = vmatpush.bf16.msra.mxu0 %v6608
        %6618 = vmatpush.bf16.msra.mxu0 %v6607
        %6619 = vmatpush.bf16.msra.mxu0 %v6606
        %6620 = vmatpush.bf16.msra.mxu0 %v6605
        %6621 = vmatpush.bf16.msra.mxu0 %v6604
        %6622 = vmatpush.bf16.msra.mxu0 %v6603
        %6623 = vmatpush.bf16.msra.mxu0 %v6602
        %6624 = vmatpush.bf16.msra.mxu0 %v6601
        %6625 = vmatmul.bf16.gmra.mxu0 %v6537
        %v6626 = vpop.f32.mrf.mxu0
        %v6627 = vadd.f32 0.0, %v6626
        %v6628 = vpop.f32.mrf.mxu0
        %v6629 = vadd.f32 0.0, %v6628
        %6630 = vmatmul.bf16.gmra.mxu0 %v6538
        %v6631 = vpop.f32.mrf.mxu0
        %v6632 = vadd.f32 0.0, %v6631
        %v6633 = vpop.f32.mrf.mxu0
        %v6634 = vadd.f32 0.0, %v6633
        %6635 = vmatmul.bf16.gmra.mxu0 %v6539
        %v6636 = vpop.f32.mrf.mxu0
        %v6637 = vadd.f32 0.0, %v6636
        %v6638 = vpop.f32.mrf.mxu0
        %v6639 = vadd.f32 0.0, %v6638
        %6640 = vmatmul.bf16.gmra.mxu0 %v6540
        %v6641 = vpop.f32.mrf.mxu0
        %v6642 = vadd.f32 0.0, %v6641
        %v6643 = vpop.f32.mrf.mxu0
        %v6644 = vadd.f32 0.0, %v6643
        %6645 = vmatmul.bf16.gmra.mxu0 %v6541
        %v6646 = vpop.f32.mrf.mxu0
        %v6647 = vadd.f32 0.0, %v6646
        %v6648 = vpop.f32.mrf.mxu0
        %v6649 = vadd.f32 0.0, %v6648
        %6650 = vmatmul.bf16.gmra.mxu0 %v6542
        %v6651 = vpop.f32.mrf.mxu0
        %v6652 = vadd.f32 0.0, %v6651
        %v6653 = vpop.f32.mrf.mxu0
        %v6654 = vadd.f32 0.0, %v6653
        %6655 = vmatmul.bf16.gmra.mxu0 %v6543
        %v6656 = vpop.f32.mrf.mxu0
        %v6657 = vadd.f32 0.0, %v6656
        %v6658 = vpop.f32.mrf.mxu0
        %v6659 = vadd.f32 0.0, %v6658
        %6660 = vmatmul.bf16.gmra.mxu0 %v6544
        %v6661 = vpop.f32.mrf.mxu0
        %v6662 = vadd.f32 0.0, %v6661
        %v6663 = vpop.f32.mrf.mxu0
        %v6664 = vadd.f32 0.0, %v6663
        %6665 = vmatmul.bf16.gmra.mxu0 %v6545
        %v6666 = vpop.f32.mrf.mxu0
        %v6667 = vadd.f32 0.0, %v6666
        %v6668 = vpop.f32.mrf.mxu0
        %v6669 = vadd.f32 0.0, %v6668
        %6670 = vmatmul.bf16.gmra.mxu0 %v6546
        %v6671 = vpop.f32.mrf.mxu0
        %v6672 = vadd.f32 0.0, %v6671
        %v6673 = vpop.f32.mrf.mxu0
        %v6674 = vadd.f32 0.0, %v6673
        %6675 = vmatmul.bf16.gmra.mxu0 %v6547
        %v6676 = vpop.f32.mrf.mxu0
        %v6677 = vadd.f32 0.0, %v6676
        %v6678 = vpop.f32.mrf.mxu0
        %v6679 = vadd.f32 0.0, %v6678
        %6680 = vmatmul.bf16.gmra.mxu0 %v6548
        %v6681 = vpop.f32.mrf.mxu0
        %v6682 = vadd.f32 0.0, %v6681
        %v6683 = vpop.f32.mrf.mxu0
        %v6684 = vadd.f32 0.0, %v6683
        %6685 = vmatmul.bf16.gmra.mxu0 %v6549
        %v6686 = vpop.f32.mrf.mxu0
        %v6687 = vadd.f32 0.0, %v6686
        %v6688 = vpop.f32.mrf.mxu0
        %v6689 = vadd.f32 0.0, %v6688
        %6690 = vmatmul.bf16.gmra.mxu0 %v6550
        %v6691 = vpop.f32.mrf.mxu0
        %v6692 = vadd.f32 0.0, %v6691
        %v6693 = vpop.f32.mrf.mxu0
        %v6694 = vadd.f32 0.0, %v6693
        %6695 = vmatmul.bf16.gmra.mxu0 %v6551
        %v6696 = vpop.f32.mrf.mxu0
        %v6697 = vadd.f32 0.0, %v6696
        %v6698 = vpop.f32.mrf.mxu0
        %v6699 = vadd.f32 0.0, %v6698
        %6700 = vmatmul.bf16.gmra.mxu0 %v6552
        %v6701 = vpop.f32.mrf.mxu0
        %v6702 = vadd.f32 0.0, %v6701
        %v6703 = vpop.f32.mrf.mxu0
        %v6704 = vadd.f32 0.0, %v6703
        %6705 = vdwg.mxu0
        %v6706 = vadd.f32 %v6392, %v6627
        %v6707 = vadd.f32 %v6393, %v6629
        %v6708 = vadd.f32 %v6394, %v6632
        %v6709 = vadd.f32 %v6395, %v6634
        %v6710 = vadd.f32 %v6396, %v6637
        %v6711 = vadd.f32 %v6397, %v6639
        %v6712 = vadd.f32 %v6398, %v6642
        %v6713 = vadd.f32 %v6399, %v6644
        %v6714 = vadd.f32 %v6400, %v6647
        %v6715 = vadd.f32 %v6401, %v6649
        %v6716 = vadd.f32 %v6402, %v6652
        %v6717 = vadd.f32 %v6403, %v6654
        %v6718 = vadd.f32 %v6404, %v6657
        %v6719 = vadd.f32 %v6405, %v6659
        %v6720 = vadd.f32 %v6406, %v6662
        %v6721 = vadd.f32 %v6407, %v6664
        %v6722 = vadd.f32 %v6408, %v6667
        %v6723 = vadd.f32 %v6409, %v6669
        %v6724 = vadd.f32 %v6410, %v6672
        %v6725 = vadd.f32 %v6411, %v6674
        %v6726 = vadd.f32 %v6412, %v6677
        %v6727 = vadd.f32 %v6413, %v6679
        %v6728 = vadd.f32 %v6414, %v6682
        %v6729 = vadd.f32 %v6415, %v6684
        %v6730 = vadd.f32 %v6416, %v6687
        %v6731 = vadd.f32 %v6417, %v6689
        %v6732 = vadd.f32 %v6418, %v6692
        %v6733 = vadd.f32 %v6419, %v6694
        %v6734 = vadd.f32 %v6420, %v6697
        %v6735 = vadd.f32 %v6421, %v6699
        %v6736 = vadd.f32 %v6422, %v6702
        %v6737 = vadd.f32 %v6423, %v6704
        %v6738 = vld [vmem:[%s4997] sm:$0xf]
        %v6739 = vld [vmem:[%s4997 + $0x4] sm:$0xf]
        %v6740 = vld [vmem:[%s4997 + $0x8] sm:$0x1]
        %v6741 = vld [vmem:[%s4997 + $0xc] sm:$0xf]
        %v6742 = vld [vmem:[%s4997 + $0x10] sm:$0xf]
        %v6743 = vld [vmem:[%s4997 + $0x14] sm:$0x1]
        %v6744 = vld [vmem:[%s4997 + $0x18] sm:$0xf]
        %v6745 = vld [vmem:[%s4997 + $0x1c] sm:$0xf]
        %v6746 = vld [vmem:[%s4997 + $0x20] sm:$0x1]
        %v6747 = vld [vmem:[%s4997 + $0x24] sm:$0xf]
        %v6748 = vld [vmem:[%s4997 + $0x28] sm:$0xf]
        %v6749 = vld [vmem:[%s4997 + $0x2c] sm:$0x1]
        %v6750 = vld [vmem:[%s4997 + $0x30] sm:$0xf]
        %v6751 = vld [vmem:[%s4997 + $0x34] sm:$0xf]
        %v6752 = vld [vmem:[%s4997 + $0x38] sm:$0x1]
        %v6753 = vld [vmem:[%s4997 + $0x3c] sm:$0xf]
        %v6754 = vld [vmem:[%s4997 + $0x40] sm:$0xf]
        %v6755 = vld [vmem:[%s4997 + $0x44] sm:$0x1]
        %v6756 = vld [vmem:[%s4997 + $0x48] sm:$0xf]
        %v6757 = vld [vmem:[%s4997 + $0x4c] sm:$0xf]
        %v6758 = vld [vmem:[%s4997 + $0x50] sm:$0x1]
        %v6759 = vld [vmem:[%s4997 + $0x54] sm:$0xf]
        %v6760 = vld [vmem:[%s4997 + $0x58] sm:$0xf]
        %v6761 = vld [vmem:[%s4997 + $0x5c] sm:$0x1]
        %v6762 = vld [vmem:[%s4997 + $0x60] sm:$0xf]
        %v6763 = vld [vmem:[%s4997 + $0x64] sm:$0xf]
        %v6764 = vld [vmem:[%s4997 + $0x68] sm:$0x1]
        %v6765 = vld [vmem:[%s4997 + $0x6c] sm:$0xf]
        %v6766 = vld [vmem:[%s4997 + $0x70] sm:$0xf]
        %v6767 = vld [vmem:[%s4997 + $0x74] sm:$0x1]
        %v6768 = vld [vmem:[%s4997 + $0x78] sm:$0xf]
        %v6769 = vld [vmem:[%s4997 + $0x7c] sm:$0xf]
        %v6770 = vld [vmem:[%s4997 + $0x80] sm:$0x1]
        %v6771 = vld [vmem:[%s4997 + $0x84] sm:$0xf]
        %v6772 = vld [vmem:[%s4997 + $0x88] sm:$0xf]
        %v6773 = vld [vmem:[%s4997 + $0x8c] sm:$0x1]
        %v6774 = vld [vmem:[%s4997 + $0x90] sm:$0xf]
        %v6775 = vld [vmem:[%s4997 + $0x94] sm:$0xf]
        %v6776 = vld [vmem:[%s4997 + $0x98] sm:$0x1]
        %v6777 = vld [vmem:[%s4997 + $0x9c] sm:$0xf]
        %v6778 = vld [vmem:[%s4997 + $0xa0] sm:$0xf]
        %v6779 = vld [vmem:[%s4997 + $0xa4] sm:$0x1]
        %v6780 = vld [vmem:[%s4997 + $0xa8] sm:$0xf]
        %v6781 = vld [vmem:[%s4997 + $0xac] sm:$0xf]
        %v6782 = vld [vmem:[%s4997 + $0xb0] sm:$0x1]
        %v6783 = vld [vmem:[%s4997 + $0xb4] sm:$0xf]
        %v6784 = vld [vmem:[%s4997 + $0xb8] sm:$0xf]
        %v6785 = vld [vmem:[%s4997 + $0xbc] sm:$0x1]
        %v6787 = vshrl.u32 %v6738, 16
        %v6789 = vrot.slane %v6787, 4
        %v6790 = vshll.u32 %v6738, 16
        %v6792 = vrot.slane %v6790, 5
        %v6793 = vor.u32 %v6789, %v6792
        %v6794 = vrot.slane %v6793, 4
        %v6796 = vshll.u32 %v6739, 16
        %v6798 = vrot.slane %v6796, 5
        %v6799 = vsel %vm361, %v6794, %v6798
        %v6800 = vshrl.u32 %v6739, 16
        %v6802 = vrot.slane %v6800, 4
        %v6803 = vor.u32 %v6802, %v6798
        %v6804 = vrot.slane %v6803, 4
        %v6806 = vshll.u32 %v6740, 16
        %v6808 = vrot.slane %v6806, 5
        %v6809 = vsel %vm361, %v6804, %v6808
        %v6811 = vshrl.u32 %v6741, 16
        %v6813 = vrot.slane %v6811, 4
        %v6814 = vshll.u32 %v6741, 16
        %v6816 = vrot.slane %v6814, 5
        %v6817 = vor.u32 %v6813, %v6816
        %v6818 = vrot.slane %v6817, 4
        %v6820 = vshll.u32 %v6742, 16
        %v6822 = vrot.slane %v6820, 5
        %v6823 = vsel %vm361, %v6818, %v6822
        %v6824 = vshrl.u32 %v6742, 16
        %v6826 = vrot.slane %v6824, 4
        %v6827 = vor.u32 %v6826, %v6822
        %v6828 = vrot.slane %v6827, 4
        %v6830 = vshll.u32 %v6743, 16
        %v6832 = vrot.slane %v6830, 5
        %v6833 = vsel %vm361, %v6828, %v6832
        %v6835 = vshrl.u32 %v6744, 16
        %v6837 = vrot.slane %v6835, 4
        %v6838 = vshll.u32 %v6744, 16
        %v6840 = vrot.slane %v6838, 5
        %v6841 = vor.u32 %v6837, %v6840
        %v6842 = vrot.slane %v6841, 4
        %v6844 = vshll.u32 %v6745, 16
        %v6846 = vrot.slane %v6844, 5
        %v6847 = vsel %vm361, %v6842, %v6846
        %v6848 = vshrl.u32 %v6745, 16
        %v6850 = vrot.slane %v6848, 4
        %v6851 = vor.u32 %v6850, %v6846
        %v6852 = vrot.slane %v6851, 4
        %v6854 = vshll.u32 %v6746, 16
        %v6856 = vrot.slane %v6854, 5
        %v6857 = vsel %vm361, %v6852, %v6856
        %v6859 = vshrl.u32 %v6747, 16
        %v6861 = vrot.slane %v6859, 4
        %v6862 = vshll.u32 %v6747, 16
        %v6864 = vrot.slane %v6862, 5
        %v6865 = vor.u32 %v6861, %v6864
        %v6866 = vrot.slane %v6865, 4
        %v6868 = vshll.u32 %v6748, 16
        %v6870 = vrot.slane %v6868, 5
        %v6871 = vsel %vm361, %v6866, %v6870
        %v6872 = vshrl.u32 %v6748, 16
        %v6874 = vrot.slane %v6872, 4
        %v6875 = vor.u32 %v6874, %v6870
        %v6876 = vrot.slane %v6875, 4
        %v6878 = vshll.u32 %v6749, 16
        %v6880 = vrot.slane %v6878, 5
        %v6881 = vsel %vm361, %v6876, %v6880
        %v6883 = vshrl.u32 %v6750, 16
        %v6885 = vrot.slane %v6883, 4
        %v6886 = vshll.u32 %v6750, 16
        %v6888 = vrot.slane %v6886, 5
        %v6889 = vor.u32 %v6885, %v6888
        %v6890 = vrot.slane %v6889, 4
        %v6892 = vshll.u32 %v6751, 16
        %v6894 = vrot.slane %v6892, 5
        %v6895 = vsel %vm361, %v6890, %v6894
        %v6896 = vshrl.u32 %v6751, 16
        %v6898 = vrot.slane %v6896, 4
        %v6899 = vor.u32 %v6898, %v6894
        %v6900 = vrot.slane %v6899, 4
        %v6902 = vshll.u32 %v6752, 16
        %v6904 = vrot.slane %v6902, 5
        %v6905 = vsel %vm361, %v6900, %v6904
        %v6907 = vshrl.u32 %v6753, 16
        %v6909 = vrot.slane %v6907, 4
        %v6910 = vshll.u32 %v6753, 16
        %v6912 = vrot.slane %v6910, 5
        %v6913 = vor.u32 %v6909, %v6912
        %v6914 = vrot.slane %v6913, 4
        %v6916 = vshll.u32 %v6754, 16
        %v6918 = vrot.slane %v6916, 5
        %v6919 = vsel %vm361, %v6914, %v6918
        %v6920 = vshrl.u32 %v6754, 16
        %v6922 = vrot.slane %v6920, 4
        %v6923 = vor.u32 %v6922, %v6918
        %v6924 = vrot.slane %v6923, 4
        %v6926 = vshll.u32 %v6755, 16
        %v6928 = vrot.slane %v6926, 5
        %v6929 = vsel %vm361, %v6924, %v6928
        %v6931 = vshrl.u32 %v6756, 16
        %v6933 = vrot.slane %v6931, 4
        %v6934 = vshll.u32 %v6756, 16
        %v6936 = vrot.slane %v6934, 5
        %v6937 = vor.u32 %v6933, %v6936
        %v6938 = vrot.slane %v6937, 4
        %v6940 = vshll.u32 %v6757, 16
        %v6942 = vrot.slane %v6940, 5
        %v6943 = vsel %vm361, %v6938, %v6942
        %v6944 = vshrl.u32 %v6757, 16
        %v6946 = vrot.slane %v6944, 4
        %v6947 = vor.u32 %v6946, %v6942
        %v6948 = vrot.slane %v6947, 4
        %v6950 = vshll.u32 %v6758, 16
        %v6952 = vrot.slane %v6950, 5
        %v6953 = vsel %vm361, %v6948, %v6952
        %v6955 = vshrl.u32 %v6759, 16
        %v6957 = vrot.slane %v6955, 4
        %v6958 = vshll.u32 %v6759, 16
        %v6960 = vrot.slane %v6958, 5
        %v6961 = vor.u32 %v6957, %v6960
        %v6962 = vrot.slane %v6961, 4
        %v6964 = vshll.u32 %v6760, 16
        %v6966 = vrot.slane %v6964, 5
        %v6967 = vsel %vm361, %v6962, %v6966
        %v6968 = vshrl.u32 %v6760, 16
        %v6970 = vrot.slane %v6968, 4
        %v6971 = vor.u32 %v6970, %v6966
        %v6972 = vrot.slane %v6971, 4
        %v6974 = vshll.u32 %v6761, 16
        %v6976 = vrot.slane %v6974, 5
        %v6977 = vsel %vm361, %v6972, %v6976
        %v6979 = vshrl.u32 %v6762, 16
        %v6981 = vrot.slane %v6979, 4
        %v6982 = vshll.u32 %v6762, 16
        %v6984 = vrot.slane %v6982, 5
        %v6985 = vor.u32 %v6981, %v6984
        %v6986 = vrot.slane %v6985, 4
        %v6988 = vshll.u32 %v6763, 16
        %v6990 = vrot.slane %v6988, 5
        %v6991 = vsel %vm361, %v6986, %v6990
        %v6992 = vshrl.u32 %v6763, 16
        %v6994 = vrot.slane %v6992, 4
        %v6995 = vor.u32 %v6994, %v6990
        %v6996 = vrot.slane %v6995, 4
        %v6998 = vshll.u32 %v6764, 16
        %v7000 = vrot.slane %v6998, 5
        %v7001 = vsel %vm361, %v6996, %v7000
        %v7003 = vshrl.u32 %v6765, 16
        %v7005 = vrot.slane %v7003, 4
        %v7006 = vshll.u32 %v6765, 16
        %v7008 = vrot.slane %v7006, 5
        %v7009 = vor.u32 %v7005, %v7008
        %v7010 = vrot.slane %v7009, 4
        %v7012 = vshll.u32 %v6766, 16
        %v7014 = vrot.slane %v7012, 5
        %v7015 = vsel %vm361, %v7010, %v7014
        %v7016 = vshrl.u32 %v6766, 16
        %v7018 = vrot.slane %v7016, 4
        %v7019 = vor.u32 %v7018, %v7014
        %v7020 = vrot.slane %v7019, 4
        %v7022 = vshll.u32 %v6767, 16
        %v7024 = vrot.slane %v7022, 5
        %v7025 = vsel %vm361, %v7020, %v7024
        %v7027 = vshrl.u32 %v6768, 16
        %v7029 = vrot.slane %v7027, 4
        %v7030 = vshll.u32 %v6768, 16
        %v7032 = vrot.slane %v7030, 5
        %v7033 = vor.u32 %v7029, %v7032
        %v7034 = vrot.slane %v7033, 4
        %v7036 = vshll.u32 %v6769, 16
        %v7038 = vrot.slane %v7036, 5
        %v7039 = vsel %vm361, %v7034, %v7038
        %v7040 = vshrl.u32 %v6769, 16
        %v7042 = vrot.slane %v7040, 4
        %v7043 = vor.u32 %v7042, %v7038
        %v7044 = vrot.slane %v7043, 4
        %v7046 = vshll.u32 %v6770, 16
        %v7048 = vrot.slane %v7046, 5
        %v7049 = vsel %vm361, %v7044, %v7048
        %v7051 = vshrl.u32 %v6771, 16
        %v7053 = vrot.slane %v7051, 4
        %v7054 = vshll.u32 %v6771, 16
        %v7056 = vrot.slane %v7054, 5
        %v7057 = vor.u32 %v7053, %v7056
        %v7058 = vrot.slane %v7057, 4
        %v7060 = vshll.u32 %v6772, 16
        %v7062 = vrot.slane %v7060, 5
        %v7063 = vsel %vm361, %v7058, %v7062
        %v7064 = vshrl.u32 %v6772, 16
        %v7066 = vrot.slane %v7064, 4
        %v7067 = vor.u32 %v7066, %v7062
        %v7068 = vrot.slane %v7067, 4
        %v7070 = vshll.u32 %v6773, 16
        %v7072 = vrot.slane %v7070, 5
        %v7073 = vsel %vm361, %v7068, %v7072
        %v7075 = vshrl.u32 %v6774, 16
        %v7077 = vrot.slane %v7075, 4
        %v7078 = vshll.u32 %v6774, 16
        %v7080 = vrot.slane %v7078, 5
        %v7081 = vor.u32 %v7077, %v7080
        %v7082 = vrot.slane %v7081, 4
        %v7084 = vshll.u32 %v6775, 16
        %v7086 = vrot.slane %v7084, 5
        %v7087 = vsel %vm361, %v7082, %v7086
        %v7088 = vshrl.u32 %v6775, 16
        %v7090 = vrot.slane %v7088, 4
        %v7091 = vor.u32 %v7090, %v7086
        %v7092 = vrot.slane %v7091, 4
        %v7094 = vshll.u32 %v6776, 16
        %v7096 = vrot.slane %v7094, 5
        %v7097 = vsel %vm361, %v7092, %v7096
        %v7099 = vshrl.u32 %v6777, 16
        %v7101 = vrot.slane %v7099, 4
        %v7102 = vshll.u32 %v6777, 16
        %v7104 = vrot.slane %v7102, 5
        %v7105 = vor.u32 %v7101, %v7104
        %v7106 = vrot.slane %v7105, 4
        %v7108 = vshll.u32 %v6778, 16
        %v7110 = vrot.slane %v7108, 5
        %v7111 = vsel %vm361, %v7106, %v7110
        %v7112 = vshrl.u32 %v6778, 16
        %v7114 = vrot.slane %v7112, 4
        %v7115 = vor.u32 %v7114, %v7110
        %v7116 = vrot.slane %v7115, 4
        %v7118 = vshll.u32 %v6779, 16
        %v7120 = vrot.slane %v7118, 5
        %v7121 = vsel %vm361, %v7116, %v7120
        %v7123 = vshrl.u32 %v6780, 16
        %v7125 = vrot.slane %v7123, 4
        %v7126 = vshll.u32 %v6780, 16
        %v7128 = vrot.slane %v7126, 5
        %v7129 = vor.u32 %v7125, %v7128
        %v7130 = vrot.slane %v7129, 4
        %v7132 = vshll.u32 %v6781, 16
        %v7134 = vrot.slane %v7132, 5
        %v7135 = vsel %vm361, %v7130, %v7134
        %v7136 = vshrl.u32 %v6781, 16
        %v7138 = vrot.slane %v7136, 4
        %v7139 = vor.u32 %v7138, %v7134
        %v7140 = vrot.slane %v7139, 4
        %v7142 = vshll.u32 %v6782, 16
        %v7144 = vrot.slane %v7142, 5
        %v7145 = vsel %vm361, %v7140, %v7144
        %v7147 = vshrl.u32 %v6783, 16
        %v7149 = vrot.slane %v7147, 4
        %v7150 = vshll.u32 %v6783, 16
        %v7152 = vrot.slane %v7150, 5
        %v7153 = vor.u32 %v7149, %v7152
        %v7154 = vrot.slane %v7153, 4
        %v7156 = vshll.u32 %v6784, 16
        %v7158 = vrot.slane %v7156, 5
        %v7159 = vsel %vm361, %v7154, %v7158
        %v7160 = vshrl.u32 %v6784, 16
        %v7162 = vrot.slane %v7160, 4
        %v7163 = vor.u32 %v7162, %v7158
        %v7164 = vrot.slane %v7163, 4
        %v7166 = vshll.u32 %v6785, 16
        %v7168 = vrot.slane %v7166, 5
        %v7169 = vsel %vm361, %v7164, %v7168
        %s7170 = scalar_lea.vmem [#allocation3], 256
        %v7171 = vld [vmem:[%s7170] sm:$0xf]
        %v7172 = vld [vmem:[%s7170 + $0x4] sm:$0xf]
        %v7173 = vld [vmem:[%s7170 + $0x8] sm:$0xf]
        %v7174 = vld [vmem:[%s7170 + $0xc] sm:$0xf]
        %v7175 = vld [vmem:[%s7170 + $0x10] sm:$0xf]
        %v7176 = vld [vmem:[%s7170 + $0x14] sm:$0xf]
        %v7177 = vld [vmem:[%s7170 + $0x18] sm:$0xf]
        %v7178 = vld [vmem:[%s7170 + $0x1c] sm:$0xf]
        %v7179 = vld [vmem:[%s7170 + $0x20] sm:$0xf]
        %v7180 = vld [vmem:[%s7170 + $0x24] sm:$0xf]
        %v7181 = vld [vmem:[%s7170 + $0x28] sm:$0xf]
        %v7182 = vld [vmem:[%s7170 + $0x2c] sm:$0xf]
        %v7183 = vld [vmem:[%s7170 + $0x30] sm:$0xf]
        %v7184 = vld [vmem:[%s7170 + $0x34] sm:$0xf]
        %v7185 = vld [vmem:[%s7170 + $0x38] sm:$0xf]
        %v7186 = vld [vmem:[%s7170 + $0x3c] sm:$0xf]
        %v7187 = vunpack.c.l.b16 %v6799
        %v7188 = vunpack.c.l.b16 %v6809
        %v7189 = vunpack.c.l.b16 %v6823
        %v7190 = vunpack.c.l.b16 %v6833
        %v7191 = vunpack.c.l.b16 %v6847
        %v7192 = vunpack.c.l.b16 %v6857
        %v7193 = vunpack.c.l.b16 %v6871
        %v7194 = vunpack.c.l.b16 %v6881
        %v7195 = vunpack.c.l.b16 %v6895
        %v7196 = vunpack.c.l.b16 %v6905
        %v7197 = vunpack.c.l.b16 %v6919
        %v7198 = vunpack.c.l.b16 %v6929
        %v7199 = vunpack.c.l.b16 %v6943
        %v7200 = vunpack.c.l.b16 %v6953
        %v7201 = vunpack.c.l.b16 %v6967
        %v7202 = vunpack.c.l.b16 %v6977
        %v7203 = vunpack.c.l.b16 %v6991
        %v7204 = vunpack.c.l.b16 %v7001
        %v7205 = vunpack.c.l.b16 %v7015
        %v7206 = vunpack.c.l.b16 %v7025
        %v7207 = vunpack.c.l.b16 %v7039
        %v7208 = vunpack.c.l.b16 %v7049
        %v7209 = vunpack.c.l.b16 %v7063
        %v7210 = vunpack.c.l.b16 %v7073
        %v7211 = vunpack.c.l.b16 %v7087
        %v7212 = vunpack.c.l.b16 %v7097
        %v7213 = vunpack.c.l.b16 %v7111
        %v7214 = vunpack.c.l.b16 %v7121
        %v7215 = vunpack.c.l.b16 %v7135
        %v7216 = vunpack.c.l.b16 %v7145
        %v7217 = vunpack.c.l.b16 %v7159
        %v7218 = vunpack.c.l.b16 %v7169
        %v7219 = vpack.c.b16 %v7188, %v7187
        %v7220 = vpack.c.b16 %v7190, %v7189
        %v7221 = vpack.c.b16 %v7192, %v7191
        %v7222 = vpack.c.b16 %v7194, %v7193
        %v7223 = vpack.c.b16 %v7196, %v7195
        %v7224 = vpack.c.b16 %v7198, %v7197
        %v7225 = vpack.c.b16 %v7200, %v7199
        %v7226 = vpack.c.b16 %v7202, %v7201
        %v7227 = vpack.c.b16 %v7204, %v7203
        %v7228 = vpack.c.b16 %v7206, %v7205
        %v7229 = vpack.c.b16 %v7208, %v7207
        %v7230 = vpack.c.b16 %v7210, %v7209
        %v7231 = vpack.c.b16 %v7212, %v7211
        %v7232 = vpack.c.b16 %v7214, %v7213
        %v7233 = vpack.c.b16 %v7216, %v7215
        %v7234 = vpack.c.b16 %v7218, %v7217
        %v7267 = vunpack.c.l.b16 %v7171
        %v7268 = vunpack.c.l.b16 %v7172
        %v7269 = vunpack.c.l.b16 %v7173
        %v7270 = vunpack.c.l.b16 %v7174
        %v7271 = vunpack.c.l.b16 %v7175
        %v7272 = vunpack.c.l.b16 %v7176
        %v7273 = vunpack.c.l.b16 %v7177
        %v7274 = vunpack.c.l.b16 %v7178
        %v7275 = vunpack.c.l.b16 %v7179
        %v7276 = vunpack.c.l.b16 %v7180
        %v7277 = vunpack.c.l.b16 %v7181
        %v7278 = vunpack.c.l.b16 %v7182
        %v7279 = vunpack.c.l.b16 %v7183
        %v7280 = vunpack.c.l.b16 %v7184
        %v7281 = vunpack.c.l.b16 %v7185
        %v7282 = vunpack.c.l.b16 %v7186
        %v7283 = vpack.c.b16 %v7268, %v7267
        %v7284 = vpack.c.b16 %v7270, %v7269
        %v7285 = vpack.c.b16 %v7272, %v7271
        %v7286 = vpack.c.b16 %v7274, %v7273
        %v7287 = vpack.c.b16 %v7276, %v7275
        %v7288 = vpack.c.b16 %v7278, %v7277
        %v7289 = vpack.c.b16 %v7280, %v7279
        %v7290 = vpack.c.b16 %v7282, %v7281
        %7299 = vmatpush.bf16.msra.mxu0 %v7290
        %7300 = vmatpush.bf16.msra.mxu0 %v7289
        %7301 = vmatpush.bf16.msra.mxu0 %v7288
        %7302 = vmatpush.bf16.msra.mxu0 %v7287
        %7303 = vmatpush.bf16.msra.mxu0 %v7286
        %7304 = vmatpush.bf16.msra.mxu0 %v7285
        %7305 = vmatpush.bf16.msra.mxu0 %v7284
        %7306 = vmatpush.bf16.msra.mxu0 %v7283
        %7307 = vmatmul.bf16.gmra.mxu0 %v7219
        %v7308 = vpop.f32.mrf.mxu0
        %v7309 = vadd.f32 0.0, %v7308
        %v7310 = vpop.f32.mrf.mxu0
        %v7311 = vadd.f32 0.0, %v7310
        %7312 = vmatmul.bf16.gmra.mxu0 %v7220
        %v7313 = vpop.f32.mrf.mxu0
        %v7314 = vadd.f32 0.0, %v7313
        %v7315 = vpop.f32.mrf.mxu0
        %v7316 = vadd.f32 0.0, %v7315
        %7317 = vmatmul.bf16.gmra.mxu0 %v7221
        %v7318 = vpop.f32.mrf.mxu0
        %v7319 = vadd.f32 0.0, %v7318
        %v7320 = vpop.f32.mrf.mxu0
        %v7321 = vadd.f32 0.0, %v7320
        %7322 = vmatmul.bf16.gmra.mxu0 %v7222
        %v7323 = vpop.f32.mrf.mxu0
        %v7324 = vadd.f32 0.0, %v7323
        %v7325 = vpop.f32.mrf.mxu0
        %v7326 = vadd.f32 0.0, %v7325
        %7327 = vmatmul.bf16.gmra.mxu0 %v7223
        %v7328 = vpop.f32.mrf.mxu0
        %v7329 = vadd.f32 0.0, %v7328
        %v7330 = vpop.f32.mrf.mxu0
        %v7331 = vadd.f32 0.0, %v7330
        %7332 = vmatmul.bf16.gmra.mxu0 %v7224
        %v7333 = vpop.f32.mrf.mxu0
        %v7334 = vadd.f32 0.0, %v7333
        %v7335 = vpop.f32.mrf.mxu0
        %v7336 = vadd.f32 0.0, %v7335
        %7337 = vmatmul.bf16.gmra.mxu0 %v7225
        %v7338 = vpop.f32.mrf.mxu0
        %v7339 = vadd.f32 0.0, %v7338
        %v7340 = vpop.f32.mrf.mxu0
        %v7341 = vadd.f32 0.0, %v7340
        %7342 = vmatmul.bf16.gmra.mxu0 %v7226
        %v7343 = vpop.f32.mrf.mxu0
        %v7344 = vadd.f32 0.0, %v7343
        %v7345 = vpop.f32.mrf.mxu0
        %v7346 = vadd.f32 0.0, %v7345
        %7347 = vmatmul.bf16.gmra.mxu0 %v7227
        %v7348 = vpop.f32.mrf.mxu0
        %v7349 = vadd.f32 0.0, %v7348
        %v7350 = vpop.f32.mrf.mxu0
        %v7351 = vadd.f32 0.0, %v7350
        %7352 = vmatmul.bf16.gmra.mxu0 %v7228
        %v7353 = vpop.f32.mrf.mxu0
        %v7354 = vadd.f32 0.0, %v7353
        %v7355 = vpop.f32.mrf.mxu0
        %v7356 = vadd.f32 0.0, %v7355
        %7357 = vmatmul.bf16.gmra.mxu0 %v7229
        %v7358 = vpop.f32.mrf.mxu0
        %v7359 = vadd.f32 0.0, %v7358
        %v7360 = vpop.f32.mrf.mxu0
        %v7361 = vadd.f32 0.0, %v7360
        %7362 = vmatmul.bf16.gmra.mxu0 %v7230
        %v7363 = vpop.f32.mrf.mxu0
        %v7364 = vadd.f32 0.0, %v7363
        %v7365 = vpop.f32.mrf.mxu0
        %v7366 = vadd.f32 0.0, %v7365
        %7367 = vmatmul.bf16.gmra.mxu0 %v7231
        %v7368 = vpop.f32.mrf.mxu0
        %v7369 = vadd.f32 0.0, %v7368
        %v7370 = vpop.f32.mrf.mxu0
        %v7371 = vadd.f32 0.0, %v7370
        %7372 = vmatmul.bf16.gmra.mxu0 %v7232
        %v7373 = vpop.f32.mrf.mxu0
        %v7374 = vadd.f32 0.0, %v7373
        %v7375 = vpop.f32.mrf.mxu0
        %v7376 = vadd.f32 0.0, %v7375
        %7377 = vmatmul.bf16.gmra.mxu0 %v7233
        %v7378 = vpop.f32.mrf.mxu0
        %v7379 = vadd.f32 0.0, %v7378
        %v7380 = vpop.f32.mrf.mxu0
        %v7381 = vadd.f32 0.0, %v7380
        %7382 = vmatmul.bf16.gmra.mxu0 %v7234
        %v7383 = vpop.f32.mrf.mxu0
        %v7384 = vadd.f32 0.0, %v7383
        %v7385 = vpop.f32.mrf.mxu0
        %v7386 = vadd.f32 0.0, %v7385
        %7387 = vdwg.mxu0
        %v7388 = vadd.f32 %v6706, %v7309
        %v7389 = vadd.f32 %v6707, %v7311
        %v7390 = vadd.f32 %v6708, %v7314
        %v7391 = vadd.f32 %v6709, %v7316
        %v7392 = vadd.f32 %v6710, %v7319
        %v7393 = vadd.f32 %v6711, %v7321
        %v7394 = vadd.f32 %v6712, %v7324
        %v7395 = vadd.f32 %v6713, %v7326
        %v7396 = vadd.f32 %v6714, %v7329
        %v7397 = vadd.f32 %v6715, %v7331
        %v7398 = vadd.f32 %v6716, %v7334
        %v7399 = vadd.f32 %v6717, %v7336
        %v7400 = vadd.f32 %v6718, %v7339
        %v7401 = vadd.f32 %v6719, %v7341
        %v7402 = vadd.f32 %v6720, %v7344
        %v7403 = vadd.f32 %v6721, %v7346
        %v7404 = vadd.f32 %v6722, %v7349
        %v7405 = vadd.f32 %v6723, %v7351
        %v7406 = vadd.f32 %v6724, %v7354
        %v7407 = vadd.f32 %v6725, %v7356
        %v7408 = vadd.f32 %v6726, %v7359
        %v7409 = vadd.f32 %v6727, %v7361
        %v7410 = vadd.f32 %v6728, %v7364
        %v7411 = vadd.f32 %v6729, %v7366
        %v7412 = vadd.f32 %v6730, %v7369
        %v7413 = vadd.f32 %v6731, %v7371
        %v7414 = vadd.f32 %v6732, %v7374
        %v7415 = vadd.f32 %v6733, %v7376
        %v7416 = vadd.f32 %v6734, %v7379
        %v7417 = vadd.f32 %v6735, %v7381
        %v7418 = vadd.f32 %v6736, %v7384
        %v7419 = vadd.f32 %v6737, %v7386
        %v7420 = vld [vmem:[%s4997] sm:$0xe]
        %v7421 = vld [vmem:[%s4997 + $0xc] sm:$0xe]
        %v7422 = vld [vmem:[%s4997 + $0x18] sm:$0xe]
        %v7423 = vld [vmem:[%s4997 + $0x24] sm:$0xe]
        %v7424 = vld [vmem:[%s4997 + $0x30] sm:$0xe]
        %v7425 = vld [vmem:[%s4997 + $0x3c] sm:$0xe]
        %v7426 = vld [vmem:[%s4997 + $0x48] sm:$0xe]
        %v7427 = vld [vmem:[%s4997 + $0x54] sm:$0xe]
        %v7428 = vld [vmem:[%s4997 + $0x60] sm:$0xe]
        %v7429 = vld [vmem:[%s4997 + $0x6c] sm:$0xe]
        %v7430 = vld [vmem:[%s4997 + $0x78] sm:$0xe]
        %v7431 = vld [vmem:[%s4997 + $0x84] sm:$0xe]
        %v7432 = vld [vmem:[%s4997 + $0x90] sm:$0xe]
        %v7433 = vld [vmem:[%s4997 + $0x9c] sm:$0xe]
        %v7434 = vld [vmem:[%s4997 + $0xa8] sm:$0xe]
        %v7435 = vld [vmem:[%s4997 + $0xb4] sm:$0xe]
        %v7484 = vrot.slane %v7420, 5
        %v7485 = vrot.slane %v7484, 4
        %v7486 = vrot.slane %v6739, 5
        %v7487 = vsel %vm1247, %v7485, %v7486
        %v7488 = vrot.slane %v7486, 4
        %v7489 = vrot.slane %v6740, 5
        %v7490 = vsel %vm1247, %v7488, %v7489
        %v7491 = vrot.slane %v7421, 5
        %v7492 = vrot.slane %v7491, 4
        %v7493 = vrot.slane %v6742, 5
        %v7494 = vsel %vm1247, %v7492, %v7493
        %v7495 = vrot.slane %v7493, 4
        %v7496 = vrot.slane %v6743, 5
        %v7497 = vsel %vm1247, %v7495, %v7496
        %v7498 = vrot.slane %v7422, 5
        %v7499 = vrot.slane %v7498, 4
        %v7500 = vrot.slane %v6745, 5
        %v7501 = vsel %vm1247, %v7499, %v7500
        %v7502 = vrot.slane %v7500, 4
        %v7503 = vrot.slane %v6746, 5
        %v7504 = vsel %vm1247, %v7502, %v7503
        %v7505 = vrot.slane %v7423, 5
        %v7506 = vrot.slane %v7505, 4
        %v7507 = vrot.slane %v6748, 5
        %v7508 = vsel %vm1247, %v7506, %v7507
        %v7509 = vrot.slane %v7507, 4
        %v7510 = vrot.slane %v6749, 5
        %v7511 = vsel %vm1247, %v7509, %v7510
        %v7512 = vrot.slane %v7424, 5
        %v7513 = vrot.slane %v7512, 4
        %v7514 = vrot.slane %v6751, 5
        %v7515 = vsel %vm1247, %v7513, %v7514
        %v7516 = vrot.slane %v7514, 4
        %v7517 = vrot.slane %v6752, 5
        %v7518 = vsel %vm1247, %v7516, %v7517
        %v7519 = vrot.slane %v7425, 5
        %v7520 = vrot.slane %v7519, 4
        %v7521 = vrot.slane %v6754, 5
        %v7522 = vsel %vm1247, %v7520, %v7521
        %v7523 = vrot.slane %v7521, 4
        %v7524 = vrot.slane %v6755, 5
        %v7525 = vsel %vm1247, %v7523, %v7524
        %v7526 = vrot.slane %v7426, 5
        %v7527 = vrot.slane %v7526, 4
        %v7528 = vrot.slane %v6757, 5
        %v7529 = vsel %vm1247, %v7527, %v7528
        %v7530 = vrot.slane %v7528, 4
        %v7531 = vrot.slane %v6758, 5
        %v7532 = vsel %vm1247, %v7530, %v7531
        %v7533 = vrot.slane %v7427, 5
        %v7534 = vrot.slane %v7533, 4
        %v7535 = vrot.slane %v6760, 5
        %v7536 = vsel %vm1247, %v7534, %v7535
        %v7537 = vrot.slane %v7535, 4
        %v7538 = vrot.slane %v6761, 5
        %v7539 = vsel %vm1247, %v7537, %v7538
        %v7540 = vrot.slane %v7428, 5
        %v7541 = vrot.slane %v7540, 4
        %v7542 = vrot.slane %v6763, 5
        %v7543 = vsel %vm1247, %v7541, %v7542
        %v7544 = vrot.slane %v7542, 4
        %v7545 = vrot.slane %v6764, 5
        %v7546 = vsel %vm1247, %v7544, %v7545
        %v7547 = vrot.slane %v7429, 5
        %v7548 = vrot.slane %v7547, 4
        %v7549 = vrot.slane %v6766, 5
        %v7550 = vsel %vm1247, %v7548, %v7549
        %v7551 = vrot.slane %v7549, 4
        %v7552 = vrot.slane %v6767, 5
        %v7553 = vsel %vm1247, %v7551, %v7552
        %v7554 = vrot.slane %v7430, 5
        %v7555 = vrot.slane %v7554, 4
        %v7556 = vrot.slane %v6769, 5
        %v7557 = vsel %vm1247, %v7555, %v7556
        %v7558 = vrot.slane %v7556, 4
        %v7559 = vrot.slane %v6770, 5
        %v7560 = vsel %vm1247, %v7558, %v7559
        %v7561 = vrot.slane %v7431, 5
        %v7562 = vrot.slane %v7561, 4
        %v7563 = vrot.slane %v6772, 5
        %v7564 = vsel %vm1247, %v7562, %v7563
        %v7565 = vrot.slane %v7563, 4
        %v7566 = vrot.slane %v6773, 5
        %v7567 = vsel %vm1247, %v7565, %v7566
        %v7568 = vrot.slane %v7432, 5
        %v7569 = vrot.slane %v7568, 4
        %v7570 = vrot.slane %v6775, 5
        %v7571 = vsel %vm1247, %v7569, %v7570
        %v7572 = vrot.slane %v7570, 4
        %v7573 = vrot.slane %v6776, 5
        %v7574 = vsel %vm1247, %v7572, %v7573
        %v7575 = vrot.slane %v7433, 5
        %v7576 = vrot.slane %v7575, 4
        %v7577 = vrot.slane %v6778, 5
        %v7578 = vsel %vm1247, %v7576, %v7577
        %v7579 = vrot.slane %v7577, 4
        %v7580 = vrot.slane %v6779, 5
        %v7581 = vsel %vm1247, %v7579, %v7580
        %v7582 = vrot.slane %v7434, 5
        %v7583 = vrot.slane %v7582, 4
        %v7584 = vrot.slane %v6781, 5
        %v7585 = vsel %vm1247, %v7583, %v7584
        %v7586 = vrot.slane %v7584, 4
        %v7587 = vrot.slane %v6782, 5
        %v7588 = vsel %vm1247, %v7586, %v7587
        %v7589 = vrot.slane %v7435, 5
        %v7590 = vrot.slane %v7589, 4
        %v7591 = vrot.slane %v6784, 5
        %v7592 = vsel %vm1247, %v7590, %v7591
        %v7593 = vrot.slane %v7591, 4
        %v7594 = vrot.slane %v6785, 5
        %v7595 = vsel %vm1247, %v7593, %v7594
        %s7596 = scalar_lea.vmem [#allocation3], 320
        %v7597 = vld [vmem:[%s7596] sm:$0xf]
        %v7598 = vld [vmem:[%s7596 + $0x4] sm:$0xf]
        %v7599 = vld [vmem:[%s7596 + $0x8] sm:$0xf]
        %v7600 = vld [vmem:[%s7596 + $0xc] sm:$0xf]
        %v7601 = vld [vmem:[%s7596 + $0x10] sm:$0xf]
        %v7602 = vld [vmem:[%s7596 + $0x14] sm:$0xf]
        %v7603 = vld [vmem:[%s7596 + $0x18] sm:$0xf]
        %v7604 = vld [vmem:[%s7596 + $0x1c] sm:$0xf]
        %v7605 = vld [vmem:[%s7596 + $0x20] sm:$0xf]
        %v7606 = vld [vmem:[%s7596 + $0x24] sm:$0xf]
        %v7607 = vld [vmem:[%s7596 + $0x28] sm:$0xf]
        %v7608 = vld [vmem:[%s7596 + $0x2c] sm:$0xf]
        %v7609 = vld [vmem:[%s7596 + $0x30] sm:$0xf]
        %v7610 = vld [vmem:[%s7596 + $0x34] sm:$0xf]
        %v7611 = vld [vmem:[%s7596 + $0x38] sm:$0xf]
        %v7612 = vld [vmem:[%s7596 + $0x3c] sm:$0xf]
        %v7613 = vunpack.c.l.b16 %v7487
        %v7614 = vunpack.c.l.b16 %v7490
        %v7615 = vunpack.c.l.b16 %v7494
        %v7616 = vunpack.c.l.b16 %v7497
        %v7617 = vunpack.c.l.b16 %v7501
        %v7618 = vunpack.c.l.b16 %v7504
        %v7619 = vunpack.c.l.b16 %v7508
        %v7620 = vunpack.c.l.b16 %v7511
        %v7621 = vunpack.c.l.b16 %v7515
        %v7622 = vunpack.c.l.b16 %v7518
        %v7623 = vunpack.c.l.b16 %v7522
        %v7624 = vunpack.c.l.b16 %v7525
        %v7625 = vunpack.c.l.b16 %v7529
        %v7626 = vunpack.c.l.b16 %v7532
        %v7627 = vunpack.c.l.b16 %v7536
        %v7628 = vunpack.c.l.b16 %v7539
        %v7629 = vunpack.c.l.b16 %v7543
        %v7630 = vunpack.c.l.b16 %v7546
        %v7631 = vunpack.c.l.b16 %v7550
        %v7632 = vunpack.c.l.b16 %v7553
        %v7633 = vunpack.c.l.b16 %v7557
        %v7634 = vunpack.c.l.b16 %v7560
        %v7635 = vunpack.c.l.b16 %v7564
        %v7636 = vunpack.c.l.b16 %v7567
        %v7637 = vunpack.c.l.b16 %v7571
        %v7638 = vunpack.c.l.b16 %v7574
        %v7639 = vunpack.c.l.b16 %v7578
        %v7640 = vunpack.c.l.b16 %v7581
        %v7641 = vunpack.c.l.b16 %v7585
        %v7642 = vunpack.c.l.b16 %v7588
        %v7643 = vunpack.c.l.b16 %v7592
        %v7644 = vunpack.c.l.b16 %v7595
        %v7645 = vpack.c.b16 %v7614, %v7613
        %v7646 = vpack.c.b16 %v7616, %v7615
        %v7647 = vpack.c.b16 %v7618, %v7617
        %v7648 = vpack.c.b16 %v7620, %v7619
        %v7649 = vpack.c.b16 %v7622, %v7621
        %v7650 = vpack.c.b16 %v7624, %v7623
        %v7651 = vpack.c.b16 %v7626, %v7625
        %v7652 = vpack.c.b16 %v7628, %v7627
        %v7653 = vpack.c.b16 %v7630, %v7629
        %v7654 = vpack.c.b16 %v7632, %v7631
        %v7655 = vpack.c.b16 %v7634, %v7633
        %v7656 = vpack.c.b16 %v7636, %v7635
        %v7657 = vpack.c.b16 %v7638, %v7637
        %v7658 = vpack.c.b16 %v7640, %v7639
        %v7659 = vpack.c.b16 %v7642, %v7641
        %v7660 = vpack.c.b16 %v7644, %v7643
        %v7693 = vunpack.c.l.b16 %v7597
        %v7694 = vunpack.c.l.b16 %v7598
        %v7695 = vunpack.c.l.b16 %v7599
        %v7696 = vunpack.c.l.b16 %v7600
        %v7697 = vunpack.c.l.b16 %v7601
        %v7698 = vunpack.c.l.b16 %v7602
        %v7699 = vunpack.c.l.b16 %v7603
        %v7700 = vunpack.c.l.b16 %v7604
        %v7701 = vunpack.c.l.b16 %v7605
        %v7702 = vunpack.c.l.b16 %v7606
        %v7703 = vunpack.c.l.b16 %v7607
        %v7704 = vunpack.c.l.b16 %v7608
        %v7705 = vunpack.c.l.b16 %v7609
        %v7706 = vunpack.c.l.b16 %v7610
        %v7707 = vunpack.c.l.b16 %v7611
        %v7708 = vunpack.c.l.b16 %v7612
        %v7709 = vpack.c.b16 %v7694, %v7693
        %v7710 = vpack.c.b16 %v7696, %v7695
        %v7711 = vpack.c.b16 %v7698, %v7697
        %v7712 = vpack.c.b16 %v7700, %v7699
        %v7713 = vpack.c.b16 %v7702, %v7701
        %v7714 = vpack.c.b16 %v7704, %v7703
        %v7715 = vpack.c.b16 %v7706, %v7705
        %v7716 = vpack.c.b16 %v7708, %v7707
        %7725 = vmatpush.bf16.msra.mxu0 %v7716
        %7726 = vmatpush.bf16.msra.mxu0 %v7715
        %7727 = vmatpush.bf16.msra.mxu0 %v7714
        %7728 = vmatpush.bf16.msra.mxu0 %v7713
        %7729 = vmatpush.bf16.msra.mxu0 %v7712
        %7730 = vmatpush.bf16.msra.mxu0 %v7711
        %7731 = vmatpush.bf16.msra.mxu0 %v7710
        %7732 = vmatpush.bf16.msra.mxu0 %v7709
        %7733 = vmatmul.bf16.gmra.mxu0 %v7645
        %v7734 = vpop.f32.mrf.mxu0
        %v7735 = vadd.f32 0.0, %v7734
        %v7736 = vpop.f32.mrf.mxu0
        %v7737 = vadd.f32 0.0, %v7736
        %7738 = vmatmul.bf16.gmra.mxu0 %v7646
        %v7739 = vpop.f32.mrf.mxu0
        %v7740 = vadd.f32 0.0, %v7739
        %v7741 = vpop.f32.mrf.mxu0
        %v7742 = vadd.f32 0.0, %v7741
        %7743 = vmatmul.bf16.gmra.mxu0 %v7647
        %v7744 = vpop.f32.mrf.mxu0
        %v7745 = vadd.f32 0.0, %v7744
        %v7746 = vpop.f32.mrf.mxu0
        %v7747 = vadd.f32 0.0, %v7746
        %7748 = vmatmul.bf16.gmra.mxu0 %v7648
        %v7749 = vpop.f32.mrf.mxu0
        %v7750 = vadd.f32 0.0, %v7749
        %v7751 = vpop.f32.mrf.mxu0
        %v7752 = vadd.f32 0.0, %v7751
        %7753 = vmatmul.bf16.gmra.mxu0 %v7649
        %v7754 = vpop.f32.mrf.mxu0
        %v7755 = vadd.f32 0.0, %v7754
        %v7756 = vpop.f32.mrf.mxu0
        %v7757 = vadd.f32 0.0, %v7756
        %7758 = vmatmul.bf16.gmra.mxu0 %v7650
        %v7759 = vpop.f32.mrf.mxu0
        %v7760 = vadd.f32 0.0, %v7759
        %v7761 = vpop.f32.mrf.mxu0
        %v7762 = vadd.f32 0.0, %v7761
        %7763 = vmatmul.bf16.gmra.mxu0 %v7651
        %v7764 = vpop.f32.mrf.mxu0
        %v7765 = vadd.f32 0.0, %v7764
        %v7766 = vpop.f32.mrf.mxu0
        %v7767 = vadd.f32 0.0, %v7766
        %7768 = vmatmul.bf16.gmra.mxu0 %v7652
        %v7769 = vpop.f32.mrf.mxu0
        %v7770 = vadd.f32 0.0, %v7769
        %v7771 = vpop.f32.mrf.mxu0
        %v7772 = vadd.f32 0.0, %v7771
        %7773 = vmatmul.bf16.gmra.mxu0 %v7653
        %v7774 = vpop.f32.mrf.mxu0
        %v7775 = vadd.f32 0.0, %v7774
        %v7776 = vpop.f32.mrf.mxu0
        %v7777 = vadd.f32 0.0, %v7776
        %7778 = vmatmul.bf16.gmra.mxu0 %v7654
        %v7779 = vpop.f32.mrf.mxu0
        %v7780 = vadd.f32 0.0, %v7779
        %v7781 = vpop.f32.mrf.mxu0
        %v7782 = vadd.f32 0.0, %v7781
        %7783 = vmatmul.bf16.gmra.mxu0 %v7655
        %v7784 = vpop.f32.mrf.mxu0
        %v7785 = vadd.f32 0.0, %v7784
        %v7786 = vpop.f32.mrf.mxu0
        %v7787 = vadd.f32 0.0, %v7786
        %7788 = vmatmul.bf16.gmra.mxu0 %v7656
        %v7789 = vpop.f32.mrf.mxu0
        %v7790 = vadd.f32 0.0, %v7789
        %v7791 = vpop.f32.mrf.mxu0
        %v7792 = vadd.f32 0.0, %v7791
        %7793 = vmatmul.bf16.gmra.mxu0 %v7657
        %v7794 = vpop.f32.mrf.mxu0
        %v7795 = vadd.f32 0.0, %v7794
        %v7796 = vpop.f32.mrf.mxu0
        %v7797 = vadd.f32 0.0, %v7796
        %7798 = vmatmul.bf16.gmra.mxu0 %v7658
        %v7799 = vpop.f32.mrf.mxu0
        %v7800 = vadd.f32 0.0, %v7799
        %v7801 = vpop.f32.mrf.mxu0
        %v7802 = vadd.f32 0.0, %v7801
        %7803 = vmatmul.bf16.gmra.mxu0 %v7659
        %v7804 = vpop.f32.mrf.mxu0
        %v7805 = vadd.f32 0.0, %v7804
        %v7806 = vpop.f32.mrf.mxu0
        %v7807 = vadd.f32 0.0, %v7806
        %7808 = vmatmul.bf16.gmra.mxu0 %v7660
        %v7809 = vpop.f32.mrf.mxu0
        %v7810 = vadd.f32 0.0, %v7809
        %v7811 = vpop.f32.mrf.mxu0
        %v7812 = vadd.f32 0.0, %v7811
        %7813 = vdwg.mxu0
        %v7814 = vadd.f32 %v7388, %v7735
        %v7815 = vadd.f32 %v7389, %v7737
        %v7816 = vadd.f32 %v7390, %v7740
        %v7817 = vadd.f32 %v7391, %v7742
        %v7818 = vadd.f32 %v7392, %v7745
        %v7819 = vadd.f32 %v7393, %v7747
        %v7820 = vadd.f32 %v7394, %v7750
        %v7821 = vadd.f32 %v7395, %v7752
        %v7822 = vadd.f32 %v7396, %v7755
        %v7823 = vadd.f32 %v7397, %v7757
        %v7824 = vadd.f32 %v7398, %v7760
        %v7825 = vadd.f32 %v7399, %v7762
        %v7826 = vadd.f32 %v7400, %v7765
        %v7827 = vadd.f32 %v7401, %v7767
        %v7828 = vadd.f32 %v7402, %v7770
        %v7829 = vadd.f32 %v7403, %v7772
        %v7830 = vadd.f32 %v7404, %v7775
        %v7831 = vadd.f32 %v7405, %v7777
        %v7832 = vadd.f32 %v7406, %v7780
        %v7833 = vadd.f32 %v7407, %v7782
        %v7834 = vadd.f32 %v7408, %v7785
        %v7835 = vadd.f32 %v7409, %v7787
        %v7836 = vadd.f32 %v7410, %v7790
        %v7837 = vadd.f32 %v7411, %v7792
        %v7838 = vadd.f32 %v7412, %v7795
        %v7839 = vadd.f32 %v7413, %v7797
        %v7840 = vadd.f32 %v7414, %v7800
        %v7841 = vadd.f32 %v7415, %v7802
        %v7842 = vadd.f32 %v7416, %v7805
        %v7843 = vadd.f32 %v7417, %v7807
        %v7844 = vadd.f32 %v7418, %v7810
        %v7845 = vadd.f32 %v7419, %v7812
        %s7846 = scalar_lea.vmem [#allocation2], 24
        %v7847 = vld [vmem:[%s7846] sm:$0xf]
        %v7848 = vld [vmem:[%s7846 + $0x4] sm:$0xf]
        %v7849 = vld [vmem:[%s7846 + $0xc] sm:$0xf]
        %v7850 = vld [vmem:[%s7846 + $0x10] sm:$0xf]
        %v7851 = vld [vmem:[%s7846 + $0x18] sm:$0xf]
        %v7852 = vld [vmem:[%s7846 + $0x1c] sm:$0xf]
        %v7853 = vld [vmem:[%s7846 + $0x24] sm:$0xf]
        %v7854 = vld [vmem:[%s7846 + $0x28] sm:$0xf]
        %v7855 = vld [vmem:[%s7846 + $0x30] sm:$0xf]
        %v7856 = vld [vmem:[%s7846 + $0x34] sm:$0xf]
        %v7857 = vld [vmem:[%s7846 + $0x3c] sm:$0xf]
        %v7858 = vld [vmem:[%s7846 + $0x40] sm:$0xf]
        %v7859 = vld [vmem:[%s7846 + $0x48] sm:$0xf]
        %v7860 = vld [vmem:[%s7846 + $0x4c] sm:$0xf]
        %v7861 = vld [vmem:[%s7846 + $0x54] sm:$0xf]
        %v7862 = vld [vmem:[%s7846 + $0x58] sm:$0xf]
        %v7863 = vld [vmem:[%s7846 + $0x60] sm:$0xf]
        %v7864 = vld [vmem:[%s7846 + $0x64] sm:$0xf]
        %v7865 = vld [vmem:[%s7846 + $0x6c] sm:$0xf]
        %v7866 = vld [vmem:[%s7846 + $0x70] sm:$0xf]
        %v7867 = vld [vmem:[%s7846 + $0x78] sm:$0xf]
        %v7868 = vld [vmem:[%s7846 + $0x7c] sm:$0xf]
        %v7869 = vld [vmem:[%s7846 + $0x84] sm:$0xf]
        %v7870 = vld [vmem:[%s7846 + $0x88] sm:$0xf]
        %v7871 = vld [vmem:[%s7846 + $0x90] sm:$0xf]
        %v7872 = vld [vmem:[%s7846 + $0x94] sm:$0xf]
        %v7873 = vld [vmem:[%s7846 + $0x9c] sm:$0xf]
        %v7874 = vld [vmem:[%s7846 + $0xa0] sm:$0xf]
        %v7875 = vld [vmem:[%s7846 + $0xa8] sm:$0xf]
        %v7876 = vld [vmem:[%s7846 + $0xac] sm:$0xf]
        %v7877 = vld [vmem:[%s7846 + $0xb4] sm:$0xf]
        %v7878 = vld [vmem:[%s7846 + $0xb8] sm:$0xf]
        %s7879 = scalar_lea.vmem [#allocation3], 384
        %v7880 = vld [vmem:[%s7879] sm:$0xf]
        %v7881 = vld [vmem:[%s7879 + $0x4] sm:$0xf]
        %v7882 = vld [vmem:[%s7879 + $0x8] sm:$0xf]
        %v7883 = vld [vmem:[%s7879 + $0xc] sm:$0xf]
        %v7884 = vld [vmem:[%s7879 + $0x10] sm:$0xf]
        %v7885 = vld [vmem:[%s7879 + $0x14] sm:$0xf]
        %v7886 = vld [vmem:[%s7879 + $0x18] sm:$0xf]
        %v7887 = vld [vmem:[%s7879 + $0x1c] sm:$0xf]
        %v7888 = vld [vmem:[%s7879 + $0x20] sm:$0xf]
        %v7889 = vld [vmem:[%s7879 + $0x24] sm:$0xf]
        %v7890 = vld [vmem:[%s7879 + $0x28] sm:$0xf]
        %v7891 = vld [vmem:[%s7879 + $0x2c] sm:$0xf]
        %v7892 = vld [vmem:[%s7879 + $0x30] sm:$0xf]
        %v7893 = vld [vmem:[%s7879 + $0x34] sm:$0xf]
        %v7894 = vld [vmem:[%s7879 + $0x38] sm:$0xf]
        %v7895 = vld [vmem:[%s7879 + $0x3c] sm:$0xf]
        %v7928 = vunpack.c.l.b16 %v7847
        %v7929 = vunpack.c.l.b16 %v7848
        %v7930 = vunpack.c.l.b16 %v7849
        %v7931 = vunpack.c.l.b16 %v7850
        %v7932 = vunpack.c.l.b16 %v7851
        %v7933 = vunpack.c.l.b16 %v7852
        %v7934 = vunpack.c.l.b16 %v7853
        %v7935 = vunpack.c.l.b16 %v7854
        %v7936 = vunpack.c.l.b16 %v7855
        %v7937 = vunpack.c.l.b16 %v7856
        %v7938 = vunpack.c.l.b16 %v7857
        %v7939 = vunpack.c.l.b16 %v7858
        %v7940 = vunpack.c.l.b16 %v7859
        %v7941 = vunpack.c.l.b16 %v7860
        %v7942 = vunpack.c.l.b16 %v7861
        %v7943 = vunpack.c.l.b16 %v7862
        %v7944 = vunpack.c.l.b16 %v7863
        %v7945 = vunpack.c.l.b16 %v7864
        %v7946 = vunpack.c.l.b16 %v7865
        %v7947 = vunpack.c.l.b16 %v7866
        %v7948 = vunpack.c.l.b16 %v7867
        %v7949 = vunpack.c.l.b16 %v7868
        %v7950 = vunpack.c.l.b16 %v7869
        %v7951 = vunpack.c.l.b16 %v7870
        %v7952 = vunpack.c.l.b16 %v7871
        %v7953 = vunpack.c.l.b16 %v7872
        %v7954 = vunpack.c.l.b16 %v7873
        %v7955 = vunpack.c.l.b16 %v7874
        %v7956 = vunpack.c.l.b16 %v7875
        %v7957 = vunpack.c.l.b16 %v7876
        %v7958 = vunpack.c.l.b16 %v7877
        %v7959 = vunpack.c.l.b16 %v7878
        %v7960 = vpack.c.b16 %v7929, %v7928
        %v7961 = vpack.c.b16 %v7931, %v7930
        %v7962 = vpack.c.b16 %v7933, %v7932
        %v7963 = vpack.c.b16 %v7935, %v7934
        %v7964 = vpack.c.b16 %v7937, %v7936
        %v7965 = vpack.c.b16 %v7939, %v7938
        %v7966 = vpack.c.b16 %v7941, %v7940
        %v7967 = vpack.c.b16 %v7943, %v7942
        %v7968 = vpack.c.b16 %v7945, %v7944
        %v7969 = vpack.c.b16 %v7947, %v7946
        %v7970 = vpack.c.b16 %v7949, %v7948
        %v7971 = vpack.c.b16 %v7951, %v7950
        %v7972 = vpack.c.b16 %v7953, %v7952
        %v7973 = vpack.c.b16 %v7955, %v7954
        %v7974 = vpack.c.b16 %v7957, %v7956
        %v7975 = vpack.c.b16 %v7959, %v7958
        %v8008 = vunpack.c.l.b16 %v7880
        %v8009 = vunpack.c.l.b16 %v7881
        %v8010 = vunpack.c.l.b16 %v7882
        %v8011 = vunpack.c.l.b16 %v7883
        %v8012 = vunpack.c.l.b16 %v7884
        %v8013 = vunpack.c.l.b16 %v7885
        %v8014 = vunpack.c.l.b16 %v7886
        %v8015 = vunpack.c.l.b16 %v7887
        %v8016 = vunpack.c.l.b16 %v7888
        %v8017 = vunpack.c.l.b16 %v7889
        %v8018 = vunpack.c.l.b16 %v7890
        %v8019 = vunpack.c.l.b16 %v7891
        %v8020 = vunpack.c.l.b16 %v7892
        %v8021 = vunpack.c.l.b16 %v7893
        %v8022 = vunpack.c.l.b16 %v7894
        %v8023 = vunpack.c.l.b16 %v7895
        %v8024 = vpack.c.b16 %v8009, %v8008
        %v8025 = vpack.c.b16 %v8011, %v8010
        %v8026 = vpack.c.b16 %v8013, %v8012
        %v8027 = vpack.c.b16 %v8015, %v8014
        %v8028 = vpack.c.b16 %v8017, %v8016
        %v8029 = vpack.c.b16 %v8019, %v8018
        %v8030 = vpack.c.b16 %v8021, %v8020
        %v8031 = vpack.c.b16 %v8023, %v8022
        %8040 = vmatpush.bf16.msra.mxu0 %v8031
        %8041 = vmatpush.bf16.msra.mxu0 %v8030
        %8042 = vmatpush.bf16.msra.mxu0 %v8029
        %8043 = vmatpush.bf16.msra.mxu0 %v8028
        %8044 = vmatpush.bf16.msra.mxu0 %v8027
        %8045 = vmatpush.bf16.msra.mxu0 %v8026
        %8046 = vmatpush.bf16.msra.mxu0 %v8025
        %8047 = vmatpush.bf16.msra.mxu0 %v8024
        %8048 = vmatmul.bf16.gmra.mxu0 %v7960
        %v8049 = vpop.f32.mrf.mxu0
        %v8050 = vadd.f32 0.0, %v8049
        %v8051 = vpop.f32.mrf.mxu0
        %v8052 = vadd.f32 0.0, %v8051
        %8053 = vmatmul.bf16.gmra.mxu0 %v7961
        %v8054 = vpop.f32.mrf.mxu0
        %v8055 = vadd.f32 0.0, %v8054
        %v8056 = vpop.f32.mrf.mxu0
        %v8057 = vadd.f32 0.0, %v8056
        %8058 = vmatmul.bf16.gmra.mxu0 %v7962
        %v8059 = vpop.f32.mrf.mxu0
        %v8060 = vadd.f32 0.0, %v8059
        %v8061 = vpop.f32.mrf.mxu0
        %v8062 = vadd.f32 0.0, %v8061
        %8063 = vmatmul.bf16.gmra.mxu0 %v7963
        %v8064 = vpop.f32.mrf.mxu0
        %v8065 = vadd.f32 0.0, %v8064
        %v8066 = vpop.f32.mrf.mxu0
        %v8067 = vadd.f32 0.0, %v8066
        %8068 = vmatmul.bf16.gmra.mxu0 %v7964
        %v8069 = vpop.f32.mrf.mxu0
        %v8070 = vadd.f32 0.0, %v8069
        %v8071 = vpop.f32.mrf.mxu0
        %v8072 = vadd.f32 0.0, %v8071
        %8073 = vmatmul.bf16.gmra.mxu0 %v7965
        %v8074 = vpop.f32.mrf.mxu0
        %v8075 = vadd.f32 0.0, %v8074
        %v8076 = vpop.f32.mrf.mxu0
        %v8077 = vadd.f32 0.0, %v8076
        %8078 = vmatmul.bf16.gmra.mxu0 %v7966
        %v8079 = vpop.f32.mrf.mxu0
        %v8080 = vadd.f32 0.0, %v8079
        %v8081 = vpop.f32.mrf.mxu0
        %v8082 = vadd.f32 0.0, %v8081
        %8083 = vmatmul.bf16.gmra.mxu0 %v7967
        %v8084 = vpop.f32.mrf.mxu0
        %v8085 = vadd.f32 0.0, %v8084
        %v8086 = vpop.f32.mrf.mxu0
        %v8087 = vadd.f32 0.0, %v8086
        %8088 = vmatmul.bf16.gmra.mxu0 %v7968
        %v8089 = vpop.f32.mrf.mxu0
        %v8090 = vadd.f32 0.0, %v8089
        %v8091 = vpop.f32.mrf.mxu0
        %v8092 = vadd.f32 0.0, %v8091
        %8093 = vmatmul.bf16.gmra.mxu0 %v7969
        %v8094 = vpop.f32.mrf.mxu0
        %v8095 = vadd.f32 0.0, %v8094
        %v8096 = vpop.f32.mrf.mxu0
        %v8097 = vadd.f32 0.0, %v8096
        %8098 = vmatmul.bf16.gmra.mxu0 %v7970
        %v8099 = vpop.f32.mrf.mxu0
        %v8100 = vadd.f32 0.0, %v8099
        %v8101 = vpop.f32.mrf.mxu0
        %v8102 = vadd.f32 0.0, %v8101
        %8103 = vmatmul.bf16.gmra.mxu0 %v7971
        %v8104 = vpop.f32.mrf.mxu0
        %v8105 = vadd.f32 0.0, %v8104
        %v8106 = vpop.f32.mrf.mxu0
        %v8107 = vadd.f32 0.0, %v8106
        %8108 = vmatmul.bf16.gmra.mxu0 %v7972
        %v8109 = vpop.f32.mrf.mxu0
        %v8110 = vadd.f32 0.0, %v8109
        %v8111 = vpop.f32.mrf.mxu0
        %v8112 = vadd.f32 0.0, %v8111
        %8113 = vmatmul.bf16.gmra.mxu0 %v7973
        %v8114 = vpop.f32.mrf.mxu0
        %v8115 = vadd.f32 0.0, %v8114
        %v8116 = vpop.f32.mrf.mxu0
        %v8117 = vadd.f32 0.0, %v8116
        %8118 = vmatmul.bf16.gmra.mxu0 %v7974
        %v8119 = vpop.f32.mrf.mxu0
        %v8120 = vadd.f32 0.0, %v8119
        %v8121 = vpop.f32.mrf.mxu0
        %v8122 = vadd.f32 0.0, %v8121
        %8123 = vmatmul.bf16.gmra.mxu0 %v7975
        %v8124 = vpop.f32.mrf.mxu0
        %v8125 = vadd.f32 0.0, %v8124
        %v8126 = vpop.f32.mrf.mxu0
        %v8127 = vadd.f32 0.0, %v8126
        %8128 = vdwg.mxu0
        %v8129 = vadd.f32 %v7814, %v8050
        %v8130 = vadd.f32 %v7815, %v8052
        %v8131 = vadd.f32 %v7816, %v8055
        %v8132 = vadd.f32 %v7817, %v8057
        %v8133 = vadd.f32 %v7818, %v8060
        %v8134 = vadd.f32 %v7819, %v8062
        %v8135 = vadd.f32 %v7820, %v8065
        %v8136 = vadd.f32 %v7821, %v8067
        %v8137 = vadd.f32 %v7822, %v8070
        %v8138 = vadd.f32 %v7823, %v8072
        %v8139 = vadd.f32 %v7824, %v8075
        %v8140 = vadd.f32 %v7825, %v8077
        %v8141 = vadd.f32 %v7826, %v8080
        %v8142 = vadd.f32 %v7827, %v8082
        %v8143 = vadd.f32 %v7828, %v8085
        %v8144 = vadd.f32 %v7829, %v8087
        %v8145 = vadd.f32 %v7830, %v8090
        %v8146 = vadd.f32 %v7831, %v8092
        %v8147 = vadd.f32 %v7832, %v8095
        %v8148 = vadd.f32 %v7833, %v8097
        %v8149 = vadd.f32 %v7834, %v8100
        %v8150 = vadd.f32 %v7835, %v8102
        %v8151 = vadd.f32 %v7836, %v8105
        %v8152 = vadd.f32 %v7837, %v8107
        %v8153 = vadd.f32 %v7838, %v8110
        %v8154 = vadd.f32 %v7839, %v8112
        %v8155 = vadd.f32 %v7840, %v8115
        %v8156 = vadd.f32 %v7841, %v8117
        %v8157 = vadd.f32 %v7842, %v8120
        %v8158 = vadd.f32 %v7843, %v8122
        %v8159 = vadd.f32 %v7844, %v8125
        %v8160 = vadd.f32 %v7845, %v8127
        %v8161 = vld [vmem:[%s7846] sm:$0xf]
        %v8162 = vld [vmem:[%s7846 + $0x4] sm:$0xf]
        %v8163 = vld [vmem:[%s7846 + $0x8] sm:$0x1]
        %v8164 = vld [vmem:[%s7846 + $0xc] sm:$0xf]
        %v8165 = vld [vmem:[%s7846 + $0x10] sm:$0xf]
        %v8166 = vld [vmem:[%s7846 + $0x14] sm:$0x1]
        %v8167 = vld [vmem:[%s7846 + $0x18] sm:$0xf]
        %v8168 = vld [vmem:[%s7846 + $0x1c] sm:$0xf]
        %v8169 = vld [vmem:[%s7846 + $0x20] sm:$0x1]
        %v8170 = vld [vmem:[%s7846 + $0x24] sm:$0xf]
        %v8171 = vld [vmem:[%s7846 + $0x28] sm:$0xf]
        %v8172 = vld [vmem:[%s7846 + $0x2c] sm:$0x1]
        %v8173 = vld [vmem:[%s7846 + $0x30] sm:$0xf]
        %v8174 = vld [vmem:[%s7846 + $0x34] sm:$0xf]
        %v8175 = vld [vmem:[%s7846 + $0x38] sm:$0x1]
        %v8176 = vld [vmem:[%s7846 + $0x3c] sm:$0xf]
        %v8177 = vld [vmem:[%s7846 + $0x40] sm:$0xf]
        %v8178 = vld [vmem:[%s7846 + $0x44] sm:$0x1]
        %v8179 = vld [vmem:[%s7846 + $0x48] sm:$0xf]
        %v8180 = vld [vmem:[%s7846 + $0x4c] sm:$0xf]
        %v8181 = vld [vmem:[%s7846 + $0x50] sm:$0x1]
        %v8182 = vld [vmem:[%s7846 + $0x54] sm:$0xf]
        %v8183 = vld [vmem:[%s7846 + $0x58] sm:$0xf]
        %v8184 = vld [vmem:[%s7846 + $0x5c] sm:$0x1]
        %v8185 = vld [vmem:[%s7846 + $0x60] sm:$0xf]
        %v8186 = vld [vmem:[%s7846 + $0x64] sm:$0xf]
        %v8187 = vld [vmem:[%s7846 + $0x68] sm:$0x1]
        %v8188 = vld [vmem:[%s7846 + $0x6c] sm:$0xf]
        %v8189 = vld [vmem:[%s7846 + $0x70] sm:$0xf]
        %v8190 = vld [vmem:[%s7846 + $0x74] sm:$0x1]
        %v8191 = vld [vmem:[%s7846 + $0x78] sm:$0xf]
        %v8192 = vld [vmem:[%s7846 + $0x7c] sm:$0xf]
        %v8193 = vld [vmem:[%s7846 + $0x80] sm:$0x1]
        %v8194 = vld [vmem:[%s7846 + $0x84] sm:$0xf]
        %v8195 = vld [vmem:[%s7846 + $0x88] sm:$0xf]
        %v8196 = vld [vmem:[%s7846 + $0x8c] sm:$0x1]
        %v8197 = vld [vmem:[%s7846 + $0x90] sm:$0xf]
        %v8198 = vld [vmem:[%s7846 + $0x94] sm:$0xf]
        %v8199 = vld [vmem:[%s7846 + $0x98] sm:$0x1]
        %v8200 = vld [vmem:[%s7846 + $0x9c] sm:$0xf]
        %v8201 = vld [vmem:[%s7846 + $0xa0] sm:$0xf]
        %v8202 = vld [vmem:[%s7846 + $0xa4] sm:$0x1]
        %v8203 = vld [vmem:[%s7846 + $0xa8] sm:$0xf]
        %v8204 = vld [vmem:[%s7846 + $0xac] sm:$0xf]
        %v8205 = vld [vmem:[%s7846 + $0xb0] sm:$0x1]
        %v8206 = vld [vmem:[%s7846 + $0xb4] sm:$0xf]
        %v8207 = vld [vmem:[%s7846 + $0xb8] sm:$0xf]
        %v8208 = vld [vmem:[%s7846 + $0xbc] sm:$0x1]
        %v8210 = vshrl.u32 %v8161, 16
        %v8212 = vrot.slane %v8210, 4
        %v8213 = vshll.u32 %v8161, 16
        %v8215 = vrot.slane %v8213, 5
        %v8216 = vor.u32 %v8212, %v8215
        %v8217 = vrot.slane %v8216, 4
        %v8219 = vshll.u32 %v8162, 16
        %v8221 = vrot.slane %v8219, 5
        %v8222 = vsel %vm361, %v8217, %v8221
        %v8223 = vshrl.u32 %v8162, 16
        %v8225 = vrot.slane %v8223, 4
        %v8226 = vor.u32 %v8225, %v8221
        %v8227 = vrot.slane %v8226, 4
        %v8229 = vshll.u32 %v8163, 16
        %v8231 = vrot.slane %v8229, 5
        %v8232 = vsel %vm361, %v8227, %v8231
        %v8234 = vshrl.u32 %v8164, 16
        %v8236 = vrot.slane %v8234, 4
        %v8237 = vshll.u32 %v8164, 16
        %v8239 = vrot.slane %v8237, 5
        %v8240 = vor.u32 %v8236, %v8239
        %v8241 = vrot.slane %v8240, 4
        %v8243 = vshll.u32 %v8165, 16
        %v8245 = vrot.slane %v8243, 5
        %v8246 = vsel %vm361, %v8241, %v8245
        %v8247 = vshrl.u32 %v8165, 16
        %v8249 = vrot.slane %v8247, 4
        %v8250 = vor.u32 %v8249, %v8245
        %v8251 = vrot.slane %v8250, 4
        %v8253 = vshll.u32 %v8166, 16
        %v8255 = vrot.slane %v8253, 5
        %v8256 = vsel %vm361, %v8251, %v8255
        %v8258 = vshrl.u32 %v8167, 16
        %v8260 = vrot.slane %v8258, 4
        %v8261 = vshll.u32 %v8167, 16
        %v8263 = vrot.slane %v8261, 5
        %v8264 = vor.u32 %v8260, %v8263
        %v8265 = vrot.slane %v8264, 4
        %v8267 = vshll.u32 %v8168, 16
        %v8269 = vrot.slane %v8267, 5
        %v8270 = vsel %vm361, %v8265, %v8269
        %v8271 = vshrl.u32 %v8168, 16
        %v8273 = vrot.slane %v8271, 4
        %v8274 = vor.u32 %v8273, %v8269
        %v8275 = vrot.slane %v8274, 4
        %v8277 = vshll.u32 %v8169, 16
        %v8279 = vrot.slane %v8277, 5
        %v8280 = vsel %vm361, %v8275, %v8279
        %v8282 = vshrl.u32 %v8170, 16
        %v8284 = vrot.slane %v8282, 4
        %v8285 = vshll.u32 %v8170, 16
        %v8287 = vrot.slane %v8285, 5
        %v8288 = vor.u32 %v8284, %v8287
        %v8289 = vrot.slane %v8288, 4
        %v8291 = vshll.u32 %v8171, 16
        %v8293 = vrot.slane %v8291, 5
        %v8294 = vsel %vm361, %v8289, %v8293
        %v8295 = vshrl.u32 %v8171, 16
        %v8297 = vrot.slane %v8295, 4
        %v8298 = vor.u32 %v8297, %v8293
        %v8299 = vrot.slane %v8298, 4
        %v8301 = vshll.u32 %v8172, 16
        %v8303 = vrot.slane %v8301, 5
        %v8304 = vsel %vm361, %v8299, %v8303
        %v8306 = vshrl.u32 %v8173, 16
        %v8308 = vrot.slane %v8306, 4
        %v8309 = vshll.u32 %v8173, 16
        %v8311 = vrot.slane %v8309, 5
        %v8312 = vor.u32 %v8308, %v8311
        %v8313 = vrot.slane %v8312, 4
        %v8315 = vshll.u32 %v8174, 16
        %v8317 = vrot.slane %v8315, 5
        %v8318 = vsel %vm361, %v8313, %v8317
        %v8319 = vshrl.u32 %v8174, 16
        %v8321 = vrot.slane %v8319, 4
        %v8322 = vor.u32 %v8321, %v8317
        %v8323 = vrot.slane %v8322, 4
        %v8325 = vshll.u32 %v8175, 16
        %v8327 = vrot.slane %v8325, 5
        %v8328 = vsel %vm361, %v8323, %v8327
        %v8330 = vshrl.u32 %v8176, 16
        %v8332 = vrot.slane %v8330, 4
        %v8333 = vshll.u32 %v8176, 16
        %v8335 = vrot.slane %v8333, 5
        %v8336 = vor.u32 %v8332, %v8335
        %v8337 = vrot.slane %v8336, 4
        %v8339 = vshll.u32 %v8177, 16
        %v8341 = vrot.slane %v8339, 5
        %v8342 = vsel %vm361, %v8337, %v8341
        %v8343 = vshrl.u32 %v8177, 16
        %v8345 = vrot.slane %v8343, 4
        %v8346 = vor.u32 %v8345, %v8341
        %v8347 = vrot.slane %v8346, 4
        %v8349 = vshll.u32 %v8178, 16
        %v8351 = vrot.slane %v8349, 5
        %v8352 = vsel %vm361, %v8347, %v8351
        %v8354 = vshrl.u32 %v8179, 16
        %v8356 = vrot.slane %v8354, 4
        %v8357 = vshll.u32 %v8179, 16
        %v8359 = vrot.slane %v8357, 5
        %v8360 = vor.u32 %v8356, %v8359
        %v8361 = vrot.slane %v8360, 4
        %v8363 = vshll.u32 %v8180, 16
        %v8365 = vrot.slane %v8363, 5
        %v8366 = vsel %vm361, %v8361, %v8365
        %v8367 = vshrl.u32 %v8180, 16
        %v8369 = vrot.slane %v8367, 4
        %v8370 = vor.u32 %v8369, %v8365
        %v8371 = vrot.slane %v8370, 4
        %v8373 = vshll.u32 %v8181, 16
        %v8375 = vrot.slane %v8373, 5
        %v8376 = vsel %vm361, %v8371, %v8375
        %v8378 = vshrl.u32 %v8182, 16
        %v8380 = vrot.slane %v8378, 4
        %v8381 = vshll.u32 %v8182, 16
        %v8383 = vrot.slane %v8381, 5
        %v8384 = vor.u32 %v8380, %v8383
        %v8385 = vrot.slane %v8384, 4
        %v8387 = vshll.u32 %v8183, 16
        %v8389 = vrot.slane %v8387, 5
        %v8390 = vsel %vm361, %v8385, %v8389
        %v8391 = vshrl.u32 %v8183, 16
        %v8393 = vrot.slane %v8391, 4
        %v8394 = vor.u32 %v8393, %v8389
        %v8395 = vrot.slane %v8394, 4
        %v8397 = vshll.u32 %v8184, 16
        %v8399 = vrot.slane %v8397, 5
        %v8400 = vsel %vm361, %v8395, %v8399
        %v8402 = vshrl.u32 %v8185, 16
        %v8404 = vrot.slane %v8402, 4
        %v8405 = vshll.u32 %v8185, 16
        %v8407 = vrot.slane %v8405, 5
        %v8408 = vor.u32 %v8404, %v8407
        %v8409 = vrot.slane %v8408, 4
        %v8411 = vshll.u32 %v8186, 16
        %v8413 = vrot.slane %v8411, 5
        %v8414 = vsel %vm361, %v8409, %v8413
        %v8415 = vshrl.u32 %v8186, 16
        %v8417 = vrot.slane %v8415, 4
        %v8418 = vor.u32 %v8417, %v8413
        %v8419 = vrot.slane %v8418, 4
        %v8421 = vshll.u32 %v8187, 16
        %v8423 = vrot.slane %v8421, 5
        %v8424 = vsel %vm361, %v8419, %v8423
        %v8426 = vshrl.u32 %v8188, 16
        %v8428 = vrot.slane %v8426, 4
        %v8429 = vshll.u32 %v8188, 16
        %v8431 = vrot.slane %v8429, 5
        %v8432 = vor.u32 %v8428, %v8431
        %v8433 = vrot.slane %v8432, 4
        %v8435 = vshll.u32 %v8189, 16
        %v8437 = vrot.slane %v8435, 5
        %v8438 = vsel %vm361, %v8433, %v8437
        %v8439 = vshrl.u32 %v8189, 16
        %v8441 = vrot.slane %v8439, 4
        %v8442 = vor.u32 %v8441, %v8437
        %v8443 = vrot.slane %v8442, 4
        %v8445 = vshll.u32 %v8190, 16
        %v8447 = vrot.slane %v8445, 5
        %v8448 = vsel %vm361, %v8443, %v8447
        %v8450 = vshrl.u32 %v8191, 16
        %v8452 = vrot.slane %v8450, 4
        %v8453 = vshll.u32 %v8191, 16
        %v8455 = vrot.slane %v8453, 5
        %v8456 = vor.u32 %v8452, %v8455
        %v8457 = vrot.slane %v8456, 4
        %v8459 = vshll.u32 %v8192, 16
        %v8461 = vrot.slane %v8459, 5
        %v8462 = vsel %vm361, %v8457, %v8461
        %v8463 = vshrl.u32 %v8192, 16
        %v8465 = vrot.slane %v8463, 4
        %v8466 = vor.u32 %v8465, %v8461
        %v8467 = vrot.slane %v8466, 4
        %v8469 = vshll.u32 %v8193, 16
        %v8471 = vrot.slane %v8469, 5
        %v8472 = vsel %vm361, %v8467, %v8471
        %v8474 = vshrl.u32 %v8194, 16
        %v8476 = vrot.slane %v8474, 4
        %v8477 = vshll.u32 %v8194, 16
        %v8479 = vrot.slane %v8477, 5
        %v8480 = vor.u32 %v8476, %v8479
        %v8481 = vrot.slane %v8480, 4
        %v8483 = vshll.u32 %v8195, 16
        %v8485 = vrot.slane %v8483, 5
        %v8486 = vsel %vm361, %v8481, %v8485
        %v8487 = vshrl.u32 %v8195, 16
        %v8489 = vrot.slane %v8487, 4
        %v8490 = vor.u32 %v8489, %v8485
        %v8491 = vrot.slane %v8490, 4
        %v8493 = vshll.u32 %v8196, 16
        %v8495 = vrot.slane %v8493, 5
        %v8496 = vsel %vm361, %v8491, %v8495
        %v8498 = vshrl.u32 %v8197, 16
        %v8500 = vrot.slane %v8498, 4
        %v8501 = vshll.u32 %v8197, 16
        %v8503 = vrot.slane %v8501, 5
        %v8504 = vor.u32 %v8500, %v8503
        %v8505 = vrot.slane %v8504, 4
        %v8507 = vshll.u32 %v8198, 16
        %v8509 = vrot.slane %v8507, 5
        %v8510 = vsel %vm361, %v8505, %v8509
        %v8511 = vshrl.u32 %v8198, 16
        %v8513 = vrot.slane %v8511, 4
        %v8514 = vor.u32 %v8513, %v8509
        %v8515 = vrot.slane %v8514, 4
        %v8517 = vshll.u32 %v8199, 16
        %v8519 = vrot.slane %v8517, 5
        %v8520 = vsel %vm361, %v8515, %v8519
        %v8522 = vshrl.u32 %v8200, 16
        %v8524 = vrot.slane %v8522, 4
        %v8525 = vshll.u32 %v8200, 16
        %v8527 = vrot.slane %v8525, 5
        %v8528 = vor.u32 %v8524, %v8527
        %v8529 = vrot.slane %v8528, 4
        %v8531 = vshll.u32 %v8201, 16
        %v8533 = vrot.slane %v8531, 5
        %v8534 = vsel %vm361, %v8529, %v8533
        %v8535 = vshrl.u32 %v8201, 16
        %v8537 = vrot.slane %v8535, 4
        %v8538 = vor.u32 %v8537, %v8533
        %v8539 = vrot.slane %v8538, 4
        %v8541 = vshll.u32 %v8202, 16
        %v8543 = vrot.slane %v8541, 5
        %v8544 = vsel %vm361, %v8539, %v8543
        %v8546 = vshrl.u32 %v8203, 16
        %v8548 = vrot.slane %v8546, 4
        %v8549 = vshll.u32 %v8203, 16
        %v8551 = vrot.slane %v8549, 5
        %v8552 = vor.u32 %v8548, %v8551
        %v8553 = vrot.slane %v8552, 4
        %v8555 = vshll.u32 %v8204, 16
        %v8557 = vrot.slane %v8555, 5
        %v8558 = vsel %vm361, %v8553, %v8557
        %v8559 = vshrl.u32 %v8204, 16
        %v8561 = vrot.slane %v8559, 4
        %v8562 = vor.u32 %v8561, %v8557
        %v8563 = vrot.slane %v8562, 4
        %v8565 = vshll.u32 %v8205, 16
        %v8567 = vrot.slane %v8565, 5
        %v8568 = vsel %vm361, %v8563, %v8567
        %v8570 = vshrl.u32 %v8206, 16
        %v8572 = vrot.slane %v8570, 4
        %v8573 = vshll.u32 %v8206, 16
        %v8575 = vrot.slane %v8573, 5
        %v8576 = vor.u32 %v8572, %v8575
        %v8577 = vrot.slane %v8576, 4
        %v8579 = vshll.u32 %v8207, 16
        %v8581 = vrot.slane %v8579, 5
        %v8582 = vsel %vm361, %v8577, %v8581
        %v8583 = vshrl.u32 %v8207, 16
        %v8585 = vrot.slane %v8583, 4
        %v8586 = vor.u32 %v8585, %v8581
        %v8587 = vrot.slane %v8586, 4
        %v8589 = vshll.u32 %v8208, 16
        %v8591 = vrot.slane %v8589, 5
        %v8592 = vsel %vm361, %v8587, %v8591
        %s8593 = scalar_lea.vmem [#allocation3], 448
        %v8594 = vld [vmem:[%s8593] sm:$0xf]
        %v8595 = vld [vmem:[%s8593 + $0x4] sm:$0xf]
        %v8596 = vld [vmem:[%s8593 + $0x8] sm:$0xf]
        %v8597 = vld [vmem:[%s8593 + $0xc] sm:$0xf]
        %v8598 = vld [vmem:[%s8593 + $0x10] sm:$0xf]
        %v8599 = vld [vmem:[%s8593 + $0x14] sm:$0xf]
        %v8600 = vld [vmem:[%s8593 + $0x18] sm:$0xf]
        %v8601 = vld [vmem:[%s8593 + $0x1c] sm:$0xf]
        %v8602 = vld [vmem:[%s8593 + $0x20] sm:$0xf]
        %v8603 = vld [vmem:[%s8593 + $0x24] sm:$0xf]
        %v8604 = vld [vmem:[%s8593 + $0x28] sm:$0xf]
        %v8605 = vld [vmem:[%s8593 + $0x2c] sm:$0xf]
        %v8606 = vld [vmem:[%s8593 + $0x30] sm:$0xf]
        %v8607 = vld [vmem:[%s8593 + $0x34] sm:$0xf]
        %v8608 = vld [vmem:[%s8593 + $0x38] sm:$0xf]
        %v8609 = vld [vmem:[%s8593 + $0x3c] sm:$0xf]
        %v8610 = vunpack.c.l.b16 %v8222
        %v8611 = vunpack.c.l.b16 %v8232
        %v8612 = vunpack.c.l.b16 %v8246
        %v8613 = vunpack.c.l.b16 %v8256
        %v8614 = vunpack.c.l.b16 %v8270
        %v8615 = vunpack.c.l.b16 %v8280
        %v8616 = vunpack.c.l.b16 %v8294
        %v8617 = vunpack.c.l.b16 %v8304
        %v8618 = vunpack.c.l.b16 %v8318
        %v8619 = vunpack.c.l.b16 %v8328
        %v8620 = vunpack.c.l.b16 %v8342
        %v8621 = vunpack.c.l.b16 %v8352
        %v8622 = vunpack.c.l.b16 %v8366
        %v8623 = vunpack.c.l.b16 %v8376
        %v8624 = vunpack.c.l.b16 %v8390
        %v8625 = vunpack.c.l.b16 %v8400
        %v8626 = vunpack.c.l.b16 %v8414
        %v8627 = vunpack.c.l.b16 %v8424
        %v8628 = vunpack.c.l.b16 %v8438
        %v8629 = vunpack.c.l.b16 %v8448
        %v8630 = vunpack.c.l.b16 %v8462
        %v8631 = vunpack.c.l.b16 %v8472
        %v8632 = vunpack.c.l.b16 %v8486
        %v8633 = vunpack.c.l.b16 %v8496
        %v8634 = vunpack.c.l.b16 %v8510
        %v8635 = vunpack.c.l.b16 %v8520
        %v8636 = vunpack.c.l.b16 %v8534
        %v8637 = vunpack.c.l.b16 %v8544
        %v8638 = vunpack.c.l.b16 %v8558
        %v8639 = vunpack.c.l.b16 %v8568
        %v8640 = vunpack.c.l.b16 %v8582
        %v8641 = vunpack.c.l.b16 %v8592
        %v8642 = vpack.c.b16 %v8611, %v8610
        %v8643 = vpack.c.b16 %v8613, %v8612
        %v8644 = vpack.c.b16 %v8615, %v8614
        %v8645 = vpack.c.b16 %v8617, %v8616
        %v8646 = vpack.c.b16 %v8619, %v8618
        %v8647 = vpack.c.b16 %v8621, %v8620
        %v8648 = vpack.c.b16 %v8623, %v8622
        %v8649 = vpack.c.b16 %v8625, %v8624
        %v8650 = vpack.c.b16 %v8627, %v8626
        %v8651 = vpack.c.b16 %v8629, %v8628
        %v8652 = vpack.c.b16 %v8631, %v8630
        %v8653 = vpack.c.b16 %v8633, %v8632
        %v8654 = vpack.c.b16 %v8635, %v8634
        %v8655 = vpack.c.b16 %v8637, %v8636
        %v8656 = vpack.c.b16 %v8639, %v8638
        %v8657 = vpack.c.b16 %v8641, %v8640
        %v8690 = vunpack.c.l.b16 %v8594
        %v8691 = vunpack.c.l.b16 %v8595
        %v8692 = vunpack.c.l.b16 %v8596
        %v8693 = vunpack.c.l.b16 %v8597
        %v8694 = vunpack.c.l.b16 %v8598
        %v8695 = vunpack.c.l.b16 %v8599
        %v8696 = vunpack.c.l.b16 %v8600
        %v8697 = vunpack.c.l.b16 %v8601
        %v8698 = vunpack.c.l.b16 %v8602
        %v8699 = vunpack.c.l.b16 %v8603
        %v8700 = vunpack.c.l.b16 %v8604
        %v8701 = vunpack.c.l.b16 %v8605
        %v8702 = vunpack.c.l.b16 %v8606
        %v8703 = vunpack.c.l.b16 %v8607
        %v8704 = vunpack.c.l.b16 %v8608
        %v8705 = vunpack.c.l.b16 %v8609
        %v8706 = vpack.c.b16 %v8691, %v8690
        %v8707 = vpack.c.b16 %v8693, %v8692
        %v8708 = vpack.c.b16 %v8695, %v8694
        %v8709 = vpack.c.b16 %v8697, %v8696
        %v8710 = vpack.c.b16 %v8699, %v8698
        %v8711 = vpack.c.b16 %v8701, %v8700
        %v8712 = vpack.c.b16 %v8703, %v8702
        %v8713 = vpack.c.b16 %v8705, %v8704
        %8722 = vmatpush.bf16.msra.mxu0 %v8713
        %8723 = vmatpush.bf16.msra.mxu0 %v8712
        %8724 = vmatpush.bf16.msra.mxu0 %v8711
        %8725 = vmatpush.bf16.msra.mxu0 %v8710
        %8726 = vmatpush.bf16.msra.mxu0 %v8709
        %8727 = vmatpush.bf16.msra.mxu0 %v8708
        %8728 = vmatpush.bf16.msra.mxu0 %v8707
        %8729 = vmatpush.bf16.msra.mxu0 %v8706
        %8730 = vmatmul.bf16.gmra.mxu0 %v8642
        %v8731 = vpop.f32.mrf.mxu0
        %v8732 = vadd.f32 0.0, %v8731
        %v8733 = vpop.f32.mrf.mxu0
        %v8734 = vadd.f32 0.0, %v8733
        %8735 = vmatmul.bf16.gmra.mxu0 %v8643
        %v8736 = vpop.f32.mrf.mxu0
        %v8737 = vadd.f32 0.0, %v8736
        %v8738 = vpop.f32.mrf.mxu0
        %v8739 = vadd.f32 0.0, %v8738
        %8740 = vmatmul.bf16.gmra.mxu0 %v8644
        %v8741 = vpop.f32.mrf.mxu0
        %v8742 = vadd.f32 0.0, %v8741
        %v8743 = vpop.f32.mrf.mxu0
        %v8744 = vadd.f32 0.0, %v8743
        %8745 = vmatmul.bf16.gmra.mxu0 %v8645
        %v8746 = vpop.f32.mrf.mxu0
        %v8747 = vadd.f32 0.0, %v8746
        %v8748 = vpop.f32.mrf.mxu0
        %v8749 = vadd.f32 0.0, %v8748
        %8750 = vmatmul.bf16.gmra.mxu0 %v8646
        %v8751 = vpop.f32.mrf.mxu0
        %v8752 = vadd.f32 0.0, %v8751
        %v8753 = vpop.f32.mrf.mxu0
        %v8754 = vadd.f32 0.0, %v8753
        %8755 = vmatmul.bf16.gmra.mxu0 %v8647
        %v8756 = vpop.f32.mrf.mxu0
        %v8757 = vadd.f32 0.0, %v8756
        %v8758 = vpop.f32.mrf.mxu0
        %v8759 = vadd.f32 0.0, %v8758
        %8760 = vmatmul.bf16.gmra.mxu0 %v8648
        %v8761 = vpop.f32.mrf.mxu0
        %v8762 = vadd.f32 0.0, %v8761
        %v8763 = vpop.f32.mrf.mxu0
        %v8764 = vadd.f32 0.0, %v8763
        %8765 = vmatmul.bf16.gmra.mxu0 %v8649
        %v8766 = vpop.f32.mrf.mxu0
        %v8767 = vadd.f32 0.0, %v8766
        %v8768 = vpop.f32.mrf.mxu0
        %v8769 = vadd.f32 0.0, %v8768
        %8770 = vmatmul.bf16.gmra.mxu0 %v8650
        %v8771 = vpop.f32.mrf.mxu0
        %v8772 = vadd.f32 0.0, %v8771
        %v8773 = vpop.f32.mrf.mxu0
        %v8774 = vadd.f32 0.0, %v8773
        %8775 = vmatmul.bf16.gmra.mxu0 %v8651
        %v8776 = vpop.f32.mrf.mxu0
        %v8777 = vadd.f32 0.0, %v8776
        %v8778 = vpop.f32.mrf.mxu0
        %v8779 = vadd.f32 0.0, %v8778
        %8780 = vmatmul.bf16.gmra.mxu0 %v8652
        %v8781 = vpop.f32.mrf.mxu0
        %v8782 = vadd.f32 0.0, %v8781
        %v8783 = vpop.f32.mrf.mxu0
        %v8784 = vadd.f32 0.0, %v8783
        %8785 = vmatmul.bf16.gmra.mxu0 %v8653
        %v8786 = vpop.f32.mrf.mxu0
        %v8787 = vadd.f32 0.0, %v8786
        %v8788 = vpop.f32.mrf.mxu0
        %v8789 = vadd.f32 0.0, %v8788
        %8790 = vmatmul.bf16.gmra.mxu0 %v8654
        %v8791 = vpop.f32.mrf.mxu0
        %v8792 = vadd.f32 0.0, %v8791
        %v8793 = vpop.f32.mrf.mxu0
        %v8794 = vadd.f32 0.0, %v8793
        %8795 = vmatmul.bf16.gmra.mxu0 %v8655
        %v8796 = vpop.f32.mrf.mxu0
        %v8797 = vadd.f32 0.0, %v8796
        %v8798 = vpop.f32.mrf.mxu0
        %v8799 = vadd.f32 0.0, %v8798
        %8800 = vmatmul.bf16.gmra.mxu0 %v8656
        %v8801 = vpop.f32.mrf.mxu0
        %v8802 = vadd.f32 0.0, %v8801
        %v8803 = vpop.f32.mrf.mxu0
        %v8804 = vadd.f32 0.0, %v8803
        %8805 = vmatmul.bf16.gmra.mxu0 %v8657
        %v8806 = vpop.f32.mrf.mxu0
        %v8807 = vadd.f32 0.0, %v8806
        %v8808 = vpop.f32.mrf.mxu0
        %v8809 = vadd.f32 0.0, %v8808
        %8810 = vdwg.mxu0
        %v8811 = vadd.f32 %v8129, %v8732
        %v8812 = vadd.f32 %v8130, %v8734
        %v8813 = vadd.f32 %v8131, %v8737
        %v8814 = vadd.f32 %v8132, %v8739
        %v8815 = vadd.f32 %v8133, %v8742
        %v8816 = vadd.f32 %v8134, %v8744
        %v8817 = vadd.f32 %v8135, %v8747
        %v8818 = vadd.f32 %v8136, %v8749
        %v8819 = vadd.f32 %v8137, %v8752
        %v8820 = vadd.f32 %v8138, %v8754
        %v8821 = vadd.f32 %v8139, %v8757
        %v8822 = vadd.f32 %v8140, %v8759
        %v8823 = vadd.f32 %v8141, %v8762
        %v8824 = vadd.f32 %v8142, %v8764
        %v8825 = vadd.f32 %v8143, %v8767
        %v8826 = vadd.f32 %v8144, %v8769
        %v8827 = vadd.f32 %v8145, %v8772
        %v8828 = vadd.f32 %v8146, %v8774
        %v8829 = vadd.f32 %v8147, %v8777
        %v8830 = vadd.f32 %v8148, %v8779
        %v8831 = vadd.f32 %v8149, %v8782
        %v8832 = vadd.f32 %v8150, %v8784
        %v8833 = vadd.f32 %v8151, %v8787
        %v8834 = vadd.f32 %v8152, %v8789
        %v8835 = vadd.f32 %v8153, %v8792
        %v8836 = vadd.f32 %v8154, %v8794
        %v8837 = vadd.f32 %v8155, %v8797
        %v8838 = vadd.f32 %v8156, %v8799
        %v8839 = vadd.f32 %v8157, %v8802
        %v8840 = vadd.f32 %v8158, %v8804
        %v8841 = vadd.f32 %v8159, %v8807
        %v8842 = vadd.f32 %v8160, %v8809
        %v8843 = vld [vmem:[%s7846] sm:$0xe]
        %v8844 = vld [vmem:[%s7846 + $0xc] sm:$0xe]
        %v8845 = vld [vmem:[%s7846 + $0x18] sm:$0xe]
        %v8846 = vld [vmem:[%s7846 + $0x24] sm:$0xe]
        %v8847 = vld [vmem:[%s7846 + $0x30] sm:$0xe]
        %v8848 = vld [vmem:[%s7846 + $0x3c] sm:$0xe]
        %v8849 = vld [vmem:[%s7846 + $0x48] sm:$0xe]
        %v8850 = vld [vmem:[%s7846 + $0x54] sm:$0xe]
        %v8851 = vld [vmem:[%s7846 + $0x60] sm:$0xe]
        %v8852 = vld [vmem:[%s7846 + $0x6c] sm:$0xe]
        %v8853 = vld [vmem:[%s7846 + $0x78] sm:$0xe]
        %v8854 = vld [vmem:[%s7846 + $0x84] sm:$0xe]
        %v8855 = vld [vmem:[%s7846 + $0x90] sm:$0xe]
        %v8856 = vld [vmem:[%s7846 + $0x9c] sm:$0xe]
        %v8857 = vld [vmem:[%s7846 + $0xa8] sm:$0xe]
        %v8858 = vld [vmem:[%s7846 + $0xb4] sm:$0xe]
        %v8907 = vrot.slane %v8843, 5
        %v8908 = vrot.slane %v8907, 4
        %v8909 = vrot.slane %v8162, 5
        %v8910 = vsel %vm1247, %v8908, %v8909
        %v8911 = vrot.slane %v8909, 4
        %v8912 = vrot.slane %v8163, 5
        %v8913 = vsel %vm1247, %v8911, %v8912
        %v8914 = vrot.slane %v8844, 5
        %v8915 = vrot.slane %v8914, 4
        %v8916 = vrot.slane %v8165, 5
        %v8917 = vsel %vm1247, %v8915, %v8916
        %v8918 = vrot.slane %v8916, 4
        %v8919 = vrot.slane %v8166, 5
        %v8920 = vsel %vm1247, %v8918, %v8919
        %v8921 = vrot.slane %v8845, 5
        %v8922 = vrot.slane %v8921, 4
        %v8923 = vrot.slane %v8168, 5
        %v8924 = vsel %vm1247, %v8922, %v8923
        %v8925 = vrot.slane %v8923, 4
        %v8926 = vrot.slane %v8169, 5
        %v8927 = vsel %vm1247, %v8925, %v8926
        %v8928 = vrot.slane %v8846, 5
        %v8929 = vrot.slane %v8928, 4
        %v8930 = vrot.slane %v8171, 5
        %v8931 = vsel %vm1247, %v8929, %v8930
        %v8932 = vrot.slane %v8930, 4
        %v8933 = vrot.slane %v8172, 5
        %v8934 = vsel %vm1247, %v8932, %v8933
        %v8935 = vrot.slane %v8847, 5
        %v8936 = vrot.slane %v8935, 4
        %v8937 = vrot.slane %v8174, 5
        %v8938 = vsel %vm1247, %v8936, %v8937
        %v8939 = vrot.slane %v8937, 4
        %v8940 = vrot.slane %v8175, 5
        %v8941 = vsel %vm1247, %v8939, %v8940
        %v8942 = vrot.slane %v8848, 5
        %v8943 = vrot.slane %v8942, 4
        %v8944 = vrot.slane %v8177, 5
        %v8945 = vsel %vm1247, %v8943, %v8944
        %v8946 = vrot.slane %v8944, 4
        %v8947 = vrot.slane %v8178, 5
        %v8948 = vsel %vm1247, %v8946, %v8947
        %v8949 = vrot.slane %v8849, 5
        %v8950 = vrot.slane %v8949, 4
        %v8951 = vrot.slane %v8180, 5
        %v8952 = vsel %vm1247, %v8950, %v8951
        %v8953 = vrot.slane %v8951, 4
        %v8954 = vrot.slane %v8181, 5
        %v8955 = vsel %vm1247, %v8953, %v8954
        %v8956 = vrot.slane %v8850, 5
        %v8957 = vrot.slane %v8956, 4
        %v8958 = vrot.slane %v8183, 5
        %v8959 = vsel %vm1247, %v8957, %v8958
        %v8960 = vrot.slane %v8958, 4
        %v8961 = vrot.slane %v8184, 5
        %v8962 = vsel %vm1247, %v8960, %v8961
        %v8963 = vrot.slane %v8851, 5
        %v8964 = vrot.slane %v8963, 4
        %v8965 = vrot.slane %v8186, 5
        %v8966 = vsel %vm1247, %v8964, %v8965
        %v8967 = vrot.slane %v8965, 4
        %v8968 = vrot.slane %v8187, 5
        %v8969 = vsel %vm1247, %v8967, %v8968
        %v8970 = vrot.slane %v8852, 5
        %v8971 = vrot.slane %v8970, 4
        %v8972 = vrot.slane %v8189, 5
        %v8973 = vsel %vm1247, %v8971, %v8972
        %v8974 = vrot.slane %v8972, 4
        %v8975 = vrot.slane %v8190, 5
        %v8976 = vsel %vm1247, %v8974, %v8975
        %v8977 = vrot.slane %v8853, 5
        %v8978 = vrot.slane %v8977, 4
        %v8979 = vrot.slane %v8192, 5
        %v8980 = vsel %vm1247, %v8978, %v8979
        %v8981 = vrot.slane %v8979, 4
        %v8982 = vrot.slane %v8193, 5
        %v8983 = vsel %vm1247, %v8981, %v8982
        %v8984 = vrot.slane %v8854, 5
        %v8985 = vrot.slane %v8984, 4
        %v8986 = vrot.slane %v8195, 5
        %v8987 = vsel %vm1247, %v8985, %v8986
        %v8988 = vrot.slane %v8986, 4
        %v8989 = vrot.slane %v8196, 5
        %v8990 = vsel %vm1247, %v8988, %v8989
        %v8991 = vrot.slane %v8855, 5
        %v8992 = vrot.slane %v8991, 4
        %v8993 = vrot.slane %v8198, 5
        %v8994 = vsel %vm1247, %v8992, %v8993
        %v8995 = vrot.slane %v8993, 4
        %v8996 = vrot.slane %v8199, 5
        %v8997 = vsel %vm1247, %v8995, %v8996
        %v8998 = vrot.slane %v8856, 5
        %v8999 = vrot.slane %v8998, 4
        %v9000 = vrot.slane %v8201, 5
        %v9001 = vsel %vm1247, %v8999, %v9000
        %v9002 = vrot.slane %v9000, 4
        %v9003 = vrot.slane %v8202, 5
        %v9004 = vsel %vm1247, %v9002, %v9003
        %v9005 = vrot.slane %v8857, 5
        %v9006 = vrot.slane %v9005, 4
        %v9007 = vrot.slane %v8204, 5
        %v9008 = vsel %vm1247, %v9006, %v9007
        %v9009 = vrot.slane %v9007, 4
        %v9010 = vrot.slane %v8205, 5
        %v9011 = vsel %vm1247, %v9009, %v9010
        %v9012 = vrot.slane %v8858, 5
        %v9013 = vrot.slane %v9012, 4
        %v9014 = vrot.slane %v8207, 5
        %v9015 = vsel %vm1247, %v9013, %v9014
        %v9016 = vrot.slane %v9014, 4
        %v9017 = vrot.slane %v8208, 5
        %v9018 = vsel %vm1247, %v9016, %v9017
        %s9019 = scalar_lea.vmem [#allocation3], 512
        %v9020 = vld [vmem:[%s9019] sm:$0xf]
        %v9021 = vld [vmem:[%s9019 + $0x4] sm:$0xf]
        %v9022 = vld [vmem:[%s9019 + $0x8] sm:$0xf]
        %v9023 = vld [vmem:[%s9019 + $0xc] sm:$0xf]
        %v9024 = vld [vmem:[%s9019 + $0x10] sm:$0xf]
        %v9025 = vld [vmem:[%s9019 + $0x14] sm:$0xf]
        %v9026 = vld [vmem:[%s9019 + $0x18] sm:$0xf]
        %v9027 = vld [vmem:[%s9019 + $0x1c] sm:$0xf]
        %v9028 = vld [vmem:[%s9019 + $0x20] sm:$0xf]
        %v9029 = vld [vmem:[%s9019 + $0x24] sm:$0xf]
        %v9030 = vld [vmem:[%s9019 + $0x28] sm:$0xf]
        %v9031 = vld [vmem:[%s9019 + $0x2c] sm:$0xf]
        %v9032 = vld [vmem:[%s9019 + $0x30] sm:$0xf]
        %v9033 = vld [vmem:[%s9019 + $0x34] sm:$0xf]
        %v9034 = vld [vmem:[%s9019 + $0x38] sm:$0xf]
        %v9035 = vld [vmem:[%s9019 + $0x3c] sm:$0xf]
        %v9036 = vunpack.c.l.b16 %v8910
        %v9037 = vunpack.c.l.b16 %v8913
        %v9038 = vunpack.c.l.b16 %v8917
        %v9039 = vunpack.c.l.b16 %v8920
        %v9040 = vunpack.c.l.b16 %v8924
        %v9041 = vunpack.c.l.b16 %v8927
        %v9042 = vunpack.c.l.b16 %v8931
        %v9043 = vunpack.c.l.b16 %v8934
        %v9044 = vunpack.c.l.b16 %v8938
        %v9045 = vunpack.c.l.b16 %v8941
        %v9046 = vunpack.c.l.b16 %v8945
        %v9047 = vunpack.c.l.b16 %v8948
        %v9048 = vunpack.c.l.b16 %v8952
        %v9049 = vunpack.c.l.b16 %v8955
        %v9050 = vunpack.c.l.b16 %v8959
        %v9051 = vunpack.c.l.b16 %v8962
        %v9052 = vunpack.c.l.b16 %v8966
        %v9053 = vunpack.c.l.b16 %v8969
        %v9054 = vunpack.c.l.b16 %v8973
        %v9055 = vunpack.c.l.b16 %v8976
        %v9056 = vunpack.c.l.b16 %v8980
        %v9057 = vunpack.c.l.b16 %v8983
        %v9058 = vunpack.c.l.b16 %v8987
        %v9059 = vunpack.c.l.b16 %v8990
        %v9060 = vunpack.c.l.b16 %v8994
        %v9061 = vunpack.c.l.b16 %v8997
        %v9062 = vunpack.c.l.b16 %v9001
        %v9063 = vunpack.c.l.b16 %v9004
        %v9064 = vunpack.c.l.b16 %v9008
        %v9065 = vunpack.c.l.b16 %v9011
        %v9066 = vunpack.c.l.b16 %v9015
        %v9067 = vunpack.c.l.b16 %v9018
        %v9068 = vpack.c.b16 %v9037, %v9036
        %v9069 = vpack.c.b16 %v9039, %v9038
        %v9070 = vpack.c.b16 %v9041, %v9040
        %v9071 = vpack.c.b16 %v9043, %v9042
        %v9072 = vpack.c.b16 %v9045, %v9044
        %v9073 = vpack.c.b16 %v9047, %v9046
        %v9074 = vpack.c.b16 %v9049, %v9048
        %v9075 = vpack.c.b16 %v9051, %v9050
        %v9076 = vpack.c.b16 %v9053, %v9052
        %v9077 = vpack.c.b16 %v9055, %v9054
        %v9078 = vpack.c.b16 %v9057, %v9056
        %v9079 = vpack.c.b16 %v9059, %v9058
        %v9080 = vpack.c.b16 %v9061, %v9060
        %v9081 = vpack.c.b16 %v9063, %v9062
        %v9082 = vpack.c.b16 %v9065, %v9064
        %v9083 = vpack.c.b16 %v9067, %v9066
        %v9116 = vunpack.c.l.b16 %v9020
        %v9117 = vunpack.c.l.b16 %v9021
        %v9118 = vunpack.c.l.b16 %v9022
        %v9119 = vunpack.c.l.b16 %v9023
        %v9120 = vunpack.c.l.b16 %v9024
        %v9121 = vunpack.c.l.b16 %v9025
        %v9122 = vunpack.c.l.b16 %v9026
        %v9123 = vunpack.c.l.b16 %v9027
        %v9124 = vunpack.c.l.b16 %v9028
        %v9125 = vunpack.c.l.b16 %v9029
        %v9126 = vunpack.c.l.b16 %v9030
        %v9127 = vunpack.c.l.b16 %v9031
        %v9128 = vunpack.c.l.b16 %v9032
        %v9129 = vunpack.c.l.b16 %v9033
        %v9130 = vunpack.c.l.b16 %v9034
        %v9131 = vunpack.c.l.b16 %v9035
        %v9132 = vpack.c.b16 %v9117, %v9116
        %v9133 = vpack.c.b16 %v9119, %v9118
        %v9134 = vpack.c.b16 %v9121, %v9120
        %v9135 = vpack.c.b16 %v9123, %v9122
        %v9136 = vpack.c.b16 %v9125, %v9124
        %v9137 = vpack.c.b16 %v9127, %v9126
        %v9138 = vpack.c.b16 %v9129, %v9128
        %v9139 = vpack.c.b16 %v9131, %v9130
        %9148 = vmatpush.bf16.msra.mxu0 %v9139
        %9149 = vmatpush.bf16.msra.mxu0 %v9138
        %9150 = vmatpush.bf16.msra.mxu0 %v9137
        %9151 = vmatpush.bf16.msra.mxu0 %v9136
        %9152 = vmatpush.bf16.msra.mxu0 %v9135
        %9153 = vmatpush.bf16.msra.mxu0 %v9134
        %9154 = vmatpush.bf16.msra.mxu0 %v9133
        %9155 = vmatpush.bf16.msra.mxu0 %v9132
        %9156 = vmatmul.bf16.gmra.mxu0 %v9068
        %v9157 = vpop.f32.mrf.mxu0
        %v9158 = vadd.f32 0.0, %v9157
        %v9159 = vpop.f32.mrf.mxu0
        %v9160 = vadd.f32 0.0, %v9159
        %9161 = vmatmul.bf16.gmra.mxu0 %v9069
        %v9162 = vpop.f32.mrf.mxu0
        %v9163 = vadd.f32 0.0, %v9162
        %v9164 = vpop.f32.mrf.mxu0
        %v9165 = vadd.f32 0.0, %v9164
        %9166 = vmatmul.bf16.gmra.mxu0 %v9070
        %v9167 = vpop.f32.mrf.mxu0
        %v9168 = vadd.f32 0.0, %v9167
        %v9169 = vpop.f32.mrf.mxu0
        %v9170 = vadd.f32 0.0, %v9169
        %9171 = vmatmul.bf16.gmra.mxu0 %v9071
        %v9172 = vpop.f32.mrf.mxu0
        %v9173 = vadd.f32 0.0, %v9172
        %v9174 = vpop.f32.mrf.mxu0
        %v9175 = vadd.f32 0.0, %v9174
        %9176 = vmatmul.bf16.gmra.mxu0 %v9072
        %v9177 = vpop.f32.mrf.mxu0
        %v9178 = vadd.f32 0.0, %v9177
        %v9179 = vpop.f32.mrf.mxu0
        %v9180 = vadd.f32 0.0, %v9179
        %9181 = vmatmul.bf16.gmra.mxu0 %v9073
        %v9182 = vpop.f32.mrf.mxu0
        %v9183 = vadd.f32 0.0, %v9182
        %v9184 = vpop.f32.mrf.mxu0
        %v9185 = vadd.f32 0.0, %v9184
        %9186 = vmatmul.bf16.gmra.mxu0 %v9074
        %v9187 = vpop.f32.mrf.mxu0
        %v9188 = vadd.f32 0.0, %v9187
        %v9189 = vpop.f32.mrf.mxu0
        %v9190 = vadd.f32 0.0, %v9189
        %9191 = vmatmul.bf16.gmra.mxu0 %v9075
        %v9192 = vpop.f32.mrf.mxu0
        %v9193 = vadd.f32 0.0, %v9192
        %v9194 = vpop.f32.mrf.mxu0
        %v9195 = vadd.f32 0.0, %v9194
        %9196 = vmatmul.bf16.gmra.mxu0 %v9076
        %v9197 = vpop.f32.mrf.mxu0
        %v9198 = vadd.f32 0.0, %v9197
        %v9199 = vpop.f32.mrf.mxu0
        %v9200 = vadd.f32 0.0, %v9199
        %9201 = vmatmul.bf16.gmra.mxu0 %v9077
        %v9202 = vpop.f32.mrf.mxu0
        %v9203 = vadd.f32 0.0, %v9202
        %v9204 = vpop.f32.mrf.mxu0
        %v9205 = vadd.f32 0.0, %v9204
        %9206 = vmatmul.bf16.gmra.mxu0 %v9078
        %v9207 = vpop.f32.mrf.mxu0
        %v9208 = vadd.f32 0.0, %v9207
        %v9209 = vpop.f32.mrf.mxu0
        %v9210 = vadd.f32 0.0, %v9209
        %9211 = vmatmul.bf16.gmra.mxu0 %v9079
        %v9212 = vpop.f32.mrf.mxu0
        %v9213 = vadd.f32 0.0, %v9212
        %v9214 = vpop.f32.mrf.mxu0
        %v9215 = vadd.f32 0.0, %v9214
        %9216 = vmatmul.bf16.gmra.mxu0 %v9080
        %v9217 = vpop.f32.mrf.mxu0
        %v9218 = vadd.f32 0.0, %v9217
        %v9219 = vpop.f32.mrf.mxu0
        %v9220 = vadd.f32 0.0, %v9219
        %9221 = vmatmul.bf16.gmra.mxu0 %v9081
        %v9222 = vpop.f32.mrf.mxu0
        %v9223 = vadd.f32 0.0, %v9222
        %v9224 = vpop.f32.mrf.mxu0
        %v9225 = vadd.f32 0.0, %v9224
        %9226 = vmatmul.bf16.gmra.mxu0 %v9082
        %v9227 = vpop.f32.mrf.mxu0
        %v9228 = vadd.f32 0.0, %v9227
        %v9229 = vpop.f32.mrf.mxu0
        %v9230 = vadd.f32 0.0, %v9229
        %9231 = vmatmul.bf16.gmra.mxu0 %v9083
        %v9232 = vpop.f32.mrf.mxu0
        %v9233 = vadd.f32 0.0, %v9232
        %v9234 = vpop.f32.mrf.mxu0
        %v9235 = vadd.f32 0.0, %v9234
        %9236 = vdwg.mxu0
        %v9237 = vadd.f32 %v8811, %v9158
        %v9238 = vadd.f32 %v8812, %v9160
        %v9239 = vadd.f32 %v8813, %v9163
        %v9240 = vadd.f32 %v8814, %v9165
        %v9241 = vadd.f32 %v8815, %v9168
        %v9242 = vadd.f32 %v8816, %v9170
        %v9243 = vadd.f32 %v8817, %v9173
        %v9244 = vadd.f32 %v8818, %v9175
        %v9245 = vadd.f32 %v8819, %v9178
        %v9246 = vadd.f32 %v8820, %v9180
        %v9247 = vadd.f32 %v8821, %v9183
        %v9248 = vadd.f32 %v8822, %v9185
        %v9249 = vadd.f32 %v8823, %v9188
        %v9250 = vadd.f32 %v8824, %v9190
        %v9251 = vadd.f32 %v8825, %v9193
        %v9252 = vadd.f32 %v8826, %v9195
        %v9253 = vadd.f32 %v8827, %v9198
        %v9254 = vadd.f32 %v8828, %v9200
        %v9255 = vadd.f32 %v8829, %v9203
        %v9256 = vadd.f32 %v8830, %v9205
        %v9257 = vadd.f32 %v8831, %v9208
        %v9258 = vadd.f32 %v8832, %v9210
        %v9259 = vadd.f32 %v8833, %v9213
        %v9260 = vadd.f32 %v8834, %v9215
        %v9261 = vadd.f32 %v8835, %v9218
        %v9262 = vadd.f32 %v8836, %v9220
        %v9263 = vadd.f32 %v8837, %v9223
        %v9264 = vadd.f32 %v8838, %v9225
        %v9265 = vadd.f32 %v8839, %v9228
        %v9266 = vadd.f32 %v8840, %v9230
        %v9267 = vadd.f32 %v8841, %v9233
        %v9268 = vadd.f32 %v8842, %v9235
        %v9269 = vld [vmem:[%s4] sm:$0x1]
        %v9271 = vperm.slane %v9269, 0
        %v9273 = vadd.f32 %v9237, %v9271
        %v9274 = vadd.f32 %v9238, %v9271
        %v9275 = vadd.f32 %v9239, %v9271
        %v9276 = vadd.f32 %v9240, %v9271
        %v9277 = vadd.f32 %v9241, %v9271
        %v9278 = vadd.f32 %v9242, %v9271
        %v9279 = vadd.f32 %v9243, %v9271
        %v9280 = vadd.f32 %v9244, %v9271
        %v9281 = vadd.f32 %v9245, %v9271
        %v9282 = vadd.f32 %v9246, %v9271
        %v9283 = vadd.f32 %v9247, %v9271
        %v9284 = vadd.f32 %v9248, %v9271
        %v9285 = vadd.f32 %v9249, %v9271
        %v9286 = vadd.f32 %v9250, %v9271
        %v9287 = vadd.f32 %v9251, %v9271
        %v9288 = vadd.f32 %v9252, %v9271
        %v9289 = vadd.f32 %v9253, %v9271
        %v9290 = vadd.f32 %v9254, %v9271
        %v9291 = vadd.f32 %v9255, %v9271
        %v9292 = vadd.f32 %v9256, %v9271
        %v9293 = vadd.f32 %v9257, %v9271
        %v9294 = vadd.f32 %v9258, %v9271
        %v9295 = vadd.f32 %v9259, %v9271
        %v9296 = vadd.f32 %v9260, %v9271
        %v9297 = vadd.f32 %v9261, %v9271
        %v9298 = vadd.f32 %v9262, %v9271
        %v9299 = vadd.f32 %v9263, %v9271
        %v9300 = vadd.f32 %v9264, %v9271
        %v9301 = vadd.f32 %v9265, %v9271
        %v9302 = vadd.f32 %v9266, %v9271
        %v9303 = vadd.f32 %v9267, %v9271
        %v9304 = vadd.f32 %v9268, %v9271
        %v9305 = vld [vmem:[%s1610] sm:$0xf]
        %v9306 = vld [vmem:[%s1610 + $0x4] sm:$0xf]
        %v9307 = vld [vmem:[%s1610 + $0x8] sm:$0x1]
        %v9308 = vld [vmem:[%s1610 + $0xc] sm:$0xf]
        %v9309 = vld [vmem:[%s1610 + $0x10] sm:$0xf]
        %v9310 = vld [vmem:[%s1610 + $0x14] sm:$0x1]
        %v9311 = vld [vmem:[%s1610 + $0x18] sm:$0xf]
        %v9312 = vld [vmem:[%s1610 + $0x1c] sm:$0xf]
        %v9313 = vld [vmem:[%s1610 + $0x20] sm:$0x1]
        %v9314 = vld [vmem:[%s1610 + $0x24] sm:$0xf]
        %v9315 = vld [vmem:[%s1610 + $0x28] sm:$0xf]
        %v9316 = vld [vmem:[%s1610 + $0x2c] sm:$0x1]
        %v9317 = vld [vmem:[%s1610 + $0x30] sm:$0xf]
        %v9318 = vld [vmem:[%s1610 + $0x34] sm:$0xf]
        %v9319 = vld [vmem:[%s1610 + $0x38] sm:$0x1]
        %v9320 = vld [vmem:[%s1610 + $0x3c] sm:$0xf]
        %v9321 = vld [vmem:[%s1610 + $0x40] sm:$0xf]
        %v9322 = vld [vmem:[%s1610 + $0x44] sm:$0x1]
        %v9323 = vld [vmem:[%s1610 + $0x48] sm:$0xf]
        %v9324 = vld [vmem:[%s1610 + $0x4c] sm:$0xf]
        %v9325 = vld [vmem:[%s1610 + $0x50] sm:$0x1]
        %v9326 = vld [vmem:[%s1610 + $0x54] sm:$0xf]
        %v9327 = vld [vmem:[%s1610 + $0x58] sm:$0xf]
        %v9328 = vld [vmem:[%s1610 + $0x5c] sm:$0x1]
        %v9329 = vld [vmem:[%s1610 + $0x60] sm:$0xf]
        %v9330 = vld [vmem:[%s1610 + $0x64] sm:$0xf]
        %v9331 = vld [vmem:[%s1610 + $0x68] sm:$0x1]
        %v9332 = vld [vmem:[%s1610 + $0x6c] sm:$0xf]
        %v9333 = vld [vmem:[%s1610 + $0x70] sm:$0xf]
        %v9334 = vld [vmem:[%s1610 + $0x74] sm:$0x1]
        %v9335 = vld [vmem:[%s1610 + $0x78] sm:$0xf]
        %v9336 = vld [vmem:[%s1610 + $0x7c] sm:$0xf]
        %v9337 = vld [vmem:[%s1610 + $0x80] sm:$0x1]
        %v9338 = vld [vmem:[%s1610 + $0x84] sm:$0xf]
        %v9339 = vld [vmem:[%s1610 + $0x88] sm:$0xf]
        %v9340 = vld [vmem:[%s1610 + $0x8c] sm:$0x1]
        %v9341 = vld [vmem:[%s1610 + $0x90] sm:$0xf]
        %v9342 = vld [vmem:[%s1610 + $0x94] sm:$0xf]
        %v9343 = vld [vmem:[%s1610 + $0x98] sm:$0x1]
        %v9344 = vld [vmem:[%s1610 + $0x9c] sm:$0xf]
        %v9345 = vld [vmem:[%s1610 + $0xa0] sm:$0xf]
        %v9346 = vld [vmem:[%s1610 + $0xa4] sm:$0x1]
        %v9347 = vld [vmem:[%s1610 + $0xa8] sm:$0xf]
        %v9348 = vld [vmem:[%s1610 + $0xac] sm:$0xf]
        %v9349 = vld [vmem:[%s1610 + $0xb0] sm:$0x1]
        %v9350 = vld [vmem:[%s1610 + $0xb4] sm:$0xf]
        %v9351 = vld [vmem:[%s1610 + $0xb8] sm:$0xf]
        %v9352 = vld [vmem:[%s1610 + $0xbc] sm:$0x1]
        %v9354 = vshrl.u32 %v9305, 16
        %v9356 = vrot.slane %v9354, 4
        %v9357 = vshll.u32 %v9305, 16
        %v9359 = vrot.slane %v9357, 5
        %v9360 = vor.u32 %v9356, %v9359
        %v9361 = vrot.slane %v9360, 4
        %v9363 = vshll.u32 %v9306, 16
        %v9365 = vrot.slane %v9363, 5
        %v9366 = vsel %vm361, %v9361, %v9365
        %v9367 = vshrl.u32 %v9306, 16
        %v9369 = vrot.slane %v9367, 4
        %v9370 = vor.u32 %v9369, %v9365
        %v9371 = vrot.slane %v9370, 4
        %v9373 = vshll.u32 %v9307, 16
        %v9375 = vrot.slane %v9373, 5
        %v9376 = vsel %vm361, %v9371, %v9375
        %v9378 = vshrl.u32 %v9308, 16
        %v9380 = vrot.slane %v9378, 4
        %v9381 = vshll.u32 %v9308, 16
        %v9383 = vrot.slane %v9381, 5
        %v9384 = vor.u32 %v9380, %v9383
        %v9385 = vrot.slane %v9384, 4
        %v9387 = vshll.u32 %v9309, 16
        %v9389 = vrot.slane %v9387, 5
        %v9390 = vsel %vm361, %v9385, %v9389
        %v9391 = vshrl.u32 %v9309, 16
        %v9393 = vrot.slane %v9391, 4
        %v9394 = vor.u32 %v9393, %v9389
        %v9395 = vrot.slane %v9394, 4
        %v9397 = vshll.u32 %v9310, 16
        %v9399 = vrot.slane %v9397, 5
        %v9400 = vsel %vm361, %v9395, %v9399
        %v9402 = vshrl.u32 %v9311, 16
        %v9404 = vrot.slane %v9402, 4
        %v9405 = vshll.u32 %v9311, 16
        %v9407 = vrot.slane %v9405, 5
        %v9408 = vor.u32 %v9404, %v9407
        %v9409 = vrot.slane %v9408, 4
        %v9411 = vshll.u32 %v9312, 16
        %v9413 = vrot.slane %v9411, 5
        %v9414 = vsel %vm361, %v9409, %v9413
        %v9415 = vshrl.u32 %v9312, 16
        %v9417 = vrot.slane %v9415, 4
        %v9418 = vor.u32 %v9417, %v9413
        %v9419 = vrot.slane %v9418, 4
        %v9421 = vshll.u32 %v9313, 16
        %v9423 = vrot.slane %v9421, 5
        %v9424 = vsel %vm361, %v9419, %v9423
        %v9426 = vshrl.u32 %v9314, 16
        %v9428 = vrot.slane %v9426, 4
        %v9429 = vshll.u32 %v9314, 16
        %v9431 = vrot.slane %v9429, 5
        %v9432 = vor.u32 %v9428, %v9431
        %v9433 = vrot.slane %v9432, 4
        %v9435 = vshll.u32 %v9315, 16
        %v9437 = vrot.slane %v9435, 5
        %v9438 = vsel %vm361, %v9433, %v9437
        %v9439 = vshrl.u32 %v9315, 16
        %v9441 = vrot.slane %v9439, 4
        %v9442 = vor.u32 %v9441, %v9437
        %v9443 = vrot.slane %v9442, 4
        %v9445 = vshll.u32 %v9316, 16
        %v9447 = vrot.slane %v9445, 5
        %v9448 = vsel %vm361, %v9443, %v9447
        %v9450 = vshrl.u32 %v9317, 16
        %v9452 = vrot.slane %v9450, 4
        %v9453 = vshll.u32 %v9317, 16
        %v9455 = vrot.slane %v9453, 5
        %v9456 = vor.u32 %v9452, %v9455
        %v9457 = vrot.slane %v9456, 4
        %v9459 = vshll.u32 %v9318, 16
        %v9461 = vrot.slane %v9459, 5
        %v9462 = vsel %vm361, %v9457, %v9461
        %v9463 = vshrl.u32 %v9318, 16
        %v9465 = vrot.slane %v9463, 4
        %v9466 = vor.u32 %v9465, %v9461
        %v9467 = vrot.slane %v9466, 4
        %v9469 = vshll.u32 %v9319, 16
        %v9471 = vrot.slane %v9469, 5
        %v9472 = vsel %vm361, %v9467, %v9471
        %v9474 = vshrl.u32 %v9320, 16
        %v9476 = vrot.slane %v9474, 4
        %v9477 = vshll.u32 %v9320, 16
        %v9479 = vrot.slane %v9477, 5
        %v9480 = vor.u32 %v9476, %v9479
        %v9481 = vrot.slane %v9480, 4
        %v9483 = vshll.u32 %v9321, 16
        %v9485 = vrot.slane %v9483, 5
        %v9486 = vsel %vm361, %v9481, %v9485
        %v9487 = vshrl.u32 %v9321, 16
        %v9489 = vrot.slane %v9487, 4
        %v9490 = vor.u32 %v9489, %v9485
        %v9491 = vrot.slane %v9490, 4
        %v9493 = vshll.u32 %v9322, 16
        %v9495 = vrot.slane %v9493, 5
        %v9496 = vsel %vm361, %v9491, %v9495
        %v9498 = vshrl.u32 %v9323, 16
        %v9500 = vrot.slane %v9498, 4
        %v9501 = vshll.u32 %v9323, 16
        %v9503 = vrot.slane %v9501, 5
        %v9504 = vor.u32 %v9500, %v9503
        %v9505 = vrot.slane %v9504, 4
        %v9507 = vshll.u32 %v9324, 16
        %v9509 = vrot.slane %v9507, 5
        %v9510 = vsel %vm361, %v9505, %v9509
        %v9511 = vshrl.u32 %v9324, 16
        %v9513 = vrot.slane %v9511, 4
        %v9514 = vor.u32 %v9513, %v9509
        %v9515 = vrot.slane %v9514, 4
        %v9517 = vshll.u32 %v9325, 16
        %v9519 = vrot.slane %v9517, 5
        %v9520 = vsel %vm361, %v9515, %v9519
        %v9522 = vshrl.u32 %v9326, 16
        %v9524 = vrot.slane %v9522, 4
        %v9525 = vshll.u32 %v9326, 16
        %v9527 = vrot.slane %v9525, 5
        %v9528 = vor.u32 %v9524, %v9527
        %v9529 = vrot.slane %v9528, 4
        %v9531 = vshll.u32 %v9327, 16
        %v9533 = vrot.slane %v9531, 5
        %v9534 = vsel %vm361, %v9529, %v9533
        %v9535 = vshrl.u32 %v9327, 16
        %v9537 = vrot.slane %v9535, 4
        %v9538 = vor.u32 %v9537, %v9533
        %v9539 = vrot.slane %v9538, 4
        %v9541 = vshll.u32 %v9328, 16
        %v9543 = vrot.slane %v9541, 5
        %v9544 = vsel %vm361, %v9539, %v9543
        %v9546 = vshrl.u32 %v9329, 16
        %v9548 = vrot.slane %v9546, 4
        %v9549 = vshll.u32 %v9329, 16
        %v9551 = vrot.slane %v9549, 5
        %v9552 = vor.u32 %v9548, %v9551
        %v9553 = vrot.slane %v9552, 4
        %v9555 = vshll.u32 %v9330, 16
        %v9557 = vrot.slane %v9555, 5
        %v9558 = vsel %vm361, %v9553, %v9557
        %v9559 = vshrl.u32 %v9330, 16
        %v9561 = vrot.slane %v9559, 4
        %v9562 = vor.u32 %v9561, %v9557
        %v9563 = vrot.slane %v9562, 4
        %v9565 = vshll.u32 %v9331, 16
        %v9567 = vrot.slane %v9565, 5
        %v9568 = vsel %vm361, %v9563, %v9567
        %v9570 = vshrl.u32 %v9332, 16
        %v9572 = vrot.slane %v9570, 4
        %v9573 = vshll.u32 %v9332, 16
        %v9575 = vrot.slane %v9573, 5
        %v9576 = vor.u32 %v9572, %v9575
        %v9577 = vrot.slane %v9576, 4
        %v9579 = vshll.u32 %v9333, 16
        %v9581 = vrot.slane %v9579, 5
        %v9582 = vsel %vm361, %v9577, %v9581
        %v9583 = vshrl.u32 %v9333, 16
        %v9585 = vrot.slane %v9583, 4
        %v9586 = vor.u32 %v9585, %v9581
        %v9587 = vrot.slane %v9586, 4
        %v9589 = vshll.u32 %v9334, 16
        %v9591 = vrot.slane %v9589, 5
        %v9592 = vsel %vm361, %v9587, %v9591
        %v9594 = vshrl.u32 %v9335, 16
        %v9596 = vrot.slane %v9594, 4
        %v9597 = vshll.u32 %v9335, 16
        %v9599 = vrot.slane %v9597, 5
        %v9600 = vor.u32 %v9596, %v9599
        %v9601 = vrot.slane %v9600, 4
        %v9603 = vshll.u32 %v9336, 16
        %v9605 = vrot.slane %v9603, 5
        %v9606 = vsel %vm361, %v9601, %v9605
        %v9607 = vshrl.u32 %v9336, 16
        %v9609 = vrot.slane %v9607, 4
        %v9610 = vor.u32 %v9609, %v9605
        %v9611 = vrot.slane %v9610, 4
        %v9613 = vshll.u32 %v9337, 16
        %v9615 = vrot.slane %v9613, 5
        %v9616 = vsel %vm361, %v9611, %v9615
        %v9618 = vshrl.u32 %v9338, 16
        %v9620 = vrot.slane %v9618, 4
        %v9621 = vshll.u32 %v9338, 16
        %v9623 = vrot.slane %v9621, 5
        %v9624 = vor.u32 %v9620, %v9623
        %v9625 = vrot.slane %v9624, 4
        %v9627 = vshll.u32 %v9339, 16
        %v9629 = vrot.slane %v9627, 5
        %v9630 = vsel %vm361, %v9625, %v9629
        %v9631 = vshrl.u32 %v9339, 16
        %v9633 = vrot.slane %v9631, 4
        %v9634 = vor.u32 %v9633, %v9629
        %v9635 = vrot.slane %v9634, 4
        %v9637 = vshll.u32 %v9340, 16
        %v9639 = vrot.slane %v9637, 5
        %v9640 = vsel %vm361, %v9635, %v9639
        %v9642 = vshrl.u32 %v9341, 16
        %v9644 = vrot.slane %v9642, 4
        %v9645 = vshll.u32 %v9341, 16
        %v9647 = vrot.slane %v9645, 5
        %v9648 = vor.u32 %v9644, %v9647
        %v9649 = vrot.slane %v9648, 4
        %v9651 = vshll.u32 %v9342, 16
        %v9653 = vrot.slane %v9651, 5
        %v9654 = vsel %vm361, %v9649, %v9653
        %v9655 = vshrl.u32 %v9342, 16
        %v9657 = vrot.slane %v9655, 4
        %v9658 = vor.u32 %v9657, %v9653
        %v9659 = vrot.slane %v9658, 4
        %v9661 = vshll.u32 %v9343, 16
        %v9663 = vrot.slane %v9661, 5
        %v9664 = vsel %vm361, %v9659, %v9663
        %v9666 = vshrl.u32 %v9344, 16
        %v9668 = vrot.slane %v9666, 4
        %v9669 = vshll.u32 %v9344, 16
        %v9671 = vrot.slane %v9669, 5
        %v9672 = vor.u32 %v9668, %v9671
        %v9673 = vrot.slane %v9672, 4
        %v9675 = vshll.u32 %v9345, 16
        %v9677 = vrot.slane %v9675, 5
        %v9678 = vsel %vm361, %v9673, %v9677
        %v9679 = vshrl.u32 %v9345, 16
        %v9681 = vrot.slane %v9679, 4
        %v9682 = vor.u32 %v9681, %v9677
        %v9683 = vrot.slane %v9682, 4
        %v9685 = vshll.u32 %v9346, 16
        %v9687 = vrot.slane %v9685, 5
        %v9688 = vsel %vm361, %v9683, %v9687
        %v9690 = vshrl.u32 %v9347, 16
        %v9692 = vrot.slane %v9690, 4
        %v9693 = vshll.u32 %v9347, 16
        %v9695 = vrot.slane %v9693, 5
        %v9696 = vor.u32 %v9692, %v9695
        %v9697 = vrot.slane %v9696, 4
        %v9699 = vshll.u32 %v9348, 16
        %v9701 = vrot.slane %v9699, 5
        %v9702 = vsel %vm361, %v9697, %v9701
        %v9703 = vshrl.u32 %v9348, 16
        %v9705 = vrot.slane %v9703, 4
        %v9706 = vor.u32 %v9705, %v9701
        %v9707 = vrot.slane %v9706, 4
        %v9709 = vshll.u32 %v9349, 16
        %v9711 = vrot.slane %v9709, 5
        %v9712 = vsel %vm361, %v9707, %v9711
        %v9714 = vshrl.u32 %v9350, 16
        %v9716 = vrot.slane %v9714, 4
        %v9717 = vshll.u32 %v9350, 16
        %v9719 = vrot.slane %v9717, 5
        %v9720 = vor.u32 %v9716, %v9719
        %v9721 = vrot.slane %v9720, 4
        %v9723 = vshll.u32 %v9351, 16
        %v9725 = vrot.slane %v9723, 5
        %v9726 = vsel %vm361, %v9721, %v9725
        %v9727 = vshrl.u32 %v9351, 16
        %v9729 = vrot.slane %v9727, 4
        %v9730 = vor.u32 %v9729, %v9725
        %v9731 = vrot.slane %v9730, 4
        %v9733 = vshll.u32 %v9352, 16
        %v9735 = vrot.slane %v9733, 5
        %v9736 = vsel %vm361, %v9731, %v9735
        %v9737 = vld [vmem:[%s5] sm:$0xf]
        %v9738 = vld [vmem:[%s5 + $0x4] sm:$0xf]
        %v9739 = vld [vmem:[%s5 + $0x8] sm:$0xf]
        %v9740 = vld [vmem:[%s5 + $0xc] sm:$0xf]
        %v9741 = vld [vmem:[%s5 + $0x10] sm:$0xf]
        %v9742 = vld [vmem:[%s5 + $0x14] sm:$0xf]
        %v9743 = vld [vmem:[%s5 + $0x18] sm:$0xf]
        %v9744 = vld [vmem:[%s5 + $0x1c] sm:$0xf]
        %v9745 = vld [vmem:[%s5 + $0x20] sm:$0xf]
        %v9746 = vld [vmem:[%s5 + $0x24] sm:$0xf]
        %v9747 = vld [vmem:[%s5 + $0x28] sm:$0xf]
        %v9748 = vld [vmem:[%s5 + $0x2c] sm:$0xf]
        %v9749 = vld [vmem:[%s5 + $0x30] sm:$0xf]
        %v9750 = vld [vmem:[%s5 + $0x34] sm:$0xf]
        %v9751 = vld [vmem:[%s5 + $0x38] sm:$0xf]
        %v9752 = vld [vmem:[%s5 + $0x3c] sm:$0xf]
        %v9753 = vunpack.c.l.b16 %v9366
        %v9754 = vunpack.c.l.b16 %v9376
        %v9755 = vunpack.c.l.b16 %v9390
        %v9756 = vunpack.c.l.b16 %v9400
        %v9757 = vunpack.c.l.b16 %v9414
        %v9758 = vunpack.c.l.b16 %v9424
        %v9759 = vunpack.c.l.b16 %v9438
        %v9760 = vunpack.c.l.b16 %v9448
        %v9761 = vunpack.c.l.b16 %v9462
        %v9762 = vunpack.c.l.b16 %v9472
        %v9763 = vunpack.c.l.b16 %v9486
        %v9764 = vunpack.c.l.b16 %v9496
        %v9765 = vunpack.c.l.b16 %v9510
        %v9766 = vunpack.c.l.b16 %v9520
        %v9767 = vunpack.c.l.b16 %v9534
        %v9768 = vunpack.c.l.b16 %v9544
        %v9769 = vunpack.c.l.b16 %v9558
        %v9770 = vunpack.c.l.b16 %v9568
        %v9771 = vunpack.c.l.b16 %v9582
        %v9772 = vunpack.c.l.b16 %v9592
        %v9773 = vunpack.c.l.b16 %v9606
        %v9774 = vunpack.c.l.b16 %v9616
        %v9775 = vunpack.c.l.b16 %v9630
        %v9776 = vunpack.c.l.b16 %v9640
        %v9777 = vunpack.c.l.b16 %v9654
        %v9778 = vunpack.c.l.b16 %v9664
        %v9779 = vunpack.c.l.b16 %v9678
        %v9780 = vunpack.c.l.b16 %v9688
        %v9781 = vunpack.c.l.b16 %v9702
        %v9782 = vunpack.c.l.b16 %v9712
        %v9783 = vunpack.c.l.b16 %v9726
        %v9784 = vunpack.c.l.b16 %v9736
        %v9785 = vpack.c.b16 %v9754, %v9753
        %v9786 = vpack.c.b16 %v9756, %v9755
        %v9787 = vpack.c.b16 %v9758, %v9757
        %v9788 = vpack.c.b16 %v9760, %v9759
        %v9789 = vpack.c.b16 %v9762, %v9761
        %v9790 = vpack.c.b16 %v9764, %v9763
        %v9791 = vpack.c.b16 %v9766, %v9765
        %v9792 = vpack.c.b16 %v9768, %v9767
        %v9793 = vpack.c.b16 %v9770, %v9769
        %v9794 = vpack.c.b16 %v9772, %v9771
        %v9795 = vpack.c.b16 %v9774, %v9773
        %v9796 = vpack.c.b16 %v9776, %v9775
        %v9797 = vpack.c.b16 %v9778, %v9777
        %v9798 = vpack.c.b16 %v9780, %v9779
        %v9799 = vpack.c.b16 %v9782, %v9781
        %v9800 = vpack.c.b16 %v9784, %v9783
        %v9833 = vunpack.c.l.b16 %v9737
        %v9834 = vunpack.c.l.b16 %v9738
        %v9835 = vunpack.c.l.b16 %v9739
        %v9836 = vunpack.c.l.b16 %v9740
        %v9837 = vunpack.c.l.b16 %v9741
        %v9838 = vunpack.c.l.b16 %v9742
        %v9839 = vunpack.c.l.b16 %v9743
        %v9840 = vunpack.c.l.b16 %v9744
        %v9841 = vunpack.c.l.b16 %v9745
        %v9842 = vunpack.c.l.b16 %v9746
        %v9843 = vunpack.c.l.b16 %v9747
        %v9844 = vunpack.c.l.b16 %v9748
        %v9845 = vunpack.c.l.b16 %v9749
        %v9846 = vunpack.c.l.b16 %v9750
        %v9847 = vunpack.c.l.b16 %v9751
        %v9848 = vunpack.c.l.b16 %v9752
        %v9849 = vpack.c.b16 %v9834, %v9833
        %v9850 = vpack.c.b16 %v9836, %v9835
        %v9851 = vpack.c.b16 %v9838, %v9837
        %v9852 = vpack.c.b16 %v9840, %v9839
        %v9853 = vpack.c.b16 %v9842, %v9841
        %v9854 = vpack.c.b16 %v9844, %v9843
        %v9855 = vpack.c.b16 %v9846, %v9845
        %v9856 = vpack.c.b16 %v9848, %v9847
        %9865 = vmatpush.bf16.msra.mxu0 %v9856
        %9866 = vmatpush.bf16.msra.mxu0 %v9855
        %9867 = vmatpush.bf16.msra.mxu0 %v9854
        %9868 = vmatpush.bf16.msra.mxu0 %v9853
        %9869 = vmatpush.bf16.msra.mxu0 %v9852
        %9870 = vmatpush.bf16.msra.mxu0 %v9851
        %9871 = vmatpush.bf16.msra.mxu0 %v9850
        %9872 = vmatpush.bf16.msra.mxu0 %v9849
        %9873 = vmatmul.bf16.gmra.mxu0 %v9785
        %v9874 = vpop.f32.mrf.mxu0
        %v9875 = vadd.f32 0.0, %v9874
        %v9876 = vpop.f32.mrf.mxu0
        %v9877 = vadd.f32 0.0, %v9876
        %9878 = vmatmul.bf16.gmra.mxu0 %v9786
        %v9879 = vpop.f32.mrf.mxu0
        %v9880 = vadd.f32 0.0, %v9879
        %v9881 = vpop.f32.mrf.mxu0
        %v9882 = vadd.f32 0.0, %v9881
        %9883 = vmatmul.bf16.gmra.mxu0 %v9787
        %v9884 = vpop.f32.mrf.mxu0
        %v9885 = vadd.f32 0.0, %v9884
        %v9886 = vpop.f32.mrf.mxu0
        %v9887 = vadd.f32 0.0, %v9886
        %9888 = vmatmul.bf16.gmra.mxu0 %v9788
        %v9889 = vpop.f32.mrf.mxu0
        %v9890 = vadd.f32 0.0, %v9889
        %v9891 = vpop.f32.mrf.mxu0
        %v9892 = vadd.f32 0.0, %v9891
        %9893 = vmatmul.bf16.gmra.mxu0 %v9789
        %v9894 = vpop.f32.mrf.mxu0
        %v9895 = vadd.f32 0.0, %v9894
        %v9896 = vpop.f32.mrf.mxu0
        %v9897 = vadd.f32 0.0, %v9896
        %9898 = vmatmul.bf16.gmra.mxu0 %v9790
        %v9899 = vpop.f32.mrf.mxu0
        %v9900 = vadd.f32 0.0, %v9899
        %v9901 = vpop.f32.mrf.mxu0
        %v9902 = vadd.f32 0.0, %v9901
        %9903 = vmatmul.bf16.gmra.mxu0 %v9791
        %v9904 = vpop.f32.mrf.mxu0
        %v9905 = vadd.f32 0.0, %v9904
        %v9906 = vpop.f32.mrf.mxu0
        %v9907 = vadd.f32 0.0, %v9906
        %9908 = vmatmul.bf16.gmra.mxu0 %v9792
        %v9909 = vpop.f32.mrf.mxu0
        %v9910 = vadd.f32 0.0, %v9909
        %v9911 = vpop.f32.mrf.mxu0
        %v9912 = vadd.f32 0.0, %v9911
        %9913 = vmatmul.bf16.gmra.mxu0 %v9793
        %v9914 = vpop.f32.mrf.mxu0
        %v9915 = vadd.f32 0.0, %v9914
        %v9916 = vpop.f32.mrf.mxu0
        %v9917 = vadd.f32 0.0, %v9916
        %9918 = vmatmul.bf16.gmra.mxu0 %v9794
        %v9919 = vpop.f32.mrf.mxu0
        %v9920 = vadd.f32 0.0, %v9919
        %v9921 = vpop.f32.mrf.mxu0
        %v9922 = vadd.f32 0.0, %v9921
        %9923 = vmatmul.bf16.gmra.mxu0 %v9795
        %v9924 = vpop.f32.mrf.mxu0
        %v9925 = vadd.f32 0.0, %v9924
        %v9926 = vpop.f32.mrf.mxu0
        %v9927 = vadd.f32 0.0, %v9926
        %9928 = vmatmul.bf16.gmra.mxu0 %v9796
        %v9929 = vpop.f32.mrf.mxu0
        %v9930 = vadd.f32 0.0, %v9929
        %v9931 = vpop.f32.mrf.mxu0
        %v9932 = vadd.f32 0.0, %v9931
        %9933 = vmatmul.bf16.gmra.mxu0 %v9797
        %v9934 = vpop.f32.mrf.mxu0
        %v9935 = vadd.f32 0.0, %v9934
        %v9936 = vpop.f32.mrf.mxu0
        %v9937 = vadd.f32 0.0, %v9936
        %9938 = vmatmul.bf16.gmra.mxu0 %v9798
        %v9939 = vpop.f32.mrf.mxu0
        %v9940 = vadd.f32 0.0, %v9939
        %v9941 = vpop.f32.mrf.mxu0
        %v9942 = vadd.f32 0.0, %v9941
        %9943 = vmatmul.bf16.gmra.mxu0 %v9799
        %v9944 = vpop.f32.mrf.mxu0
        %v9945 = vadd.f32 0.0, %v9944
        %v9946 = vpop.f32.mrf.mxu0
        %v9947 = vadd.f32 0.0, %v9946
        %9948 = vmatmul.bf16.gmra.mxu0 %v9800
        %v9949 = vpop.f32.mrf.mxu0
        %v9950 = vadd.f32 0.0, %v9949
        %v9951 = vpop.f32.mrf.mxu0
        %v9952 = vadd.f32 0.0, %v9951
        %9953 = vdwg.mxu0
        %v9954 = vadd.f32 %v9273, %v9875
        %v9955 = vadd.f32 %v9274, %v9877
        %v9956 = vadd.f32 %v9275, %v9880
        %v9957 = vadd.f32 %v9276, %v9882
        %v9958 = vadd.f32 %v9277, %v9885
        %v9959 = vadd.f32 %v9278, %v9887
        %v9960 = vadd.f32 %v9279, %v9890
        %v9961 = vadd.f32 %v9280, %v9892
        %v9962 = vadd.f32 %v9281, %v9895
        %v9963 = vadd.f32 %v9282, %v9897
        %v9964 = vadd.f32 %v9283, %v9900
        %v9965 = vadd.f32 %v9284, %v9902
        %v9966 = vadd.f32 %v9285, %v9905
        %v9967 = vadd.f32 %v9286, %v9907
        %v9968 = vadd.f32 %v9287, %v9910
        %v9969 = vadd.f32 %v9288, %v9912
        %v9970 = vadd.f32 %v9289, %v9915
        %v9971 = vadd.f32 %v9290, %v9917
        %v9972 = vadd.f32 %v9291, %v9920
        %v9973 = vadd.f32 %v9292, %v9922
        %v9974 = vadd.f32 %v9293, %v9925
        %v9975 = vadd.f32 %v9294, %v9927
        %v9976 = vadd.f32 %v9295, %v9930
        %v9977 = vadd.f32 %v9296, %v9932
        %v9978 = vadd.f32 %v9297, %v9935
        %v9979 = vadd.f32 %v9298, %v9937
        %v9980 = vadd.f32 %v9299, %v9940
        %v9981 = vadd.f32 %v9300, %v9942
        %v9982 = vadd.f32 %v9301, %v9945
        %v9983 = vadd.f32 %v9302, %v9947
        %v9984 = vadd.f32 %v9303, %v9950
        %v9985 = vadd.f32 %v9304, %v9952
        %v9986 = vld [vmem:[%s6] sm:$0x1]
        %v9988 = vperm.slane %v9986, 0
        %v9990 = vadd.f32 %v9954, %v9988
        %v9991 = vadd.f32 %v9955, %v9988
        %v9992 = vadd.f32 %v9956, %v9988
        %v9993 = vadd.f32 %v9957, %v9988
        %v9994 = vadd.f32 %v9958, %v9988
        %v9995 = vadd.f32 %v9959, %v9988
        %v9996 = vadd.f32 %v9960, %v9988
        %v9997 = vadd.f32 %v9961, %v9988
        %v9998 = vadd.f32 %v9962, %v9988
        %v9999 = vadd.f32 %v9963, %v9988
        %v10000 = vadd.f32 %v9964, %v9988
        %v10001 = vadd.f32 %v9965, %v9988
        %v10002 = vadd.f32 %v9966, %v9988
        %v10003 = vadd.f32 %v9967, %v9988
        %v10004 = vadd.f32 %v9968, %v9988
        %v10005 = vadd.f32 %v9969, %v9988
        %v10006 = vadd.f32 %v9970, %v9988
        %v10007 = vadd.f32 %v9971, %v9988
        %v10008 = vadd.f32 %v9972, %v9988
        %v10009 = vadd.f32 %v9973, %v9988
        %v10010 = vadd.f32 %v9974, %v9988
        %v10011 = vadd.f32 %v9975, %v9988
        %v10012 = vadd.f32 %v9976, %v9988
        %v10013 = vadd.f32 %v9977, %v9988
        %v10014 = vadd.f32 %v9978, %v9988
        %v10015 = vadd.f32 %v9979, %v9988
        %v10016 = vadd.f32 %v9980, %v9988
        %v10017 = vadd.f32 %v9981, %v9988
        %v10018 = vadd.f32 %v9982, %v9988
        %v10019 = vadd.f32 %v9983, %v9988
        %v10020 = vadd.f32 %v9984, %v9988
        %v10021 = vadd.f32 %v9985, %v9988
        %vm10022 = vcmp.gt.f32.partialorder %v9990, 0.0
        %vm10023 = vcmp.gt.f32.partialorder %v9991, 0.0
        %vm10024 = vcmp.gt.f32.partialorder %v9992, 0.0
        %vm10025 = vcmp.gt.f32.partialorder %v9993, 0.0
        %vm10026 = vcmp.gt.f32.partialorder %v9994, 0.0
        %vm10027 = vcmp.gt.f32.partialorder %v9995, 0.0
        %vm10028 = vcmp.gt.f32.partialorder %v9996, 0.0
        %vm10029 = vcmp.gt.f32.partialorder %v9997, 0.0
        %vm10030 = vcmp.gt.f32.partialorder %v9998, 0.0
        %vm10031 = vcmp.gt.f32.partialorder %v9999, 0.0
        %vm10032 = vcmp.gt.f32.partialorder %v10000, 0.0
        %vm10033 = vcmp.gt.f32.partialorder %v10001, 0.0
        %vm10034 = vcmp.gt.f32.partialorder %v10002, 0.0
        %vm10035 = vcmp.gt.f32.partialorder %v10003, 0.0
        %vm10036 = vcmp.gt.f32.partialorder %v10004, 0.0
        %vm10037 = vcmp.gt.f32.partialorder %v10005, 0.0
        %vm10038 = vcmp.gt.f32.partialorder %v10006, 0.0
        %vm10039 = vcmp.gt.f32.partialorder %v10007, 0.0
        %vm10040 = vcmp.gt.f32.partialorder %v10008, 0.0
        %vm10041 = vcmp.gt.f32.partialorder %v10009, 0.0
        %vm10042 = vcmp.gt.f32.partialorder %v10010, 0.0
        %vm10043 = vcmp.gt.f32.partialorder %v10011, 0.0
        %vm10044 = vcmp.gt.f32.partialorder %v10012, 0.0
        %vm10045 = vcmp.gt.f32.partialorder %v10013, 0.0
        %vm10046 = vcmp.gt.f32.partialorder %v10014, 0.0
        %vm10047 = vcmp.gt.f32.partialorder %v10015, 0.0
        %vm10048 = vcmp.gt.f32.partialorder %v10016, 0.0
        %vm10049 = vcmp.gt.f32.partialorder %v10017, 0.0
        %vm10050 = vcmp.gt.f32.partialorder %v10018, 0.0
        %vm10051 = vcmp.gt.f32.partialorder %v10019, 0.0
        %vm10052 = vcmp.gt.f32.partialorder %v10020, 0.0
        %vm10053 = vcmp.gt.f32.partialorder %v10021, 0.0
        %v10054 = vmul.f32 %v9990, 0.1
        %v10055 = vmul.f32 %v9991, 0.1
        %v10056 = vmul.f32 %v9992, 0.1
        %v10057 = vmul.f32 %v9993, 0.1
        %v10058 = vmul.f32 %v9994, 0.1
        %v10059 = vmul.f32 %v9995, 0.1
        %v10060 = vmul.f32 %v9996, 0.1
        %v10061 = vmul.f32 %v9997, 0.1
        %v10062 = vmul.f32 %v9998, 0.1
        %v10063 = vmul.f32 %v9999, 0.1
        %v10064 = vmul.f32 %v10000, 0.1
        %v10065 = vmul.f32 %v10001, 0.1
        %v10066 = vmul.f32 %v10002, 0.1
        %v10067 = vmul.f32 %v10003, 0.1
        %v10068 = vmul.f32 %v10004, 0.1
        %v10069 = vmul.f32 %v10005, 0.1
        %v10070 = vmul.f32 %v10006, 0.1
        %v10071 = vmul.f32 %v10007, 0.1
        %v10072 = vmul.f32 %v10008, 0.1
        %v10073 = vmul.f32 %v10009, 0.1
        %v10074 = vmul.f32 %v10010, 0.1
        %v10075 = vmul.f32 %v10011, 0.1
        %v10076 = vmul.f32 %v10012, 0.1
        %v10077 = vmul.f32 %v10013, 0.1
        %v10078 = vmul.f32 %v10014, 0.1
        %v10079 = vmul.f32 %v10015, 0.1
        %v10080 = vmul.f32 %v10016, 0.1
        %v10081 = vmul.f32 %v10017, 0.1
        %v10082 = vmul.f32 %v10018, 0.1
        %v10083 = vmul.f32 %v10019, 0.1
        %v10084 = vmul.f32 %v10020, 0.1
        %v10085 = vmul.f32 %v10021, 0.1
        %v10086 = vsel %vm10022, %v9990, %v10054
        %v10087 = vsel %vm10023, %v9991, %v10055
        %v10088 = vsel %vm10024, %v9992, %v10056
        %v10089 = vsel %vm10025, %v9993, %v10057
        %v10090 = vsel %vm10026, %v9994, %v10058
        %v10091 = vsel %vm10027, %v9995, %v10059
        %v10092 = vsel %vm10028, %v9996, %v10060
        %v10093 = vsel %vm10029, %v9997, %v10061
        %v10094 = vsel %vm10030, %v9998, %v10062
        %v10095 = vsel %vm10031, %v9999, %v10063
        %v10096 = vsel %vm10032, %v10000, %v10064
        %v10097 = vsel %vm10033, %v10001, %v10065
        %v10098 = vsel %vm10034, %v10002, %v10066
        %v10099 = vsel %vm10035, %v10003, %v10067
        %v10100 = vsel %vm10036, %v10004, %v10068
        %v10101 = vsel %vm10037, %v10005, %v10069
        %v10102 = vsel %vm10038, %v10006, %v10070
        %v10103 = vsel %vm10039, %v10007, %v10071
        %v10104 = vsel %vm10040, %v10008, %v10072
        %v10105 = vsel %vm10041, %v10009, %v10073
        %v10106 = vsel %vm10042, %v10010, %v10074
        %v10107 = vsel %vm10043, %v10011, %v10075
        %v10108 = vsel %vm10044, %v10012, %v10076
        %v10109 = vsel %vm10045, %v10013, %v10077
        %v10110 = vsel %vm10046, %v10014, %v10078
        %v10111 = vsel %vm10047, %v10015, %v10079
        %v10112 = vsel %vm10048, %v10016, %v10080
        %v10113 = vsel %vm10049, %v10017, %v10081
        %v10114 = vsel %vm10050, %v10018, %v10082
        %v10115 = vsel %vm10051, %v10019, %v10083
        %v10116 = vsel %vm10052, %v10020, %v10084
        %v10117 = vsel %vm10053, %v10021, %v10085
        %10118 = vst [vmem:[%s288] sm:$0xff] %v10086
        %10119 = vst [vmem:[%s288 + $0x8] sm:$0xff] %v10087
        %10120 = vst [vmem:[%s288 + $0x10] sm:$0xff] %v10088
        %10121 = vst [vmem:[%s288 + $0x18] sm:$0xff] %v10089
        %10122 = vst [vmem:[%s288 + $0x20] sm:$0xff] %v10090
        %10123 = vst [vmem:[%s288 + $0x28] sm:$0xff] %v10091
        %10124 = vst [vmem:[%s288 + $0x30] sm:$0xff] %v10092
        %10125 = vst [vmem:[%s288 + $0x38] sm:$0xff] %v10093
        %10126 = vst [vmem:[%s288 + $0x40] sm:$0xff] %v10094
        %10127 = vst [vmem:[%s288 + $0x48] sm:$0xff] %v10095
        %10128 = vst [vmem:[%s288 + $0x50] sm:$0xff] %v10096
        %10129 = vst [vmem:[%s288 + $0x58] sm:$0xff] %v10097
        %10130 = vst [vmem:[%s288 + $0x60] sm:$0xff] %v10098
        %10131 = vst [vmem:[%s288 + $0x68] sm:$0xff] %v10099
        %10132 = vst [vmem:[%s288 + $0x70] sm:$0xff] %v10100
        %10133 = vst [vmem:[%s288 + $0x78] sm:$0xff] %v10101
        %10134 = vst [vmem:[%s288 + $0x80] sm:$0xff] %v10102
        %10135 = vst [vmem:[%s288 + $0x88] sm:$0xff] %v10103
        %10136 = vst [vmem:[%s288 + $0x90] sm:$0xff] %v10104
        %10137 = vst [vmem:[%s288 + $0x98] sm:$0xff] %v10105
        %10138 = vst [vmem:[%s288 + $0xa0] sm:$0xff] %v10106
        %10139 = vst [vmem:[%s288 + $0xa8] sm:$0xff] %v10107
        %10140 = vst [vmem:[%s288 + $0xb0] sm:$0xff] %v10108
        %10141 = vst [vmem:[%s288 + $0xb8] sm:$0xff] %v10109
        %10142 = vst [vmem:[%s288 + $0xc0] sm:$0xff] %v10110
        %10143 = vst [vmem:[%s288 + $0xc8] sm:$0xff] %v10111
        %10144 = vst [vmem:[%s288 + $0xd0] sm:$0xff] %v10112
        %10145 = vst [vmem:[%s288 + $0xd8] sm:$0xff] %v10113
        %10146 = vst [vmem:[%s288 + $0xe0] sm:$0xff] %v10114
        %10147 = vst [vmem:[%s288 + $0xe8] sm:$0xff] %v10115
        %10148 = vst [vmem:[%s288 + $0xf0] sm:$0xff] %v10116
        %10149 = vst [vmem:[%s288 + $0xf8] sm:$0xff] %v10117
        %s10150 = sand.u32 %s182, 1
        %s10151 = scalar_lea.sflag [#allocation5], %s10150
        %s10152 = sand.u32 %s182, 1
        %s10153 = smul.addr %s10152, 256
        %s10154 = scalar_lea.vmem [#allocation6], %s10153
        // Predicated region
        $region53: #{tpu_custom_call.1} parent=47 // pred_check
          %p10155 = pneg %p192
        $region54: #{tpu_custom_call.1} parent=47 // pred_check_branch
          %10157 = sbr.rel (%p10155) target = $region56
        $region55: #{tpu_custom_call.1} parent=47 // pred_region
          %10159 = vsyncadd %s10151, 0
          %s10160 = smul.addr %s22, 32
          %s10161 = smul.addr %s10160, 8
          %s10162 = scalar_lea.hbm %s7, %s10161
          %s10163 = sshll.u32 %s10154, 4
          %s10164 = int_to_ptr.vmem [resolvable:$true] %s10163
          %s10165 = sshll.u32 %s10162, 4
          %s10166 = int_to_ptr.hbm [resolvable:$true] %s10165
          %10171 = dma.vmem_to_hbm [thread:$0]  %s10164, 4096, %s10166, %s10151, 128, 128, 8
        $region56: #{tpu_custom_call.1} parent=47 // pred_fallthru
          _
      $region48: #{tpu_custom_call.1} parent=5 // pred_fallthru
        _
      %p10172 = scmp.le.s32.totalorder 2, %s17
      // Predicated region
      $region57: #{tpu_custom_call.1} parent=5 // pred_check
        %p10173 = pneg %p10172
      $region58: #{tpu_custom_call.1} parent=5 // pred_check_branch
        %10175 = sbr.rel (%p10173) target = $region60
      $region59: #{tpu_custom_call.1} parent=5 // pred_region
        %s10176 = ssub.s32 %s17, 2
        // Predicated region
        $region61: #{tpu_custom_call.1} parent=59 // pred_check
          %p10177 = pneg %p198
        $region62: #{tpu_custom_call.1} parent=59 // pred_check_branch
          %10179 = sbr.rel (%p10177) target = $region64
        $region63: #{tpu_custom_call.1} parent=59 // pred_region
          %s10180 = sand.u32 %s183, 1
          %s10181 = scalar_lea.sflag [#allocation5], %s10180
          %s10182 = sand.u32 %s183, 1
          %s10183 = smul.addr %s10182, 256
          %s10184 = scalar_lea.vmem [#allocation6], %s10183
          %10186 = dma.done %s10181, 4096
        $region64: #{tpu_custom_call.1} parent=59 // pred_fallthru
          _
      $region60: #{tpu_custom_call.1} parent=5 // pred_fallthru
        _
    $region6: #{tpu_custom_call.1} parent=1 // loop_footer
      %s21 = sadd.s32 1, %s17
    $region7: #{tpu_custom_call.1} parent=1 // loop_footer_branch
      %16 = sbr.rel target = $region3
    $region8: #{tpu_custom_call.1} parent=1 // loop_exit
      _
    %10187 = vsyncpa [#allocation4], 1
    %s10188 = scalar_lea.sflag [#allocation4], 1
    %10189 = vsyncpa %s10188, 1
    %10190 = vsyncpa [#allocation5], 1
    %s10191 = scalar_lea.sflag [#allocation5], 1
    %10192 = vsyncpa %s10191, 1

</llo_original>
